<compile_context>
chip_gen: v7x
topology: tpu7x:2x2x1
jax: 0.10.0
libtpu: 0.0.40
codegen_flags: <defaults>
</compile_context>

<pallas_src>
import jax
import jax.numpy as jnp
from jax.experimental import pallas as pl
from jax.experimental.pallas import tpu as pltpu


# ----------------------------------------------------------------------------
# One Conv1d / ConvTranspose1d layer on sublane-stacked (batched) activations:
#     out = bias + W_full @ vstack_k( h @ S_k )
# ----------------------------------------------------------------------------
def _layer(h, w_ref, b_ref, s_ref, *, relu):
    """h:     (Bt*Cin, Lin)  f32 value
       w_ref: (Bt*Cout, K*Bt*Cin) VMEM ref  (tap-folded, sample-block-diagonal)
       b_ref: (Bt*Cout, 1)   VMEM ref
       s_ref: (K, Lin, Lout) VMEM ref       (precomputed 0/1 tap selections)
       returns (Bt*Cout, Lout) f32."""
    K = s_ref.shape[0]
    # K gather matmuls (exact 0/1 RHS), sublane-stacked into one im2col slab.
    g = jnp.concatenate(
        [jnp.dot(h, s_ref[k], preferred_element_type=jnp.float32)
         for k in range(K)],
        axis=0)                                               # (K*Bt*Cin, Lout)
    out = jnp.dot(w_ref[...], g, preferred_element_type=jnp.float32) + b_ref[...]
    if relu:
        out = jnp.maximum(out, 0.0)
    return out


# ----------------------------------------------------------------------------
# Fused autoencoder kernel: Bt batch elements per grid step.
# ----------------------------------------------------------------------------
def _autoencoder_kernel(x_ref,
                        e1w, e1b, e1s, e2w, e2b, e2s, e3w, e3b, e3s,
                        d1w, d1b, d1s, d2w, d2b, d2s, d3w, d3b, d3s,
                        o_ref):
    h = x_ref[...].astype(jnp.float32)                        # (Bt, L)   (Cin=1)
    # ---------------- encoder ----------------
    h = _layer(h, e1w, e1b, e1s, relu=True)                   # (Bt*16, L/2)
    h = _layer(h, e2w, e2b, e2s, relu=True)                   # (Bt*16, L/4)
    h = _layer(h, e3w, e3b, e3s, relu=False)                  # (Bt,    L/4)  latent
    # Flatten + unsqueeze(dim=1) are identities on the (Bt, L/4) slab.
    # ---------------- decoder ----------------
    h = _layer(h, d1w, d1b, d1s, relu=True)                   # (Bt*16, L/2)
    h = _layer(h, d2w, d2b, d2s, relu=True)                   # (Bt*16, L)
    h = _layer(h, d3w, d3b, d3s, relu=False)                  # (Bt,    L)
    o_ref[...] = h.astype(o_ref.dtype)


# ----------------------------------------------------------------------------
# Wrapper: single pallas_call, grid over batch chunks, precomputed VMEM params.
# ----------------------------------------------------------------------------
def autoencoder_forward(x, params, *, block_batch=8):
    """x: (B, L) or (B, 1, L) float32 -> (B, 1, L) float32."""
    if x.ndim == 3:
        x = x[:, 0, :]
    B, L = x.shape
    assert L % 4 == 0, "L must be divisible by 4 (two stride-2 stages)"

    # Largest divisor of B that is <= block_batch.
    Bt = 1
    for cand in range(min(B, block_batch), 0, -1):
        if B % cand == 0:
            Bt = cand
            break

    L2, L4 = L // 2, L // 4
    eye = jnp.eye(Bt, dtype=jnp.float32)

    def conv_taps(w):     # PyTorch Conv1d weight (Cout, Cin, K) -> per-tap (Cout, Cin)
        return [w[:, :, k].astype(jnp.float32) for k in range(w.shape[2])]

    def convt_taps(w):    # PyTorch ConvTranspose1d weight (Cin, Cout, K) -> (Cout, Cin)
        return [w[:, :, k].T.astype(jnp.float32) for k in range(w.shape[2])]

    def fold(taps):       # -> (Bt*Cout, K*Bt*Cin) block-diag over samples, concat over taps
        return jnp.concatenate([jnp.kron(eye, wk) for wk in taps], axis=1)

    def bias(b):          # -> (Bt*Cout, 1)
        return jnp.tile(b.reshape(-1, 1).astype(jnp.float32), (Bt, 1))

    def conv_sel(K, stride, pad, l_in, l_out):
        i = jnp.arange(l_in)[:, None]
        t = jnp.arange(l_out)[None, :]
        return jnp.stack([(i == stride * t + k - pad).astype(jnp.float32)
                          for k in range(K)])                 # (K, Lin, Lout)

    def convt_sel(K, stride, pad, l_in, l_out):
        i = jnp.arange(l_in)[:, None]
        t = jnp.arange(l_out)[None, :]
        return jnp.stack([(stride * i - pad + k == t).astype(jnp.float32)
                          for k in range(K)])                 # (K, Lin, Lout)

    args = [
        x.astype(jnp.float32),
        # encoder
        fold(conv_taps(params["enc_w1"])),  bias(params["enc_b1"]), conv_sel(5, 2, 2, L,  L2),
        fold(conv_taps(params["enc_w2"])),  bias(params["enc_b2"]), conv_sel(5, 2, 2, L2, L4),
        fold(conv_taps(params["enc_w3"])),  bias(params["enc_b3"]), conv_sel(3, 1, 1, L4, L4),
        # decoder
        fold(convt_taps(params["dec_w1"])), bias(params["dec_b1"]), convt_sel(5, 2, 2, L4, L2),
        fold(convt_taps(params["dec_w2"])), bias(params["dec_b2"]), convt_sel(5, 2, 2, L2, L),
        fold(conv_taps(params["dec_w3"])),  bias(params["dec_b3"]), conv_sel(3, 1, 1, L,  L),
    ]

    # Parameters: full-array blocks, constant index_maps -> single DMA, VMEM-resident.
    param_specs = [
        pl.BlockSpec(a.shape, (lambda i, n=a.ndim: (0,) * n)) for a in args[1:]
    ]
    in_specs = [pl.BlockSpec((Bt, L), lambda i: (i, 0))] + param_specs

    out = pl.pallas_call(
        _autoencoder_kernel,
        out_shape=jax.ShapeDtypeStruct((B, L), jnp.float32),
        grid=(B // Bt,),
        in_specs=in_specs,
        out_specs=pl.BlockSpec((Bt, L), lambda i: (i, 0)),
        compiler_params=pltpu.CompilerParams(
            dimension_semantics=("parallel",)),
    )(*args)
    return out.reshape(B, 1, L)


# ----------------------------------------------------------------------------
# Parameters (nlayers=3, nchannels=16) and a pure-JAX reference for validation.
# ----------------------------------------------------------------------------
def init_params(key, nchannels=16):
    ks = jax.random.split(key, 12)
    s = 0.1
    return {
        "enc_w1": s * jax.random.normal(ks[0], (nchannels, 1, 5), jnp.float32),
        "enc_b1": s * jax.random.normal(ks[1], (nchannels,), jnp.float32),
        "enc_w2": s * jax.random.normal(ks[2], (nchannels, nchannels, 5), jnp.float32),
        "enc_b2": s * jax.random.normal(ks[3], (nchannels,), jnp.float32),
        "enc_w3": s * jax.random.normal(ks[4], (1, nchannels, 3), jnp.float32),
        "enc_b3": s * jax.random.normal(ks[5], (1,), jnp.float32),
        "dec_w1": s * jax.random.normal(ks[6], (1, nchannels, 5), jnp.float32),
        "dec_b1": s * jax.random.normal(ks[7], (nchannels,), jnp.float32),
        "dec_w2": s * jax.random.normal(ks[8], (nchannels, nchannels, 5), jnp.float32),
        "dec_b2": s * jax.random.normal(ks[9], (nchannels,), jnp.float32),
        "dec_w3": s * jax.random.normal(ks[10], (1, nchannels, 3), jnp.float32),
        "dec_b3": s * jax.random.normal(ks[11], (1,), jnp.float32),
    }


def _ref_forward(x, p):
    """Pure-JAX (lax.conv) reference with PyTorch semantics."""
    if x.ndim == 2:
        x = x[:, None, :]
    B = x.shape[0]

    def conv(x, w, b, stride, pad):
        y = jax.lax.conv_general_dilated(
            x, w, window_strides=(stride,), padding=[(pad, pad)],
            dimension_numbers=("NCH", "OIH", "NCH"),
            precision=jax.lax.Precision.HIGHEST)
        return y + b[None, :, None]

    def convt(x, w, b, stride, pad, op):
        K = w.shape[2]
        w_eq = jnp.transpose(jnp.flip(w, axis=2), (1, 0, 2))
        y = jax.lax.conv_general_dilated(
            x, w_eq, window_strides=(1,),
            padding=[(K - 1 - pad, K - 1 - pad + op)],
            lhs_dilation=(stride,),
            dimension_numbers=("NCH", "OIH", "NCH"),
            precision=jax.lax.Precision.HIGHEST)
        return y + b[None, :, None]

    relu = jax.nn.relu
    h = relu(conv(x, p["enc_w1"], p["enc_b1"], 2, 2))
    h = relu(conv(h, p["enc_w2"], p["enc_b2"], 2, 2))
    h = conv(h, p["enc_w3"], p["enc_b3"], 1, 1)
    h = h.reshape(B, -1)[:, None, :]
    d = relu(convt(h, p["dec_w1"], p["dec_b1"], 2, 2, 1))
    d = relu(convt(d, p["dec_w2"], p["dec_b2"], 2, 2, 1))
    d = conv(d, p["dec_w3"], p["dec_b3"], 1, 1)
    return d


if __name__ == "__main__":
    key = jax.random.PRNGKey(0)
    kx, kp = jax.random.split(key)
    B, L = 16, 128                      # Bt=8 -> grid=(2,), lane-dense (8,128) blocks
    x = jax.random.normal(kx, (B, 1, L), jnp.float32)
    params = init_params(kp, nchannels=16)

    fwd = jax.jit(autoencoder_forward)
    out = jax.block_until_ready(fwd(x, params))

    assert out.shape == (B, 1, L), out.shape
    assert bool(jnp.all(jnp.isfinite(out)))

    ref = _ref_forward(x, params)
    err = float(jnp.max(jnp.abs(out - ref)))
    assert err < 1e-2, f"max|kernel - reference| = {err}"

    print("KERNEL_OK")
</pallas_src>

<mosaic_0001>
module attributes {stable_mosaic.version = 11 : i64} {
  func.func @_autoencoder_kernel(%arg0: i32, %arg1: memref<8x128xf32, #tpu.memory_space<vmem>>, %arg2: memref<128x40xf32, #tpu.memory_space<vmem>>, %arg3: memref<128x1xf32, #tpu.memory_space<vmem>>, %arg4: memref<5x128x64xf32, #tpu.memory_space<vmem>>, %arg5: memref<128x640xf32, #tpu.memory_space<vmem>>, %arg6: memref<128x1xf32, #tpu.memory_space<vmem>>, %arg7: memref<5x64x32xf32, #tpu.memory_space<vmem>>, %arg8: memref<8x384xf32, #tpu.memory_space<vmem>>, %arg9: memref<8x1xf32, #tpu.memory_space<vmem>>, %arg10: memref<3x32x32xf32, #tpu.memory_space<vmem>>, %arg11: memref<128x40xf32, #tpu.memory_space<vmem>>, %arg12: memref<128x1xf32, #tpu.memory_space<vmem>>, %arg13: memref<5x32x64xf32, #tpu.memory_space<vmem>>, %arg14: memref<128x640xf32, #tpu.memory_space<vmem>>, %arg15: memref<128x1xf32, #tpu.memory_space<vmem>>, %arg16: memref<5x64x128xf32, #tpu.memory_space<vmem>>, %arg17: memref<8x384xf32, #tpu.memory_space<vmem>>, %arg18: memref<8x1xf32, #tpu.memory_space<vmem>>, %arg19: memref<3x128x128xf32, #tpu.memory_space<vmem>>, %arg20: memref<8x128xf32, #tpu.memory_space<vmem>>) attributes {dimension_semantics = [#tpu.dimension_semantics<parallel>], iteration_bounds = array<i64: 2>, scalar_prefetch = 0 : i64, scratch_operands = 0 : i64, tpu.core_type = #tpu.core_type<tc>, window_params = [{transform_indices = @transform_0, window_bounds = array<i64: 8, 128>}, {pipeline_mode = #tpu.pipeline_mode<synchronous>, transform_indices = @transform_1, window_bounds = array<i64: 128, 40>}, {pipeline_mode = #tpu.pipeline_mode<synchronous>, transform_indices = @transform_2, window_bounds = array<i64: 128, 1>}, {pipeline_mode = #tpu.pipeline_mode<synchronous>, transform_indices = @transform_3, window_bounds = array<i64: 5, 128, 64>}, {pipeline_mode = #tpu.pipeline_mode<synchronous>, transform_indices = @transform_4, window_bounds = array<i64: 128, 640>}, {pipeline_mode = #tpu.pipeline_mode<synchronous>, transform_indices = @transform_5, window_bounds = array<i64: 128, 1>}, {pipeline_mode = #tpu.pipeline_mode<synchronous>, transform_indices = @transform_6, window_bounds = array<i64: 5, 64, 32>}, {pipeline_mode = #tpu.pipeline_mode<synchronous>, transform_indices = @transform_7, window_bounds = array<i64: 8, 384>}, {pipeline_mode = #tpu.pipeline_mode<synchronous>, transform_indices = @transform_8, window_bounds = array<i64: 8, 1>}, {pipeline_mode = #tpu.pipeline_mode<synchronous>, transform_indices = @transform_9, window_bounds = array<i64: 3, 32, 32>}, {pipeline_mode = #tpu.pipeline_mode<synchronous>, transform_indices = @transform_10, window_bounds = array<i64: 128, 40>}, {pipeline_mode = #tpu.pipeline_mode<synchronous>, transform_indices = @transform_11, window_bounds = array<i64: 128, 1>}, {pipeline_mode = #tpu.pipeline_mode<synchronous>, transform_indices = @transform_12, window_bounds = array<i64: 5, 32, 64>}, {pipeline_mode = #tpu.pipeline_mode<synchronous>, transform_indices = @transform_13, window_bounds = array<i64: 128, 640>}, {pipeline_mode = #tpu.pipeline_mode<synchronous>, transform_indices = @transform_14, window_bounds = array<i64: 128, 1>}, {pipeline_mode = #tpu.pipeline_mode<synchronous>, transform_indices = @transform_15, window_bounds = array<i64: 5, 64, 128>}, {pipeline_mode = #tpu.pipeline_mode<synchronous>, transform_indices = @transform_16, window_bounds = array<i64: 8, 384>}, {pipeline_mode = #tpu.pipeline_mode<synchronous>, transform_indices = @transform_17, window_bounds = array<i64: 8, 1>}, {pipeline_mode = #tpu.pipeline_mode<synchronous>, transform_indices = @transform_18, window_bounds = array<i64: 3, 128, 128>}, {transform_indices = @transform_19, window_bounds = array<i64: 8, 128>}]} {
    %c0 = arith.constant 0 : index
    %c0_0 = arith.constant 0 : index
    %0 = vector.load %arg1[%c0, %c0_0] : memref<8x128xf32, #tpu.memory_space<vmem>>, vector<8x128xf32>
    %c0_1 = arith.constant 0 : index
    %c0_2 = arith.constant 0 : index
    %c0_3 = arith.constant 0 : index
    %1 = vector.load %arg4[%c0_1, %c0_2, %c0_3] : memref<5x128x64xf32, #tpu.memory_space<vmem>>, vector<1x128x64xf32>
    %2 = vector.shape_cast %1 : vector<1x128x64xf32> to vector<128x64xf32>
    %cst = arith.constant dense<0.000000e+00> : vector<8x64xf32>
    %3 = tpu.matmul %0, %2, %cst {dimension_numbers = #tpu.dot_dimension_numbers<[1], [0], [0], [1], [0, 0, 1, 1], [], []>} : vector<8x128xf32>, vector<128x64xf32>, vector<8x64xf32> -> vector<8x64xf32>
    %c1 = arith.constant 1 : index
    %c0_4 = arith.constant 0 : index
    %c0_5 = arith.constant 0 : index
    %4 = vector.load %arg4[%c1, %c0_4, %c0_5] : memref<5x128x64xf32, #tpu.memory_space<vmem>>, vector<1x128x64xf32>
    %5 = vector.shape_cast %4 : vector<1x128x64xf32> to vector<128x64xf32>
    %cst_6 = arith.constant dense<0.000000e+00> : vector<8x64xf32>
    %6 = tpu.matmul %0, %5, %cst_6 {dimension_numbers = #tpu.dot_dimension_numbers<[1], [0], [0], [1], [0, 0, 1, 1], [], []>} : vector<8x128xf32>, vector<128x64xf32>, vector<8x64xf32> -> vector<8x64xf32>
    %c2 = arith.constant 2 : index
    %c0_7 = arith.constant 0 : index
    %c0_8 = arith.constant 0 : index
    %7 = vector.load %arg4[%c2, %c0_7, %c0_8] : memref<5x128x64xf32, #tpu.memory_space<vmem>>, vector<1x128x64xf32>
    %8 = vector.shape_cast %7 : vector<1x128x64xf32> to vector<128x64xf32>
    %cst_9 = arith.constant dense<0.000000e+00> : vector<8x64xf32>
    %9 = tpu.matmul %0, %8, %cst_9 {dimension_numbers = #tpu.dot_dimension_numbers<[1], [0], [0], [1], [0, 0, 1, 1], [], []>} : vector<8x128xf32>, vector<128x64xf32>, vector<8x64xf32> -> vector<8x64xf32>
    %c3 = arith.constant 3 : index
    %c0_10 = arith.constant 0 : index
    %c0_11 = arith.constant 0 : index
    %10 = vector.load %arg4[%c3, %c0_10, %c0_11] : memref<5x128x64xf32, #tpu.memory_space<vmem>>, vector<1x128x64xf32>
    %11 = vector.shape_cast %10 : vector<1x128x64xf32> to vector<128x64xf32>
    %cst_12 = arith.constant dense<0.000000e+00> : vector<8x64xf32>
    %12 = tpu.matmul %0, %11, %cst_12 {dimension_numbers = #tpu.dot_dimension_numbers<[1], [0], [0], [1], [0, 0, 1, 1], [], []>} : vector<8x128xf32>, vector<128x64xf32>, vector<8x64xf32> -> vector<8x64xf32>
    %c4 = arith.constant 4 : index
    %c0_13 = arith.constant 0 : index
    %c0_14 = arith.constant 0 : index
    %13 = vector.load %arg4[%c4, %c0_13, %c0_14] : memref<5x128x64xf32, #tpu.memory_space<vmem>>, vector<1x128x64xf32>
    %14 = vector.shape_cast %13 : vector<1x128x64xf32> to vector<128x64xf32>
    %cst_15 = arith.constant dense<0.000000e+00> : vector<8x64xf32>
    %15 = tpu.matmul %0, %14, %cst_15 {dimension_numbers = #tpu.dot_dimension_numbers<[1], [0], [0], [1], [0, 0, 1, 1], [], []>} : vector<8x128xf32>, vector<128x64xf32>, vector<8x64xf32> -> vector<8x64xf32>
    %16 = tpu.concatenate %3, %6, %9, %12, %15 in 0 : vector<8x64xf32>, vector<8x64xf32>, vector<8x64xf32>, vector<8x64xf32>, vector<8x64xf32> -> vector<40x64xf32>
    %c0_16 = arith.constant 0 : index
    %c0_17 = arith.constant 0 : index
    %17 = vector.load %arg2[%c0_16, %c0_17] : memref<128x40xf32, #tpu.memory_space<vmem>>, vector<128x40xf32>
    %cst_18 = arith.constant dense<0.000000e+00> : vector<128x64xf32>
    %18 = tpu.matmul %17, %16, %cst_18 {dimension_numbers = #tpu.dot_dimension_numbers<[1], [0], [0], [1], [0, 0, 1, 1], [], []>} : vector<128x40xf32>, vector<40x64xf32>, vector<128x64xf32> -> vector<128x64xf32>
    %c0_19 = arith.constant 0 : index
    %c0_20 = arith.constant 0 : index
    %19 = vector.load %arg3[%c0_19, %c0_20] : memref<128x1xf32, #tpu.memory_space<vmem>>, vector<128x1xf32>
    %20 = vector.broadcast %19 : vector<128x1xf32> to vector<128x64xf32>
    %21 = arith.addf %18, %20 : vector<128x64xf32>
    %cst_21 = arith.constant 0.000000e+00 : f32
    %22 = vector.broadcast %cst_21 : f32 to vector<128x64xf32>
    %23 = arith.maximumf %21, %22 : vector<128x64xf32>
    %c0_22 = arith.constant 0 : index
    %c0_23 = arith.constant 0 : index
    %c0_24 = arith.constant 0 : index
    %24 = vector.load %arg7[%c0_22, %c0_23, %c0_24] : memref<5x64x32xf32, #tpu.memory_space<vmem>>, vector<1x64x32xf32>
    %25 = vector.shape_cast %24 : vector<1x64x32xf32> to vector<64x32xf32>
    %cst_25 = arith.constant dense<0.000000e+00> : vector<128x32xf32>
    %26 = tpu.matmul %23, %25, %cst_25 {dimension_numbers = #tpu.dot_dimension_numbers<[1], [0], [0], [1], [0, 0, 1, 1], [], []>} : vector<128x64xf32>, vector<64x32xf32>, vector<128x32xf32> -> vector<128x32xf32>
    %c1_26 = arith.constant 1 : index
    %c0_27 = arith.constant 0 : index
    %c0_28 = arith.constant 0 : index
    %27 = vector.load %arg7[%c1_26, %c0_27, %c0_28] : memref<5x64x32xf32, #tpu.memory_space<vmem>>, vector<1x64x32xf32>
    %28 = vector.shape_cast %27 : vector<1x64x32xf32> to vector<64x32xf32>
    %cst_29 = arith.constant dense<0.000000e+00> : vector<128x32xf32>
    %29 = tpu.matmul %23, %28, %cst_29 {dimension_numbers = #tpu.dot_dimension_numbers<[1], [0], [0], [1], [0, 0, 1, 1], [], []>} : vector<128x64xf32>, vector<64x32xf32>, vector<128x32xf32> -> vector<128x32xf32>
    %c2_30 = arith.constant 2 : index
    %c0_31 = arith.constant 0 : index
    %c0_32 = arith.constant 0 : index
    %30 = vector.load %arg7[%c2_30, %c0_31, %c0_32] : memref<5x64x32xf32, #tpu.memory_space<vmem>>, vector<1x64x32xf32>
    %31 = vector.shape_cast %30 : vector<1x64x32xf32> to vector<64x32xf32>
    %cst_33 = arith.constant dense<0.000000e+00> : vector<128x32xf32>
    %32 = tpu.matmul %23, %31, %cst_33 {dimension_numbers = #tpu.dot_dimension_numbers<[1], [0], [0], [1], [0, 0, 1, 1], [], []>} : vector<128x64xf32>, vector<64x32xf32>, vector<128x32xf32> -> vector<128x32xf32>
    %c3_34 = arith.constant 3 : index
    %c0_35 = arith.constant 0 : index
    %c0_36 = arith.constant 0 : index
    %33 = vector.load %arg7[%c3_34, %c0_35, %c0_36] : memref<5x64x32xf32, #tpu.memory_space<vmem>>, vector<1x64x32xf32>
    %34 = vector.shape_cast %33 : vector<1x64x32xf32> to vector<64x32xf32>
    %cst_37 = arith.constant dense<0.000000e+00> : vector<128x32xf32>
    %35 = tpu.matmul %23, %34, %cst_37 {dimension_numbers = #tpu.dot_dimension_numbers<[1], [0], [0], [1], [0, 0, 1, 1], [], []>} : vector<128x64xf32>, vector<64x32xf32>, vector<128x32xf32> -> vector<128x32xf32>
    %c4_38 = arith.constant 4 : index
    %c0_39 = arith.constant 0 : index
    %c0_40 = arith.constant 0 : index
    %36 = vector.load %arg7[%c4_38, %c0_39, %c0_40] : memref<5x64x32xf32, #tpu.memory_space<vmem>>, vector<1x64x32xf32>
    %37 = vector.shape_cast %36 : vector<1x64x32xf32> to vector<64x32xf32>
    %cst_41 = arith.constant dense<0.000000e+00> : vector<128x32xf32>
    %38 = tpu.matmul %23, %37, %cst_41 {dimension_numbers = #tpu.dot_dimension_numbers<[1], [0], [0], [1], [0, 0, 1, 1], [], []>} : vector<128x64xf32>, vector<64x32xf32>, vector<128x32xf32> -> vector<128x32xf32>
    %39 = tpu.concatenate %26, %29, %32, %35, %38 in 0 : vector<128x32xf32>, vector<128x32xf32>, vector<128x32xf32>, vector<128x32xf32>, vector<128x32xf32> -> vector<640x32xf32>
    %c0_42 = arith.constant 0 : index
    %c0_43 = arith.constant 0 : index
    %40 = vector.load %arg5[%c0_42, %c0_43] : memref<128x640xf32, #tpu.memory_space<vmem>>, vector<128x640xf32>
    %cst_44 = arith.constant dense<0.000000e+00> : vector<128x32xf32>
    %41 = tpu.matmul %40, %39, %cst_44 {dimension_numbers = #tpu.dot_dimension_numbers<[1], [0], [0], [1], [0, 0, 1, 1], [], []>} : vector<128x640xf32>, vector<640x32xf32>, vector<128x32xf32> -> vector<128x32xf32>
    %c0_45 = arith.constant 0 : index
    %c0_46 = arith.constant 0 : index
    %42 = vector.load %arg6[%c0_45, %c0_46] : memref<128x1xf32, #tpu.memory_space<vmem>>, vector<128x1xf32>
    %43 = vector.broadcast %42 : vector<128x1xf32> to vector<128x32xf32>
    %44 = arith.addf %41, %43 : vector<128x32xf32>
    %cst_47 = arith.constant 0.000000e+00 : f32
    %45 = vector.broadcast %cst_47 : f32 to vector<128x32xf32>
    %46 = arith.maximumf %44, %45 : vector<128x32xf32>
    %c0_48 = arith.constant 0 : index
    %c0_49 = arith.constant 0 : index
    %c0_50 = arith.constant 0 : index
    %47 = vector.load %arg10[%c0_48, %c0_49, %c0_50] : memref<3x32x32xf32, #tpu.memory_space<vmem>>, vector<1x32x32xf32>
    %48 = vector.shape_cast %47 : vector<1x32x32xf32> to vector<32x32xf32>
    %cst_51 = arith.constant dense<0.000000e+00> : vector<128x32xf32>
    %49 = tpu.matmul %46, %48, %cst_51 {dimension_numbers = #tpu.dot_dimension_numbers<[1], [0], [0], [1], [0, 0, 1, 1], [], []>} : vector<128x32xf32>, vector<32x32xf32>, vector<128x32xf32> -> vector<128x32xf32>
    %c1_52 = arith.constant 1 : index
    %c0_53 = arith.constant 0 : index
    %c0_54 = arith.constant 0 : index
    %50 = vector.load %arg10[%c1_52, %c0_53, %c0_54] : memref<3x32x32xf32, #tpu.memory_space<vmem>>, vector<1x32x32xf32>
    %51 = vector.shape_cast %50 : vector<1x32x32xf32> to vector<32x32xf32>
    %cst_55 = arith.constant dense<0.000000e+00> : vector<128x32xf32>
    %52 = tpu.matmul %46, %51, %cst_55 {dimension_numbers = #tpu.dot_dimension_numbers<[1], [0], [0], [1], [0, 0, 1, 1], [], []>} : vector<128x32xf32>, vector<32x32xf32>, vector<128x32xf32> -> vector<128x32xf32>
    %c2_56 = arith.constant 2 : index
    %c0_57 = arith.constant 0 : index
    %c0_58 = arith.constant 0 : index
    %53 = vector.load %arg10[%c2_56, %c0_57, %c0_58] : memref<3x32x32xf32, #tpu.memory_space<vmem>>, vector<1x32x32xf32>
    %54 = vector.shape_cast %53 : vector<1x32x32xf32> to vector<32x32xf32>
    %cst_59 = arith.constant dense<0.000000e+00> : vector<128x32xf32>
    %55 = tpu.matmul %46, %54, %cst_59 {dimension_numbers = #tpu.dot_dimension_numbers<[1], [0], [0], [1], [0, 0, 1, 1], [], []>} : vector<128x32xf32>, vector<32x32xf32>, vector<128x32xf32> -> vector<128x32xf32>
    %56 = tpu.concatenate %49, %52, %55 in 0 : vector<128x32xf32>, vector<128x32xf32>, vector<128x32xf32> -> vector<384x32xf32>
    %c0_60 = arith.constant 0 : index
    %c0_61 = arith.constant 0 : index
    %57 = vector.load %arg8[%c0_60, %c0_61] : memref<8x384xf32, #tpu.memory_space<vmem>>, vector<8x384xf32>
    %cst_62 = arith.constant dense<0.000000e+00> : vector<8x32xf32>
    %58 = tpu.matmul %57, %56, %cst_62 {dimension_numbers = #tpu.dot_dimension_numbers<[1], [0], [0], [1], [0, 0, 1, 1], [], []>} : vector<8x384xf32>, vector<384x32xf32>, vector<8x32xf32> -> vector<8x32xf32>
    %c0_63 = arith.constant 0 : index
    %c0_64 = arith.constant 0 : index
    %59 = vector.load %arg9[%c0_63, %c0_64] : memref<8x1xf32, #tpu.memory_space<vmem>>, vector<8x1xf32>
    %60 = vector.broadcast %59 : vector<8x1xf32> to vector<8x32xf32>
    %61 = arith.addf %58, %60 : vector<8x32xf32>
    %c0_65 = arith.constant 0 : index
    %c0_66 = arith.constant 0 : index
    %c0_67 = arith.constant 0 : index
    %62 = vector.load %arg13[%c0_65, %c0_66, %c0_67] : memref<5x32x64xf32, #tpu.memory_space<vmem>>, vector<1x32x64xf32>
    %63 = vector.shape_cast %62 : vector<1x32x64xf32> to vector<32x64xf32>
    %cst_68 = arith.constant dense<0.000000e+00> : vector<8x64xf32>
    %64 = tpu.matmul %61, %63, %cst_68 {dimension_numbers = #tpu.dot_dimension_numbers<[1], [0], [0], [1], [0, 0, 1, 1], [], []>} : vector<8x32xf32>, vector<32x64xf32>, vector<8x64xf32> -> vector<8x64xf32>
    %c1_69 = arith.constant 1 : index
    %c0_70 = arith.constant 0 : index
    %c0_71 = arith.constant 0 : index
    %65 = vector.load %arg13[%c1_69, %c0_70, %c0_71] : memref<5x32x64xf32, #tpu.memory_space<vmem>>, vector<1x32x64xf32>
    %66 = vector.shape_cast %65 : vector<1x32x64xf32> to vector<32x64xf32>
    %cst_72 = arith.constant dense<0.000000e+00> : vector<8x64xf32>
    %67 = tpu.matmul %61, %66, %cst_72 {dimension_numbers = #tpu.dot_dimension_numbers<[1], [0], [0], [1], [0, 0, 1, 1], [], []>} : vector<8x32xf32>, vector<32x64xf32>, vector<8x64xf32> -> vector<8x64xf32>
    %c2_73 = arith.constant 2 : index
    %c0_74 = arith.constant 0 : index
    %c0_75 = arith.constant 0 : index
    %68 = vector.load %arg13[%c2_73, %c0_74, %c0_75] : memref<5x32x64xf32, #tpu.memory_space<vmem>>, vector<1x32x64xf32>
    %69 = vector.shape_cast %68 : vector<1x32x64xf32> to vector<32x64xf32>
    %cst_76 = arith.constant dense<0.000000e+00> : vector<8x64xf32>
    %70 = tpu.matmul %61, %69, %cst_76 {dimension_numbers = #tpu.dot_dimension_numbers<[1], [0], [0], [1], [0, 0, 1, 1], [], []>} : vector<8x32xf32>, vector<32x64xf32>, vector<8x64xf32> -> vector<8x64xf32>
    %c3_77 = arith.constant 3 : index
    %c0_78 = arith.constant 0 : index
    %c0_79 = arith.constant 0 : index
    %71 = vector.load %arg13[%c3_77, %c0_78, %c0_79] : memref<5x32x64xf32, #tpu.memory_space<vmem>>, vector<1x32x64xf32>
    %72 = vector.shape_cast %71 : vector<1x32x64xf32> to vector<32x64xf32>
    %cst_80 = arith.constant dense<0.000000e+00> : vector<8x64xf32>
    %73 = tpu.matmul %61, %72, %cst_80 {dimension_numbers = #tpu.dot_dimension_numbers<[1], [0], [0], [1], [0, 0, 1, 1], [], []>} : vector<8x32xf32>, vector<32x64xf32>, vector<8x64xf32> -> vector<8x64xf32>
    %c4_81 = arith.constant 4 : index
    %c0_82 = arith.constant 0 : index
    %c0_83 = arith.constant 0 : index
    %74 = vector.load %arg13[%c4_81, %c0_82, %c0_83] : memref<5x32x64xf32, #tpu.memory_space<vmem>>, vector<1x32x64xf32>
    %75 = vector.shape_cast %74 : vector<1x32x64xf32> to vector<32x64xf32>
    %cst_84 = arith.constant dense<0.000000e+00> : vector<8x64xf32>
    %76 = tpu.matmul %61, %75, %cst_84 {dimension_numbers = #tpu.dot_dimension_numbers<[1], [0], [0], [1], [0, 0, 1, 1], [], []>} : vector<8x32xf32>, vector<32x64xf32>, vector<8x64xf32> -> vector<8x64xf32>
    %77 = tpu.concatenate %64, %67, %70, %73, %76 in 0 : vector<8x64xf32>, vector<8x64xf32>, vector<8x64xf32>, vector<8x64xf32>, vector<8x64xf32> -> vector<40x64xf32>
    %c0_85 = arith.constant 0 : index
    %c0_86 = arith.constant 0 : index
    %78 = vector.load %arg11[%c0_85, %c0_86] : memref<128x40xf32, #tpu.memory_space<vmem>>, vector<128x40xf32>
    %cst_87 = arith.constant dense<0.000000e+00> : vector<128x64xf32>
    %79 = tpu.matmul %78, %77, %cst_87 {dimension_numbers = #tpu.dot_dimension_numbers<[1], [0], [0], [1], [0, 0, 1, 1], [], []>} : vector<128x40xf32>, vector<40x64xf32>, vector<128x64xf32> -> vector<128x64xf32>
    %c0_88 = arith.constant 0 : index
    %c0_89 = arith.constant 0 : index
    %80 = vector.load %arg12[%c0_88, %c0_89] : memref<128x1xf32, #tpu.memory_space<vmem>>, vector<128x1xf32>
    %81 = vector.broadcast %80 : vector<128x1xf32> to vector<128x64xf32>
    %82 = arith.addf %79, %81 : vector<128x64xf32>
    %cst_90 = arith.constant 0.000000e+00 : f32
    %83 = vector.broadcast %cst_90 : f32 to vector<128x64xf32>
    %84 = arith.maximumf %82, %83 : vector<128x64xf32>
    %c0_91 = arith.constant 0 : index
    %c0_92 = arith.constant 0 : index
    %c0_93 = arith.constant 0 : index
    %85 = vector.load %arg16[%c0_91, %c0_92, %c0_93] : memref<5x64x128xf32, #tpu.memory_space<vmem>>, vector<1x64x128xf32>
    %86 = vector.shape_cast %85 : vector<1x64x128xf32> to vector<64x128xf32>
    %cst_94 = arith.constant dense<0.000000e+00> : vector<128x128xf32>
    %87 = tpu.matmul %84, %86, %cst_94 {dimension_numbers = #tpu.dot_dimension_numbers<[1], [0], [0], [1], [0, 0, 1, 1], [], []>} : vector<128x64xf32>, vector<64x128xf32>, vector<128x128xf32> -> vector<128x128xf32>
    %c1_95 = arith.constant 1 : index
    %c0_96 = arith.constant 0 : index
    %c0_97 = arith.constant 0 : index
    %88 = vector.load %arg16[%c1_95, %c0_96, %c0_97] : memref<5x64x128xf32, #tpu.memory_space<vmem>>, vector<1x64x128xf32>
    %89 = vector.shape_cast %88 : vector<1x64x128xf32> to vector<64x128xf32>
    %cst_98 = arith.constant dense<0.000000e+00> : vector<128x128xf32>
    %90 = tpu.matmul %84, %89, %cst_98 {dimension_numbers = #tpu.dot_dimension_numbers<[1], [0], [0], [1], [0, 0, 1, 1], [], []>} : vector<128x64xf32>, vector<64x128xf32>, vector<128x128xf32> -> vector<128x128xf32>
    %c2_99 = arith.constant 2 : index
    %c0_100 = arith.constant 0 : index
    %c0_101 = arith.constant 0 : index
    %91 = vector.load %arg16[%c2_99, %c0_100, %c0_101] : memref<5x64x128xf32, #tpu.memory_space<vmem>>, vector<1x64x128xf32>
    %92 = vector.shape_cast %91 : vector<1x64x128xf32> to vector<64x128xf32>
    %cst_102 = arith.constant dense<0.000000e+00> : vector<128x128xf32>
    %93 = tpu.matmul %84, %92, %cst_102 {dimension_numbers = #tpu.dot_dimension_numbers<[1], [0], [0], [1], [0, 0, 1, 1], [], []>} : vector<128x64xf32>, vector<64x128xf32>, vector<128x128xf32> -> vector<128x128xf32>
    %c3_103 = arith.constant 3 : index
    %c0_104 = arith.constant 0 : index
    %c0_105 = arith.constant 0 : index
    %94 = vector.load %arg16[%c3_103, %c0_104, %c0_105] : memref<5x64x128xf32, #tpu.memory_space<vmem>>, vector<1x64x128xf32>
    %95 = vector.shape_cast %94 : vector<1x64x128xf32> to vector<64x128xf32>
    %cst_106 = arith.constant dense<0.000000e+00> : vector<128x128xf32>
    %96 = tpu.matmul %84, %95, %cst_106 {dimension_numbers = #tpu.dot_dimension_numbers<[1], [0], [0], [1], [0, 0, 1, 1], [], []>} : vector<128x64xf32>, vector<64x128xf32>, vector<128x128xf32> -> vector<128x128xf32>
    %c4_107 = arith.constant 4 : index
    %c0_108 = arith.constant 0 : index
    %c0_109 = arith.constant 0 : index
    %97 = vector.load %arg16[%c4_107, %c0_108, %c0_109] : memref<5x64x128xf32, #tpu.memory_space<vmem>>, vector<1x64x128xf32>
    %98 = vector.shape_cast %97 : vector<1x64x128xf32> to vector<64x128xf32>
    %cst_110 = arith.constant dense<0.000000e+00> : vector<128x128xf32>
    %99 = tpu.matmul %84, %98, %cst_110 {dimension_numbers = #tpu.dot_dimension_numbers<[1], [0], [0], [1], [0, 0, 1, 1], [], []>} : vector<128x64xf32>, vector<64x128xf32>, vector<128x128xf32> -> vector<128x128xf32>
    %100 = tpu.concatenate %87, %90, %93, %96, %99 in 0 : vector<128x128xf32>, vector<128x128xf32>, vector<128x128xf32>, vector<128x128xf32>, vector<128x128xf32> -> vector<640x128xf32>
    %c0_111 = arith.constant 0 : index
    %c0_112 = arith.constant 0 : index
    %101 = vector.load %arg14[%c0_111, %c0_112] : memref<128x640xf32, #tpu.memory_space<vmem>>, vector<128x640xf32>
    %cst_113 = arith.constant dense<0.000000e+00> : vector<128x128xf32>
    %102 = tpu.matmul %101, %100, %cst_113 {dimension_numbers = #tpu.dot_dimension_numbers<[1], [0], [0], [1], [0, 0, 1, 1], [], []>} : vector<128x640xf32>, vector<640x128xf32>, vector<128x128xf32> -> vector<128x128xf32>
    %c0_114 = arith.constant 0 : index
    %c0_115 = arith.constant 0 : index
    %103 = vector.load %arg15[%c0_114, %c0_115] : memref<128x1xf32, #tpu.memory_space<vmem>>, vector<128x1xf32>
    %104 = vector.broadcast %103 : vector<128x1xf32> to vector<128x128xf32>
    %105 = arith.addf %102, %104 : vector<128x128xf32>
    %cst_116 = arith.constant 0.000000e+00 : f32
    %106 = vector.broadcast %cst_116 : f32 to vector<128x128xf32>
    %107 = arith.maximumf %105, %106 : vector<128x128xf32>
    %c0_117 = arith.constant 0 : index
    %c0_118 = arith.constant 0 : index
    %c0_119 = arith.constant 0 : index
    %108 = vector.load %arg19[%c0_117, %c0_118, %c0_119] : memref<3x128x128xf32, #tpu.memory_space<vmem>>, vector<1x128x128xf32>
    %109 = vector.shape_cast %108 : vector<1x128x128xf32> to vector<128x128xf32>
    %cst_120 = arith.constant dense<0.000000e+00> : vector<128x128xf32>
    %110 = tpu.matmul %107, %109, %cst_120 {dimension_numbers = #tpu.dot_dimension_numbers<[1], [0], [0], [1], [0, 0, 1, 1], [], []>} : vector<128x128xf32>, vector<128x128xf32>, vector<128x128xf32> -> vector<128x128xf32>
    %c1_121 = arith.constant 1 : index
    %c0_122 = arith.constant 0 : index
    %c0_123 = arith.constant 0 : index
    %111 = vector.load %arg19[%c1_121, %c0_122, %c0_123] : memref<3x128x128xf32, #tpu.memory_space<vmem>>, vector<1x128x128xf32>
    %112 = vector.shape_cast %111 : vector<1x128x128xf32> to vector<128x128xf32>
    %cst_124 = arith.constant dense<0.000000e+00> : vector<128x128xf32>
    %113 = tpu.matmul %107, %112, %cst_124 {dimension_numbers = #tpu.dot_dimension_numbers<[1], [0], [0], [1], [0, 0, 1, 1], [], []>} : vector<128x128xf32>, vector<128x128xf32>, vector<128x128xf32> -> vector<128x128xf32>
    %c2_125 = arith.constant 2 : index
    %c0_126 = arith.constant 0 : index
    %c0_127 = arith.constant 0 : index
    %114 = vector.load %arg19[%c2_125, %c0_126, %c0_127] : memref<3x128x128xf32, #tpu.memory_space<vmem>>, vector<1x128x128xf32>
    %115 = vector.shape_cast %114 : vector<1x128x128xf32> to vector<128x128xf32>
    %cst_128 = arith.constant dense<0.000000e+00> : vector<128x128xf32>
    %116 = tpu.matmul %107, %115, %cst_128 {dimension_numbers = #tpu.dot_dimension_numbers<[1], [0], [0], [1], [0, 0, 1, 1], [], []>} : vector<128x128xf32>, vector<128x128xf32>, vector<128x128xf32> -> vector<128x128xf32>
    %117 = tpu.concatenate %110, %113, %116 in 0 : vector<128x128xf32>, vector<128x128xf32>, vector<128x128xf32> -> vector<384x128xf32>
    %c0_129 = arith.constant 0 : index
    %c0_130 = arith.constant 0 : index
    %118 = vector.load %arg17[%c0_129, %c0_130] : memref<8x384xf32, #tpu.memory_space<vmem>>, vector<8x384xf32>
    %cst_131 = arith.constant dense<0.000000e+00> : vector<8x128xf32>
    %119 = tpu.matmul %118, %117, %cst_131 {dimension_numbers = #tpu.dot_dimension_numbers<[1], [0], [0], [1], [0, 0, 1, 1], [], []>} : vector<8x384xf32>, vector<384x128xf32>, vector<8x128xf32> -> vector<8x128xf32>
    %c0_132 = arith.constant 0 : index
    %c0_133 = arith.constant 0 : index
    %120 = vector.load %arg18[%c0_132, %c0_133] : memref<8x1xf32, #tpu.memory_space<vmem>>, vector<8x1xf32>
    %121 = vector.broadcast %120 : vector<8x1xf32> to vector<8x128xf32>
    %122 = arith.addf %119, %121 : vector<8x128xf32>
    %c0_134 = arith.constant 0 : index
    %c0_135 = arith.constant 0 : index
    %123 = vector.load %arg20[%c0_134, %c0_135] : memref<8x128xf32, #tpu.memory_space<vmem>>, vector<8x128xf32>
    tpu.vector_store %arg20[%c0_134, %c0_135], %122 {strides = array<i32>} : memref<8x128xf32, #tpu.memory_space<vmem>>, vector<8x128xf32>,
    return
  }
  func.func @transform_0(%arg0: i32) -> (i32, i32) {
    %c0_i32 = arith.constant 0 : i32
    %c0_i32_0 = arith.constant 0 : i32
    return %arg0, %c0_i32 : i32, i32
  }
  func.func @transform_1(%arg0: i32) -> (i32, i32) {
    %c0_i32 = arith.constant 0 : i32
    %c0_i32_0 = arith.constant 0 : i32
    %c0_i32_1 = arith.constant 0 : i32
    return %c0_i32, %c0_i32_0 : i32, i32
  }
  func.func @transform_2(%arg0: i32) -> (i32, i32) {
    %c0_i32 = arith.constant 0 : i32
    %c0_i32_0 = arith.constant 0 : i32
    %c0_i32_1 = arith.constant 0 : i32
    return %c0_i32, %c0_i32_0 : i32, i32
  }
  func.func @transform_3(%arg0: i32) -> (i32, i32, i32) {
    %c0_i32 = arith.constant 0 : i32
    %c0_i32_0 = arith.constant 0 : i32
    %c0_i32_1 = arith.constant 0 : i32
    %c0_i32_2 = arith.constant 0 : i32
    return %c0_i32, %c0_i32_0, %c0_i32_1 : i32, i32, i32
  }
  func.func @transform_4(%arg0: i32) -> (i32, i32) {
    %c0_i32 = arith.constant 0 : i32
    %c0_i32_0 = arith.constant 0 : i32
    %c0_i32_1 = arith.constant 0 : i32
    return %c0_i32, %c0_i32_0 : i32, i32
  }
  func.func @transform_5(%arg0: i32) -> (i32, i32) {
    %c0_i32 = arith.constant 0 : i32
    %c0_i32_0 = arith.constant 0 : i32
    %c0_i32_1 = arith.constant 0 : i32
    return %c0_i32, %c0_i32_0 : i32, i32
  }
  func.func @transform_6(%arg0: i32) -> (i32, i32, i32) {
    %c0_i32 = arith.constant 0 : i32
    %c0_i32_0 = arith.constant 0 : i32
    %c0_i32_1 = arith.constant 0 : i32
    %c0_i32_2 = arith.constant 0 : i32
    return %c0_i32, %c0_i32_0, %c0_i32_1 : i32, i32, i32
  }
  func.func @transform_7(%arg0: i32) -> (i32, i32) {
    %c0_i32 = arith.constant 0 : i32
    %c0_i32_0 = arith.constant 0 : i32
    %c0_i32_1 = arith.constant 0 : i32
    return %c0_i32, %c0_i32_0 : i32, i32
  }
  func.func @transform_8(%arg0: i32) -> (i32, i32) {
    %c0_i32 = arith.constant 0 : i32
    %c0_i32_0 = arith.constant 0 : i32
    %c0_i32_1 = arith.constant 0 : i32
    return %c0_i32, %c0_i32_0 : i32, i32
  }
  func.func @transform_9(%arg0: i32) -> (i32, i32, i32) {
    %c0_i32 = arith.constant 0 : i32
    %c0_i32_0 = arith.constant 0 : i32
    %c0_i32_1 = arith.constant 0 : i32
    %c0_i32_2 = arith.constant 0 : i32
    return %c0_i32, %c0_i32_0, %c0_i32_1 : i32, i32, i32
  }
  func.func @transform_10(%arg0: i32) -> (i32, i32) {
    %c0_i32 = arith.constant 0 : i32
    %c0_i32_0 = arith.constant 0 : i32
    %c0_i32_1 = arith.constant 0 : i32
    return %c0_i32, %c0_i32_0 : i32, i32
  }
  func.func @transform_11(%arg0: i32) -> (i32, i32) {
    %c0_i32 = arith.constant 0 : i32
    %c0_i32_0 = arith.constant 0 : i32
    %c0_i32_1 = arith.constant 0 : i32
    return %c0_i32, %c0_i32_0 : i32, i32
  }
  func.func @transform_12(%arg0: i32) -> (i32, i32, i32) {
    %c0_i32 = arith.constant 0 : i32
    %c0_i32_0 = arith.constant 0 : i32
    %c0_i32_1 = arith.constant 0 : i32
    %c0_i32_2 = arith.constant 0 : i32
    return %c0_i32, %c0_i32_0, %c0_i32_1 : i32, i32, i32
  }
  func.func @transform_13(%arg0: i32) -> (i32, i32) {
    %c0_i32 = arith.constant 0 : i32
    %c0_i32_0 = arith.constant 0 : i32
    %c0_i32_1 = arith.constant 0 : i32
    return %c0_i32, %c0_i32_0 : i32, i32
  }
  func.func @transform_14(%arg0: i32) -> (i32, i32) {
    %c0_i32 = arith.constant 0 : i32
    %c0_i32_0 = arith.constant 0 : i32
    %c0_i32_1 = arith.constant 0 : i32
    return %c0_i32, %c0_i32_0 : i32, i32
  }
  func.func @transform_15(%arg0: i32) -> (i32, i32, i32) {
    %c0_i32 = arith.constant 0 : i32
    %c0_i32_0 = arith.constant 0 : i32
    %c0_i32_1 = arith.constant 0 : i32
    %c0_i32_2 = arith.constant 0 : i32
    return %c0_i32, %c0_i32_0, %c0_i32_1 : i32, i32, i32
  }
  func.func @transform_16(%arg0: i32) -> (i32, i32) {
    %c0_i32 = arith.constant 0 : i32
    %c0_i32_0 = arith.constant 0 : i32
    %c0_i32_1 = arith.constant 0 : i32
    return %c0_i32, %c0_i32_0 : i32, i32
  }
  func.func @transform_17(%arg0: i32) -> (i32, i32) {
    %c0_i32 = arith.constant 0 : i32
    %c0_i32_0 = arith.constant 0 : i32
    %c0_i32_1 = arith.constant 0 : i32
    return %c0_i32, %c0_i32_0 : i32, i32
  }
  func.func @transform_18(%arg0: i32) -> (i32, i32, i32) {
    %c0_i32 = arith.constant 0 : i32
    %c0_i32_0 = arith.constant 0 : i32
    %c0_i32_1 = arith.constant 0 : i32
    %c0_i32_2 = arith.constant 0 : i32
    return %c0_i32, %c0_i32_0, %c0_i32_1 : i32, i32, i32
  }
  func.func @transform_19(%arg0: i32) -> (i32, i32) {
    %c0_i32 = arith.constant 0 : i32
    %c0_i32_0 = arith.constant 0 : i32
    return %arg0, %c0_i32 : i32, i32
  }
}

</mosaic_0001>

<llo_original>
// kernel: autoencoder_forward.1
$region0: #{autoencoder_forward.1}
  #allocation0 [shape = 'u32[]', space=smem, size = 0x4, offset = 0x4, fixed_abs, tag = 'smem constant byte address 0x4 - core index']
  #allocation1 [shape = 'u32[144,128]{1,0:T(1,128)}', space=vmem, size = 0x12000, scoped, tag = 'internal scratch']
  %s0 = inlined_call_operand.vmem [shape: f32[16,128], index: 0, kind: input, shape index: {}]
  %s1 = inlined_call_operand.vmem [shape: f32[128,40], index: 1, kind: input, shape index: {}]
  %s2 = inlined_call_operand.vmem [shape: f32[128,1], index: 2, kind: input, shape index: {}]
  %s3 = inlined_call_operand.vmem [shape: f32[5,128,64], index: 3, kind: input, shape index: {}]
  %s4 = inlined_call_operand.vmem [shape: f32[128,640], index: 4, kind: input, shape index: {}]
  %s5 = inlined_call_operand.vmem [shape: f32[128,1], index: 5, kind: input, shape index: {}]
  %s6 = inlined_call_operand.vmem [shape: f32[5,64,32], index: 6, kind: input, shape index: {}]
  %s7 = inlined_call_operand.vmem [shape: f32[8,384], index: 7, kind: input, shape index: {}]
  %s8 = inlined_call_operand.vmem [shape: f32[8,1], index: 8, kind: input, shape index: {}]
  %s9 = inlined_call_operand.vmem [shape: f32[3,32,32], index: 9, kind: input, shape index: {}]
  %s10 = inlined_call_operand.vmem [shape: f32[128,40], index: 10, kind: input, shape index: {}]
  %s11 = inlined_call_operand.vmem [shape: f32[128,1], index: 11, kind: input, shape index: {}]
  %s12 = inlined_call_operand.vmem [shape: f32[5,32,64], index: 12, kind: input, shape index: {}]
  %s13 = inlined_call_operand.vmem [shape: f32[128,640], index: 13, kind: input, shape index: {}]
  %s14 = inlined_call_operand.vmem [shape: f32[128,1], index: 14, kind: input, shape index: {}]
  %s15 = inlined_call_operand.vmem [shape: f32[5,64,128], index: 15, kind: input, shape index: {}]
  %s16 = inlined_call_operand.vmem [shape: f32[8,384], index: 16, kind: input, shape index: {}]
  %s17 = inlined_call_operand.vmem [shape: f32[8,1], index: 17, kind: input, shape index: {}]
  %s18 = inlined_call_operand.vmem [shape: f32[3,128,128], index: 18, kind: input, shape index: {}]
  %s19 = inlined_call_operand.hbm [shape: f32[16,128], index: 19, kind: output, shape index: {}]
  %s20 = sld [smem:[#allocation0]]
  $region109: #{autoencoder_forward.1} parent=0
    _
  %s22 = ssub.s32 1, %s20
  %s23 = scalar_select 0, %s22, %s20
  $region1: #{autoencoder_forward.1} parent=0
    #allocation2 [shape = 'u8[8192]{0}', space=vmem, size = 0x2000, scoped, tag = 'output window, operand 0']
    #allocation3 [shape = 's32[2]{0}', space=sflag, size = 0x8, scoped, tag = 'scoped memory for autoencoder_forward.1']
    %24 = vsyncpa [#allocation3], 0
    %s25 = scalar_lea.sflag [#allocation3], 1
    %26 = vsyncpa %s25, 0
    loop: start=0, step=1, limit=4
    $region2: #{autoencoder_forward.1} parent=1 // loop_pre_header
      _
    $region3: #{autoencoder_forward.1} parent=1 // loop_header
      %s28 = sphi 0, %s32
      %p29 = scmp.ge.s32.totalorder %s28, 4
      %s38 = sphi 0, %s40
      %s41 = sphi 0, %s38
      %s42 = sphi 0, %s41
      %s58 = sphi 0, %s42
      %s62 = sphi 0, %s62
      %s64 = sphi 0, %s62
      %s65 = sphi 0, %s64
      %s79 = sphi 0, %s65
      %s83 = sphi 0, %s83
      %s85 = sphi 0, %s83
      %s86 = sphi 0, %s85
      %s100 = sphi 0, %s86
      %s104 = sphi 0, %s104
      %s106 = sphi 0, %s104
      %s107 = sphi 0, %s106
      %s121 = sphi 0, %s107
      %s125 = sphi 0, %s125
      %s127 = sphi 0, %s125
      %s128 = sphi 0, %s127
      %s142 = sphi 0, %s128
      %s146 = sphi 0, %s146
      %s148 = sphi 0, %s146
      %s149 = sphi 0, %s148
      %s163 = sphi 0, %s149
      %s167 = sphi 0, %s167
      %s169 = sphi 0, %s167
      %s170 = sphi 0, %s169
      %s184 = sphi 0, %s170
      %s188 = sphi 0, %s188
      %s190 = sphi 0, %s188
      %s191 = sphi 0, %s190
      %s205 = sphi 0, %s191
      %s209 = sphi 0, %s209
      %s211 = sphi 0, %s209
      %s212 = sphi 0, %s211
      %s226 = sphi 0, %s212
      %s230 = sphi 0, %s230
      %s232 = sphi 0, %s230
      %s233 = sphi 0, %s232
      %s247 = sphi 0, %s233
      %s251 = sphi 0, %s251
      %s253 = sphi 0, %s251
      %s254 = sphi 0, %s253
      %s268 = sphi 0, %s254
      %s272 = sphi 0, %s272
      %s274 = sphi 0, %s272
      %s275 = sphi 0, %s274
      %s289 = sphi 0, %s275
      %s293 = sphi 0, %s293
      %s295 = sphi 0, %s293
      %s296 = sphi 0, %s295
      %s310 = sphi 0, %s296
      %s314 = sphi 0, %s314
      %s316 = sphi 0, %s314
      %s317 = sphi 0, %s316
      %s331 = sphi 0, %s317
      %s335 = sphi 0, %s335
      %s337 = sphi 0, %s335
      %s338 = sphi 0, %s337
      %s352 = sphi 0, %s338
      %s356 = sphi 0, %s356
      %s358 = sphi 0, %s356
      %s359 = sphi 0, %s358
      %s373 = sphi 0, %s359
      %s377 = sphi 0, %s377
      %s379 = sphi 0, %s377
      %s380 = sphi 0, %s379
      %s394 = sphi 0, %s380
      %s398 = sphi 0, %s398
      %s400 = sphi 0, %s398
      %s401 = sphi 0, %s400
      %s415 = sphi 0, %s401
      %s419 = sphi 0, %s419
      %s421 = sphi 0, %s419
      %s422 = sphi 0, %s421
      %s436 = sphi 0, %s422
      %s442 = sphi 0, %s444
      %s445 = sphi 0, %s442
      %s446 = sphi 0, %s445
      %s462 = sphi 0, %s446
    $region4: #{autoencoder_forward.1} parent=1 // loop_header_branch
      %31 = sbr.rel (%p29) target = $region8
    $region5: #{autoencoder_forward.1} parent=1 // loop_body
      %s33 = ssub.s32 %s28, 1
      %s34 = ssub.s32 %s28, 2
      %s35 = sadd.s32 %s28, 1
      %s36 = ssub.s32 %s28, %s35
      %p37 = scmp.eq.s32.totalorder %s36, 0
      %s39 = sadd.s32 %s38, 1
      %s40 = scalar_select %p37, %s38, %s39
      %p43 = pneg %p37
      %p44 = scmp.eq.s32.totalorder %s28, 1
      %p45 = por %p43, %p44
      %p46 = scmp.ne.s32.totalorder %s38, %s41
      %p47 = scmp.eq.s32.totalorder %s28, 0
      %p48 = por %p46, %p47
      %p49 = scmp.ne.s32.totalorder %s38, %s41
      %p50 = scmp.eq.s32.totalorder %s33, 1
      %p51 = por %p49, %p50
      %p52 = scmp.ne.s32.totalorder %s41, %s42
      %p53 = scmp.eq.s32.totalorder %s33, 0
      %p54 = por %p52, %p53
      %p55 = scmp.ne.s32.totalorder %s41, %s42
      %p56 = scmp.eq.s32.totalorder %s34, 1
      %p57 = por %p55, %p56
      %p59 = scmp.ne.s32.totalorder %s42, %s58
      %p60 = scmp.eq.s32.totalorder %s34, 0
      %p61 = por %p59, %p60
      %s63 = sadd.s32 %s62, 1
      %p66 = scmp.eq.s32.totalorder %s28, 1
      %p67 = scmp.ne.s32.totalorder %s62, %s64
      %p68 = scmp.eq.s32.totalorder %s28, 0
      %p69 = por %p67, %p68
      %p70 = scmp.ne.s32.totalorder %s62, %s64
      %p71 = scmp.eq.s32.totalorder %s33, 1
      %p72 = por %p70, %p71
      %p73 = scmp.ne.s32.totalorder %s64, %s65
      %p74 = scmp.eq.s32.totalorder %s33, 0
      %p75 = por %p73, %p74
      %p76 = scmp.ne.s32.totalorder %s64, %s65
      %p77 = scmp.eq.s32.totalorder %s34, 1
      %p78 = por %p76, %p77
      %p80 = scmp.ne.s32.totalorder %s65, %s79
      %p81 = scmp.eq.s32.totalorder %s34, 0
      %p82 = por %p80, %p81
      %s84 = sadd.s32 %s83, 1
      %p87 = scmp.eq.s32.totalorder %s28, 1
      %p88 = scmp.ne.s32.totalorder %s83, %s85
      %p89 = scmp.eq.s32.totalorder %s28, 0
      %p90 = por %p88, %p89
      %p91 = scmp.ne.s32.totalorder %s83, %s85
      %p92 = scmp.eq.s32.totalorder %s33, 1
      %p93 = por %p91, %p92
      %p94 = scmp.ne.s32.totalorder %s85, %s86
      %p95 = scmp.eq.s32.totalorder %s33, 0
      %p96 = por %p94, %p95
      %p97 = scmp.ne.s32.totalorder %s85, %s86
      %p98 = scmp.eq.s32.totalorder %s34, 1
      %p99 = por %p97, %p98
      %p101 = scmp.ne.s32.totalorder %s86, %s100
      %p102 = scmp.eq.s32.totalorder %s34, 0
      %p103 = por %p101, %p102
      %s105 = sadd.s32 %s104, 1
      %p108 = scmp.eq.s32.totalorder %s28, 1
      %p109 = scmp.ne.s32.totalorder %s104, %s106
      %p110 = scmp.eq.s32.totalorder %s28, 0
      %p111 = por %p109, %p110
      %p112 = scmp.ne.s32.totalorder %s104, %s106
      %p113 = scmp.eq.s32.totalorder %s33, 1
      %p114 = por %p112, %p113
      %p115 = scmp.ne.s32.totalorder %s106, %s107
      %p116 = scmp.eq.s32.totalorder %s33, 0
      %p117 = por %p115, %p116
      %p118 = scmp.ne.s32.totalorder %s106, %s107
      %p119 = scmp.eq.s32.totalorder %s34, 1
      %p120 = por %p118, %p119
      %p122 = scmp.ne.s32.totalorder %s107, %s121
      %p123 = scmp.eq.s32.totalorder %s34, 0
      %p124 = por %p122, %p123
      %s126 = sadd.s32 %s125, 1
      %p129 = scmp.eq.s32.totalorder %s28, 1
      %p130 = scmp.ne.s32.totalorder %s125, %s127
      %p131 = scmp.eq.s32.totalorder %s28, 0
      %p132 = por %p130, %p131
      %p133 = scmp.ne.s32.totalorder %s125, %s127
      %p134 = scmp.eq.s32.totalorder %s33, 1
      %p135 = por %p133, %p134
      %p136 = scmp.ne.s32.totalorder %s127, %s128
      %p137 = scmp.eq.s32.totalorder %s33, 0
      %p138 = por %p136, %p137
      %p139 = scmp.ne.s32.totalorder %s127, %s128
      %p140 = scmp.eq.s32.totalorder %s34, 1
      %p141 = por %p139, %p140
      %p143 = scmp.ne.s32.totalorder %s128, %s142
      %p144 = scmp.eq.s32.totalorder %s34, 0
      %p145 = por %p143, %p144
      %s147 = sadd.s32 %s146, 1
      %p150 = scmp.eq.s32.totalorder %s28, 1
      %p151 = scmp.ne.s32.totalorder %s146, %s148
      %p152 = scmp.eq.s32.totalorder %s28, 0
      %p153 = por %p151, %p152
      %p154 = scmp.ne.s32.totalorder %s146, %s148
      %p155 = scmp.eq.s32.totalorder %s33, 1
      %p156 = por %p154, %p155
      %p157 = scmp.ne.s32.totalorder %s148, %s149
      %p158 = scmp.eq.s32.totalorder %s33, 0
      %p159 = por %p157, %p158
      %p160 = scmp.ne.s32.totalorder %s148, %s149
      %p161 = scmp.eq.s32.totalorder %s34, 1
      %p162 = por %p160, %p161
      %p164 = scmp.ne.s32.totalorder %s149, %s163
      %p165 = scmp.eq.s32.totalorder %s34, 0
      %p166 = por %p164, %p165
      %s168 = sadd.s32 %s167, 1
      %p171 = scmp.eq.s32.totalorder %s28, 1
      %p172 = scmp.ne.s32.totalorder %s167, %s169
      %p173 = scmp.eq.s32.totalorder %s28, 0
      %p174 = por %p172, %p173
      %p175 = scmp.ne.s32.totalorder %s167, %s169
      %p176 = scmp.eq.s32.totalorder %s33, 1
      %p177 = por %p175, %p176
      %p178 = scmp.ne.s32.totalorder %s169, %s170
      %p179 = scmp.eq.s32.totalorder %s33, 0
      %p180 = por %p178, %p179
      %p181 = scmp.ne.s32.totalorder %s169, %s170
      %p182 = scmp.eq.s32.totalorder %s34, 1
      %p183 = por %p181, %p182
      %p185 = scmp.ne.s32.totalorder %s170, %s184
      %p186 = scmp.eq.s32.totalorder %s34, 0
      %p187 = por %p185, %p186
      %s189 = sadd.s32 %s188, 1
      %p192 = scmp.eq.s32.totalorder %s28, 1
      %p193 = scmp.ne.s32.totalorder %s188, %s190
      %p194 = scmp.eq.s32.totalorder %s28, 0
      %p195 = por %p193, %p194
      %p196 = scmp.ne.s32.totalorder %s188, %s190
      %p197 = scmp.eq.s32.totalorder %s33, 1
      %p198 = por %p196, %p197
      %p199 = scmp.ne.s32.totalorder %s190, %s191
      %p200 = scmp.eq.s32.totalorder %s33, 0
      %p201 = por %p199, %p200
      %p202 = scmp.ne.s32.totalorder %s190, %s191
      %p203 = scmp.eq.s32.totalorder %s34, 1
      %p204 = por %p202, %p203
      %p206 = scmp.ne.s32.totalorder %s191, %s205
      %p207 = scmp.eq.s32.totalorder %s34, 0
      %p208 = por %p206, %p207
      %s210 = sadd.s32 %s209, 1
      %p213 = scmp.eq.s32.totalorder %s28, 1
      %p214 = scmp.ne.s32.totalorder %s209, %s211
      %p215 = scmp.eq.s32.totalorder %s28, 0
      %p216 = por %p214, %p215
      %p217 = scmp.ne.s32.totalorder %s209, %s211
      %p218 = scmp.eq.s32.totalorder %s33, 1
      %p219 = por %p217, %p218
      %p220 = scmp.ne.s32.totalorder %s211, %s212
      %p221 = scmp.eq.s32.totalorder %s33, 0
      %p222 = por %p220, %p221
      %p223 = scmp.ne.s32.totalorder %s211, %s212
      %p224 = scmp.eq.s32.totalorder %s34, 1
      %p225 = por %p223, %p224
      %p227 = scmp.ne.s32.totalorder %s212, %s226
      %p228 = scmp.eq.s32.totalorder %s34, 0
      %p229 = por %p227, %p228
      %s231 = sadd.s32 %s230, 1
      %p234 = scmp.eq.s32.totalorder %s28, 1
      %p235 = scmp.ne.s32.totalorder %s230, %s232
      %p236 = scmp.eq.s32.totalorder %s28, 0
      %p237 = por %p235, %p236
      %p238 = scmp.ne.s32.totalorder %s230, %s232
      %p239 = scmp.eq.s32.totalorder %s33, 1
      %p240 = por %p238, %p239
      %p241 = scmp.ne.s32.totalorder %s232, %s233
      %p242 = scmp.eq.s32.totalorder %s33, 0
      %p243 = por %p241, %p242
      %p244 = scmp.ne.s32.totalorder %s232, %s233
      %p245 = scmp.eq.s32.totalorder %s34, 1
      %p246 = por %p244, %p245
      %p248 = scmp.ne.s32.totalorder %s233, %s247
      %p249 = scmp.eq.s32.totalorder %s34, 0
      %p250 = por %p248, %p249
      %s252 = sadd.s32 %s251, 1
      %p255 = scmp.eq.s32.totalorder %s28, 1
      %p256 = scmp.ne.s32.totalorder %s251, %s253
      %p257 = scmp.eq.s32.totalorder %s28, 0
      %p258 = por %p256, %p257
      %p259 = scmp.ne.s32.totalorder %s251, %s253
      %p260 = scmp.eq.s32.totalorder %s33, 1
      %p261 = por %p259, %p260
      %p262 = scmp.ne.s32.totalorder %s253, %s254
      %p263 = scmp.eq.s32.totalorder %s33, 0
      %p264 = por %p262, %p263
      %p265 = scmp.ne.s32.totalorder %s253, %s254
      %p266 = scmp.eq.s32.totalorder %s34, 1
      %p267 = por %p265, %p266
      %p269 = scmp.ne.s32.totalorder %s254, %s268
      %p270 = scmp.eq.s32.totalorder %s34, 0
      %p271 = por %p269, %p270
      %s273 = sadd.s32 %s272, 1
      %p276 = scmp.eq.s32.totalorder %s28, 1
      %p277 = scmp.ne.s32.totalorder %s272, %s274
      %p278 = scmp.eq.s32.totalorder %s28, 0
      %p279 = por %p277, %p278
      %p280 = scmp.ne.s32.totalorder %s272, %s274
      %p281 = scmp.eq.s32.totalorder %s33, 1
      %p282 = por %p280, %p281
      %p283 = scmp.ne.s32.totalorder %s274, %s275
      %p284 = scmp.eq.s32.totalorder %s33, 0
      %p285 = por %p283, %p284
      %p286 = scmp.ne.s32.totalorder %s274, %s275
      %p287 = scmp.eq.s32.totalorder %s34, 1
      %p288 = por %p286, %p287
      %p290 = scmp.ne.s32.totalorder %s275, %s289
      %p291 = scmp.eq.s32.totalorder %s34, 0
      %p292 = por %p290, %p291
      %s294 = sadd.s32 %s293, 1
      %p297 = scmp.eq.s32.totalorder %s28, 1
      %p298 = scmp.ne.s32.totalorder %s293, %s295
      %p299 = scmp.eq.s32.totalorder %s28, 0
      %p300 = por %p298, %p299
      %p301 = scmp.ne.s32.totalorder %s293, %s295
      %p302 = scmp.eq.s32.totalorder %s33, 1
      %p303 = por %p301, %p302
      %p304 = scmp.ne.s32.totalorder %s295, %s296
      %p305 = scmp.eq.s32.totalorder %s33, 0
      %p306 = por %p304, %p305
      %p307 = scmp.ne.s32.totalorder %s295, %s296
      %p308 = scmp.eq.s32.totalorder %s34, 1
      %p309 = por %p307, %p308
      %p311 = scmp.ne.s32.totalorder %s296, %s310
      %p312 = scmp.eq.s32.totalorder %s34, 0
      %p313 = por %p311, %p312
      %s315 = sadd.s32 %s314, 1
      %p318 = scmp.eq.s32.totalorder %s28, 1
      %p319 = scmp.ne.s32.totalorder %s314, %s316
      %p320 = scmp.eq.s32.totalorder %s28, 0
      %p321 = por %p319, %p320
      %p322 = scmp.ne.s32.totalorder %s314, %s316
      %p323 = scmp.eq.s32.totalorder %s33, 1
      %p324 = por %p322, %p323
      %p325 = scmp.ne.s32.totalorder %s316, %s317
      %p326 = scmp.eq.s32.totalorder %s33, 0
      %p327 = por %p325, %p326
      %p328 = scmp.ne.s32.totalorder %s316, %s317
      %p329 = scmp.eq.s32.totalorder %s34, 1
      %p330 = por %p328, %p329
      %p332 = scmp.ne.s32.totalorder %s317, %s331
      %p333 = scmp.eq.s32.totalorder %s34, 0
      %p334 = por %p332, %p333
      %s336 = sadd.s32 %s335, 1
      %p339 = scmp.eq.s32.totalorder %s28, 1
      %p340 = scmp.ne.s32.totalorder %s335, %s337
      %p341 = scmp.eq.s32.totalorder %s28, 0
      %p342 = por %p340, %p341
      %p343 = scmp.ne.s32.totalorder %s335, %s337
      %p344 = scmp.eq.s32.totalorder %s33, 1
      %p345 = por %p343, %p344
      %p346 = scmp.ne.s32.totalorder %s337, %s338
      %p347 = scmp.eq.s32.totalorder %s33, 0
      %p348 = por %p346, %p347
      %p349 = scmp.ne.s32.totalorder %s337, %s338
      %p350 = scmp.eq.s32.totalorder %s34, 1
      %p351 = por %p349, %p350
      %p353 = scmp.ne.s32.totalorder %s338, %s352
      %p354 = scmp.eq.s32.totalorder %s34, 0
      %p355 = por %p353, %p354
      %s357 = sadd.s32 %s356, 1
      %p360 = scmp.eq.s32.totalorder %s28, 1
      %p361 = scmp.ne.s32.totalorder %s356, %s358
      %p362 = scmp.eq.s32.totalorder %s28, 0
      %p363 = por %p361, %p362
      %p364 = scmp.ne.s32.totalorder %s356, %s358
      %p365 = scmp.eq.s32.totalorder %s33, 1
      %p366 = por %p364, %p365
      %p367 = scmp.ne.s32.totalorder %s358, %s359
      %p368 = scmp.eq.s32.totalorder %s33, 0
      %p369 = por %p367, %p368
      %p370 = scmp.ne.s32.totalorder %s358, %s359
      %p371 = scmp.eq.s32.totalorder %s34, 1
      %p372 = por %p370, %p371
      %p374 = scmp.ne.s32.totalorder %s359, %s373
      %p375 = scmp.eq.s32.totalorder %s34, 0
      %p376 = por %p374, %p375
      %s378 = sadd.s32 %s377, 1
      %p381 = scmp.eq.s32.totalorder %s28, 1
      %p382 = scmp.ne.s32.totalorder %s377, %s379
      %p383 = scmp.eq.s32.totalorder %s28, 0
      %p384 = por %p382, %p383
      %p385 = scmp.ne.s32.totalorder %s377, %s379
      %p386 = scmp.eq.s32.totalorder %s33, 1
      %p387 = por %p385, %p386
      %p388 = scmp.ne.s32.totalorder %s379, %s380
      %p389 = scmp.eq.s32.totalorder %s33, 0
      %p390 = por %p388, %p389
      %p391 = scmp.ne.s32.totalorder %s379, %s380
      %p392 = scmp.eq.s32.totalorder %s34, 1
      %p393 = por %p391, %p392
      %p395 = scmp.ne.s32.totalorder %s380, %s394
      %p396 = scmp.eq.s32.totalorder %s34, 0
      %p397 = por %p395, %p396
      %s399 = sadd.s32 %s398, 1
      %p402 = scmp.eq.s32.totalorder %s28, 1
      %p403 = scmp.ne.s32.totalorder %s398, %s400
      %p404 = scmp.eq.s32.totalorder %s28, 0
      %p405 = por %p403, %p404
      %p406 = scmp.ne.s32.totalorder %s398, %s400
      %p407 = scmp.eq.s32.totalorder %s33, 1
      %p408 = por %p406, %p407
      %p409 = scmp.ne.s32.totalorder %s400, %s401
      %p410 = scmp.eq.s32.totalorder %s33, 0
      %p411 = por %p409, %p410
      %p412 = scmp.ne.s32.totalorder %s400, %s401
      %p413 = scmp.eq.s32.totalorder %s34, 1
      %p414 = por %p412, %p413
      %p416 = scmp.ne.s32.totalorder %s401, %s415
      %p417 = scmp.eq.s32.totalorder %s34, 0
      %p418 = por %p416, %p417
      %s420 = sadd.s32 %s419, 1
      %p423 = scmp.eq.s32.totalorder %s28, 1
      %p424 = scmp.ne.s32.totalorder %s419, %s421
      %p425 = scmp.eq.s32.totalorder %s28, 0
      %p426 = por %p424, %p425
      %p427 = scmp.ne.s32.totalorder %s419, %s421
      %p428 = scmp.eq.s32.totalorder %s33, 1
      %p429 = por %p427, %p428
      %p430 = scmp.ne.s32.totalorder %s421, %s422
      %p431 = scmp.eq.s32.totalorder %s33, 0
      %p432 = por %p430, %p431
      %p433 = scmp.ne.s32.totalorder %s421, %s422
      %p434 = scmp.eq.s32.totalorder %s34, 1
      %p435 = por %p433, %p434
      %p437 = scmp.ne.s32.totalorder %s422, %s436
      %p438 = scmp.eq.s32.totalorder %s34, 0
      %p439 = por %p437, %p438
      %s440 = ssub.s32 %s28, %s35
      %p441 = scmp.eq.s32.totalorder %s440, 0
      %s443 = sadd.s32 %s442, 1
      %s444 = scalar_select %p441, %s442, %s443
      %p447 = pneg %p441
      %p448 = scmp.eq.s32.totalorder %s28, 1
      %p449 = por %p447, %p448
      %p450 = scmp.ne.s32.totalorder %s442, %s445
      %p451 = scmp.eq.s32.totalorder %s28, 0
      %p452 = por %p450, %p451
      %p453 = scmp.ne.s32.totalorder %s442, %s445
      %p454 = scmp.eq.s32.totalorder %s33, 1
      %p455 = por %p453, %p454
      %p456 = scmp.ne.s32.totalorder %s445, %s446
      %p457 = scmp.eq.s32.totalorder %s33, 0
      %p458 = por %p456, %p457
      %p459 = scmp.ne.s32.totalorder %s445, %s446
      %p460 = scmp.eq.s32.totalorder %s34, 1
      %p461 = por %p459, %p460
      %p463 = scmp.ne.s32.totalorder %s446, %s462
      %p464 = scmp.eq.s32.totalorder %s34, 0
      %p465 = por %p463, %p464
      %p466 = scmp.le.s32.totalorder 1, %s28
      %p467 = scmp.lt.s32.totalorder %s28, 3
      %p468 = pnand %p466, %p467
      %p469 = pneg %p468
      // Predicated region
      $region9: #{autoencoder_forward.1} parent=5 // pred_check
        _
      $region10: #{autoencoder_forward.1} parent=5 // pred_check_branch
        %471 = sbr.rel (%p468) target = $region12
      $region11: #{autoencoder_forward.1} parent=5 // pred_region
        %s472 = ssub.s32 %s28, 1
        // Predicated region
        $region13: #{autoencoder_forward.1} parent=11 // pred_check
          %p473 = pneg %p75
        $region14: #{autoencoder_forward.1} parent=11 // pred_check_branch
          %475 = sbr.rel (%p473) target = $region16
        $region15: #{autoencoder_forward.1} parent=11 // pred_region
          _
        $region16: #{autoencoder_forward.1} parent=11 // pred_fallthru
          _
        // Predicated region
        $region17: #{autoencoder_forward.1} parent=11 // pred_check
          %p476 = pneg %p96
        $region18: #{autoencoder_forward.1} parent=11 // pred_check_branch
          %478 = sbr.rel (%p476) target = $region20
        $region19: #{autoencoder_forward.1} parent=11 // pred_region
          _
        $region20: #{autoencoder_forward.1} parent=11 // pred_fallthru
          _
        // Predicated region
        $region21: #{autoencoder_forward.1} parent=11 // pred_check
          %p479 = pneg %p117
        $region22: #{autoencoder_forward.1} parent=11 // pred_check_branch
          %481 = sbr.rel (%p479) target = $region24
        $region23: #{autoencoder_forward.1} parent=11 // pred_region
          _
        $region24: #{autoencoder_forward.1} parent=11 // pred_fallthru
          _
        // Predicated region
        $region25: #{autoencoder_forward.1} parent=11 // pred_check
          %p482 = pneg %p138
        $region26: #{autoencoder_forward.1} parent=11 // pred_check_branch
          %484 = sbr.rel (%p482) target = $region28
        $region27: #{autoencoder_forward.1} parent=11 // pred_region
          _
        $region28: #{autoencoder_forward.1} parent=11 // pred_fallthru
          _
        // Predicated region
        $region29: #{autoencoder_forward.1} parent=11 // pred_check
          %p485 = pneg %p159
        $region30: #{autoencoder_forward.1} parent=11 // pred_check_branch
          %487 = sbr.rel (%p485) target = $region32
        $region31: #{autoencoder_forward.1} parent=11 // pred_region
          _
        $region32: #{autoencoder_forward.1} parent=11 // pred_fallthru
          _
        // Predicated region
        $region33: #{autoencoder_forward.1} parent=11 // pred_check
          %p488 = pneg %p180
        $region34: #{autoencoder_forward.1} parent=11 // pred_check_branch
          %490 = sbr.rel (%p488) target = $region36
        $region35: #{autoencoder_forward.1} parent=11 // pred_region
          _
        $region36: #{autoencoder_forward.1} parent=11 // pred_fallthru
          _
        // Predicated region
        $region37: #{autoencoder_forward.1} parent=11 // pred_check
          %p491 = pneg %p201
        $region38: #{autoencoder_forward.1} parent=11 // pred_check_branch
          %493 = sbr.rel (%p491) target = $region40
        $region39: #{autoencoder_forward.1} parent=11 // pred_region
          _
        $region40: #{autoencoder_forward.1} parent=11 // pred_fallthru
          _
        // Predicated region
        $region41: #{autoencoder_forward.1} parent=11 // pred_check
          %p494 = pneg %p222
        $region42: #{autoencoder_forward.1} parent=11 // pred_check_branch
          %496 = sbr.rel (%p494) target = $region44
        $region43: #{autoencoder_forward.1} parent=11 // pred_region
          _
        $region44: #{autoencoder_forward.1} parent=11 // pred_fallthru
          _
        // Predicated region
        $region45: #{autoencoder_forward.1} parent=11 // pred_check
          %p497 = pneg %p243
        $region46: #{autoencoder_forward.1} parent=11 // pred_check_branch
          %499 = sbr.rel (%p497) target = $region48
        $region47: #{autoencoder_forward.1} parent=11 // pred_region
          _
        $region48: #{autoencoder_forward.1} parent=11 // pred_fallthru
          _
        // Predicated region
        $region49: #{autoencoder_forward.1} parent=11 // pred_check
          %p500 = pneg %p264
        $region50: #{autoencoder_forward.1} parent=11 // pred_check_branch
          %502 = sbr.rel (%p500) target = $region52
        $region51: #{autoencoder_forward.1} parent=11 // pred_region
          _
        $region52: #{autoencoder_forward.1} parent=11 // pred_fallthru
          _
        // Predicated region
        $region53: #{autoencoder_forward.1} parent=11 // pred_check
          %p503 = pneg %p285
        $region54: #{autoencoder_forward.1} parent=11 // pred_check_branch
          %505 = sbr.rel (%p503) target = $region56
        $region55: #{autoencoder_forward.1} parent=11 // pred_region
          _
        $region56: #{autoencoder_forward.1} parent=11 // pred_fallthru
          _
        // Predicated region
        $region57: #{autoencoder_forward.1} parent=11 // pred_check
          %p506 = pneg %p306
        $region58: #{autoencoder_forward.1} parent=11 // pred_check_branch
          %508 = sbr.rel (%p506) target = $region60
        $region59: #{autoencoder_forward.1} parent=11 // pred_region
          _
        $region60: #{autoencoder_forward.1} parent=11 // pred_fallthru
          _
        // Predicated region
        $region61: #{autoencoder_forward.1} parent=11 // pred_check
          %p509 = pneg %p327
        $region62: #{autoencoder_forward.1} parent=11 // pred_check_branch
          %511 = sbr.rel (%p509) target = $region64
        $region63: #{autoencoder_forward.1} parent=11 // pred_region
          _
        $region64: #{autoencoder_forward.1} parent=11 // pred_fallthru
          _
        // Predicated region
        $region65: #{autoencoder_forward.1} parent=11 // pred_check
          %p512 = pneg %p348
        $region66: #{autoencoder_forward.1} parent=11 // pred_check_branch
          %514 = sbr.rel (%p512) target = $region68
        $region67: #{autoencoder_forward.1} parent=11 // pred_region
          _
        $region68: #{autoencoder_forward.1} parent=11 // pred_fallthru
          _
        // Predicated region
        $region69: #{autoencoder_forward.1} parent=11 // pred_check
          %p515 = pneg %p369
        $region70: #{autoencoder_forward.1} parent=11 // pred_check_branch
          %517 = sbr.rel (%p515) target = $region72
        $region71: #{autoencoder_forward.1} parent=11 // pred_region
          _
        $region72: #{autoencoder_forward.1} parent=11 // pred_fallthru
          _
        // Predicated region
        $region73: #{autoencoder_forward.1} parent=11 // pred_check
          %p518 = pneg %p390
        $region74: #{autoencoder_forward.1} parent=11 // pred_check_branch
          %520 = sbr.rel (%p518) target = $region76
        $region75: #{autoencoder_forward.1} parent=11 // pred_region
          _
        $region76: #{autoencoder_forward.1} parent=11 // pred_fallthru
          _
        // Predicated region
        $region77: #{autoencoder_forward.1} parent=11 // pred_check
          %p521 = pneg %p411
        $region78: #{autoencoder_forward.1} parent=11 // pred_check_branch
          %523 = sbr.rel (%p521) target = $region80
        $region79: #{autoencoder_forward.1} parent=11 // pred_region
          _
        $region80: #{autoencoder_forward.1} parent=11 // pred_fallthru
          _
        // Predicated region
        $region81: #{autoencoder_forward.1} parent=11 // pred_check
          %p524 = pneg %p432
        $region82: #{autoencoder_forward.1} parent=11 // pred_check_branch
          %526 = sbr.rel (%p524) target = $region84
        $region83: #{autoencoder_forward.1} parent=11 // pred_region
          _
        $region84: #{autoencoder_forward.1} parent=11 // pred_fallthru
          _
      $region12: #{autoencoder_forward.1} parent=5 // pred_fallthru
        _
      %p527 = scmp.lt.s32.totalorder %s28, 2
      // Predicated region
      $region85: #{autoencoder_forward.1} parent=5 // pred_check
        %p528 = pneg %p527
      $region86: #{autoencoder_forward.1} parent=5 // pred_check_branch
        %530 = sbr.rel (%p528) target = $region88
      $region87: #{autoencoder_forward.1} parent=5 // pred_region
        // Predicated region
        $region89: #{autoencoder_forward.1} parent=87 // pred_check
          %p531 = pneg %p48
        $region90: #{autoencoder_forward.1} parent=87 // pred_check_branch
          %533 = sbr.rel (%p531) target = $region92
        $region91: #{autoencoder_forward.1} parent=87 // pred_region
          %p534 = scmp.lt.s32.totalorder %s28, 1
          %s535 = scalar_select %p534, %s28, 1
          %s536 = smul.addr %s535, 8
          %s537 = scalar_lea.vmem %s0, %s536
        $region92: #{autoencoder_forward.1} parent=87 // pred_fallthru
          _
      $region88: #{autoencoder_forward.1} parent=5 // pred_fallthru
        _
      %p538 = scmp.le.s32.totalorder 1, %s28
      %p539 = scmp.lt.s32.totalorder %s28, 3
      %p540 = pnand %p538, %p539
      %p541 = pneg %p540
      // Predicated region
      $region93: #{autoencoder_forward.1} parent=5 // pred_check
        _
      $region94: #{autoencoder_forward.1} parent=5 // pred_check_branch
        %543 = sbr.rel (%p540) target = $region96
      $region95: #{autoencoder_forward.1} parent=5 // pred_region
        %s544 = ssub.s32 %s28, 1
        %p545 = scmp.lt.s32.totalorder %s33, 1
        %s546 = scalar_select %p545, %s33, 1
        %s547 = smul.addr %s546, 8
        %s548 = scalar_lea.vmem %s0, %s547
        %p549 = pneg %p54
        %p550 = pneg %p51
        %p551 = pneg %p75
        %p552 = pneg %p72
        %p553 = pneg %p96
        %p554 = pneg %p93
        %p555 = pneg %p117
        %p556 = pneg %p114
        %p557 = pneg %p138
        %p558 = pneg %p135
        %p559 = pneg %p159
        %p560 = pneg %p156
        %p561 = pneg %p180
        %p562 = pneg %p177
        %p563 = pneg %p201
        %p564 = pneg %p198
        %p565 = pneg %p222
        %p566 = pneg %p219
        %p567 = pneg %p243
        %p568 = pneg %p240
        %p569 = pneg %p264
        %p570 = pneg %p261
        %p571 = pneg %p285
        %p572 = pneg %p282
        %p573 = pneg %p306
        %p574 = pneg %p303
        %p575 = pneg %p327
        %p576 = pneg %p324
        %p577 = pneg %p348
        %p578 = pneg %p345
        %p579 = pneg %p369
        %p580 = pneg %p366
        %p581 = pneg %p390
        %p582 = pneg %p387
        %p583 = pneg %p411
        %p584 = pneg %p408
        %p585 = pneg %p432
        %p586 = pneg %p429
        %p587 = pneg %p458
        %p588 = pneg %p455
        %s589 = sand.u32 %s445, 1
        %s590 = scalar_lea.sflag [#allocation3], %s589
        %s591 = sand.u32 %s445, 1
        %s592 = smul.addr %s591, 8
        %s593 = scalar_lea.vmem [#allocation2], %s592
        %p594 = scmp.lt.s32.totalorder %s33, 1
        %s595 = scalar_select %p594, %s33, 1
        %s596 = smul.addr %s595, 8
        %s597 = scalar_lea.vmem %s0, %s596
        %v598 = vld [vmem:[%s597] sm:$0xff]
        %v599 = vld [vmem:[%s3] sm:$0xff]
        %v600 = vld [vmem:[%s3 + $0x8] sm:$0xff]
        %v601 = vld [vmem:[%s3 + $0x10] sm:$0xff]
        %v602 = vld [vmem:[%s3 + $0x18] sm:$0xff]
        %v603 = vld [vmem:[%s3 + $0x20] sm:$0xff]
        %v604 = vld [vmem:[%s3 + $0x28] sm:$0xff]
        %v605 = vld [vmem:[%s3 + $0x30] sm:$0xff]
        %v606 = vld [vmem:[%s3 + $0x38] sm:$0xff]
        %v607 = vld [vmem:[%s3 + $0x40] sm:$0xff]
        %v608 = vld [vmem:[%s3 + $0x48] sm:$0xff]
        %v609 = vld [vmem:[%s3 + $0x50] sm:$0xff]
        %v610 = vld [vmem:[%s3 + $0x58] sm:$0xff]
        %v611 = vld [vmem:[%s3 + $0x60] sm:$0xff]
        %v612 = vld [vmem:[%s3 + $0x68] sm:$0xff]
        %v613 = vld [vmem:[%s3 + $0x70] sm:$0xff]
        %v614 = vld [vmem:[%s3 + $0x78] sm:$0xff]
        %615 = vmatprep.subr.mxu0 0.0
        %616 = vmatpush1.msra.mxu0 %v599
        %617 = vmatprep.subr.mxu0 0.0
        %618 = vmatpush1.msra.mxu0 %v600
        %619 = vmatprep.subr.mxu0 0.0
        %620 = vmatpush1.msra.mxu0 %v601
        %621 = vmatprep.subr.mxu0 0.0
        %622 = vmatpush1.msra.mxu0 %v602
        %623 = vmatprep.subr.mxu0 0.0
        %624 = vmatpush1.msra.mxu0 %v603
        %625 = vmatprep.subr.mxu0 0.0
        %626 = vmatpush1.msra.mxu0 %v604
        %627 = vmatprep.subr.mxu0 0.0
        %628 = vmatpush1.msra.mxu0 %v605
        %629 = vmatprep.subr.mxu0 0.0
        %630 = vmatpush1.msra.mxu0 %v606
        %631 = vmatprep.subr.mxu0 0.0
        %632 = vmatpush1.msra.mxu0 %v607
        %633 = vmatprep.subr.mxu0 0.0
        %634 = vmatpush1.msra.mxu0 %v608
        %635 = vmatprep.subr.mxu0 0.0
        %636 = vmatpush1.msra.mxu0 %v609
        %637 = vmatprep.subr.mxu0 0.0
        %638 = vmatpush1.msra.mxu0 %v610
        %639 = vmatprep.subr.mxu0 0.0
        %640 = vmatpush1.msra.mxu0 %v611
        %641 = vmatprep.subr.mxu0 0.0
        %642 = vmatpush1.msra.mxu0 %v612
        %643 = vmatprep.subr.mxu0 0.0
        %644 = vmatpush1.msra.mxu0 %v613
        %645 = vmatprep.subr.mxu0 0.0
        %646 = vmatpush1.msra.mxu0 %v614
        %647 = vmatprep.subr.mxu0 0.0
        %648 = vmatpush1.msra.mxu0 0.0
        %649 = vmatprep.subr.mxu0 0.0
        %650 = vmatpush1.msra.mxu0 0.0
        %651 = vmatprep.subr.mxu0 0.0
        %652 = vmatpush1.msra.mxu0 0.0
        %653 = vmatprep.subr.mxu0 0.0
        %654 = vmatpush1.msra.mxu0 0.0
        %655 = vmatprep.subr.mxu0 0.0
        %656 = vmatpush1.msra.mxu0 0.0
        %657 = vmatprep.subr.mxu0 0.0
        %658 = vmatpush1.msra.mxu0 0.0
        %659 = vmatprep.subr.mxu0 0.0
        %660 = vmatpush1.msra.mxu0 0.0
        %661 = vmatprep.subr.mxu0 0.0
        %662 = vmatpush1.msra.mxu0 0.0
        %663 = vmatprep.subr.mxu0 0.0
        %664 = vmatpush1.msra.mxu0 0.0
        %665 = vmatprep.subr.mxu0 0.0
        %666 = vmatpush1.msra.mxu0 0.0
        %667 = vmatprep.subr.mxu0 0.0
        %668 = vmatpush1.msra.mxu0 0.0
        %669 = vmatprep.subr.mxu0 0.0
        %670 = vmatpush1.msra.mxu0 0.0
        %671 = vmatprep.subr.mxu0 0.0
        %672 = vmatpush1.msra.mxu0 0.0
        %673 = vmatprep.subr.mxu0 0.0
        %674 = vmatpush1.msra.mxu0 0.0
        %675 = vmatprep.subr.mxu0 0.0
        %676 = vmatpush1.msra.mxu0 0.0
        %677 = vmatprep.subr.mxu0 0.0
        %678 = vmatpush1.msra.mxu0 0.0
        %679 = vmatprep.mubr.f32.mxu0 0.0
        %680 = vmatmul.mubr.f32.gmra.mrb[0].mxu0 %v598
        %v681 = vpop.f32.mrb[0].mxu0
        %v682 = vadd.f32 0.0, %v681
        %v683 = vpop.f32.mrb[0].mxu0
        %684 = vdwg.mxu0
        %s685 = scalar_lea.vmem %s3, 128
        %v686 = vld [vmem:[%s685] sm:$0xff]
        %v687 = vld [vmem:[%s685 + $0x8] sm:$0xff]
        %v688 = vld [vmem:[%s685 + $0x10] sm:$0xff]
        %v689 = vld [vmem:[%s685 + $0x18] sm:$0xff]
        %v690 = vld [vmem:[%s685 + $0x20] sm:$0xff]
        %v691 = vld [vmem:[%s685 + $0x28] sm:$0xff]
        %v692 = vld [vmem:[%s685 + $0x30] sm:$0xff]
        %v693 = vld [vmem:[%s685 + $0x38] sm:$0xff]
        %v694 = vld [vmem:[%s685 + $0x40] sm:$0xff]
        %v695 = vld [vmem:[%s685 + $0x48] sm:$0xff]
        %v696 = vld [vmem:[%s685 + $0x50] sm:$0xff]
        %v697 = vld [vmem:[%s685 + $0x58] sm:$0xff]
        %v698 = vld [vmem:[%s685 + $0x60] sm:$0xff]
        %v699 = vld [vmem:[%s685 + $0x68] sm:$0xff]
        %v700 = vld [vmem:[%s685 + $0x70] sm:$0xff]
        %v701 = vld [vmem:[%s685 + $0x78] sm:$0xff]
        %702 = vmatprep.subr.mxu0 0.0
        %703 = vmatpush1.msra.mxu0 %v686
        %704 = vmatprep.subr.mxu0 0.0
        %705 = vmatpush1.msra.mxu0 %v687
        %706 = vmatprep.subr.mxu0 0.0
        %707 = vmatpush1.msra.mxu0 %v688
        %708 = vmatprep.subr.mxu0 0.0
        %709 = vmatpush1.msra.mxu0 %v689
        %710 = vmatprep.subr.mxu0 0.0
        %711 = vmatpush1.msra.mxu0 %v690
        %712 = vmatprep.subr.mxu0 0.0
        %713 = vmatpush1.msra.mxu0 %v691
        %714 = vmatprep.subr.mxu0 0.0
        %715 = vmatpush1.msra.mxu0 %v692
        %716 = vmatprep.subr.mxu0 0.0
        %717 = vmatpush1.msra.mxu0 %v693
        %718 = vmatprep.subr.mxu0 0.0
        %719 = vmatpush1.msra.mxu0 %v694
        %720 = vmatprep.subr.mxu0 0.0
        %721 = vmatpush1.msra.mxu0 %v695
        %722 = vmatprep.subr.mxu0 0.0
        %723 = vmatpush1.msra.mxu0 %v696
        %724 = vmatprep.subr.mxu0 0.0
        %725 = vmatpush1.msra.mxu0 %v697
        %726 = vmatprep.subr.mxu0 0.0
        %727 = vmatpush1.msra.mxu0 %v698
        %728 = vmatprep.subr.mxu0 0.0
        %729 = vmatpush1.msra.mxu0 %v699
        %730 = vmatprep.subr.mxu0 0.0
        %731 = vmatpush1.msra.mxu0 %v700
        %732 = vmatprep.subr.mxu0 0.0
        %733 = vmatpush1.msra.mxu0 %v701
        %734 = vmatprep.subr.mxu0 0.0
        %735 = vmatpush1.msra.mxu0 0.0
        %736 = vmatprep.subr.mxu0 0.0
        %737 = vmatpush1.msra.mxu0 0.0
        %738 = vmatprep.subr.mxu0 0.0
        %739 = vmatpush1.msra.mxu0 0.0
        %740 = vmatprep.subr.mxu0 0.0
        %741 = vmatpush1.msra.mxu0 0.0
        %742 = vmatprep.subr.mxu0 0.0
        %743 = vmatpush1.msra.mxu0 0.0
        %744 = vmatprep.subr.mxu0 0.0
        %745 = vmatpush1.msra.mxu0 0.0
        %746 = vmatprep.subr.mxu0 0.0
        %747 = vmatpush1.msra.mxu0 0.0
        %748 = vmatprep.subr.mxu0 0.0
        %749 = vmatpush1.msra.mxu0 0.0
        %750 = vmatprep.subr.mxu0 0.0
        %751 = vmatpush1.msra.mxu0 0.0
        %752 = vmatprep.subr.mxu0 0.0
        %753 = vmatpush1.msra.mxu0 0.0
        %754 = vmatprep.subr.mxu0 0.0
        %755 = vmatpush1.msra.mxu0 0.0
        %756 = vmatprep.subr.mxu0 0.0
        %757 = vmatpush1.msra.mxu0 0.0
        %758 = vmatprep.subr.mxu0 0.0
        %759 = vmatpush1.msra.mxu0 0.0
        %760 = vmatprep.subr.mxu0 0.0
        %761 = vmatpush1.msra.mxu0 0.0
        %762 = vmatprep.subr.mxu0 0.0
        %763 = vmatpush1.msra.mxu0 0.0
        %764 = vmatprep.subr.mxu0 0.0
        %765 = vmatpush1.msra.mxu0 0.0
        %766 = vmatprep.mubr.f32.mxu0 0.0
        %767 = vmatmul.mubr.f32.gmra.mrb[0].mxu0 %v598
        %v768 = vpop.f32.mrb[0].mxu0
        %v769 = vadd.f32 0.0, %v768
        %v770 = vpop.f32.mrb[0].mxu0
        %771 = vdwg.mxu0
        %s772 = scalar_lea.vmem %s3, 256
        %v773 = vld [vmem:[%s772] sm:$0xff]
        %v774 = vld [vmem:[%s772 + $0x8] sm:$0xff]
        %v775 = vld [vmem:[%s772 + $0x10] sm:$0xff]
        %v776 = vld [vmem:[%s772 + $0x18] sm:$0xff]
        %v777 = vld [vmem:[%s772 + $0x20] sm:$0xff]
        %v778 = vld [vmem:[%s772 + $0x28] sm:$0xff]
        %v779 = vld [vmem:[%s772 + $0x30] sm:$0xff]
        %v780 = vld [vmem:[%s772 + $0x38] sm:$0xff]
        %v781 = vld [vmem:[%s772 + $0x40] sm:$0xff]
        %v782 = vld [vmem:[%s772 + $0x48] sm:$0xff]
        %v783 = vld [vmem:[%s772 + $0x50] sm:$0xff]
        %v784 = vld [vmem:[%s772 + $0x58] sm:$0xff]
        %v785 = vld [vmem:[%s772 + $0x60] sm:$0xff]
        %v786 = vld [vmem:[%s772 + $0x68] sm:$0xff]
        %v787 = vld [vmem:[%s772 + $0x70] sm:$0xff]
        %v788 = vld [vmem:[%s772 + $0x78] sm:$0xff]
        %789 = vmatprep.subr.mxu0 0.0
        %790 = vmatpush1.msra.mxu0 %v773
        %791 = vmatprep.subr.mxu0 0.0
        %792 = vmatpush1.msra.mxu0 %v774
        %793 = vmatprep.subr.mxu0 0.0
        %794 = vmatpush1.msra.mxu0 %v775
        %795 = vmatprep.subr.mxu0 0.0
        %796 = vmatpush1.msra.mxu0 %v776
        %797 = vmatprep.subr.mxu0 0.0
        %798 = vmatpush1.msra.mxu0 %v777
        %799 = vmatprep.subr.mxu0 0.0
        %800 = vmatpush1.msra.mxu0 %v778
        %801 = vmatprep.subr.mxu0 0.0
        %802 = vmatpush1.msra.mxu0 %v779
        %803 = vmatprep.subr.mxu0 0.0
        %804 = vmatpush1.msra.mxu0 %v780
        %805 = vmatprep.subr.mxu0 0.0
        %806 = vmatpush1.msra.mxu0 %v781
        %807 = vmatprep.subr.mxu0 0.0
        %808 = vmatpush1.msra.mxu0 %v782
        %809 = vmatprep.subr.mxu0 0.0
        %810 = vmatpush1.msra.mxu0 %v783
        %811 = vmatprep.subr.mxu0 0.0
        %812 = vmatpush1.msra.mxu0 %v784
        %813 = vmatprep.subr.mxu0 0.0
        %814 = vmatpush1.msra.mxu0 %v785
        %815 = vmatprep.subr.mxu0 0.0
        %816 = vmatpush1.msra.mxu0 %v786
        %817 = vmatprep.subr.mxu0 0.0
        %818 = vmatpush1.msra.mxu0 %v787
        %819 = vmatprep.subr.mxu0 0.0
        %820 = vmatpush1.msra.mxu0 %v788
        %821 = vmatprep.subr.mxu0 0.0
        %822 = vmatpush1.msra.mxu0 0.0
        %823 = vmatprep.subr.mxu0 0.0
        %824 = vmatpush1.msra.mxu0 0.0
        %825 = vmatprep.subr.mxu0 0.0
        %826 = vmatpush1.msra.mxu0 0.0
        %827 = vmatprep.subr.mxu0 0.0
        %828 = vmatpush1.msra.mxu0 0.0
        %829 = vmatprep.subr.mxu0 0.0
        %830 = vmatpush1.msra.mxu0 0.0
        %831 = vmatprep.subr.mxu0 0.0
        %832 = vmatpush1.msra.mxu0 0.0
        %833 = vmatprep.subr.mxu0 0.0
        %834 = vmatpush1.msra.mxu0 0.0
        %835 = vmatprep.subr.mxu0 0.0
        %836 = vmatpush1.msra.mxu0 0.0
        %837 = vmatprep.subr.mxu0 0.0
        %838 = vmatpush1.msra.mxu0 0.0
        %839 = vmatprep.subr.mxu0 0.0
        %840 = vmatpush1.msra.mxu0 0.0
        %841 = vmatprep.subr.mxu0 0.0
        %842 = vmatpush1.msra.mxu0 0.0
        %843 = vmatprep.subr.mxu0 0.0
        %844 = vmatpush1.msra.mxu0 0.0
        %845 = vmatprep.subr.mxu0 0.0
        %846 = vmatpush1.msra.mxu0 0.0
        %847 = vmatprep.subr.mxu0 0.0
        %848 = vmatpush1.msra.mxu0 0.0
        %849 = vmatprep.subr.mxu0 0.0
        %850 = vmatpush1.msra.mxu0 0.0
        %851 = vmatprep.subr.mxu0 0.0
        %852 = vmatpush1.msra.mxu0 0.0
        %853 = vmatprep.mubr.f32.mxu0 0.0
        %854 = vmatmul.mubr.f32.gmra.mrb[0].mxu0 %v598
        %v855 = vpop.f32.mrb[0].mxu0
        %v856 = vadd.f32 0.0, %v855
        %v857 = vpop.f32.mrb[0].mxu0
        %858 = vdwg.mxu0
        %s859 = scalar_lea.vmem %s3, 384
        %v860 = vld [vmem:[%s859] sm:$0xff]
        %v861 = vld [vmem:[%s859 + $0x8] sm:$0xff]
        %v862 = vld [vmem:[%s859 + $0x10] sm:$0xff]
        %v863 = vld [vmem:[%s859 + $0x18] sm:$0xff]
        %v864 = vld [vmem:[%s859 + $0x20] sm:$0xff]
        %v865 = vld [vmem:[%s859 + $0x28] sm:$0xff]
        %v866 = vld [vmem:[%s859 + $0x30] sm:$0xff]
        %v867 = vld [vmem:[%s859 + $0x38] sm:$0xff]
        %v868 = vld [vmem:[%s859 + $0x40] sm:$0xff]
        %v869 = vld [vmem:[%s859 + $0x48] sm:$0xff]
        %v870 = vld [vmem:[%s859 + $0x50] sm:$0xff]
        %v871 = vld [vmem:[%s859 + $0x58] sm:$0xff]
        %v872 = vld [vmem:[%s859 + $0x60] sm:$0xff]
        %v873 = vld [vmem:[%s859 + $0x68] sm:$0xff]
        %v874 = vld [vmem:[%s859 + $0x70] sm:$0xff]
        %v875 = vld [vmem:[%s859 + $0x78] sm:$0xff]
        %876 = vmatprep.subr.mxu0 0.0
        %877 = vmatpush1.msra.mxu0 %v860
        %878 = vmatprep.subr.mxu0 0.0
        %879 = vmatpush1.msra.mxu0 %v861
        %880 = vmatprep.subr.mxu0 0.0
        %881 = vmatpush1.msra.mxu0 %v862
        %882 = vmatprep.subr.mxu0 0.0
        %883 = vmatpush1.msra.mxu0 %v863
        %884 = vmatprep.subr.mxu0 0.0
        %885 = vmatpush1.msra.mxu0 %v864
        %886 = vmatprep.subr.mxu0 0.0
        %887 = vmatpush1.msra.mxu0 %v865
        %888 = vmatprep.subr.mxu0 0.0
        %889 = vmatpush1.msra.mxu0 %v866
        %890 = vmatprep.subr.mxu0 0.0
        %891 = vmatpush1.msra.mxu0 %v867
        %892 = vmatprep.subr.mxu0 0.0
        %893 = vmatpush1.msra.mxu0 %v868
        %894 = vmatprep.subr.mxu0 0.0
        %895 = vmatpush1.msra.mxu0 %v869
        %896 = vmatprep.subr.mxu0 0.0
        %897 = vmatpush1.msra.mxu0 %v870
        %898 = vmatprep.subr.mxu0 0.0
        %899 = vmatpush1.msra.mxu0 %v871
        %900 = vmatprep.subr.mxu0 0.0
        %901 = vmatpush1.msra.mxu0 %v872
        %902 = vmatprep.subr.mxu0 0.0
        %903 = vmatpush1.msra.mxu0 %v873
        %904 = vmatprep.subr.mxu0 0.0
        %905 = vmatpush1.msra.mxu0 %v874
        %906 = vmatprep.subr.mxu0 0.0
        %907 = vmatpush1.msra.mxu0 %v875
        %908 = vmatprep.subr.mxu0 0.0
        %909 = vmatpush1.msra.mxu0 0.0
        %910 = vmatprep.subr.mxu0 0.0
        %911 = vmatpush1.msra.mxu0 0.0
        %912 = vmatprep.subr.mxu0 0.0
        %913 = vmatpush1.msra.mxu0 0.0
        %914 = vmatprep.subr.mxu0 0.0
        %915 = vmatpush1.msra.mxu0 0.0
        %916 = vmatprep.subr.mxu0 0.0
        %917 = vmatpush1.msra.mxu0 0.0
        %918 = vmatprep.subr.mxu0 0.0
        %919 = vmatpush1.msra.mxu0 0.0
        %920 = vmatprep.subr.mxu0 0.0
        %921 = vmatpush1.msra.mxu0 0.0
        %922 = vmatprep.subr.mxu0 0.0
        %923 = vmatpush1.msra.mxu0 0.0
        %924 = vmatprep.subr.mxu0 0.0
        %925 = vmatpush1.msra.mxu0 0.0
        %926 = vmatprep.subr.mxu0 0.0
        %927 = vmatpush1.msra.mxu0 0.0
        %928 = vmatprep.subr.mxu0 0.0
        %929 = vmatpush1.msra.mxu0 0.0
        %930 = vmatprep.subr.mxu0 0.0
        %931 = vmatpush1.msra.mxu0 0.0
        %932 = vmatprep.subr.mxu0 0.0
        %933 = vmatpush1.msra.mxu0 0.0
        %934 = vmatprep.subr.mxu0 0.0
        %935 = vmatpush1.msra.mxu0 0.0
        %936 = vmatprep.subr.mxu0 0.0
        %937 = vmatpush1.msra.mxu0 0.0
        %938 = vmatprep.subr.mxu0 0.0
        %939 = vmatpush1.msra.mxu0 0.0
        %940 = vmatprep.mubr.f32.mxu0 0.0
        %941 = vmatmul.mubr.f32.gmra.mrb[0].mxu0 %v598
        %v942 = vpop.f32.mrb[0].mxu0
        %v943 = vadd.f32 0.0, %v942
        %v944 = vpop.f32.mrb[0].mxu0
        %945 = vdwg.mxu0
        %s946 = scalar_lea.vmem %s3, 512
        %v947 = vld [vmem:[%s946] sm:$0xff]
        %v948 = vld [vmem:[%s946 + $0x8] sm:$0xff]
        %v949 = vld [vmem:[%s946 + $0x10] sm:$0xff]
        %v950 = vld [vmem:[%s946 + $0x18] sm:$0xff]
        %v951 = vld [vmem:[%s946 + $0x20] sm:$0xff]
        %v952 = vld [vmem:[%s946 + $0x28] sm:$0xff]
        %v953 = vld [vmem:[%s946 + $0x30] sm:$0xff]
        %v954 = vld [vmem:[%s946 + $0x38] sm:$0xff]
        %v955 = vld [vmem:[%s946 + $0x40] sm:$0xff]
        %v956 = vld [vmem:[%s946 + $0x48] sm:$0xff]
        %v957 = vld [vmem:[%s946 + $0x50] sm:$0xff]
        %v958 = vld [vmem:[%s946 + $0x58] sm:$0xff]
        %v959 = vld [vmem:[%s946 + $0x60] sm:$0xff]
        %v960 = vld [vmem:[%s946 + $0x68] sm:$0xff]
        %v961 = vld [vmem:[%s946 + $0x70] sm:$0xff]
        %v962 = vld [vmem:[%s946 + $0x78] sm:$0xff]
        %963 = vmatprep.subr.mxu0 0.0
        %964 = vmatpush1.msra.mxu0 %v947
        %965 = vmatprep.subr.mxu0 0.0
        %966 = vmatpush1.msra.mxu0 %v948
        %967 = vmatprep.subr.mxu0 0.0
        %968 = vmatpush1.msra.mxu0 %v949
        %969 = vmatprep.subr.mxu0 0.0
        %970 = vmatpush1.msra.mxu0 %v950
        %971 = vmatprep.subr.mxu0 0.0
        %972 = vmatpush1.msra.mxu0 %v951
        %973 = vmatprep.subr.mxu0 0.0
        %974 = vmatpush1.msra.mxu0 %v952
        %975 = vmatprep.subr.mxu0 0.0
        %976 = vmatpush1.msra.mxu0 %v953
        %977 = vmatprep.subr.mxu0 0.0
        %978 = vmatpush1.msra.mxu0 %v954
        %979 = vmatprep.subr.mxu0 0.0
        %980 = vmatpush1.msra.mxu0 %v955
        %981 = vmatprep.subr.mxu0 0.0
        %982 = vmatpush1.msra.mxu0 %v956
        %983 = vmatprep.subr.mxu0 0.0
        %984 = vmatpush1.msra.mxu0 %v957
        %985 = vmatprep.subr.mxu0 0.0
        %986 = vmatpush1.msra.mxu0 %v958
        %987 = vmatprep.subr.mxu0 0.0
        %988 = vmatpush1.msra.mxu0 %v959
        %989 = vmatprep.subr.mxu0 0.0
        %990 = vmatpush1.msra.mxu0 %v960
        %991 = vmatprep.subr.mxu0 0.0
        %992 = vmatpush1.msra.mxu0 %v961
        %993 = vmatprep.subr.mxu0 0.0
        %994 = vmatpush1.msra.mxu0 %v962
        %995 = vmatprep.subr.mxu0 0.0
        %996 = vmatpush1.msra.mxu0 0.0
        %997 = vmatprep.subr.mxu0 0.0
        %998 = vmatpush1.msra.mxu0 0.0
        %999 = vmatprep.subr.mxu0 0.0
        %1000 = vmatpush1.msra.mxu0 0.0
        %1001 = vmatprep.subr.mxu0 0.0
        %1002 = vmatpush1.msra.mxu0 0.0
        %1003 = vmatprep.subr.mxu0 0.0
        %1004 = vmatpush1.msra.mxu0 0.0
        %1005 = vmatprep.subr.mxu0 0.0
        %1006 = vmatpush1.msra.mxu0 0.0
        %1007 = vmatprep.subr.mxu0 0.0
        %1008 = vmatpush1.msra.mxu0 0.0
        %1009 = vmatprep.subr.mxu0 0.0
        %1010 = vmatpush1.msra.mxu0 0.0
        %1011 = vmatprep.subr.mxu0 0.0
        %1012 = vmatpush1.msra.mxu0 0.0
        %1013 = vmatprep.subr.mxu0 0.0
        %1014 = vmatpush1.msra.mxu0 0.0
        %1015 = vmatprep.subr.mxu0 0.0
        %1016 = vmatpush1.msra.mxu0 0.0
        %1017 = vmatprep.subr.mxu0 0.0
        %1018 = vmatpush1.msra.mxu0 0.0
        %1019 = vmatprep.subr.mxu0 0.0
        %1020 = vmatpush1.msra.mxu0 0.0
        %1021 = vmatprep.subr.mxu0 0.0
        %1022 = vmatpush1.msra.mxu0 0.0
        %1023 = vmatprep.subr.mxu0 0.0
        %1024 = vmatpush1.msra.mxu0 0.0
        %1025 = vmatprep.subr.mxu0 0.0
        %1026 = vmatpush1.msra.mxu0 0.0
        %1027 = vmatprep.mubr.f32.mxu0 0.0
        %1028 = vmatmul.mubr.f32.gmra.mrb[0].mxu0 %v598
        %v1029 = vpop.f32.mrb[0].mxu0
        %v1030 = vadd.f32 0.0, %v1029
        %v1031 = vpop.f32.mrb[0].mxu0
        %1032 = vdwg.mxu0
        %v1033 = vld [vmem:[%s1] sm:$0xff]
        %v1034 = vld [vmem:[%s1 + $0x8] sm:$0xff]
        %v1035 = vld [vmem:[%s1 + $0x10] sm:$0xff]
        %v1036 = vld [vmem:[%s1 + $0x18] sm:$0xff]
        %v1037 = vld [vmem:[%s1 + $0x20] sm:$0xff]
        %v1038 = vld [vmem:[%s1 + $0x28] sm:$0xff]
        %v1039 = vld [vmem:[%s1 + $0x30] sm:$0xff]
        %v1040 = vld [vmem:[%s1 + $0x38] sm:$0xff]
        %v1041 = vld [vmem:[%s1 + $0x40] sm:$0xff]
        %v1042 = vld [vmem:[%s1 + $0x48] sm:$0xff]
        %v1043 = vld [vmem:[%s1 + $0x50] sm:$0xff]
        %v1044 = vld [vmem:[%s1 + $0x58] sm:$0xff]
        %v1045 = vld [vmem:[%s1 + $0x60] sm:$0xff]
        %v1046 = vld [vmem:[%s1 + $0x68] sm:$0xff]
        %v1047 = vld [vmem:[%s1 + $0x70] sm:$0xff]
        %v1048 = vld [vmem:[%s1 + $0x78] sm:$0xff]
        %v1049 = vld [vmem:[%s2] sm:$0xff]
        %v1050 = vld [vmem:[%s2 + $0x8] sm:$0xff]
        %v1051 = vld [vmem:[%s2 + $0x10] sm:$0xff]
        %v1052 = vld [vmem:[%s2 + $0x18] sm:$0xff]
        %v1053 = vld [vmem:[%s2 + $0x20] sm:$0xff]
        %v1054 = vld [vmem:[%s2 + $0x28] sm:$0xff]
        %v1055 = vld [vmem:[%s2 + $0x30] sm:$0xff]
        %v1056 = vld [vmem:[%s2 + $0x38] sm:$0xff]
        %v1057 = vld [vmem:[%s2 + $0x40] sm:$0xff]
        %v1058 = vld [vmem:[%s2 + $0x48] sm:$0xff]
        %v1059 = vld [vmem:[%s2 + $0x50] sm:$0xff]
        %v1060 = vld [vmem:[%s2 + $0x58] sm:$0xff]
        %v1061 = vld [vmem:[%s2 + $0x60] sm:$0xff]
        %v1062 = vld [vmem:[%s2 + $0x68] sm:$0xff]
        %v1063 = vld [vmem:[%s2 + $0x70] sm:$0xff]
        %v1064 = vld [vmem:[%s2 + $0x78] sm:$0xff]
        %1066 = vset.pattern.permute.xlu0 0
        %1067 = vperm.xlu0 %1066, %v1049
        %v1068 = vpop.permute.xlu0 %1067
        %1071 = vset.pattern.permute.xlu0 0
        %1072 = vperm.xlu0 %1071, %v1050
        %v1073 = vpop.permute.xlu0 %1072
        %1076 = vset.pattern.permute.xlu0 0
        %1077 = vperm.xlu0 %1076, %v1051
        %v1078 = vpop.permute.xlu0 %1077
        %1081 = vset.pattern.permute.xlu0 0
        %1082 = vperm.xlu0 %1081, %v1052
        %v1083 = vpop.permute.xlu0 %1082
        %1086 = vset.pattern.permute.xlu0 0
        %1087 = vperm.xlu0 %1086, %v1053
        %v1088 = vpop.permute.xlu0 %1087
        %1091 = vset.pattern.permute.xlu0 0
        %1092 = vperm.xlu0 %1091, %v1054
        %v1093 = vpop.permute.xlu0 %1092
        %1096 = vset.pattern.permute.xlu0 0
        %1097 = vperm.xlu0 %1096, %v1055
        %v1098 = vpop.permute.xlu0 %1097
        %1101 = vset.pattern.permute.xlu0 0
        %1102 = vperm.xlu0 %1101, %v1056
        %v1103 = vpop.permute.xlu0 %1102
        %1106 = vset.pattern.permute.xlu0 0
        %1107 = vperm.xlu0 %1106, %v1057
        %v1108 = vpop.permute.xlu0 %1107
        %1111 = vset.pattern.permute.xlu0 0
        %1112 = vperm.xlu0 %1111, %v1058
        %v1113 = vpop.permute.xlu0 %1112
        %1116 = vset.pattern.permute.xlu0 0
        %1117 = vperm.xlu0 %1116, %v1059
        %v1118 = vpop.permute.xlu0 %1117
        %1121 = vset.pattern.permute.xlu0 0
        %1122 = vperm.xlu0 %1121, %v1060
        %v1123 = vpop.permute.xlu0 %1122
        %1126 = vset.pattern.permute.xlu0 0
        %1127 = vperm.xlu0 %1126, %v1061
        %v1128 = vpop.permute.xlu0 %1127
        %1131 = vset.pattern.permute.xlu0 0
        %1132 = vperm.xlu0 %1131, %v1062
        %v1133 = vpop.permute.xlu0 %1132
        %1136 = vset.pattern.permute.xlu0 0
        %1137 = vperm.xlu0 %1136, %v1063
        %v1138 = vpop.permute.xlu0 %1137
        %1141 = vset.pattern.permute.xlu0 0
        %1142 = vperm.xlu0 %1141, %v1064
        %v1143 = vpop.permute.xlu0 %1142
        %vm1145 = vcmask 326656
        %v1147 = vsel %vm1145, %v1033, 0
        %v1150 = vsel %vm1145, %v1034, 0
        %v1153 = vsel %vm1145, %v1035, 0
        %v1156 = vsel %vm1145, %v1036, 0
        %v1159 = vsel %vm1145, %v1037, 0
        %v1162 = vsel %vm1145, %v1038, 0
        %v1165 = vsel %vm1145, %v1039, 0
        %v1168 = vsel %vm1145, %v1040, 0
        %v1171 = vsel %vm1145, %v1041, 0
        %v1174 = vsel %vm1145, %v1042, 0
        %v1177 = vsel %vm1145, %v1043, 0
        %v1180 = vsel %vm1145, %v1044, 0
        %v1183 = vsel %vm1145, %v1045, 0
        %v1186 = vsel %vm1145, %v1046, 0
        %v1189 = vsel %vm1145, %v1047, 0
        %v1192 = vsel %vm1145, %v1048, 0
        %1194 = vmatprep.subr.mxu0 0.0
        %1195 = vmatpush1.msra.mxu0 %v682
        %1196 = vmatprep.subr.mxu0 0.0
        %1197 = vmatpush1.msra.mxu0 %v769
        %1198 = vmatprep.subr.mxu0 0.0
        %1199 = vmatpush1.msra.mxu0 %v856
        %1200 = vmatprep.subr.mxu0 0.0
        %1201 = vmatpush1.msra.mxu0 %v943
        %1202 = vmatprep.subr.mxu0 0.0
        %1203 = vmatpush1.msra.mxu0 %v1030
        %1204 = vmatprep.subr.mxu0 0.0
        %1205 = vmatpush1.msra.mxu0 0.0
        %1206 = vmatprep.subr.mxu0 0.0
        %1207 = vmatpush1.msra.mxu0 0.0
        %1208 = vmatprep.subr.mxu0 0.0
        %1209 = vmatpush1.msra.mxu0 0.0
        %1210 = vmatprep.subr.mxu0 0.0
        %1211 = vmatpush1.msra.mxu0 0.0
        %1212 = vmatprep.subr.mxu0 0.0
        %1213 = vmatpush1.msra.mxu0 0.0
        %1214 = vmatprep.subr.mxu0 0.0
        %1215 = vmatpush1.msra.mxu0 0.0
        %1216 = vmatprep.subr.mxu0 0.0
        %1217 = vmatpush1.msra.mxu0 0.0
        %1218 = vmatprep.subr.mxu0 0.0
        %1219 = vmatpush1.msra.mxu0 0.0
        %1220 = vmatprep.subr.mxu0 0.0
        %1221 = vmatpush1.msra.mxu0 0.0
        %1222 = vmatprep.subr.mxu0 0.0
        %1223 = vmatpush1.msra.mxu0 0.0
        %1224 = vmatprep.subr.mxu0 0.0
        %1225 = vmatpush1.msra.mxu0 0.0
        %1226 = vmatprep.subr.mxu0 0.0
        %1227 = vmatpush1.msra.mxu0 0.0
        %1228 = vmatprep.subr.mxu0 0.0
        %1229 = vmatpush1.msra.mxu0 0.0
        %1230 = vmatprep.subr.mxu0 0.0
        %1231 = vmatpush1.msra.mxu0 0.0
        %1232 = vmatprep.subr.mxu0 0.0
        %1233 = vmatpush1.msra.mxu0 0.0
        %1234 = vmatprep.subr.mxu0 0.0
        %1235 = vmatpush1.msra.mxu0 0.0
        %1236 = vmatprep.subr.mxu0 0.0
        %1237 = vmatpush1.msra.mxu0 0.0
        %1238 = vmatprep.subr.mxu0 0.0
        %1239 = vmatpush1.msra.mxu0 0.0
        %1240 = vmatprep.subr.mxu0 0.0
        %1241 = vmatpush1.msra.mxu0 0.0
        %1242 = vmatprep.subr.mxu0 0.0
        %1243 = vmatpush1.msra.mxu0 0.0
        %1244 = vmatprep.subr.mxu0 0.0
        %1245 = vmatpush1.msra.mxu0 0.0
        %1246 = vmatprep.subr.mxu0 0.0
        %1247 = vmatpush1.msra.mxu0 0.0
        %1248 = vmatprep.subr.mxu0 0.0
        %1249 = vmatpush1.msra.mxu0 0.0
        %1250 = vmatprep.subr.mxu0 0.0
        %1251 = vmatpush1.msra.mxu0 0.0
        %1252 = vmatprep.subr.mxu0 0.0
        %1253 = vmatpush1.msra.mxu0 0.0
        %1254 = vmatprep.subr.mxu0 0.0
        %1255 = vmatpush1.msra.mxu0 0.0
        %1256 = vmatprep.subr.mxu0 0.0
        %1257 = vmatpush1.msra.mxu0 0.0
        %1258 = vmatprep.mubr.f32.mxu0 0.0
        %1259 = vmatmul.mubr.f32.gmra.mrb[0].mxu0 %v1147
        %v1260 = vpop.f32.mrb[0].mxu0
        %v1261 = vadd.f32 %v1068, %v1260
        %v1262 = vpop.f32.mrb[0].mxu0
        %1263 = vmatprep.mubr.f32.mxu0 0.0
        %1264 = vmatmul.mubr.f32.gmra.mrb[0].mxu0 %v1150
        %v1265 = vpop.f32.mrb[0].mxu0
        %v1266 = vadd.f32 %v1073, %v1265
        %v1267 = vpop.f32.mrb[0].mxu0
        %1268 = vmatprep.mubr.f32.mxu0 0.0
        %1269 = vmatmul.mubr.f32.gmra.mrb[0].mxu0 %v1153
        %v1270 = vpop.f32.mrb[0].mxu0
        %v1271 = vadd.f32 %v1078, %v1270
        %v1272 = vpop.f32.mrb[0].mxu0
        %1273 = vmatprep.mubr.f32.mxu0 0.0
        %1274 = vmatmul.mubr.f32.gmra.mrb[0].mxu0 %v1156
        %v1275 = vpop.f32.mrb[0].mxu0
        %v1276 = vadd.f32 %v1083, %v1275
        %v1277 = vpop.f32.mrb[0].mxu0
        %1278 = vmatprep.mubr.f32.mxu0 0.0
        %1279 = vmatmul.mubr.f32.gmra.mrb[0].mxu0 %v1159
        %v1280 = vpop.f32.mrb[0].mxu0
        %v1281 = vadd.f32 %v1088, %v1280
        %v1282 = vpop.f32.mrb[0].mxu0
        %1283 = vmatprep.mubr.f32.mxu0 0.0
        %1284 = vmatmul.mubr.f32.gmra.mrb[0].mxu0 %v1162
        %v1285 = vpop.f32.mrb[0].mxu0
        %v1286 = vadd.f32 %v1093, %v1285
        %v1287 = vpop.f32.mrb[0].mxu0
        %1288 = vmatprep.mubr.f32.mxu0 0.0
        %1289 = vmatmul.mubr.f32.gmra.mrb[0].mxu0 %v1165
        %v1290 = vpop.f32.mrb[0].mxu0
        %v1291 = vadd.f32 %v1098, %v1290
        %v1292 = vpop.f32.mrb[0].mxu0
        %1293 = vmatprep.mubr.f32.mxu0 0.0
        %1294 = vmatmul.mubr.f32.gmra.mrb[0].mxu0 %v1168
        %v1295 = vpop.f32.mrb[0].mxu0
        %v1296 = vadd.f32 %v1103, %v1295
        %v1297 = vpop.f32.mrb[0].mxu0
        %1298 = vmatprep.mubr.f32.mxu0 0.0
        %1299 = vmatmul.mubr.f32.gmra.mrb[0].mxu0 %v1171
        %v1300 = vpop.f32.mrb[0].mxu0
        %v1301 = vadd.f32 %v1108, %v1300
        %v1302 = vpop.f32.mrb[0].mxu0
        %1303 = vmatprep.mubr.f32.mxu0 0.0
        %1304 = vmatmul.mubr.f32.gmra.mrb[0].mxu0 %v1174
        %v1305 = vpop.f32.mrb[0].mxu0
        %v1306 = vadd.f32 %v1113, %v1305
        %v1307 = vpop.f32.mrb[0].mxu0
        %1308 = vmatprep.mubr.f32.mxu0 0.0
        %1309 = vmatmul.mubr.f32.gmra.mrb[0].mxu0 %v1177
        %v1310 = vpop.f32.mrb[0].mxu0
        %v1311 = vadd.f32 %v1118, %v1310
        %v1312 = vpop.f32.mrb[0].mxu0
        %1313 = vmatprep.mubr.f32.mxu0 0.0
        %1314 = vmatmul.mubr.f32.gmra.mrb[0].mxu0 %v1180
        %v1315 = vpop.f32.mrb[0].mxu0
        %v1316 = vadd.f32 %v1123, %v1315
        %v1317 = vpop.f32.mrb[0].mxu0
        %1318 = vmatprep.mubr.f32.mxu0 0.0
        %1319 = vmatmul.mubr.f32.gmra.mrb[0].mxu0 %v1183
        %v1320 = vpop.f32.mrb[0].mxu0
        %v1321 = vadd.f32 %v1128, %v1320
        %v1322 = vpop.f32.mrb[0].mxu0
        %1323 = vmatprep.mubr.f32.mxu0 0.0
        %1324 = vmatmul.mubr.f32.gmra.mrb[0].mxu0 %v1186
        %v1325 = vpop.f32.mrb[0].mxu0
        %v1326 = vadd.f32 %v1133, %v1325
        %v1327 = vpop.f32.mrb[0].mxu0
        %1328 = vmatprep.mubr.f32.mxu0 0.0
        %1329 = vmatmul.mubr.f32.gmra.mrb[0].mxu0 %v1189
        %v1330 = vpop.f32.mrb[0].mxu0
        %v1331 = vadd.f32 %v1138, %v1330
        %v1332 = vpop.f32.mrb[0].mxu0
        %1333 = vmatprep.mubr.f32.mxu0 0.0
        %1334 = vmatmul.mubr.f32.gmra.mrb[0].mxu0 %v1192
        %v1335 = vpop.f32.mrb[0].mxu0
        %v1336 = vadd.f32 %v1143, %v1335
        %v1337 = vpop.f32.mrb[0].mxu0
        %1338 = vdwg.mxu0
        %v1339 = vmax.f32 %v1261, 0.0
        %v1340 = vmax.f32 %v1266, 0.0
        %v1341 = vmax.f32 %v1271, 0.0
        %v1342 = vmax.f32 %v1276, 0.0
        %v1343 = vmax.f32 %v1281, 0.0
        %v1344 = vmax.f32 %v1286, 0.0
        %v1345 = vmax.f32 %v1291, 0.0
        %v1346 = vmax.f32 %v1296, 0.0
        %v1347 = vmax.f32 %v1301, 0.0
        %v1348 = vmax.f32 %v1306, 0.0
        %v1349 = vmax.f32 %v1311, 0.0
        %v1350 = vmax.f32 %v1316, 0.0
        %v1351 = vmax.f32 %v1321, 0.0
        %v1352 = vmax.f32 %v1326, 0.0
        %v1353 = vmax.f32 %v1331, 0.0
        %v1354 = vmax.f32 %v1336, 0.0
        %v1355 = vld [vmem:[%s6] sm:$0xff]
        %v1356 = vld [vmem:[%s6 + $0x8] sm:$0xff]
        %v1357 = vld [vmem:[%s6 + $0x10] sm:$0xff]
        %v1358 = vld [vmem:[%s6 + $0x18] sm:$0xff]
        %v1359 = vld [vmem:[%s6 + $0x20] sm:$0xff]
        %v1360 = vld [vmem:[%s6 + $0x28] sm:$0xff]
        %v1361 = vld [vmem:[%s6 + $0x30] sm:$0xff]
        %v1362 = vld [vmem:[%s6 + $0x38] sm:$0xff]
        %vm1363 = vcmask 523264
        %v1365 = vsel %vm1363, %v1339, 0
        %v1368 = vsel %vm1363, %v1340, 0
        %v1371 = vsel %vm1363, %v1341, 0
        %v1374 = vsel %vm1363, %v1342, 0
        %v1377 = vsel %vm1363, %v1343, 0
        %v1380 = vsel %vm1363, %v1344, 0
        %v1383 = vsel %vm1363, %v1345, 0
        %v1386 = vsel %vm1363, %v1346, 0
        %v1389 = vsel %vm1363, %v1347, 0
        %v1392 = vsel %vm1363, %v1348, 0
        %v1395 = vsel %vm1363, %v1349, 0
        %v1398 = vsel %vm1363, %v1350, 0
        %v1401 = vsel %vm1363, %v1351, 0
        %v1404 = vsel %vm1363, %v1352, 0
        %v1407 = vsel %vm1363, %v1353, 0
        %v1410 = vsel %vm1363, %v1354, 0
        %1412 = vmatprep.subr.mxu0 0.0
        %1413 = vmatpush1.msra.mxu0 %v1355
        %1414 = vmatprep.subr.mxu0 0.0
        %1415 = vmatpush1.msra.mxu0 %v1356
        %1416 = vmatprep.subr.mxu0 0.0
        %1417 = vmatpush1.msra.mxu0 %v1357
        %1418 = vmatprep.subr.mxu0 0.0
        %1419 = vmatpush1.msra.mxu0 %v1358
        %1420 = vmatprep.subr.mxu0 0.0
        %1421 = vmatpush1.msra.mxu0 %v1359
        %1422 = vmatprep.subr.mxu0 0.0
        %1423 = vmatpush1.msra.mxu0 %v1360
        %1424 = vmatprep.subr.mxu0 0.0
        %1425 = vmatpush1.msra.mxu0 %v1361
        %1426 = vmatprep.subr.mxu0 0.0
        %1427 = vmatpush1.msra.mxu0 %v1362
        %1428 = vmatprep.subr.mxu0 0.0
        %1429 = vmatpush1.msra.mxu0 0.0
        %1430 = vmatprep.subr.mxu0 0.0
        %1431 = vmatpush1.msra.mxu0 0.0
        %1432 = vmatprep.subr.mxu0 0.0
        %1433 = vmatpush1.msra.mxu0 0.0
        %1434 = vmatprep.subr.mxu0 0.0
        %1435 = vmatpush1.msra.mxu0 0.0
        %1436 = vmatprep.subr.mxu0 0.0
        %1437 = vmatpush1.msra.mxu0 0.0
        %1438 = vmatprep.subr.mxu0 0.0
        %1439 = vmatpush1.msra.mxu0 0.0
        %1440 = vmatprep.subr.mxu0 0.0
        %1441 = vmatpush1.msra.mxu0 0.0
        %1442 = vmatprep.subr.mxu0 0.0
        %1443 = vmatpush1.msra.mxu0 0.0
        %1444 = vmatprep.subr.mxu0 0.0
        %1445 = vmatpush1.msra.mxu0 0.0
        %1446 = vmatprep.subr.mxu0 0.0
        %1447 = vmatpush1.msra.mxu0 0.0
        %1448 = vmatprep.subr.mxu0 0.0
        %1449 = vmatpush1.msra.mxu0 0.0
        %1450 = vmatprep.subr.mxu0 0.0
        %1451 = vmatpush1.msra.mxu0 0.0
        %1452 = vmatprep.subr.mxu0 0.0
        %1453 = vmatpush1.msra.mxu0 0.0
        %1454 = vmatprep.subr.mxu0 0.0
        %1455 = vmatpush1.msra.mxu0 0.0
        %1456 = vmatprep.subr.mxu0 0.0
        %1457 = vmatpush1.msra.mxu0 0.0
        %1458 = vmatprep.subr.mxu0 0.0
        %1459 = vmatpush1.msra.mxu0 0.0
        %1460 = vmatprep.subr.mxu0 0.0
        %1461 = vmatpush1.msra.mxu0 0.0
        %1462 = vmatprep.subr.mxu0 0.0
        %1463 = vmatpush1.msra.mxu0 0.0
        %1464 = vmatprep.subr.mxu0 0.0
        %1465 = vmatpush1.msra.mxu0 0.0
        %1466 = vmatprep.subr.mxu0 0.0
        %1467 = vmatpush1.msra.mxu0 0.0
        %1468 = vmatprep.subr.mxu0 0.0
        %1469 = vmatpush1.msra.mxu0 0.0
        %1470 = vmatprep.subr.mxu0 0.0
        %1471 = vmatpush1.msra.mxu0 0.0
        %1472 = vmatprep.subr.mxu0 0.0
        %1473 = vmatpush1.msra.mxu0 0.0
        %1474 = vmatprep.subr.mxu0 0.0
        %1475 = vmatpush1.msra.mxu0 0.0
        %1476 = vmatprep.mubr.f32.mxu0 0.0
        %1477 = vmatmul.mubr.f32.gmra.mrb[0].mxu0 %v1365
        %v1478 = vpop.f32.mrb[0].mxu0
        %v1479 = vadd.f32 0.0, %v1478
        %v1480 = vpop.f32.mrb[0].mxu0
        %1481 = vmatprep.mubr.f32.mxu0 0.0
        %1482 = vmatmul.mubr.f32.gmra.mrb[0].mxu0 %v1368
        %v1483 = vpop.f32.mrb[0].mxu0
        %v1484 = vadd.f32 0.0, %v1483
        %v1485 = vpop.f32.mrb[0].mxu0
        %1486 = vmatprep.mubr.f32.mxu0 0.0
        %1487 = vmatmul.mubr.f32.gmra.mrb[0].mxu0 %v1371
        %v1488 = vpop.f32.mrb[0].mxu0
        %v1489 = vadd.f32 0.0, %v1488
        %v1490 = vpop.f32.mrb[0].mxu0
        %1491 = vmatprep.mubr.f32.mxu0 0.0
        %1492 = vmatmul.mubr.f32.gmra.mrb[0].mxu0 %v1374
        %v1493 = vpop.f32.mrb[0].mxu0
        %v1494 = vadd.f32 0.0, %v1493
        %v1495 = vpop.f32.mrb[0].mxu0
        %1496 = vmatprep.mubr.f32.mxu0 0.0
        %1497 = vmatmul.mubr.f32.gmra.mrb[0].mxu0 %v1377
        %v1498 = vpop.f32.mrb[0].mxu0
        %v1499 = vadd.f32 0.0, %v1498
        %v1500 = vpop.f32.mrb[0].mxu0
        %1501 = vmatprep.mubr.f32.mxu0 0.0
        %1502 = vmatmul.mubr.f32.gmra.mrb[0].mxu0 %v1380
        %v1503 = vpop.f32.mrb[0].mxu0
        %v1504 = vadd.f32 0.0, %v1503
        %v1505 = vpop.f32.mrb[0].mxu0
        %1506 = vmatprep.mubr.f32.mxu0 0.0
        %1507 = vmatmul.mubr.f32.gmra.mrb[0].mxu0 %v1383
        %v1508 = vpop.f32.mrb[0].mxu0
        %v1509 = vadd.f32 0.0, %v1508
        %v1510 = vpop.f32.mrb[0].mxu0
        %1511 = vmatprep.mubr.f32.mxu0 0.0
        %1512 = vmatmul.mubr.f32.gmra.mrb[0].mxu0 %v1386
        %v1513 = vpop.f32.mrb[0].mxu0
        %v1514 = vadd.f32 0.0, %v1513
        %v1515 = vpop.f32.mrb[0].mxu0
        %1516 = vmatprep.mubr.f32.mxu0 0.0
        %1517 = vmatmul.mubr.f32.gmra.mrb[0].mxu0 %v1389
        %v1518 = vpop.f32.mrb[0].mxu0
        %v1519 = vadd.f32 0.0, %v1518
        %v1520 = vpop.f32.mrb[0].mxu0
        %1521 = vmatprep.mubr.f32.mxu0 0.0
        %1522 = vmatmul.mubr.f32.gmra.mrb[0].mxu0 %v1392
        %v1523 = vpop.f32.mrb[0].mxu0
        %v1524 = vadd.f32 0.0, %v1523
        %v1525 = vpop.f32.mrb[0].mxu0
        %1526 = vmatprep.mubr.f32.mxu0 0.0
        %1527 = vmatmul.mubr.f32.gmra.mrb[0].mxu0 %v1395
        %v1528 = vpop.f32.mrb[0].mxu0
        %v1529 = vadd.f32 0.0, %v1528
        %v1530 = vpop.f32.mrb[0].mxu0
        %1531 = vmatprep.mubr.f32.mxu0 0.0
        %1532 = vmatmul.mubr.f32.gmra.mrb[0].mxu0 %v1398
        %v1533 = vpop.f32.mrb[0].mxu0
        %v1534 = vadd.f32 0.0, %v1533
        %v1535 = vpop.f32.mrb[0].mxu0
        %1536 = vmatprep.mubr.f32.mxu0 0.0
        %1537 = vmatmul.mubr.f32.gmra.mrb[0].mxu0 %v1401
        %v1538 = vpop.f32.mrb[0].mxu0
        %v1539 = vadd.f32 0.0, %v1538
        %v1540 = vpop.f32.mrb[0].mxu0
        %1541 = vmatprep.mubr.f32.mxu0 0.0
        %1542 = vmatmul.mubr.f32.gmra.mrb[0].mxu0 %v1404
        %v1543 = vpop.f32.mrb[0].mxu0
        %v1544 = vadd.f32 0.0, %v1543
        %v1545 = vpop.f32.mrb[0].mxu0
        %1546 = vmatprep.mubr.f32.mxu0 0.0
        %1547 = vmatmul.mubr.f32.gmra.mrb[0].mxu0 %v1407
        %v1548 = vpop.f32.mrb[0].mxu0
        %v1549 = vadd.f32 0.0, %v1548
        %v1550 = vpop.f32.mrb[0].mxu0
        %1551 = vmatprep.mubr.f32.mxu0 0.0
        %1552 = vmatmul.mubr.f32.gmra.mrb[0].mxu0 %v1410
        %v1553 = vpop.f32.mrb[0].mxu0
        %v1554 = vadd.f32 0.0, %v1553
        %v1555 = vpop.f32.mrb[0].mxu0
        %1556 = vdwg.mxu0
        %s1557 = scalar_lea.vmem %s6, 64
        %v1558 = vld [vmem:[%s1557] sm:$0xff]
        %v1559 = vld [vmem:[%s1557 + $0x8] sm:$0xff]
        %v1560 = vld [vmem:[%s1557 + $0x10] sm:$0xff]
        %v1561 = vld [vmem:[%s1557 + $0x18] sm:$0xff]
        %v1562 = vld [vmem:[%s1557 + $0x20] sm:$0xff]
        %v1563 = vld [vmem:[%s1557 + $0x28] sm:$0xff]
        %v1564 = vld [vmem:[%s1557 + $0x30] sm:$0xff]
        %v1565 = vld [vmem:[%s1557 + $0x38] sm:$0xff]
        %1566 = vmatprep.subr.mxu0 0.0
        %1567 = vmatpush1.msra.mxu0 %v1558
        %1568 = vmatprep.subr.mxu0 0.0
        %1569 = vmatpush1.msra.mxu0 %v1559
        %1570 = vmatprep.subr.mxu0 0.0
        %1571 = vmatpush1.msra.mxu0 %v1560
        %1572 = vmatprep.subr.mxu0 0.0
        %1573 = vmatpush1.msra.mxu0 %v1561
        %1574 = vmatprep.subr.mxu0 0.0
        %1575 = vmatpush1.msra.mxu0 %v1562
        %1576 = vmatprep.subr.mxu0 0.0
        %1577 = vmatpush1.msra.mxu0 %v1563
        %1578 = vmatprep.subr.mxu0 0.0
        %1579 = vmatpush1.msra.mxu0 %v1564
        %1580 = vmatprep.subr.mxu0 0.0
        %1581 = vmatpush1.msra.mxu0 %v1565
        %1582 = vmatprep.subr.mxu0 0.0
        %1583 = vmatpush1.msra.mxu0 0.0
        %1584 = vmatprep.subr.mxu0 0.0
        %1585 = vmatpush1.msra.mxu0 0.0
        %1586 = vmatprep.subr.mxu0 0.0
        %1587 = vmatpush1.msra.mxu0 0.0
        %1588 = vmatprep.subr.mxu0 0.0
        %1589 = vmatpush1.msra.mxu0 0.0
        %1590 = vmatprep.subr.mxu0 0.0
        %1591 = vmatpush1.msra.mxu0 0.0
        %1592 = vmatprep.subr.mxu0 0.0
        %1593 = vmatpush1.msra.mxu0 0.0
        %1594 = vmatprep.subr.mxu0 0.0
        %1595 = vmatpush1.msra.mxu0 0.0
        %1596 = vmatprep.subr.mxu0 0.0
        %1597 = vmatpush1.msra.mxu0 0.0
        %1598 = vmatprep.subr.mxu0 0.0
        %1599 = vmatpush1.msra.mxu0 0.0
        %1600 = vmatprep.subr.mxu0 0.0
        %1601 = vmatpush1.msra.mxu0 0.0
        %1602 = vmatprep.subr.mxu0 0.0
        %1603 = vmatpush1.msra.mxu0 0.0
        %1604 = vmatprep.subr.mxu0 0.0
        %1605 = vmatpush1.msra.mxu0 0.0
        %1606 = vmatprep.subr.mxu0 0.0
        %1607 = vmatpush1.msra.mxu0 0.0
        %1608 = vmatprep.subr.mxu0 0.0
        %1609 = vmatpush1.msra.mxu0 0.0
        %1610 = vmatprep.subr.mxu0 0.0
        %1611 = vmatpush1.msra.mxu0 0.0
        %1612 = vmatprep.subr.mxu0 0.0
        %1613 = vmatpush1.msra.mxu0 0.0
        %1614 = vmatprep.subr.mxu0 0.0
        %1615 = vmatpush1.msra.mxu0 0.0
        %1616 = vmatprep.subr.mxu0 0.0
        %1617 = vmatpush1.msra.mxu0 0.0
        %1618 = vmatprep.subr.mxu0 0.0
        %1619 = vmatpush1.msra.mxu0 0.0
        %1620 = vmatprep.subr.mxu0 0.0
        %1621 = vmatpush1.msra.mxu0 0.0
        %1622 = vmatprep.subr.mxu0 0.0
        %1623 = vmatpush1.msra.mxu0 0.0
        %1624 = vmatprep.subr.mxu0 0.0
        %1625 = vmatpush1.msra.mxu0 0.0
        %1626 = vmatprep.subr.mxu0 0.0
        %1627 = vmatpush1.msra.mxu0 0.0
        %1628 = vmatprep.subr.mxu0 0.0
        %1629 = vmatpush1.msra.mxu0 0.0
        %1630 = vmatprep.mubr.f32.mxu0 0.0
        %1631 = vmatmul.mubr.f32.gmra.mrb[0].mxu0 %v1365
        %v1632 = vpop.f32.mrb[0].mxu0
        %v1633 = vadd.f32 0.0, %v1632
        %v1634 = vpop.f32.mrb[0].mxu0
        %1635 = vmatprep.mubr.f32.mxu0 0.0
        %1636 = vmatmul.mubr.f32.gmra.mrb[0].mxu0 %v1368
        %v1637 = vpop.f32.mrb[0].mxu0
        %v1638 = vadd.f32 0.0, %v1637
        %v1639 = vpop.f32.mrb[0].mxu0
        %1640 = vmatprep.mubr.f32.mxu0 0.0
        %1641 = vmatmul.mubr.f32.gmra.mrb[0].mxu0 %v1371
        %v1642 = vpop.f32.mrb[0].mxu0
        %v1643 = vadd.f32 0.0, %v1642
        %v1644 = vpop.f32.mrb[0].mxu0
        %1645 = vmatprep.mubr.f32.mxu0 0.0
        %1646 = vmatmul.mubr.f32.gmra.mrb[0].mxu0 %v1374
        %v1647 = vpop.f32.mrb[0].mxu0
        %v1648 = vadd.f32 0.0, %v1647
        %v1649 = vpop.f32.mrb[0].mxu0
        %1650 = vmatprep.mubr.f32.mxu0 0.0
        %1651 = vmatmul.mubr.f32.gmra.mrb[0].mxu0 %v1377
        %v1652 = vpop.f32.mrb[0].mxu0
        %v1653 = vadd.f32 0.0, %v1652
        %v1654 = vpop.f32.mrb[0].mxu0
        %1655 = vmatprep.mubr.f32.mxu0 0.0
        %1656 = vmatmul.mubr.f32.gmra.mrb[0].mxu0 %v1380
        %v1657 = vpop.f32.mrb[0].mxu0
        %v1658 = vadd.f32 0.0, %v1657
        %v1659 = vpop.f32.mrb[0].mxu0
        %1660 = vmatprep.mubr.f32.mxu0 0.0
        %1661 = vmatmul.mubr.f32.gmra.mrb[0].mxu0 %v1383
        %v1662 = vpop.f32.mrb[0].mxu0
        %v1663 = vadd.f32 0.0, %v1662
        %v1664 = vpop.f32.mrb[0].mxu0
        %1665 = vmatprep.mubr.f32.mxu0 0.0
        %1666 = vmatmul.mubr.f32.gmra.mrb[0].mxu0 %v1386
        %v1667 = vpop.f32.mrb[0].mxu0
        %v1668 = vadd.f32 0.0, %v1667
        %v1669 = vpop.f32.mrb[0].mxu0
        %1670 = vmatprep.mubr.f32.mxu0 0.0
        %1671 = vmatmul.mubr.f32.gmra.mrb[0].mxu0 %v1389
        %v1672 = vpop.f32.mrb[0].mxu0
        %v1673 = vadd.f32 0.0, %v1672
        %v1674 = vpop.f32.mrb[0].mxu0
        %1675 = vmatprep.mubr.f32.mxu0 0.0
        %1676 = vmatmul.mubr.f32.gmra.mrb[0].mxu0 %v1392
        %v1677 = vpop.f32.mrb[0].mxu0
        %v1678 = vadd.f32 0.0, %v1677
        %v1679 = vpop.f32.mrb[0].mxu0
        %1680 = vmatprep.mubr.f32.mxu0 0.0
        %1681 = vmatmul.mubr.f32.gmra.mrb[0].mxu0 %v1395
        %v1682 = vpop.f32.mrb[0].mxu0
        %v1683 = vadd.f32 0.0, %v1682
        %v1684 = vpop.f32.mrb[0].mxu0
        %1685 = vmatprep.mubr.f32.mxu0 0.0
        %1686 = vmatmul.mubr.f32.gmra.mrb[0].mxu0 %v1398
        %v1687 = vpop.f32.mrb[0].mxu0
        %v1688 = vadd.f32 0.0, %v1687
        %v1689 = vpop.f32.mrb[0].mxu0
        %1690 = vmatprep.mubr.f32.mxu0 0.0
        %1691 = vmatmul.mubr.f32.gmra.mrb[0].mxu0 %v1401
        %v1692 = vpop.f32.mrb[0].mxu0
        %v1693 = vadd.f32 0.0, %v1692
        %v1694 = vpop.f32.mrb[0].mxu0
        %1695 = vmatprep.mubr.f32.mxu0 0.0
        %1696 = vmatmul.mubr.f32.gmra.mrb[0].mxu0 %v1404
        %v1697 = vpop.f32.mrb[0].mxu0
        %v1698 = vadd.f32 0.0, %v1697
        %v1699 = vpop.f32.mrb[0].mxu0
        %1700 = vmatprep.mubr.f32.mxu0 0.0
        %1701 = vmatmul.mubr.f32.gmra.mrb[0].mxu0 %v1407
        %v1702 = vpop.f32.mrb[0].mxu0
        %v1703 = vadd.f32 0.0, %v1702
        %v1704 = vpop.f32.mrb[0].mxu0
        %1705 = vmatprep.mubr.f32.mxu0 0.0
        %1706 = vmatmul.mubr.f32.gmra.mrb[0].mxu0 %v1410
        %v1707 = vpop.f32.mrb[0].mxu0
        %v1708 = vadd.f32 0.0, %v1707
        %v1709 = vpop.f32.mrb[0].mxu0
        %1710 = vdwg.mxu0
        %s1711 = scalar_lea.vmem %s6, 128
        %v1712 = vld [vmem:[%s1711] sm:$0xff]
        %v1713 = vld [vmem:[%s1711 + $0x8] sm:$0xff]
        %v1714 = vld [vmem:[%s1711 + $0x10] sm:$0xff]
        %v1715 = vld [vmem:[%s1711 + $0x18] sm:$0xff]
        %v1716 = vld [vmem:[%s1711 + $0x20] sm:$0xff]
        %v1717 = vld [vmem:[%s1711 + $0x28] sm:$0xff]
        %v1718 = vld [vmem:[%s1711 + $0x30] sm:$0xff]
        %v1719 = vld [vmem:[%s1711 + $0x38] sm:$0xff]
        %1720 = vmatprep.subr.mxu0 0.0
        %1721 = vmatpush1.msra.mxu0 %v1712
        %1722 = vmatprep.subr.mxu0 0.0
        %1723 = vmatpush1.msra.mxu0 %v1713
        %1724 = vmatprep.subr.mxu0 0.0
        %1725 = vmatpush1.msra.mxu0 %v1714
        %1726 = vmatprep.subr.mxu0 0.0
        %1727 = vmatpush1.msra.mxu0 %v1715
        %1728 = vmatprep.subr.mxu0 0.0
        %1729 = vmatpush1.msra.mxu0 %v1716
        %1730 = vmatprep.subr.mxu0 0.0
        %1731 = vmatpush1.msra.mxu0 %v1717
        %1732 = vmatprep.subr.mxu0 0.0
        %1733 = vmatpush1.msra.mxu0 %v1718
        %1734 = vmatprep.subr.mxu0 0.0
        %1735 = vmatpush1.msra.mxu0 %v1719
        %1736 = vmatprep.subr.mxu0 0.0
        %1737 = vmatpush1.msra.mxu0 0.0
        %1738 = vmatprep.subr.mxu0 0.0
        %1739 = vmatpush1.msra.mxu0 0.0
        %1740 = vmatprep.subr.mxu0 0.0
        %1741 = vmatpush1.msra.mxu0 0.0
        %1742 = vmatprep.subr.mxu0 0.0
        %1743 = vmatpush1.msra.mxu0 0.0
        %1744 = vmatprep.subr.mxu0 0.0
        %1745 = vmatpush1.msra.mxu0 0.0
        %1746 = vmatprep.subr.mxu0 0.0
        %1747 = vmatpush1.msra.mxu0 0.0
        %1748 = vmatprep.subr.mxu0 0.0
        %1749 = vmatpush1.msra.mxu0 0.0
        %1750 = vmatprep.subr.mxu0 0.0
        %1751 = vmatpush1.msra.mxu0 0.0
        %1752 = vmatprep.subr.mxu0 0.0
        %1753 = vmatpush1.msra.mxu0 0.0
        %1754 = vmatprep.subr.mxu0 0.0
        %1755 = vmatpush1.msra.mxu0 0.0
        %1756 = vmatprep.subr.mxu0 0.0
        %1757 = vmatpush1.msra.mxu0 0.0
        %1758 = vmatprep.subr.mxu0 0.0
        %1759 = vmatpush1.msra.mxu0 0.0
        %1760 = vmatprep.subr.mxu0 0.0
        %1761 = vmatpush1.msra.mxu0 0.0
        %1762 = vmatprep.subr.mxu0 0.0
        %1763 = vmatpush1.msra.mxu0 0.0
        %1764 = vmatprep.subr.mxu0 0.0
        %1765 = vmatpush1.msra.mxu0 0.0
        %1766 = vmatprep.subr.mxu0 0.0
        %1767 = vmatpush1.msra.mxu0 0.0
        %1768 = vmatprep.subr.mxu0 0.0
        %1769 = vmatpush1.msra.mxu0 0.0
        %1770 = vmatprep.subr.mxu0 0.0
        %1771 = vmatpush1.msra.mxu0 0.0
        %1772 = vmatprep.subr.mxu0 0.0
        %1773 = vmatpush1.msra.mxu0 0.0
        %1774 = vmatprep.subr.mxu0 0.0
        %1775 = vmatpush1.msra.mxu0 0.0
        %1776 = vmatprep.subr.mxu0 0.0
        %1777 = vmatpush1.msra.mxu0 0.0
        %1778 = vmatprep.subr.mxu0 0.0
        %1779 = vmatpush1.msra.mxu0 0.0
        %1780 = vmatprep.subr.mxu0 0.0
        %1781 = vmatpush1.msra.mxu0 0.0
        %1782 = vmatprep.subr.mxu0 0.0
        %1783 = vmatpush1.msra.mxu0 0.0
        %1784 = vmatprep.mubr.f32.mxu0 0.0
        %1785 = vmatmul.mubr.f32.gmra.mrb[0].mxu0 %v1365
        %v1786 = vpop.f32.mrb[0].mxu0
        %v1787 = vadd.f32 0.0, %v1786
        %v1788 = vpop.f32.mrb[0].mxu0
        %1789 = vmatprep.mubr.f32.mxu0 0.0
        %1790 = vmatmul.mubr.f32.gmra.mrb[0].mxu0 %v1368
        %v1791 = vpop.f32.mrb[0].mxu0
        %v1792 = vadd.f32 0.0, %v1791
        %v1793 = vpop.f32.mrb[0].mxu0
        %1794 = vmatprep.mubr.f32.mxu0 0.0
        %1795 = vmatmul.mubr.f32.gmra.mrb[0].mxu0 %v1371
        %v1796 = vpop.f32.mrb[0].mxu0
        %v1797 = vadd.f32 0.0, %v1796
        %v1798 = vpop.f32.mrb[0].mxu0
        %1799 = vmatprep.mubr.f32.mxu0 0.0
        %1800 = vmatmul.mubr.f32.gmra.mrb[0].mxu0 %v1374
        %v1801 = vpop.f32.mrb[0].mxu0
        %v1802 = vadd.f32 0.0, %v1801
        %v1803 = vpop.f32.mrb[0].mxu0
        %1804 = vmatprep.mubr.f32.mxu0 0.0
        %1805 = vmatmul.mubr.f32.gmra.mrb[0].mxu0 %v1377
        %v1806 = vpop.f32.mrb[0].mxu0
        %v1807 = vadd.f32 0.0, %v1806
        %v1808 = vpop.f32.mrb[0].mxu0
        %1809 = vmatprep.mubr.f32.mxu0 0.0
        %1810 = vmatmul.mubr.f32.gmra.mrb[0].mxu0 %v1380
        %v1811 = vpop.f32.mrb[0].mxu0
        %v1812 = vadd.f32 0.0, %v1811
        %v1813 = vpop.f32.mrb[0].mxu0
        %1814 = vmatprep.mubr.f32.mxu0 0.0
        %1815 = vmatmul.mubr.f32.gmra.mrb[0].mxu0 %v1383
        %v1816 = vpop.f32.mrb[0].mxu0
        %v1817 = vadd.f32 0.0, %v1816
        %v1818 = vpop.f32.mrb[0].mxu0
        %1819 = vmatprep.mubr.f32.mxu0 0.0
        %1820 = vmatmul.mubr.f32.gmra.mrb[0].mxu0 %v1386
        %v1821 = vpop.f32.mrb[0].mxu0
        %v1822 = vadd.f32 0.0, %v1821
        %v1823 = vpop.f32.mrb[0].mxu0
        %1824 = vmatprep.mubr.f32.mxu0 0.0
        %1825 = vmatmul.mubr.f32.gmra.mrb[0].mxu0 %v1389
        %v1826 = vpop.f32.mrb[0].mxu0
        %v1827 = vadd.f32 0.0, %v1826
        %v1828 = vpop.f32.mrb[0].mxu0
        %1829 = vmatprep.mubr.f32.mxu0 0.0
        %1830 = vmatmul.mubr.f32.gmra.mrb[0].mxu0 %v1392
        %v1831 = vpop.f32.mrb[0].mxu0
        %v1832 = vadd.f32 0.0, %v1831
        %v1833 = vpop.f32.mrb[0].mxu0
        %1834 = vmatprep.mubr.f32.mxu0 0.0
        %1835 = vmatmul.mubr.f32.gmra.mrb[0].mxu0 %v1395
        %v1836 = vpop.f32.mrb[0].mxu0
        %v1837 = vadd.f32 0.0, %v1836
        %v1838 = vpop.f32.mrb[0].mxu0
        %1839 = vmatprep.mubr.f32.mxu0 0.0
        %1840 = vmatmul.mubr.f32.gmra.mrb[0].mxu0 %v1398
        %v1841 = vpop.f32.mrb[0].mxu0
        %v1842 = vadd.f32 0.0, %v1841
        %v1843 = vpop.f32.mrb[0].mxu0
        %1844 = vmatprep.mubr.f32.mxu0 0.0
        %1845 = vmatmul.mubr.f32.gmra.mrb[0].mxu0 %v1401
        %v1846 = vpop.f32.mrb[0].mxu0
        %v1847 = vadd.f32 0.0, %v1846
        %v1848 = vpop.f32.mrb[0].mxu0
        %1849 = vmatprep.mubr.f32.mxu0 0.0
        %1850 = vmatmul.mubr.f32.gmra.mrb[0].mxu0 %v1404
        %v1851 = vpop.f32.mrb[0].mxu0
        %v1852 = vadd.f32 0.0, %v1851
        %v1853 = vpop.f32.mrb[0].mxu0
        %1854 = vmatprep.mubr.f32.mxu0 0.0
        %1855 = vmatmul.mubr.f32.gmra.mrb[0].mxu0 %v1407
        %v1856 = vpop.f32.mrb[0].mxu0
        %v1857 = vadd.f32 0.0, %v1856
        %v1858 = vpop.f32.mrb[0].mxu0
        %1859 = vmatprep.mubr.f32.mxu0 0.0
        %1860 = vmatmul.mubr.f32.gmra.mrb[0].mxu0 %v1410
        %v1861 = vpop.f32.mrb[0].mxu0
        %v1862 = vadd.f32 0.0, %v1861
        %v1863 = vpop.f32.mrb[0].mxu0
        %1864 = vdwg.mxu0
        %s1865 = scalar_lea.vmem %s6, 192
        %v1866 = vld [vmem:[%s1865] sm:$0xff]
        %v1867 = vld [vmem:[%s1865 + $0x8] sm:$0xff]
        %v1868 = vld [vmem:[%s1865 + $0x10] sm:$0xff]
        %v1869 = vld [vmem:[%s1865 + $0x18] sm:$0xff]
        %v1870 = vld [vmem:[%s1865 + $0x20] sm:$0xff]
        %v1871 = vld [vmem:[%s1865 + $0x28] sm:$0xff]
        %v1872 = vld [vmem:[%s1865 + $0x30] sm:$0xff]
        %v1873 = vld [vmem:[%s1865 + $0x38] sm:$0xff]
        %1874 = vmatprep.subr.mxu0 0.0
        %1875 = vmatpush1.msra.mxu0 %v1866
        %1876 = vmatprep.subr.mxu0 0.0
        %1877 = vmatpush1.msra.mxu0 %v1867
        %1878 = vmatprep.subr.mxu0 0.0
        %1879 = vmatpush1.msra.mxu0 %v1868
        %1880 = vmatprep.subr.mxu0 0.0
        %1881 = vmatpush1.msra.mxu0 %v1869
        %1882 = vmatprep.subr.mxu0 0.0
        %1883 = vmatpush1.msra.mxu0 %v1870
        %1884 = vmatprep.subr.mxu0 0.0
        %1885 = vmatpush1.msra.mxu0 %v1871
        %1886 = vmatprep.subr.mxu0 0.0
        %1887 = vmatpush1.msra.mxu0 %v1872
        %1888 = vmatprep.subr.mxu0 0.0
        %1889 = vmatpush1.msra.mxu0 %v1873
        %1890 = vmatprep.subr.mxu0 0.0
        %1891 = vmatpush1.msra.mxu0 0.0
        %1892 = vmatprep.subr.mxu0 0.0
        %1893 = vmatpush1.msra.mxu0 0.0
        %1894 = vmatprep.subr.mxu0 0.0
        %1895 = vmatpush1.msra.mxu0 0.0
        %1896 = vmatprep.subr.mxu0 0.0
        %1897 = vmatpush1.msra.mxu0 0.0
        %1898 = vmatprep.subr.mxu0 0.0
        %1899 = vmatpush1.msra.mxu0 0.0
        %1900 = vmatprep.subr.mxu0 0.0
        %1901 = vmatpush1.msra.mxu0 0.0
        %1902 = vmatprep.subr.mxu0 0.0
        %1903 = vmatpush1.msra.mxu0 0.0
        %1904 = vmatprep.subr.mxu0 0.0
        %1905 = vmatpush1.msra.mxu0 0.0
        %1906 = vmatprep.subr.mxu0 0.0
        %1907 = vmatpush1.msra.mxu0 0.0
        %1908 = vmatprep.subr.mxu0 0.0
        %1909 = vmatpush1.msra.mxu0 0.0
        %1910 = vmatprep.subr.mxu0 0.0
        %1911 = vmatpush1.msra.mxu0 0.0
        %1912 = vmatprep.subr.mxu0 0.0
        %1913 = vmatpush1.msra.mxu0 0.0
        %1914 = vmatprep.subr.mxu0 0.0
        %1915 = vmatpush1.msra.mxu0 0.0
        %1916 = vmatprep.subr.mxu0 0.0
        %1917 = vmatpush1.msra.mxu0 0.0
        %1918 = vmatprep.subr.mxu0 0.0
        %1919 = vmatpush1.msra.mxu0 0.0
        %1920 = vmatprep.subr.mxu0 0.0
        %1921 = vmatpush1.msra.mxu0 0.0
        %1922 = vmatprep.subr.mxu0 0.0
        %1923 = vmatpush1.msra.mxu0 0.0
        %1924 = vmatprep.subr.mxu0 0.0
        %1925 = vmatpush1.msra.mxu0 0.0
        %1926 = vmatprep.subr.mxu0 0.0
        %1927 = vmatpush1.msra.mxu0 0.0
        %1928 = vmatprep.subr.mxu0 0.0
        %1929 = vmatpush1.msra.mxu0 0.0
        %1930 = vmatprep.subr.mxu0 0.0
        %1931 = vmatpush1.msra.mxu0 0.0
        %1932 = vmatprep.subr.mxu0 0.0
        %1933 = vmatpush1.msra.mxu0 0.0
        %1934 = vmatprep.subr.mxu0 0.0
        %1935 = vmatpush1.msra.mxu0 0.0
        %1936 = vmatprep.subr.mxu0 0.0
        %1937 = vmatpush1.msra.mxu0 0.0
        %1938 = vmatprep.mubr.f32.mxu0 0.0
        %1939 = vmatmul.mubr.f32.gmra.mrb[0].mxu0 %v1365
        %v1940 = vpop.f32.mrb[0].mxu0
        %v1941 = vadd.f32 0.0, %v1940
        %v1942 = vpop.f32.mrb[0].mxu0
        %1943 = vmatprep.mubr.f32.mxu0 0.0
        %1944 = vmatmul.mubr.f32.gmra.mrb[0].mxu0 %v1368
        %v1945 = vpop.f32.mrb[0].mxu0
        %v1946 = vadd.f32 0.0, %v1945
        %v1947 = vpop.f32.mrb[0].mxu0
        %1948 = vmatprep.mubr.f32.mxu0 0.0
        %1949 = vmatmul.mubr.f32.gmra.mrb[0].mxu0 %v1371
        %v1950 = vpop.f32.mrb[0].mxu0
        %v1951 = vadd.f32 0.0, %v1950
        %v1952 = vpop.f32.mrb[0].mxu0
        %1953 = vmatprep.mubr.f32.mxu0 0.0
        %1954 = vmatmul.mubr.f32.gmra.mrb[0].mxu0 %v1374
        %v1955 = vpop.f32.mrb[0].mxu0
        %v1956 = vadd.f32 0.0, %v1955
        %v1957 = vpop.f32.mrb[0].mxu0
        %1958 = vmatprep.mubr.f32.mxu0 0.0
        %1959 = vmatmul.mubr.f32.gmra.mrb[0].mxu0 %v1377
        %v1960 = vpop.f32.mrb[0].mxu0
        %v1961 = vadd.f32 0.0, %v1960
        %v1962 = vpop.f32.mrb[0].mxu0
        %1963 = vmatprep.mubr.f32.mxu0 0.0
        %1964 = vmatmul.mubr.f32.gmra.mrb[0].mxu0 %v1380
        %v1965 = vpop.f32.mrb[0].mxu0
        %v1966 = vadd.f32 0.0, %v1965
        %v1967 = vpop.f32.mrb[0].mxu0
        %1968 = vmatprep.mubr.f32.mxu0 0.0
        %1969 = vmatmul.mubr.f32.gmra.mrb[0].mxu0 %v1383
        %v1970 = vpop.f32.mrb[0].mxu0
        %v1971 = vadd.f32 0.0, %v1970
        %v1972 = vpop.f32.mrb[0].mxu0
        %1973 = vmatprep.mubr.f32.mxu0 0.0
        %1974 = vmatmul.mubr.f32.gmra.mrb[0].mxu0 %v1386
        %v1975 = vpop.f32.mrb[0].mxu0
        %v1976 = vadd.f32 0.0, %v1975
        %v1977 = vpop.f32.mrb[0].mxu0
        %1978 = vmatprep.mubr.f32.mxu0 0.0
        %1979 = vmatmul.mubr.f32.gmra.mrb[0].mxu0 %v1389
        %v1980 = vpop.f32.mrb[0].mxu0
        %v1981 = vadd.f32 0.0, %v1980
        %v1982 = vpop.f32.mrb[0].mxu0
        %1983 = vmatprep.mubr.f32.mxu0 0.0
        %1984 = vmatmul.mubr.f32.gmra.mrb[0].mxu0 %v1392
        %v1985 = vpop.f32.mrb[0].mxu0
        %v1986 = vadd.f32 0.0, %v1985
        %v1987 = vpop.f32.mrb[0].mxu0
        %1988 = vmatprep.mubr.f32.mxu0 0.0
        %1989 = vmatmul.mubr.f32.gmra.mrb[0].mxu0 %v1395
        %v1990 = vpop.f32.mrb[0].mxu0
        %v1991 = vadd.f32 0.0, %v1990
        %v1992 = vpop.f32.mrb[0].mxu0
        %1993 = vmatprep.mubr.f32.mxu0 0.0
        %1994 = vmatmul.mubr.f32.gmra.mrb[0].mxu0 %v1398
        %v1995 = vpop.f32.mrb[0].mxu0
        %v1996 = vadd.f32 0.0, %v1995
        %v1997 = vpop.f32.mrb[0].mxu0
        %1998 = vmatprep.mubr.f32.mxu0 0.0
        %1999 = vmatmul.mubr.f32.gmra.mrb[0].mxu0 %v1401
        %v2000 = vpop.f32.mrb[0].mxu0
        %v2001 = vadd.f32 0.0, %v2000
        %v2002 = vpop.f32.mrb[0].mxu0
        %2003 = vmatprep.mubr.f32.mxu0 0.0
        %2004 = vmatmul.mubr.f32.gmra.mrb[0].mxu0 %v1404
        %v2005 = vpop.f32.mrb[0].mxu0
        %v2006 = vadd.f32 0.0, %v2005
        %v2007 = vpop.f32.mrb[0].mxu0
        %2008 = vmatprep.mubr.f32.mxu0 0.0
        %2009 = vmatmul.mubr.f32.gmra.mrb[0].mxu0 %v1407
        %v2010 = vpop.f32.mrb[0].mxu0
        %v2011 = vadd.f32 0.0, %v2010
        %v2012 = vpop.f32.mrb[0].mxu0
        %2013 = vmatprep.mubr.f32.mxu0 0.0
        %2014 = vmatmul.mubr.f32.gmra.mrb[0].mxu0 %v1410
        %v2015 = vpop.f32.mrb[0].mxu0
        %v2016 = vadd.f32 0.0, %v2015
        %v2017 = vpop.f32.mrb[0].mxu0
        %2018 = vdwg.mxu0
        %s2019 = scalar_lea.vmem %s6, 256
        %v2020 = vld [vmem:[%s2019] sm:$0xff]
        %v2021 = vld [vmem:[%s2019 + $0x8] sm:$0xff]
        %v2022 = vld [vmem:[%s2019 + $0x10] sm:$0xff]
        %v2023 = vld [vmem:[%s2019 + $0x18] sm:$0xff]
        %v2024 = vld [vmem:[%s2019 + $0x20] sm:$0xff]
        %v2025 = vld [vmem:[%s2019 + $0x28] sm:$0xff]
        %v2026 = vld [vmem:[%s2019 + $0x30] sm:$0xff]
        %v2027 = vld [vmem:[%s2019 + $0x38] sm:$0xff]
        %2028 = vmatprep.subr.mxu0 0.0
        %2029 = vmatpush1.msra.mxu0 %v2020
        %2030 = vmatprep.subr.mxu0 0.0
        %2031 = vmatpush1.msra.mxu0 %v2021
        %2032 = vmatprep.subr.mxu0 0.0
        %2033 = vmatpush1.msra.mxu0 %v2022
        %2034 = vmatprep.subr.mxu0 0.0
        %2035 = vmatpush1.msra.mxu0 %v2023
        %2036 = vmatprep.subr.mxu0 0.0
        %2037 = vmatpush1.msra.mxu0 %v2024
        %2038 = vmatprep.subr.mxu0 0.0
        %2039 = vmatpush1.msra.mxu0 %v2025
        %2040 = vmatprep.subr.mxu0 0.0
        %2041 = vmatpush1.msra.mxu0 %v2026
        %2042 = vmatprep.subr.mxu0 0.0
        %2043 = vmatpush1.msra.mxu0 %v2027
        %2044 = vmatprep.subr.mxu0 0.0
        %2045 = vmatpush1.msra.mxu0 0.0
        %2046 = vmatprep.subr.mxu0 0.0
        %2047 = vmatpush1.msra.mxu0 0.0
        %2048 = vmatprep.subr.mxu0 0.0
        %2049 = vmatpush1.msra.mxu0 0.0
        %2050 = vmatprep.subr.mxu0 0.0
        %2051 = vmatpush1.msra.mxu0 0.0
        %2052 = vmatprep.subr.mxu0 0.0
        %2053 = vmatpush1.msra.mxu0 0.0
        %2054 = vmatprep.subr.mxu0 0.0
        %2055 = vmatpush1.msra.mxu0 0.0
        %2056 = vmatprep.subr.mxu0 0.0
        %2057 = vmatpush1.msra.mxu0 0.0
        %2058 = vmatprep.subr.mxu0 0.0
        %2059 = vmatpush1.msra.mxu0 0.0
        %2060 = vmatprep.subr.mxu0 0.0
        %2061 = vmatpush1.msra.mxu0 0.0
        %2062 = vmatprep.subr.mxu0 0.0
        %2063 = vmatpush1.msra.mxu0 0.0
        %2064 = vmatprep.subr.mxu0 0.0
        %2065 = vmatpush1.msra.mxu0 0.0
        %2066 = vmatprep.subr.mxu0 0.0
        %2067 = vmatpush1.msra.mxu0 0.0
        %2068 = vmatprep.subr.mxu0 0.0
        %2069 = vmatpush1.msra.mxu0 0.0
        %2070 = vmatprep.subr.mxu0 0.0
        %2071 = vmatpush1.msra.mxu0 0.0
        %2072 = vmatprep.subr.mxu0 0.0
        %2073 = vmatpush1.msra.mxu0 0.0
        %2074 = vmatprep.subr.mxu0 0.0
        %2075 = vmatpush1.msra.mxu0 0.0
        %2076 = vmatprep.subr.mxu0 0.0
        %2077 = vmatpush1.msra.mxu0 0.0
        %2078 = vmatprep.subr.mxu0 0.0
        %2079 = vmatpush1.msra.mxu0 0.0
        %2080 = vmatprep.subr.mxu0 0.0
        %2081 = vmatpush1.msra.mxu0 0.0
        %2082 = vmatprep.subr.mxu0 0.0
        %2083 = vmatpush1.msra.mxu0 0.0
        %2084 = vmatprep.subr.mxu0 0.0
        %2085 = vmatpush1.msra.mxu0 0.0
        %2086 = vmatprep.subr.mxu0 0.0
        %2087 = vmatpush1.msra.mxu0 0.0
        %2088 = vmatprep.subr.mxu0 0.0
        %2089 = vmatpush1.msra.mxu0 0.0
        %2090 = vmatprep.subr.mxu0 0.0
        %2091 = vmatpush1.msra.mxu0 0.0
        %2092 = vmatprep.mubr.f32.mxu0 0.0
        %2093 = vmatmul.mubr.f32.gmra.mrb[0].mxu0 %v1365
        %v2094 = vpop.f32.mrb[0].mxu0
        %v2095 = vadd.f32 0.0, %v2094
        %v2096 = vpop.f32.mrb[0].mxu0
        %2097 = vmatprep.mubr.f32.mxu0 0.0
        %2098 = vmatmul.mubr.f32.gmra.mrb[0].mxu0 %v1368
        %v2099 = vpop.f32.mrb[0].mxu0
        %v2100 = vadd.f32 0.0, %v2099
        %v2101 = vpop.f32.mrb[0].mxu0
        %2102 = vmatprep.mubr.f32.mxu0 0.0
        %2103 = vmatmul.mubr.f32.gmra.mrb[0].mxu0 %v1371
        %v2104 = vpop.f32.mrb[0].mxu0
        %v2105 = vadd.f32 0.0, %v2104
        %v2106 = vpop.f32.mrb[0].mxu0
        %2107 = vmatprep.mubr.f32.mxu0 0.0
        %2108 = vmatmul.mubr.f32.gmra.mrb[0].mxu0 %v1374
        %v2109 = vpop.f32.mrb[0].mxu0
        %v2110 = vadd.f32 0.0, %v2109
        %v2111 = vpop.f32.mrb[0].mxu0
        %2112 = vmatprep.mubr.f32.mxu0 0.0
        %2113 = vmatmul.mubr.f32.gmra.mrb[0].mxu0 %v1377
        %v2114 = vpop.f32.mrb[0].mxu0
        %v2115 = vadd.f32 0.0, %v2114
        %v2116 = vpop.f32.mrb[0].mxu0
        %2117 = vmatprep.mubr.f32.mxu0 0.0
        %2118 = vmatmul.mubr.f32.gmra.mrb[0].mxu0 %v1380
        %v2119 = vpop.f32.mrb[0].mxu0
        %v2120 = vadd.f32 0.0, %v2119
        %v2121 = vpop.f32.mrb[0].mxu0
        %2122 = vmatprep.mubr.f32.mxu0 0.0
        %2123 = vmatmul.mubr.f32.gmra.mrb[0].mxu0 %v1383
        %v2124 = vpop.f32.mrb[0].mxu0
        %v2125 = vadd.f32 0.0, %v2124
        %v2126 = vpop.f32.mrb[0].mxu0
        %2127 = vmatprep.mubr.f32.mxu0 0.0
        %2128 = vmatmul.mubr.f32.gmra.mrb[0].mxu0 %v1386
        %v2129 = vpop.f32.mrb[0].mxu0
        %v2130 = vadd.f32 0.0, %v2129
        %v2131 = vpop.f32.mrb[0].mxu0
        %2132 = vmatprep.mubr.f32.mxu0 0.0
        %2133 = vmatmul.mubr.f32.gmra.mrb[0].mxu0 %v1389
        %v2134 = vpop.f32.mrb[0].mxu0
        %v2135 = vadd.f32 0.0, %v2134
        %v2136 = vpop.f32.mrb[0].mxu0
        %2137 = vmatprep.mubr.f32.mxu0 0.0
        %2138 = vmatmul.mubr.f32.gmra.mrb[0].mxu0 %v1392
        %v2139 = vpop.f32.mrb[0].mxu0
        %v2140 = vadd.f32 0.0, %v2139
        %v2141 = vpop.f32.mrb[0].mxu0
        %2142 = vmatprep.mubr.f32.mxu0 0.0
        %2143 = vmatmul.mubr.f32.gmra.mrb[0].mxu0 %v1395
        %v2144 = vpop.f32.mrb[0].mxu0
        %v2145 = vadd.f32 0.0, %v2144
        %v2146 = vpop.f32.mrb[0].mxu0
        %2147 = vmatprep.mubr.f32.mxu0 0.0
        %2148 = vmatmul.mubr.f32.gmra.mrb[0].mxu0 %v1398
        %v2149 = vpop.f32.mrb[0].mxu0
        %v2150 = vadd.f32 0.0, %v2149
        %v2151 = vpop.f32.mrb[0].mxu0
        %2152 = vmatprep.mubr.f32.mxu0 0.0
        %2153 = vmatmul.mubr.f32.gmra.mrb[0].mxu0 %v1401
        %v2154 = vpop.f32.mrb[0].mxu0
        %v2155 = vadd.f32 0.0, %v2154
        %v2156 = vpop.f32.mrb[0].mxu0
        %2157 = vmatprep.mubr.f32.mxu0 0.0
        %2158 = vmatmul.mubr.f32.gmra.mrb[0].mxu0 %v1404
        %v2159 = vpop.f32.mrb[0].mxu0
        %v2160 = vadd.f32 0.0, %v2159
        %v2161 = vpop.f32.mrb[0].mxu0
        %2162 = vmatprep.mubr.f32.mxu0 0.0
        %2163 = vmatmul.mubr.f32.gmra.mrb[0].mxu0 %v1407
        %v2164 = vpop.f32.mrb[0].mxu0
        %v2165 = vadd.f32 0.0, %v2164
        %v2166 = vpop.f32.mrb[0].mxu0
        %2167 = vmatprep.mubr.f32.mxu0 0.0
        %2168 = vmatmul.mubr.f32.gmra.mrb[0].mxu0 %v1410
        %v2169 = vpop.f32.mrb[0].mxu0
        %v2170 = vadd.f32 0.0, %v2169
        %v2171 = vpop.f32.mrb[0].mxu0
        %2172 = vdwg.mxu0
        %v2173 = vld [vmem:[%s4] sm:$0xff]
        %v2174 = vld [vmem:[%s4 + $0x8] sm:$0xff]
        %v2175 = vld [vmem:[%s4 + $0x10] sm:$0xff]
        %v2176 = vld [vmem:[%s4 + $0x18] sm:$0xff]
        %v2177 = vld [vmem:[%s4 + $0x20] sm:$0xff]
        %v2178 = vld [vmem:[%s4 + $0x28] sm:$0xff]
        %v2179 = vld [vmem:[%s4 + $0x30] sm:$0xff]
        %v2180 = vld [vmem:[%s4 + $0x38] sm:$0xff]
        %v2181 = vld [vmem:[%s4 + $0x40] sm:$0xff]
        %v2182 = vld [vmem:[%s4 + $0x48] sm:$0xff]
        %v2183 = vld [vmem:[%s4 + $0x50] sm:$0xff]
        %v2184 = vld [vmem:[%s4 + $0x58] sm:$0xff]
        %v2185 = vld [vmem:[%s4 + $0x60] sm:$0xff]
        %v2186 = vld [vmem:[%s4 + $0x68] sm:$0xff]
        %v2187 = vld [vmem:[%s4 + $0x70] sm:$0xff]
        %v2188 = vld [vmem:[%s4 + $0x78] sm:$0xff]
        %v2189 = vld [vmem:[%s4 + $0x80] sm:$0xff]
        %v2190 = vld [vmem:[%s4 + $0x88] sm:$0xff]
        %v2191 = vld [vmem:[%s4 + $0x90] sm:$0xff]
        %v2192 = vld [vmem:[%s4 + $0x98] sm:$0xff]
        %v2193 = vld [vmem:[%s4 + $0xa0] sm:$0xff]
        %v2194 = vld [vmem:[%s4 + $0xa8] sm:$0xff]
        %v2195 = vld [vmem:[%s4 + $0xb0] sm:$0xff]
        %v2196 = vld [vmem:[%s4 + $0xb8] sm:$0xff]
        %v2197 = vld [vmem:[%s4 + $0xc0] sm:$0xff]
        %v2198 = vld [vmem:[%s4 + $0xc8] sm:$0xff]
        %v2199 = vld [vmem:[%s4 + $0xd0] sm:$0xff]
        %v2200 = vld [vmem:[%s4 + $0xd8] sm:$0xff]
        %v2201 = vld [vmem:[%s4 + $0xe0] sm:$0xff]
        %v2202 = vld [vmem:[%s4 + $0xe8] sm:$0xff]
        %v2203 = vld [vmem:[%s4 + $0xf0] sm:$0xff]
        %v2204 = vld [vmem:[%s4 + $0xf8] sm:$0xff]
        %v2205 = vld [vmem:[%s4 + $0x100] sm:$0xff]
        %v2206 = vld [vmem:[%s4 + $0x108] sm:$0xff]
        %v2207 = vld [vmem:[%s4 + $0x110] sm:$0xff]
        %v2208 = vld [vmem:[%s4 + $0x118] sm:$0xff]
        %v2209 = vld [vmem:[%s4 + $0x120] sm:$0xff]
        %v2210 = vld [vmem:[%s4 + $0x128] sm:$0xff]
        %v2211 = vld [vmem:[%s4 + $0x130] sm:$0xff]
        %v2212 = vld [vmem:[%s4 + $0x138] sm:$0xff]
        %v2213 = vld [vmem:[%s4 + $0x140] sm:$0xff]
        %v2214 = vld [vmem:[%s4 + $0x148] sm:$0xff]
        %v2215 = vld [vmem:[%s4 + $0x150] sm:$0xff]
        %v2216 = vld [vmem:[%s4 + $0x158] sm:$0xff]
        %v2217 = vld [vmem:[%s4 + $0x160] sm:$0xff]
        %v2218 = vld [vmem:[%s4 + $0x168] sm:$0xff]
        %v2219 = vld [vmem:[%s4 + $0x170] sm:$0xff]
        %v2220 = vld [vmem:[%s4 + $0x178] sm:$0xff]
        %v2221 = vld [vmem:[%s4 + $0x180] sm:$0xff]
        %v2222 = vld [vmem:[%s4 + $0x188] sm:$0xff]
        %v2223 = vld [vmem:[%s4 + $0x190] sm:$0xff]
        %v2224 = vld [vmem:[%s4 + $0x198] sm:$0xff]
        %v2225 = vld [vmem:[%s4 + $0x1a0] sm:$0xff]
        %v2226 = vld [vmem:[%s4 + $0x1a8] sm:$0xff]
        %v2227 = vld [vmem:[%s4 + $0x1b0] sm:$0xff]
        %v2228 = vld [vmem:[%s4 + $0x1b8] sm:$0xff]
        %v2229 = vld [vmem:[%s4 + $0x1c0] sm:$0xff]
        %v2230 = vld [vmem:[%s4 + $0x1c8] sm:$0xff]
        %v2231 = vld [vmem:[%s4 + $0x1d0] sm:$0xff]
        %v2232 = vld [vmem:[%s4 + $0x1d8] sm:$0xff]
        %v2233 = vld [vmem:[%s4 + $0x1e0] sm:$0xff]
        %v2234 = vld [vmem:[%s4 + $0x1e8] sm:$0xff]
        %v2235 = vld [vmem:[%s4 + $0x1f0] sm:$0xff]
        %v2236 = vld [vmem:[%s4 + $0x1f8] sm:$0xff]
        %v2237 = vld [vmem:[%s4 + $0x200] sm:$0xff]
        %v2238 = vld [vmem:[%s4 + $0x208] sm:$0xff]
        %v2239 = vld [vmem:[%s4 + $0x210] sm:$0xff]
        %v2240 = vld [vmem:[%s4 + $0x218] sm:$0xff]
        %v2241 = vld [vmem:[%s4 + $0x220] sm:$0xff]
        %v2242 = vld [vmem:[%s4 + $0x228] sm:$0xff]
        %v2243 = vld [vmem:[%s4 + $0x230] sm:$0xff]
        %v2244 = vld [vmem:[%s4 + $0x238] sm:$0xff]
        %v2245 = vld [vmem:[%s4 + $0x240] sm:$0xff]
        %v2246 = vld [vmem:[%s4 + $0x248] sm:$0xff]
        %v2247 = vld [vmem:[%s4 + $0x250] sm:$0xff]
        %v2248 = vld [vmem:[%s4 + $0x258] sm:$0xff]
        %v2249 = vld [vmem:[%s4 + $0x260] sm:$0xff]
        %v2250 = vld [vmem:[%s4 + $0x268] sm:$0xff]
        %v2251 = vld [vmem:[%s4 + $0x270] sm:$0xff]
        %v2252 = vld [vmem:[%s4 + $0x278] sm:$0xff]
        %v2253 = vld [vmem:[%s5] sm:$0xff]
        %v2254 = vld [vmem:[%s5 + $0x8] sm:$0xff]
        %v2255 = vld [vmem:[%s5 + $0x10] sm:$0xff]
        %v2256 = vld [vmem:[%s5 + $0x18] sm:$0xff]
        %v2257 = vld [vmem:[%s5 + $0x20] sm:$0xff]
        %v2258 = vld [vmem:[%s5 + $0x28] sm:$0xff]
        %v2259 = vld [vmem:[%s5 + $0x30] sm:$0xff]
        %v2260 = vld [vmem:[%s5 + $0x38] sm:$0xff]
        %v2261 = vld [vmem:[%s5 + $0x40] sm:$0xff]
        %v2262 = vld [vmem:[%s5 + $0x48] sm:$0xff]
        %v2263 = vld [vmem:[%s5 + $0x50] sm:$0xff]
        %v2264 = vld [vmem:[%s5 + $0x58] sm:$0xff]
        %v2265 = vld [vmem:[%s5 + $0x60] sm:$0xff]
        %v2266 = vld [vmem:[%s5 + $0x68] sm:$0xff]
        %v2267 = vld [vmem:[%s5 + $0x70] sm:$0xff]
        %v2268 = vld [vmem:[%s5 + $0x78] sm:$0xff]
        %2270 = vset.pattern.permute.xlu0 0
        %2271 = vperm.xlu0 %2270, %v2253
        %v2272 = vpop.permute.xlu0 %2271
        %2275 = vset.pattern.permute.xlu0 0
        %2276 = vperm.xlu0 %2275, %v2254
        %v2277 = vpop.permute.xlu0 %2276
        %2280 = vset.pattern.permute.xlu0 0
        %2281 = vperm.xlu0 %2280, %v2255
        %v2282 = vpop.permute.xlu0 %2281
        %2285 = vset.pattern.permute.xlu0 0
        %2286 = vperm.xlu0 %2285, %v2256
        %v2287 = vpop.permute.xlu0 %2286
        %2290 = vset.pattern.permute.xlu0 0
        %2291 = vperm.xlu0 %2290, %v2257
        %v2292 = vpop.permute.xlu0 %2291
        %2295 = vset.pattern.permute.xlu0 0
        %2296 = vperm.xlu0 %2295, %v2258
        %v2297 = vpop.permute.xlu0 %2296
        %2300 = vset.pattern.permute.xlu0 0
        %2301 = vperm.xlu0 %2300, %v2259
        %v2302 = vpop.permute.xlu0 %2301
        %2305 = vset.pattern.permute.xlu0 0
        %2306 = vperm.xlu0 %2305, %v2260
        %v2307 = vpop.permute.xlu0 %2306
        %2310 = vset.pattern.permute.xlu0 0
        %2311 = vperm.xlu0 %2310, %v2261
        %v2312 = vpop.permute.xlu0 %2311
        %2315 = vset.pattern.permute.xlu0 0
        %2316 = vperm.xlu0 %2315, %v2262
        %v2317 = vpop.permute.xlu0 %2316
        %2320 = vset.pattern.permute.xlu0 0
        %2321 = vperm.xlu0 %2320, %v2263
        %v2322 = vpop.permute.xlu0 %2321
        %2325 = vset.pattern.permute.xlu0 0
        %2326 = vperm.xlu0 %2325, %v2264
        %v2327 = vpop.permute.xlu0 %2326
        %2330 = vset.pattern.permute.xlu0 0
        %2331 = vperm.xlu0 %2330, %v2265
        %v2332 = vpop.permute.xlu0 %2331
        %2335 = vset.pattern.permute.xlu0 0
        %2336 = vperm.xlu0 %2335, %v2266
        %v2337 = vpop.permute.xlu0 %2336
        %2340 = vset.pattern.permute.xlu0 0
        %2341 = vperm.xlu0 %2340, %v2267
        %v2342 = vpop.permute.xlu0 %2341
        %2345 = vset.pattern.permute.xlu0 0
        %2346 = vperm.xlu0 %2345, %v2268
        %v2347 = vpop.permute.xlu0 %2346
        %2349 = vmatprep.subr.mxu0 0.0
        %2350 = vmatpush1.msra.mxu0 %v1479
        %2351 = vmatprep.subr.mxu0 0.0
        %2352 = vmatpush1.msra.mxu0 %v1484
        %2353 = vmatprep.subr.mxu0 0.0
        %2354 = vmatpush1.msra.mxu0 %v1489
        %2355 = vmatprep.subr.mxu0 0.0
        %2356 = vmatpush1.msra.mxu0 %v1494
        %2357 = vmatprep.subr.mxu0 0.0
        %2358 = vmatpush1.msra.mxu0 %v1499
        %2359 = vmatprep.subr.mxu0 0.0
        %2360 = vmatpush1.msra.mxu0 %v1504
        %2361 = vmatprep.subr.mxu0 0.0
        %2362 = vmatpush1.msra.mxu0 %v1509
        %2363 = vmatprep.subr.mxu0 0.0
        %2364 = vmatpush1.msra.mxu0 %v1514
        %2365 = vmatprep.subr.mxu0 0.0
        %2366 = vmatpush1.msra.mxu0 %v1519
        %2367 = vmatprep.subr.mxu0 0.0
        %2368 = vmatpush1.msra.mxu0 %v1524
        %2369 = vmatprep.subr.mxu0 0.0
        %2370 = vmatpush1.msra.mxu0 %v1529
        %2371 = vmatprep.subr.mxu0 0.0
        %2372 = vmatpush1.msra.mxu0 %v1534
        %2373 = vmatprep.subr.mxu0 0.0
        %2374 = vmatpush1.msra.mxu0 %v1539
        %2375 = vmatprep.subr.mxu0 0.0
        %2376 = vmatpush1.msra.mxu0 %v1544
        %2377 = vmatprep.subr.mxu0 0.0
        %2378 = vmatpush1.msra.mxu0 %v1549
        %2379 = vmatprep.subr.mxu0 0.0
        %2380 = vmatpush1.msra.mxu0 %v1554
        %2381 = vmatprep.subr.mxu0 0.0
        %2382 = vmatpush1.msra.mxu0 %v1633
        %2383 = vmatprep.subr.mxu0 0.0
        %2384 = vmatpush1.msra.mxu0 %v1638
        %2385 = vmatprep.subr.mxu0 0.0
        %2386 = vmatpush1.msra.mxu0 %v1643
        %2387 = vmatprep.subr.mxu0 0.0
        %2388 = vmatpush1.msra.mxu0 %v1648
        %2389 = vmatprep.subr.mxu0 0.0
        %2390 = vmatpush1.msra.mxu0 %v1653
        %2391 = vmatprep.subr.mxu0 0.0
        %2392 = vmatpush1.msra.mxu0 %v1658
        %2393 = vmatprep.subr.mxu0 0.0
        %2394 = vmatpush1.msra.mxu0 %v1663
        %2395 = vmatprep.subr.mxu0 0.0
        %2396 = vmatpush1.msra.mxu0 %v1668
        %2397 = vmatprep.subr.mxu0 0.0
        %2398 = vmatpush1.msra.mxu0 %v1673
        %2399 = vmatprep.subr.mxu0 0.0
        %2400 = vmatpush1.msra.mxu0 %v1678
        %2401 = vmatprep.subr.mxu0 0.0
        %2402 = vmatpush1.msra.mxu0 %v1683
        %2403 = vmatprep.subr.mxu0 0.0
        %2404 = vmatpush1.msra.mxu0 %v1688
        %2405 = vmatprep.subr.mxu0 0.0
        %2406 = vmatpush1.msra.mxu0 %v1693
        %2407 = vmatprep.subr.mxu0 0.0
        %2408 = vmatpush1.msra.mxu0 %v1698
        %2409 = vmatprep.subr.mxu0 0.0
        %2410 = vmatpush1.msra.mxu0 %v1703
        %2411 = vmatprep.subr.mxu0 0.0
        %2412 = vmatpush1.msra.mxu0 %v1708
        %2413 = vmatprep.mubr.f32.mxu0 %v2174
        %2414 = vmatmul.mubr.f32.gmra.mrb[0].mxu0 %v2173
        %v2415 = vpop.f32.mrb[0].mxu0
        %v2416 = vadd.f32 %v2272, %v2415
        %v2417 = vpop.f32.mrb[0].mxu0
        %2418 = vmatprep.mubr.f32.mxu0 %v2179
        %2419 = vmatmul.mubr.f32.gmra.mrb[0].mxu0 %v2178
        %v2420 = vpop.f32.mrb[0].mxu0
        %v2421 = vadd.f32 %v2277, %v2420
        %v2422 = vpop.f32.mrb[0].mxu0
        %2423 = vmatprep.mubr.f32.mxu0 %v2184
        %2424 = vmatmul.mubr.f32.gmra.mrb[0].mxu0 %v2183
        %v2425 = vpop.f32.mrb[0].mxu0
        %v2426 = vadd.f32 %v2282, %v2425
        %v2427 = vpop.f32.mrb[0].mxu0
        %2428 = vmatprep.mubr.f32.mxu0 %v2189
        %2429 = vmatmul.mubr.f32.gmra.mrb[0].mxu0 %v2188
        %v2430 = vpop.f32.mrb[0].mxu0
        %v2431 = vadd.f32 %v2287, %v2430
        %v2432 = vpop.f32.mrb[0].mxu0
        %2433 = vmatprep.mubr.f32.mxu0 %v2194
        %2434 = vmatmul.mubr.f32.gmra.mrb[0].mxu0 %v2193
        %v2435 = vpop.f32.mrb[0].mxu0
        %v2436 = vadd.f32 %v2292, %v2435
        %v2437 = vpop.f32.mrb[0].mxu0
        %2438 = vmatprep.mubr.f32.mxu0 %v2199
        %2439 = vmatmul.mubr.f32.gmra.mrb[0].mxu0 %v2198
        %v2440 = vpop.f32.mrb[0].mxu0
        %v2441 = vadd.f32 %v2297, %v2440
        %v2442 = vpop.f32.mrb[0].mxu0
        %2443 = vmatprep.mubr.f32.mxu0 %v2204
        %2444 = vmatmul.mubr.f32.gmra.mrb[0].mxu0 %v2203
        %v2445 = vpop.f32.mrb[0].mxu0
        %v2446 = vadd.f32 %v2302, %v2445
        %v2447 = vpop.f32.mrb[0].mxu0
        %2448 = vmatprep.mubr.f32.mxu0 %v2209
        %2449 = vmatmul.mubr.f32.gmra.mrb[0].mxu0 %v2208
        %v2450 = vpop.f32.mrb[0].mxu0
        %v2451 = vadd.f32 %v2307, %v2450
        %v2452 = vpop.f32.mrb[0].mxu0
        %2453 = vmatprep.mubr.f32.mxu0 %v2214
        %2454 = vmatmul.mubr.f32.gmra.mrb[0].mxu0 %v2213
        %v2455 = vpop.f32.mrb[0].mxu0
        %v2456 = vadd.f32 %v2312, %v2455
        %v2457 = vpop.f32.mrb[0].mxu0
        %2458 = vmatprep.mubr.f32.mxu0 %v2219
        %2459 = vmatmul.mubr.f32.gmra.mrb[0].mxu0 %v2218
        %v2460 = vpop.f32.mrb[0].mxu0
        %v2461 = vadd.f32 %v2317, %v2460
        %v2462 = vpop.f32.mrb[0].mxu0
        %2463 = vmatprep.mubr.f32.mxu0 %v2224
        %2464 = vmatmul.mubr.f32.gmra.mrb[0].mxu0 %v2223
        %v2465 = vpop.f32.mrb[0].mxu0
        %v2466 = vadd.f32 %v2322, %v2465
        %v2467 = vpop.f32.mrb[0].mxu0
        %2468 = vmatprep.mubr.f32.mxu0 %v2229
        %2469 = vmatmul.mubr.f32.gmra.mrb[0].mxu0 %v2228
        %v2470 = vpop.f32.mrb[0].mxu0
        %v2471 = vadd.f32 %v2327, %v2470
        %v2472 = vpop.f32.mrb[0].mxu0
        %2473 = vmatprep.mubr.f32.mxu0 %v2234
        %2474 = vmatmul.mubr.f32.gmra.mrb[0].mxu0 %v2233
        %v2475 = vpop.f32.mrb[0].mxu0
        %v2476 = vadd.f32 %v2332, %v2475
        %v2477 = vpop.f32.mrb[0].mxu0
        %2478 = vmatprep.mubr.f32.mxu0 %v2239
        %2479 = vmatmul.mubr.f32.gmra.mrb[0].mxu0 %v2238
        %v2480 = vpop.f32.mrb[0].mxu0
        %v2481 = vadd.f32 %v2337, %v2480
        %v2482 = vpop.f32.mrb[0].mxu0
        %2483 = vmatprep.mubr.f32.mxu0 %v2244
        %2484 = vmatmul.mubr.f32.gmra.mrb[0].mxu0 %v2243
        %v2485 = vpop.f32.mrb[0].mxu0
        %v2486 = vadd.f32 %v2342, %v2485
        %v2487 = vpop.f32.mrb[0].mxu0
        %2488 = vmatprep.mubr.f32.mxu0 %v2249
        %2489 = vmatmul.mubr.f32.gmra.mrb[0].mxu0 %v2248
        %v2490 = vpop.f32.mrb[0].mxu0
        %v2491 = vadd.f32 %v2347, %v2490
        %v2492 = vpop.f32.mrb[0].mxu0
        %2493 = vdwg.mxu0
        %2494 = vmatprep.subr.mxu0 0.0
        %2495 = vmatpush1.msra.mxu0 %v1787
        %2496 = vmatprep.subr.mxu0 0.0
        %2497 = vmatpush1.msra.mxu0 %v1792
        %2498 = vmatprep.subr.mxu0 0.0
        %2499 = vmatpush1.msra.mxu0 %v1797
        %2500 = vmatprep.subr.mxu0 0.0
        %2501 = vmatpush1.msra.mxu0 %v1802
        %2502 = vmatprep.subr.mxu0 0.0
        %2503 = vmatpush1.msra.mxu0 %v1807
        %2504 = vmatprep.subr.mxu0 0.0
        %2505 = vmatpush1.msra.mxu0 %v1812
        %2506 = vmatprep.subr.mxu0 0.0
        %2507 = vmatpush1.msra.mxu0 %v1817
        %2508 = vmatprep.subr.mxu0 0.0
        %2509 = vmatpush1.msra.mxu0 %v1822
        %2510 = vmatprep.subr.mxu0 0.0
        %2511 = vmatpush1.msra.mxu0 %v1827
        %2512 = vmatprep.subr.mxu0 0.0
        %2513 = vmatpush1.msra.mxu0 %v1832
        %2514 = vmatprep.subr.mxu0 0.0
        %2515 = vmatpush1.msra.mxu0 %v1837
        %2516 = vmatprep.subr.mxu0 0.0
        %2517 = vmatpush1.msra.mxu0 %v1842
        %2518 = vmatprep.subr.mxu0 0.0
        %2519 = vmatpush1.msra.mxu0 %v1847
        %2520 = vmatprep.subr.mxu0 0.0
        %2521 = vmatpush1.msra.mxu0 %v1852
        %2522 = vmatprep.subr.mxu0 0.0
        %2523 = vmatpush1.msra.mxu0 %v1857
        %2524 = vmatprep.subr.mxu0 0.0
        %2525 = vmatpush1.msra.mxu0 %v1862
        %2526 = vmatprep.subr.mxu0 0.0
        %2527 = vmatpush1.msra.mxu0 %v1941
        %2528 = vmatprep.subr.mxu0 0.0
        %2529 = vmatpush1.msra.mxu0 %v1946
        %2530 = vmatprep.subr.mxu0 0.0
        %2531 = vmatpush1.msra.mxu0 %v1951
        %2532 = vmatprep.subr.mxu0 0.0
        %2533 = vmatpush1.msra.mxu0 %v1956
        %2534 = vmatprep.subr.mxu0 0.0
        %2535 = vmatpush1.msra.mxu0 %v1961
        %2536 = vmatprep.subr.mxu0 0.0
        %2537 = vmatpush1.msra.mxu0 %v1966
        %2538 = vmatprep.subr.mxu0 0.0
        %2539 = vmatpush1.msra.mxu0 %v1971
        %2540 = vmatprep.subr.mxu0 0.0
        %2541 = vmatpush1.msra.mxu0 %v1976
        %2542 = vmatprep.subr.mxu0 0.0
        %2543 = vmatpush1.msra.mxu0 %v1981
        %2544 = vmatprep.subr.mxu0 0.0
        %2545 = vmatpush1.msra.mxu0 %v1986
        %2546 = vmatprep.subr.mxu0 0.0
        %2547 = vmatpush1.msra.mxu0 %v1991
        %2548 = vmatprep.subr.mxu0 0.0
        %2549 = vmatpush1.msra.mxu0 %v1996
        %2550 = vmatprep.subr.mxu0 0.0
        %2551 = vmatpush1.msra.mxu0 %v2001
        %2552 = vmatprep.subr.mxu0 0.0
        %2553 = vmatpush1.msra.mxu0 %v2006
        %2554 = vmatprep.subr.mxu0 0.0
        %2555 = vmatpush1.msra.mxu0 %v2011
        %2556 = vmatprep.subr.mxu0 0.0
        %2557 = vmatpush1.msra.mxu0 %v2016
        %2558 = vmatprep.mubr.f32.mxu0 %v2176
        %2559 = vmatmul.mubr.f32.gmra.mrb[0].mxu0 %v2175
        %v2560 = vpop.f32.mrb[0].mxu0
        %v2561 = vadd.f32 %v2416, %v2560
        %v2562 = vpop.f32.mrb[0].mxu0
        %2563 = vmatprep.mubr.f32.mxu0 %v2181
        %2564 = vmatmul.mubr.f32.gmra.mrb[0].mxu0 %v2180
        %v2565 = vpop.f32.mrb[0].mxu0
        %v2566 = vadd.f32 %v2421, %v2565
        %v2567 = vpop.f32.mrb[0].mxu0
        %2568 = vmatprep.mubr.f32.mxu0 %v2186
        %2569 = vmatmul.mubr.f32.gmra.mrb[0].mxu0 %v2185
        %v2570 = vpop.f32.mrb[0].mxu0
        %v2571 = vadd.f32 %v2426, %v2570
        %v2572 = vpop.f32.mrb[0].mxu0
        %2573 = vmatprep.mubr.f32.mxu0 %v2191
        %2574 = vmatmul.mubr.f32.gmra.mrb[0].mxu0 %v2190
        %v2575 = vpop.f32.mrb[0].mxu0
        %v2576 = vadd.f32 %v2431, %v2575
        %v2577 = vpop.f32.mrb[0].mxu0
        %2578 = vmatprep.mubr.f32.mxu0 %v2196
        %2579 = vmatmul.mubr.f32.gmra.mrb[0].mxu0 %v2195
        %v2580 = vpop.f32.mrb[0].mxu0
        %v2581 = vadd.f32 %v2436, %v2580
        %v2582 = vpop.f32.mrb[0].mxu0
        %2583 = vmatprep.mubr.f32.mxu0 %v2201
        %2584 = vmatmul.mubr.f32.gmra.mrb[0].mxu0 %v2200
        %v2585 = vpop.f32.mrb[0].mxu0
        %v2586 = vadd.f32 %v2441, %v2585
        %v2587 = vpop.f32.mrb[0].mxu0
        %2588 = vmatprep.mubr.f32.mxu0 %v2206
        %2589 = vmatmul.mubr.f32.gmra.mrb[0].mxu0 %v2205
        %v2590 = vpop.f32.mrb[0].mxu0
        %v2591 = vadd.f32 %v2446, %v2590
        %v2592 = vpop.f32.mrb[0].mxu0
        %2593 = vmatprep.mubr.f32.mxu0 %v2211
        %2594 = vmatmul.mubr.f32.gmra.mrb[0].mxu0 %v2210
        %v2595 = vpop.f32.mrb[0].mxu0
        %v2596 = vadd.f32 %v2451, %v2595
        %v2597 = vpop.f32.mrb[0].mxu0
        %2598 = vmatprep.mubr.f32.mxu0 %v2216
        %2599 = vmatmul.mubr.f32.gmra.mrb[0].mxu0 %v2215
        %v2600 = vpop.f32.mrb[0].mxu0
        %v2601 = vadd.f32 %v2456, %v2600
        %v2602 = vpop.f32.mrb[0].mxu0
        %2603 = vmatprep.mubr.f32.mxu0 %v2221
        %2604 = vmatmul.mubr.f32.gmra.mrb[0].mxu0 %v2220
        %v2605 = vpop.f32.mrb[0].mxu0
        %v2606 = vadd.f32 %v2461, %v2605
        %v2607 = vpop.f32.mrb[0].mxu0
        %2608 = vmatprep.mubr.f32.mxu0 %v2226
        %2609 = vmatmul.mubr.f32.gmra.mrb[0].mxu0 %v2225
        %v2610 = vpop.f32.mrb[0].mxu0
        %v2611 = vadd.f32 %v2466, %v2610
        %v2612 = vpop.f32.mrb[0].mxu0
        %2613 = vmatprep.mubr.f32.mxu0 %v2231
        %2614 = vmatmul.mubr.f32.gmra.mrb[0].mxu0 %v2230
        %v2615 = vpop.f32.mrb[0].mxu0
        %v2616 = vadd.f32 %v2471, %v2615
        %v2617 = vpop.f32.mrb[0].mxu0
        %2618 = vmatprep.mubr.f32.mxu0 %v2236
        %2619 = vmatmul.mubr.f32.gmra.mrb[0].mxu0 %v2235
        %v2620 = vpop.f32.mrb[0].mxu0
        %v2621 = vadd.f32 %v2476, %v2620
        %v2622 = vpop.f32.mrb[0].mxu0
        %2623 = vmatprep.mubr.f32.mxu0 %v2241
        %2624 = vmatmul.mubr.f32.gmra.mrb[0].mxu0 %v2240
        %v2625 = vpop.f32.mrb[0].mxu0
        %v2626 = vadd.f32 %v2481, %v2625
        %v2627 = vpop.f32.mrb[0].mxu0
        %2628 = vmatprep.mubr.f32.mxu0 %v2246
        %2629 = vmatmul.mubr.f32.gmra.mrb[0].mxu0 %v2245
        %v2630 = vpop.f32.mrb[0].mxu0
        %v2631 = vadd.f32 %v2486, %v2630
        %v2632 = vpop.f32.mrb[0].mxu0
        %2633 = vmatprep.mubr.f32.mxu0 %v2251
        %2634 = vmatmul.mubr.f32.gmra.mrb[0].mxu0 %v2250
        %v2635 = vpop.f32.mrb[0].mxu0
        %v2636 = vadd.f32 %v2491, %v2635
        %v2637 = vpop.f32.mrb[0].mxu0
        %2638 = vdwg.mxu0
        %2639 = vmatprep.subr.mxu0 0.0
        %2640 = vmatpush1.msra.mxu0 %v2095
        %2641 = vmatprep.subr.mxu0 0.0
        %2642 = vmatpush1.msra.mxu0 %v2100
        %2643 = vmatprep.subr.mxu0 0.0
        %2644 = vmatpush1.msra.mxu0 %v2105
        %2645 = vmatprep.subr.mxu0 0.0
        %2646 = vmatpush1.msra.mxu0 %v2110
        %2647 = vmatprep.subr.mxu0 0.0
        %2648 = vmatpush1.msra.mxu0 %v2115
        %2649 = vmatprep.subr.mxu0 0.0
        %2650 = vmatpush1.msra.mxu0 %v2120
        %2651 = vmatprep.subr.mxu0 0.0
        %2652 = vmatpush1.msra.mxu0 %v2125
        %2653 = vmatprep.subr.mxu0 0.0
        %2654 = vmatpush1.msra.mxu0 %v2130
        %2655 = vmatprep.subr.mxu0 0.0
        %2656 = vmatpush1.msra.mxu0 %v2135
        %2657 = vmatprep.subr.mxu0 0.0
        %2658 = vmatpush1.msra.mxu0 %v2140
        %2659 = vmatprep.subr.mxu0 0.0
        %2660 = vmatpush1.msra.mxu0 %v2145
        %2661 = vmatprep.subr.mxu0 0.0
        %2662 = vmatpush1.msra.mxu0 %v2150
        %2663 = vmatprep.subr.mxu0 0.0
        %2664 = vmatpush1.msra.mxu0 %v2155
        %2665 = vmatprep.subr.mxu0 0.0
        %2666 = vmatpush1.msra.mxu0 %v2160
        %2667 = vmatprep.subr.mxu0 0.0
        %2668 = vmatpush1.msra.mxu0 %v2165
        %2669 = vmatprep.subr.mxu0 0.0
        %2670 = vmatpush1.msra.mxu0 %v2170
        %2671 = vmatprep.subr.mxu0 0.0
        %2672 = vmatpush1.msra.mxu0 0.0
        %2673 = vmatprep.subr.mxu0 0.0
        %2674 = vmatpush1.msra.mxu0 0.0
        %2675 = vmatprep.subr.mxu0 0.0
        %2676 = vmatpush1.msra.mxu0 0.0
        %2677 = vmatprep.subr.mxu0 0.0
        %2678 = vmatpush1.msra.mxu0 0.0
        %2679 = vmatprep.subr.mxu0 0.0
        %2680 = vmatpush1.msra.mxu0 0.0
        %2681 = vmatprep.subr.mxu0 0.0
        %2682 = vmatpush1.msra.mxu0 0.0
        %2683 = vmatprep.subr.mxu0 0.0
        %2684 = vmatpush1.msra.mxu0 0.0
        %2685 = vmatprep.subr.mxu0 0.0
        %2686 = vmatpush1.msra.mxu0 0.0
        %2687 = vmatprep.subr.mxu0 0.0
        %2688 = vmatpush1.msra.mxu0 0.0
        %2689 = vmatprep.subr.mxu0 0.0
        %2690 = vmatpush1.msra.mxu0 0.0
        %2691 = vmatprep.subr.mxu0 0.0
        %2692 = vmatpush1.msra.mxu0 0.0
        %2693 = vmatprep.subr.mxu0 0.0
        %2694 = vmatpush1.msra.mxu0 0.0
        %2695 = vmatprep.subr.mxu0 0.0
        %2696 = vmatpush1.msra.mxu0 0.0
        %2697 = vmatprep.subr.mxu0 0.0
        %2698 = vmatpush1.msra.mxu0 0.0
        %2699 = vmatprep.subr.mxu0 0.0
        %2700 = vmatpush1.msra.mxu0 0.0
        %2701 = vmatprep.subr.mxu0 0.0
        %2702 = vmatpush1.msra.mxu0 0.0
        %2703 = vmatprep.mubr.f32.mxu0 0.0
        %2704 = vmatmul.mubr.f32.gmra.mrb[0].mxu0 %v2177
        %v2705 = vpop.f32.mrb[0].mxu0
        %v2706 = vadd.f32 %v2561, %v2705
        %v2707 = vpop.f32.mrb[0].mxu0
        %2708 = vmatprep.mubr.f32.mxu0 0.0
        %2709 = vmatmul.mubr.f32.gmra.mrb[0].mxu0 %v2182
        %v2710 = vpop.f32.mrb[0].mxu0
        %v2711 = vadd.f32 %v2566, %v2710
        %v2712 = vpop.f32.mrb[0].mxu0
        %2713 = vmatprep.mubr.f32.mxu0 0.0
        %2714 = vmatmul.mubr.f32.gmra.mrb[0].mxu0 %v2187
        %v2715 = vpop.f32.mrb[0].mxu0
        %v2716 = vadd.f32 %v2571, %v2715
        %v2717 = vpop.f32.mrb[0].mxu0
        %2718 = vmatprep.mubr.f32.mxu0 0.0
        %2719 = vmatmul.mubr.f32.gmra.mrb[0].mxu0 %v2192
        %v2720 = vpop.f32.mrb[0].mxu0
        %v2721 = vadd.f32 %v2576, %v2720
        %v2722 = vpop.f32.mrb[0].mxu0
        %2723 = vmatprep.mubr.f32.mxu0 0.0
        %2724 = vmatmul.mubr.f32.gmra.mrb[0].mxu0 %v2197
        %v2725 = vpop.f32.mrb[0].mxu0
        %v2726 = vadd.f32 %v2581, %v2725
        %v2727 = vpop.f32.mrb[0].mxu0
        %2728 = vmatprep.mubr.f32.mxu0 0.0
        %2729 = vmatmul.mubr.f32.gmra.mrb[0].mxu0 %v2202
        %v2730 = vpop.f32.mrb[0].mxu0
        %v2731 = vadd.f32 %v2586, %v2730
        %v2732 = vpop.f32.mrb[0].mxu0
        %2733 = vmatprep.mubr.f32.mxu0 0.0
        %2734 = vmatmul.mubr.f32.gmra.mrb[0].mxu0 %v2207
        %v2735 = vpop.f32.mrb[0].mxu0
        %v2736 = vadd.f32 %v2591, %v2735
        %v2737 = vpop.f32.mrb[0].mxu0
        %2738 = vmatprep.mubr.f32.mxu0 0.0
        %2739 = vmatmul.mubr.f32.gmra.mrb[0].mxu0 %v2212
        %v2740 = vpop.f32.mrb[0].mxu0
        %v2741 = vadd.f32 %v2596, %v2740
        %v2742 = vpop.f32.mrb[0].mxu0
        %2743 = vmatprep.mubr.f32.mxu0 0.0
        %2744 = vmatmul.mubr.f32.gmra.mrb[0].mxu0 %v2217
        %v2745 = vpop.f32.mrb[0].mxu0
        %v2746 = vadd.f32 %v2601, %v2745
        %v2747 = vpop.f32.mrb[0].mxu0
        %2748 = vmatprep.mubr.f32.mxu0 0.0
        %2749 = vmatmul.mubr.f32.gmra.mrb[0].mxu0 %v2222
        %v2750 = vpop.f32.mrb[0].mxu0
        %v2751 = vadd.f32 %v2606, %v2750
        %v2752 = vpop.f32.mrb[0].mxu0
        %2753 = vmatprep.mubr.f32.mxu0 0.0
        %2754 = vmatmul.mubr.f32.gmra.mrb[0].mxu0 %v2227
        %v2755 = vpop.f32.mrb[0].mxu0
        %v2756 = vadd.f32 %v2611, %v2755
        %v2757 = vpop.f32.mrb[0].mxu0
        %2758 = vmatprep.mubr.f32.mxu0 0.0
        %2759 = vmatmul.mubr.f32.gmra.mrb[0].mxu0 %v2232
        %v2760 = vpop.f32.mrb[0].mxu0
        %v2761 = vadd.f32 %v2616, %v2760
        %v2762 = vpop.f32.mrb[0].mxu0
        %2763 = vmatprep.mubr.f32.mxu0 0.0
        %2764 = vmatmul.mubr.f32.gmra.mrb[0].mxu0 %v2237
        %v2765 = vpop.f32.mrb[0].mxu0
        %v2766 = vadd.f32 %v2621, %v2765
        %v2767 = vpop.f32.mrb[0].mxu0
        %2768 = vmatprep.mubr.f32.mxu0 0.0
        %2769 = vmatmul.mubr.f32.gmra.mrb[0].mxu0 %v2242
        %v2770 = vpop.f32.mrb[0].mxu0
        %v2771 = vadd.f32 %v2626, %v2770
        %v2772 = vpop.f32.mrb[0].mxu0
        %2773 = vmatprep.mubr.f32.mxu0 0.0
        %2774 = vmatmul.mubr.f32.gmra.mrb[0].mxu0 %v2247
        %v2775 = vpop.f32.mrb[0].mxu0
        %v2776 = vadd.f32 %v2631, %v2775
        %v2777 = vpop.f32.mrb[0].mxu0
        %2778 = vmatprep.mubr.f32.mxu0 0.0
        %2779 = vmatmul.mubr.f32.gmra.mrb[0].mxu0 %v2252
        %v2780 = vpop.f32.mrb[0].mxu0
        %v2781 = vadd.f32 %v2636, %v2780
        %v2782 = vpop.f32.mrb[0].mxu0
        %2783 = vdwg.mxu0
        %v2784 = vmax.f32 %v2706, 0.0
        %v2785 = vmax.f32 %v2711, 0.0
        %v2786 = vmax.f32 %v2716, 0.0
        %v2787 = vmax.f32 %v2721, 0.0
        %v2788 = vmax.f32 %v2726, 0.0
        %v2789 = vmax.f32 %v2731, 0.0
        %v2790 = vmax.f32 %v2736, 0.0
        %v2791 = vmax.f32 %v2741, 0.0
        %v2792 = vmax.f32 %v2746, 0.0
        %v2793 = vmax.f32 %v2751, 0.0
        %v2794 = vmax.f32 %v2756, 0.0
        %v2795 = vmax.f32 %v2761, 0.0
        %v2796 = vmax.f32 %v2766, 0.0
        %v2797 = vmax.f32 %v2771, 0.0
        %v2798 = vmax.f32 %v2776, 0.0
        %v2799 = vmax.f32 %v2781, 0.0
        %v2800 = vld [vmem:[%s9] sm:$0xff]
        %v2801 = vld [vmem:[%s9 + $0x8] sm:$0xff]
        %v2802 = vld [vmem:[%s9 + $0x10] sm:$0xff]
        %v2803 = vld [vmem:[%s9 + $0x18] sm:$0xff]
        %vm2804 = vcmask 261120
        %v2806 = vsel %vm2804, %v2784, 0
        %v2809 = vsel %vm2804, %v2785, 0
        %v2812 = vsel %vm2804, %v2786, 0
        %v2815 = vsel %vm2804, %v2787, 0
        %v2818 = vsel %vm2804, %v2788, 0
        %v2821 = vsel %vm2804, %v2789, 0
        %v2824 = vsel %vm2804, %v2790, 0
        %v2827 = vsel %vm2804, %v2791, 0
        %v2830 = vsel %vm2804, %v2792, 0
        %v2833 = vsel %vm2804, %v2793, 0
        %v2836 = vsel %vm2804, %v2794, 0
        %v2839 = vsel %vm2804, %v2795, 0
        %v2842 = vsel %vm2804, %v2796, 0
        %v2845 = vsel %vm2804, %v2797, 0
        %v2848 = vsel %vm2804, %v2798, 0
        %v2851 = vsel %vm2804, %v2799, 0
        %2853 = vmatprep.subr.mxu0 0.0
        %2854 = vmatpush1.msra.mxu0 %v2800
        %2855 = vmatprep.subr.mxu0 0.0
        %2856 = vmatpush1.msra.mxu0 %v2801
        %2857 = vmatprep.subr.mxu0 0.0
        %2858 = vmatpush1.msra.mxu0 %v2802
        %2859 = vmatprep.subr.mxu0 0.0
        %2860 = vmatpush1.msra.mxu0 %v2803
        %2861 = vmatprep.subr.mxu0 0.0
        %2862 = vmatpush1.msra.mxu0 0.0
        %2863 = vmatprep.subr.mxu0 0.0
        %2864 = vmatpush1.msra.mxu0 0.0
        %2865 = vmatprep.subr.mxu0 0.0
        %2866 = vmatpush1.msra.mxu0 0.0
        %2867 = vmatprep.subr.mxu0 0.0
        %2868 = vmatpush1.msra.mxu0 0.0
        %2869 = vmatprep.subr.mxu0 0.0
        %2870 = vmatpush1.msra.mxu0 0.0
        %2871 = vmatprep.subr.mxu0 0.0
        %2872 = vmatpush1.msra.mxu0 0.0
        %2873 = vmatprep.subr.mxu0 0.0
        %2874 = vmatpush1.msra.mxu0 0.0
        %2875 = vmatprep.subr.mxu0 0.0
        %2876 = vmatpush1.msra.mxu0 0.0
        %2877 = vmatprep.subr.mxu0 0.0
        %2878 = vmatpush1.msra.mxu0 0.0
        %2879 = vmatprep.subr.mxu0 0.0
        %2880 = vmatpush1.msra.mxu0 0.0
        %2881 = vmatprep.subr.mxu0 0.0
        %2882 = vmatpush1.msra.mxu0 0.0
        %2883 = vmatprep.subr.mxu0 0.0
        %2884 = vmatpush1.msra.mxu0 0.0
        %2885 = vmatprep.subr.mxu0 0.0
        %2886 = vmatpush1.msra.mxu0 0.0
        %2887 = vmatprep.subr.mxu0 0.0
        %2888 = vmatpush1.msra.mxu0 0.0
        %2889 = vmatprep.subr.mxu0 0.0
        %2890 = vmatpush1.msra.mxu0 0.0
        %2891 = vmatprep.subr.mxu0 0.0
        %2892 = vmatpush1.msra.mxu0 0.0
        %2893 = vmatprep.subr.mxu0 0.0
        %2894 = vmatpush1.msra.mxu0 0.0
        %2895 = vmatprep.subr.mxu0 0.0
        %2896 = vmatpush1.msra.mxu0 0.0
        %2897 = vmatprep.subr.mxu0 0.0
        %2898 = vmatpush1.msra.mxu0 0.0
        %2899 = vmatprep.subr.mxu0 0.0
        %2900 = vmatpush1.msra.mxu0 0.0
        %2901 = vmatprep.subr.mxu0 0.0
        %2902 = vmatpush1.msra.mxu0 0.0
        %2903 = vmatprep.subr.mxu0 0.0
        %2904 = vmatpush1.msra.mxu0 0.0
        %2905 = vmatprep.subr.mxu0 0.0
        %2906 = vmatpush1.msra.mxu0 0.0
        %2907 = vmatprep.subr.mxu0 0.0
        %2908 = vmatpush1.msra.mxu0 0.0
        %2909 = vmatprep.subr.mxu0 0.0
        %2910 = vmatpush1.msra.mxu0 0.0
        %2911 = vmatprep.subr.mxu0 0.0
        %2912 = vmatpush1.msra.mxu0 0.0
        %2913 = vmatprep.subr.mxu0 0.0
        %2914 = vmatpush1.msra.mxu0 0.0
        %2915 = vmatprep.subr.mxu0 0.0
        %2916 = vmatpush1.msra.mxu0 0.0
        %2917 = vmatprep.mubr.f32.mxu0 0.0
        %2918 = vmatmul.mubr.f32.gmra.mrb[0].mxu0 %v2806
        %v2919 = vpop.f32.mrb[0].mxu0
        %v2920 = vadd.f32 0.0, %v2919
        %v2921 = vpop.f32.mrb[0].mxu0
        %2922 = vmatprep.mubr.f32.mxu0 0.0
        %2923 = vmatmul.mubr.f32.gmra.mrb[0].mxu0 %v2809
        %v2924 = vpop.f32.mrb[0].mxu0
        %v2925 = vadd.f32 0.0, %v2924
        %v2926 = vpop.f32.mrb[0].mxu0
        %2927 = vmatprep.mubr.f32.mxu0 0.0
        %2928 = vmatmul.mubr.f32.gmra.mrb[0].mxu0 %v2812
        %v2929 = vpop.f32.mrb[0].mxu0
        %v2930 = vadd.f32 0.0, %v2929
        %v2931 = vpop.f32.mrb[0].mxu0
        %2932 = vmatprep.mubr.f32.mxu0 0.0
        %2933 = vmatmul.mubr.f32.gmra.mrb[0].mxu0 %v2815
        %v2934 = vpop.f32.mrb[0].mxu0
        %v2935 = vadd.f32 0.0, %v2934
        %v2936 = vpop.f32.mrb[0].mxu0
        %2937 = vmatprep.mubr.f32.mxu0 0.0
        %2938 = vmatmul.mubr.f32.gmra.mrb[0].mxu0 %v2818
        %v2939 = vpop.f32.mrb[0].mxu0
        %v2940 = vadd.f32 0.0, %v2939
        %v2941 = vpop.f32.mrb[0].mxu0
        %2942 = vmatprep.mubr.f32.mxu0 0.0
        %2943 = vmatmul.mubr.f32.gmra.mrb[0].mxu0 %v2821
        %v2944 = vpop.f32.mrb[0].mxu0
        %v2945 = vadd.f32 0.0, %v2944
        %v2946 = vpop.f32.mrb[0].mxu0
        %2947 = vmatprep.mubr.f32.mxu0 0.0
        %2948 = vmatmul.mubr.f32.gmra.mrb[0].mxu0 %v2824
        %v2949 = vpop.f32.mrb[0].mxu0
        %v2950 = vadd.f32 0.0, %v2949
        %v2951 = vpop.f32.mrb[0].mxu0
        %2952 = vmatprep.mubr.f32.mxu0 0.0
        %2953 = vmatmul.mubr.f32.gmra.mrb[0].mxu0 %v2827
        %v2954 = vpop.f32.mrb[0].mxu0
        %v2955 = vadd.f32 0.0, %v2954
        %v2956 = vpop.f32.mrb[0].mxu0
        %2957 = vmatprep.mubr.f32.mxu0 0.0
        %2958 = vmatmul.mubr.f32.gmra.mrb[0].mxu0 %v2830
        %v2959 = vpop.f32.mrb[0].mxu0
        %v2960 = vadd.f32 0.0, %v2959
        %v2961 = vpop.f32.mrb[0].mxu0
        %2962 = vmatprep.mubr.f32.mxu0 0.0
        %2963 = vmatmul.mubr.f32.gmra.mrb[0].mxu0 %v2833
        %v2964 = vpop.f32.mrb[0].mxu0
        %v2965 = vadd.f32 0.0, %v2964
        %v2966 = vpop.f32.mrb[0].mxu0
        %2967 = vmatprep.mubr.f32.mxu0 0.0
        %2968 = vmatmul.mubr.f32.gmra.mrb[0].mxu0 %v2836
        %v2969 = vpop.f32.mrb[0].mxu0
        %v2970 = vadd.f32 0.0, %v2969
        %v2971 = vpop.f32.mrb[0].mxu0
        %2972 = vmatprep.mubr.f32.mxu0 0.0
        %2973 = vmatmul.mubr.f32.gmra.mrb[0].mxu0 %v2839
        %v2974 = vpop.f32.mrb[0].mxu0
        %v2975 = vadd.f32 0.0, %v2974
        %v2976 = vpop.f32.mrb[0].mxu0
        %2977 = vmatprep.mubr.f32.mxu0 0.0
        %2978 = vmatmul.mubr.f32.gmra.mrb[0].mxu0 %v2842
        %v2979 = vpop.f32.mrb[0].mxu0
        %v2980 = vadd.f32 0.0, %v2979
        %v2981 = vpop.f32.mrb[0].mxu0
        %2982 = vmatprep.mubr.f32.mxu0 0.0
        %2983 = vmatmul.mubr.f32.gmra.mrb[0].mxu0 %v2845
        %v2984 = vpop.f32.mrb[0].mxu0
        %v2985 = vadd.f32 0.0, %v2984
        %v2986 = vpop.f32.mrb[0].mxu0
        %2987 = vmatprep.mubr.f32.mxu0 0.0
        %2988 = vmatmul.mubr.f32.gmra.mrb[0].mxu0 %v2848
        %v2989 = vpop.f32.mrb[0].mxu0
        %v2990 = vadd.f32 0.0, %v2989
        %v2991 = vpop.f32.mrb[0].mxu0
        %2992 = vmatprep.mubr.f32.mxu0 0.0
        %2993 = vmatmul.mubr.f32.gmra.mrb[0].mxu0 %v2851
        %v2994 = vpop.f32.mrb[0].mxu0
        %v2995 = vadd.f32 0.0, %v2994
        %v2996 = vpop.f32.mrb[0].mxu0
        %2997 = vdwg.mxu0
        %s2998 = scalar_lea.vmem %s9, 32
        %v2999 = vld [vmem:[%s2998] sm:$0xff]
        %v3000 = vld [vmem:[%s2998 + $0x8] sm:$0xff]
        %v3001 = vld [vmem:[%s2998 + $0x10] sm:$0xff]
        %v3002 = vld [vmem:[%s2998 + $0x18] sm:$0xff]
        %3003 = vmatprep.subr.mxu0 0.0
        %3004 = vmatpush1.msra.mxu0 %v2999
        %3005 = vmatprep.subr.mxu0 0.0
        %3006 = vmatpush1.msra.mxu0 %v3000
        %3007 = vmatprep.subr.mxu0 0.0
        %3008 = vmatpush1.msra.mxu0 %v3001
        %3009 = vmatprep.subr.mxu0 0.0
        %3010 = vmatpush1.msra.mxu0 %v3002
        %3011 = vmatprep.subr.mxu0 0.0
        %3012 = vmatpush1.msra.mxu0 0.0
        %3013 = vmatprep.subr.mxu0 0.0
        %3014 = vmatpush1.msra.mxu0 0.0
        %3015 = vmatprep.subr.mxu0 0.0
        %3016 = vmatpush1.msra.mxu0 0.0
        %3017 = vmatprep.subr.mxu0 0.0
        %3018 = vmatpush1.msra.mxu0 0.0
        %3019 = vmatprep.subr.mxu0 0.0
        %3020 = vmatpush1.msra.mxu0 0.0
        %3021 = vmatprep.subr.mxu0 0.0
        %3022 = vmatpush1.msra.mxu0 0.0
        %3023 = vmatprep.subr.mxu0 0.0
        %3024 = vmatpush1.msra.mxu0 0.0
        %3025 = vmatprep.subr.mxu0 0.0
        %3026 = vmatpush1.msra.mxu0 0.0
        %3027 = vmatprep.subr.mxu0 0.0
        %3028 = vmatpush1.msra.mxu0 0.0
        %3029 = vmatprep.subr.mxu0 0.0
        %3030 = vmatpush1.msra.mxu0 0.0
        %3031 = vmatprep.subr.mxu0 0.0
        %3032 = vmatpush1.msra.mxu0 0.0
        %3033 = vmatprep.subr.mxu0 0.0
        %3034 = vmatpush1.msra.mxu0 0.0
        %3035 = vmatprep.subr.mxu0 0.0
        %3036 = vmatpush1.msra.mxu0 0.0
        %3037 = vmatprep.subr.mxu0 0.0
        %3038 = vmatpush1.msra.mxu0 0.0
        %3039 = vmatprep.subr.mxu0 0.0
        %3040 = vmatpush1.msra.mxu0 0.0
        %3041 = vmatprep.subr.mxu0 0.0
        %3042 = vmatpush1.msra.mxu0 0.0
        %3043 = vmatprep.subr.mxu0 0.0
        %3044 = vmatpush1.msra.mxu0 0.0
        %3045 = vmatprep.subr.mxu0 0.0
        %3046 = vmatpush1.msra.mxu0 0.0
        %3047 = vmatprep.subr.mxu0 0.0
        %3048 = vmatpush1.msra.mxu0 0.0
        %3049 = vmatprep.subr.mxu0 0.0
        %3050 = vmatpush1.msra.mxu0 0.0
        %3051 = vmatprep.subr.mxu0 0.0
        %3052 = vmatpush1.msra.mxu0 0.0
        %3053 = vmatprep.subr.mxu0 0.0
        %3054 = vmatpush1.msra.mxu0 0.0
        %3055 = vmatprep.subr.mxu0 0.0
        %3056 = vmatpush1.msra.mxu0 0.0
        %3057 = vmatprep.subr.mxu0 0.0
        %3058 = vmatpush1.msra.mxu0 0.0
        %3059 = vmatprep.subr.mxu0 0.0
        %3060 = vmatpush1.msra.mxu0 0.0
        %3061 = vmatprep.subr.mxu0 0.0
        %3062 = vmatpush1.msra.mxu0 0.0
        %3063 = vmatprep.subr.mxu0 0.0
        %3064 = vmatpush1.msra.mxu0 0.0
        %3065 = vmatprep.subr.mxu0 0.0
        %3066 = vmatpush1.msra.mxu0 0.0
        %3067 = vmatprep.mubr.f32.mxu0 0.0
        %3068 = vmatmul.mubr.f32.gmra.mrb[0].mxu0 %v2806
        %v3069 = vpop.f32.mrb[0].mxu0
        %v3070 = vadd.f32 0.0, %v3069
        %v3071 = vpop.f32.mrb[0].mxu0
        %3072 = vmatprep.mubr.f32.mxu0 0.0
        %3073 = vmatmul.mubr.f32.gmra.mrb[0].mxu0 %v2809
        %v3074 = vpop.f32.mrb[0].mxu0
        %v3075 = vadd.f32 0.0, %v3074
        %v3076 = vpop.f32.mrb[0].mxu0
        %3077 = vmatprep.mubr.f32.mxu0 0.0
        %3078 = vmatmul.mubr.f32.gmra.mrb[0].mxu0 %v2812
        %v3079 = vpop.f32.mrb[0].mxu0
        %v3080 = vadd.f32 0.0, %v3079
        %v3081 = vpop.f32.mrb[0].mxu0
        %3082 = vmatprep.mubr.f32.mxu0 0.0
        %3083 = vmatmul.mubr.f32.gmra.mrb[0].mxu0 %v2815
        %v3084 = vpop.f32.mrb[0].mxu0
        %v3085 = vadd.f32 0.0, %v3084
        %v3086 = vpop.f32.mrb[0].mxu0
        %3087 = vmatprep.mubr.f32.mxu0 0.0
        %3088 = vmatmul.mubr.f32.gmra.mrb[0].mxu0 %v2818
        %v3089 = vpop.f32.mrb[0].mxu0
        %v3090 = vadd.f32 0.0, %v3089
        %v3091 = vpop.f32.mrb[0].mxu0
        %3092 = vmatprep.mubr.f32.mxu0 0.0
        %3093 = vmatmul.mubr.f32.gmra.mrb[0].mxu0 %v2821
        %v3094 = vpop.f32.mrb[0].mxu0
        %v3095 = vadd.f32 0.0, %v3094
        %v3096 = vpop.f32.mrb[0].mxu0
        %3097 = vmatprep.mubr.f32.mxu0 0.0
        %3098 = vmatmul.mubr.f32.gmra.mrb[0].mxu0 %v2824
        %v3099 = vpop.f32.mrb[0].mxu0
        %v3100 = vadd.f32 0.0, %v3099
        %v3101 = vpop.f32.mrb[0].mxu0
        %3102 = vmatprep.mubr.f32.mxu0 0.0
        %3103 = vmatmul.mubr.f32.gmra.mrb[0].mxu0 %v2827
        %v3104 = vpop.f32.mrb[0].mxu0
        %v3105 = vadd.f32 0.0, %v3104
        %v3106 = vpop.f32.mrb[0].mxu0
        %3107 = vmatprep.mubr.f32.mxu0 0.0
        %3108 = vmatmul.mubr.f32.gmra.mrb[0].mxu0 %v2830
        %v3109 = vpop.f32.mrb[0].mxu0
        %v3110 = vadd.f32 0.0, %v3109
        %v3111 = vpop.f32.mrb[0].mxu0
        %3112 = vmatprep.mubr.f32.mxu0 0.0
        %3113 = vmatmul.mubr.f32.gmra.mrb[0].mxu0 %v2833
        %v3114 = vpop.f32.mrb[0].mxu0
        %v3115 = vadd.f32 0.0, %v3114
        %v3116 = vpop.f32.mrb[0].mxu0
        %3117 = vmatprep.mubr.f32.mxu0 0.0
        %3118 = vmatmul.mubr.f32.gmra.mrb[0].mxu0 %v2836
        %v3119 = vpop.f32.mrb[0].mxu0
        %v3120 = vadd.f32 0.0, %v3119
        %v3121 = vpop.f32.mrb[0].mxu0
        %3122 = vmatprep.mubr.f32.mxu0 0.0
        %3123 = vmatmul.mubr.f32.gmra.mrb[0].mxu0 %v2839
        %v3124 = vpop.f32.mrb[0].mxu0
        %v3125 = vadd.f32 0.0, %v3124
        %v3126 = vpop.f32.mrb[0].mxu0
        %3127 = vmatprep.mubr.f32.mxu0 0.0
        %3128 = vmatmul.mubr.f32.gmra.mrb[0].mxu0 %v2842
        %v3129 = vpop.f32.mrb[0].mxu0
        %v3130 = vadd.f32 0.0, %v3129
        %v3131 = vpop.f32.mrb[0].mxu0
        %3132 = vmatprep.mubr.f32.mxu0 0.0
        %3133 = vmatmul.mubr.f32.gmra.mrb[0].mxu0 %v2845
        %v3134 = vpop.f32.mrb[0].mxu0
        %v3135 = vadd.f32 0.0, %v3134
        %v3136 = vpop.f32.mrb[0].mxu0
        %3137 = vmatprep.mubr.f32.mxu0 0.0
        %3138 = vmatmul.mubr.f32.gmra.mrb[0].mxu0 %v2848
        %v3139 = vpop.f32.mrb[0].mxu0
        %v3140 = vadd.f32 0.0, %v3139
        %v3141 = vpop.f32.mrb[0].mxu0
        %3142 = vmatprep.mubr.f32.mxu0 0.0
        %3143 = vmatmul.mubr.f32.gmra.mrb[0].mxu0 %v2851
        %v3144 = vpop.f32.mrb[0].mxu0
        %v3145 = vadd.f32 0.0, %v3144
        %v3146 = vpop.f32.mrb[0].mxu0
        %3147 = vdwg.mxu0
        %s3148 = scalar_lea.vmem %s9, 64
        %v3149 = vld [vmem:[%s3148] sm:$0xff]
        %v3150 = vld [vmem:[%s3148 + $0x8] sm:$0xff]
        %v3151 = vld [vmem:[%s3148 + $0x10] sm:$0xff]
        %v3152 = vld [vmem:[%s3148 + $0x18] sm:$0xff]
        %3153 = vmatprep.subr.mxu0 0.0
        %3154 = vmatpush1.msra.mxu0 %v3149
        %3155 = vmatprep.subr.mxu0 0.0
        %3156 = vmatpush1.msra.mxu0 %v3150
        %3157 = vmatprep.subr.mxu0 0.0
        %3158 = vmatpush1.msra.mxu0 %v3151
        %3159 = vmatprep.subr.mxu0 0.0
        %3160 = vmatpush1.msra.mxu0 %v3152
        %3161 = vmatprep.subr.mxu0 0.0
        %3162 = vmatpush1.msra.mxu0 0.0
        %3163 = vmatprep.subr.mxu0 0.0
        %3164 = vmatpush1.msra.mxu0 0.0
        %3165 = vmatprep.subr.mxu0 0.0
        %3166 = vmatpush1.msra.mxu0 0.0
        %3167 = vmatprep.subr.mxu0 0.0
        %3168 = vmatpush1.msra.mxu0 0.0
        %3169 = vmatprep.subr.mxu0 0.0
        %3170 = vmatpush1.msra.mxu0 0.0
        %3171 = vmatprep.subr.mxu0 0.0
        %3172 = vmatpush1.msra.mxu0 0.0
        %3173 = vmatprep.subr.mxu0 0.0
        %3174 = vmatpush1.msra.mxu0 0.0
        %3175 = vmatprep.subr.mxu0 0.0
        %3176 = vmatpush1.msra.mxu0 0.0
        %3177 = vmatprep.subr.mxu0 0.0
        %3178 = vmatpush1.msra.mxu0 0.0
        %3179 = vmatprep.subr.mxu0 0.0
        %3180 = vmatpush1.msra.mxu0 0.0
        %3181 = vmatprep.subr.mxu0 0.0
        %3182 = vmatpush1.msra.mxu0 0.0
        %3183 = vmatprep.subr.mxu0 0.0
        %3184 = vmatpush1.msra.mxu0 0.0
        %3185 = vmatprep.subr.mxu0 0.0
        %3186 = vmatpush1.msra.mxu0 0.0
        %3187 = vmatprep.subr.mxu0 0.0
        %3188 = vmatpush1.msra.mxu0 0.0
        %3189 = vmatprep.subr.mxu0 0.0
        %3190 = vmatpush1.msra.mxu0 0.0
        %3191 = vmatprep.subr.mxu0 0.0
        %3192 = vmatpush1.msra.mxu0 0.0
        %3193 = vmatprep.subr.mxu0 0.0
        %3194 = vmatpush1.msra.mxu0 0.0
        %3195 = vmatprep.subr.mxu0 0.0
        %3196 = vmatpush1.msra.mxu0 0.0
        %3197 = vmatprep.subr.mxu0 0.0
        %3198 = vmatpush1.msra.mxu0 0.0
        %3199 = vmatprep.subr.mxu0 0.0
        %3200 = vmatpush1.msra.mxu0 0.0
        %3201 = vmatprep.subr.mxu0 0.0
        %3202 = vmatpush1.msra.mxu0 0.0
        %3203 = vmatprep.subr.mxu0 0.0
        %3204 = vmatpush1.msra.mxu0 0.0
        %3205 = vmatprep.subr.mxu0 0.0
        %3206 = vmatpush1.msra.mxu0 0.0
        %3207 = vmatprep.subr.mxu0 0.0
        %3208 = vmatpush1.msra.mxu0 0.0
        %3209 = vmatprep.subr.mxu0 0.0
        %3210 = vmatpush1.msra.mxu0 0.0
        %3211 = vmatprep.subr.mxu0 0.0
        %3212 = vmatpush1.msra.mxu0 0.0
        %3213 = vmatprep.subr.mxu0 0.0
        %3214 = vmatpush1.msra.mxu0 0.0
        %3215 = vmatprep.subr.mxu0 0.0
        %3216 = vmatpush1.msra.mxu0 0.0
        %3217 = vmatprep.mubr.f32.mxu0 0.0
        %3218 = vmatmul.mubr.f32.gmra.mrb[0].mxu0 %v2806
        %v3219 = vpop.f32.mrb[0].mxu0
        %v3220 = vadd.f32 0.0, %v3219
        %v3221 = vpop.f32.mrb[0].mxu0
        %3222 = vmatprep.mubr.f32.mxu0 0.0
        %3223 = vmatmul.mubr.f32.gmra.mrb[0].mxu0 %v2809
        %v3224 = vpop.f32.mrb[0].mxu0
        %v3225 = vadd.f32 0.0, %v3224
        %v3226 = vpop.f32.mrb[0].mxu0
        %3227 = vmatprep.mubr.f32.mxu0 0.0
        %3228 = vmatmul.mubr.f32.gmra.mrb[0].mxu0 %v2812
        %v3229 = vpop.f32.mrb[0].mxu0
        %v3230 = vadd.f32 0.0, %v3229
        %v3231 = vpop.f32.mrb[0].mxu0
        %3232 = vmatprep.mubr.f32.mxu0 0.0
        %3233 = vmatmul.mubr.f32.gmra.mrb[0].mxu0 %v2815
        %v3234 = vpop.f32.mrb[0].mxu0
        %v3235 = vadd.f32 0.0, %v3234
        %v3236 = vpop.f32.mrb[0].mxu0
        %3237 = vmatprep.mubr.f32.mxu0 0.0
        %3238 = vmatmul.mubr.f32.gmra.mrb[0].mxu0 %v2818
        %v3239 = vpop.f32.mrb[0].mxu0
        %v3240 = vadd.f32 0.0, %v3239
        %v3241 = vpop.f32.mrb[0].mxu0
        %3242 = vmatprep.mubr.f32.mxu0 0.0
        %3243 = vmatmul.mubr.f32.gmra.mrb[0].mxu0 %v2821
        %v3244 = vpop.f32.mrb[0].mxu0
        %v3245 = vadd.f32 0.0, %v3244
        %v3246 = vpop.f32.mrb[0].mxu0
        %3247 = vmatprep.mubr.f32.mxu0 0.0
        %3248 = vmatmul.mubr.f32.gmra.mrb[0].mxu0 %v2824
        %v3249 = vpop.f32.mrb[0].mxu0
        %v3250 = vadd.f32 0.0, %v3249
        %v3251 = vpop.f32.mrb[0].mxu0
        %3252 = vmatprep.mubr.f32.mxu0 0.0
        %3253 = vmatmul.mubr.f32.gmra.mrb[0].mxu0 %v2827
        %v3254 = vpop.f32.mrb[0].mxu0
        %v3255 = vadd.f32 0.0, %v3254
        %v3256 = vpop.f32.mrb[0].mxu0
        %3257 = vmatprep.mubr.f32.mxu0 0.0
        %3258 = vmatmul.mubr.f32.gmra.mrb[0].mxu0 %v2830
        %v3259 = vpop.f32.mrb[0].mxu0
        %v3260 = vadd.f32 0.0, %v3259
        %v3261 = vpop.f32.mrb[0].mxu0
        %3262 = vmatprep.mubr.f32.mxu0 0.0
        %3263 = vmatmul.mubr.f32.gmra.mrb[0].mxu0 %v2833
        %v3264 = vpop.f32.mrb[0].mxu0
        %v3265 = vadd.f32 0.0, %v3264
        %v3266 = vpop.f32.mrb[0].mxu0
        %3267 = vmatprep.mubr.f32.mxu0 0.0
        %3268 = vmatmul.mubr.f32.gmra.mrb[0].mxu0 %v2836
        %v3269 = vpop.f32.mrb[0].mxu0
        %v3270 = vadd.f32 0.0, %v3269
        %v3271 = vpop.f32.mrb[0].mxu0
        %3272 = vmatprep.mubr.f32.mxu0 0.0
        %3273 = vmatmul.mubr.f32.gmra.mrb[0].mxu0 %v2839
        %v3274 = vpop.f32.mrb[0].mxu0
        %v3275 = vadd.f32 0.0, %v3274
        %v3276 = vpop.f32.mrb[0].mxu0
        %3277 = vmatprep.mubr.f32.mxu0 0.0
        %3278 = vmatmul.mubr.f32.gmra.mrb[0].mxu0 %v2842
        %v3279 = vpop.f32.mrb[0].mxu0
        %v3280 = vadd.f32 0.0, %v3279
        %v3281 = vpop.f32.mrb[0].mxu0
        %3282 = vmatprep.mubr.f32.mxu0 0.0
        %3283 = vmatmul.mubr.f32.gmra.mrb[0].mxu0 %v2845
        %v3284 = vpop.f32.mrb[0].mxu0
        %v3285 = vadd.f32 0.0, %v3284
        %v3286 = vpop.f32.mrb[0].mxu0
        %3287 = vmatprep.mubr.f32.mxu0 0.0
        %3288 = vmatmul.mubr.f32.gmra.mrb[0].mxu0 %v2848
        %v3289 = vpop.f32.mrb[0].mxu0
        %v3290 = vadd.f32 0.0, %v3289
        %v3291 = vpop.f32.mrb[0].mxu0
        %3292 = vmatprep.mubr.f32.mxu0 0.0
        %3293 = vmatmul.mubr.f32.gmra.mrb[0].mxu0 %v2851
        %v3294 = vpop.f32.mrb[0].mxu0
        %v3295 = vadd.f32 0.0, %v3294
        %v3296 = vpop.f32.mrb[0].mxu0
        %3297 = vdwg.mxu0
        %v3298 = vld [vmem:[%s7] sm:$0xff]
        %v3299 = vld [vmem:[%s7 + $0x8] sm:$0xff]
        %v3300 = vld [vmem:[%s7 + $0x10] sm:$0xff]
        %v3301 = vld [vmem:[%s8] sm:$0xff]
        %3303 = vset.pattern.permute.xlu0 0
        %3304 = vperm.xlu0 %3303, %v3301
        %v3305 = vpop.permute.xlu0 %3304
        %3307 = vmatprep.subr.mxu0 0.0
        %3308 = vmatpush1.msra.mxu0 %v2920
        %3309 = vmatprep.subr.mxu0 0.0
        %3310 = vmatpush1.msra.mxu0 %v2925
        %3311 = vmatprep.subr.mxu0 0.0
        %3312 = vmatpush1.msra.mxu0 %v2930
        %3313 = vmatprep.subr.mxu0 0.0
        %3314 = vmatpush1.msra.mxu0 %v2935
        %3315 = vmatprep.subr.mxu0 0.0
        %3316 = vmatpush1.msra.mxu0 %v2940
        %3317 = vmatprep.subr.mxu0 0.0
        %3318 = vmatpush1.msra.mxu0 %v2945
        %3319 = vmatprep.subr.mxu0 0.0
        %3320 = vmatpush1.msra.mxu0 %v2950
        %3321 = vmatprep.subr.mxu0 0.0
        %3322 = vmatpush1.msra.mxu0 %v2955
        %3323 = vmatprep.subr.mxu0 0.0
        %3324 = vmatpush1.msra.mxu0 %v2960
        %3325 = vmatprep.subr.mxu0 0.0
        %3326 = vmatpush1.msra.mxu0 %v2965
        %3327 = vmatprep.subr.mxu0 0.0
        %3328 = vmatpush1.msra.mxu0 %v2970
        %3329 = vmatprep.subr.mxu0 0.0
        %3330 = vmatpush1.msra.mxu0 %v2975
        %3331 = vmatprep.subr.mxu0 0.0
        %3332 = vmatpush1.msra.mxu0 %v2980
        %3333 = vmatprep.subr.mxu0 0.0
        %3334 = vmatpush1.msra.mxu0 %v2985
        %3335 = vmatprep.subr.mxu0 0.0
        %3336 = vmatpush1.msra.mxu0 %v2990
        %3337 = vmatprep.subr.mxu0 0.0
        %3338 = vmatpush1.msra.mxu0 %v2995
        %3339 = vmatprep.subr.mxu0 0.0
        %3340 = vmatpush1.msra.mxu0 %v3070
        %3341 = vmatprep.subr.mxu0 0.0
        %3342 = vmatpush1.msra.mxu0 %v3075
        %3343 = vmatprep.subr.mxu0 0.0
        %3344 = vmatpush1.msra.mxu0 %v3080
        %3345 = vmatprep.subr.mxu0 0.0
        %3346 = vmatpush1.msra.mxu0 %v3085
        %3347 = vmatprep.subr.mxu0 0.0
        %3348 = vmatpush1.msra.mxu0 %v3090
        %3349 = vmatprep.subr.mxu0 0.0
        %3350 = vmatpush1.msra.mxu0 %v3095
        %3351 = vmatprep.subr.mxu0 0.0
        %3352 = vmatpush1.msra.mxu0 %v3100
        %3353 = vmatprep.subr.mxu0 0.0
        %3354 = vmatpush1.msra.mxu0 %v3105
        %3355 = vmatprep.subr.mxu0 0.0
        %3356 = vmatpush1.msra.mxu0 %v3110
        %3357 = vmatprep.subr.mxu0 0.0
        %3358 = vmatpush1.msra.mxu0 %v3115
        %3359 = vmatprep.subr.mxu0 0.0
        %3360 = vmatpush1.msra.mxu0 %v3120
        %3361 = vmatprep.subr.mxu0 0.0
        %3362 = vmatpush1.msra.mxu0 %v3125
        %3363 = vmatprep.subr.mxu0 0.0
        %3364 = vmatpush1.msra.mxu0 %v3130
        %3365 = vmatprep.subr.mxu0 0.0
        %3366 = vmatpush1.msra.mxu0 %v3135
        %3367 = vmatprep.subr.mxu0 0.0
        %3368 = vmatpush1.msra.mxu0 %v3140
        %3369 = vmatprep.subr.mxu0 0.0
        %3370 = vmatpush1.msra.mxu0 %v3145
        %3371 = vmatprep.mubr.f32.mxu0 %v3299
        %3372 = vmatmul.mubr.f32.gmra.mrb[0].mxu0 %v3298
        %v3373 = vpop.f32.mrb[0].mxu0
        %v3374 = vadd.f32 %v3305, %v3373
        %v3375 = vpop.f32.mrb[0].mxu0
        %3376 = vdwg.mxu0
        %3377 = vmatprep.subr.mxu0 0.0
        %3378 = vmatpush1.msra.mxu0 %v3220
        %3379 = vmatprep.subr.mxu0 0.0
        %3380 = vmatpush1.msra.mxu0 %v3225
        %3381 = vmatprep.subr.mxu0 0.0
        %3382 = vmatpush1.msra.mxu0 %v3230
        %3383 = vmatprep.subr.mxu0 0.0
        %3384 = vmatpush1.msra.mxu0 %v3235
        %3385 = vmatprep.subr.mxu0 0.0
        %3386 = vmatpush1.msra.mxu0 %v3240
        %3387 = vmatprep.subr.mxu0 0.0
        %3388 = vmatpush1.msra.mxu0 %v3245
        %3389 = vmatprep.subr.mxu0 0.0
        %3390 = vmatpush1.msra.mxu0 %v3250
        %3391 = vmatprep.subr.mxu0 0.0
        %3392 = vmatpush1.msra.mxu0 %v3255
        %3393 = vmatprep.subr.mxu0 0.0
        %3394 = vmatpush1.msra.mxu0 %v3260
        %3395 = vmatprep.subr.mxu0 0.0
        %3396 = vmatpush1.msra.mxu0 %v3265
        %3397 = vmatprep.subr.mxu0 0.0
        %3398 = vmatpush1.msra.mxu0 %v3270
        %3399 = vmatprep.subr.mxu0 0.0
        %3400 = vmatpush1.msra.mxu0 %v3275
        %3401 = vmatprep.subr.mxu0 0.0
        %3402 = vmatpush1.msra.mxu0 %v3280
        %3403 = vmatprep.subr.mxu0 0.0
        %3404 = vmatpush1.msra.mxu0 %v3285
        %3405 = vmatprep.subr.mxu0 0.0
        %3406 = vmatpush1.msra.mxu0 %v3290
        %3407 = vmatprep.subr.mxu0 0.0
        %3408 = vmatpush1.msra.mxu0 %v3295
        %3409 = vmatprep.subr.mxu0 0.0
        %3410 = vmatpush1.msra.mxu0 0.0
        %3411 = vmatprep.subr.mxu0 0.0
        %3412 = vmatpush1.msra.mxu0 0.0
        %3413 = vmatprep.subr.mxu0 0.0
        %3414 = vmatpush1.msra.mxu0 0.0
        %3415 = vmatprep.subr.mxu0 0.0
        %3416 = vmatpush1.msra.mxu0 0.0
        %3417 = vmatprep.subr.mxu0 0.0
        %3418 = vmatpush1.msra.mxu0 0.0
        %3419 = vmatprep.subr.mxu0 0.0
        %3420 = vmatpush1.msra.mxu0 0.0
        %3421 = vmatprep.subr.mxu0 0.0
        %3422 = vmatpush1.msra.mxu0 0.0
        %3423 = vmatprep.subr.mxu0 0.0
        %3424 = vmatpush1.msra.mxu0 0.0
        %3425 = vmatprep.subr.mxu0 0.0
        %3426 = vmatpush1.msra.mxu0 0.0
        %3427 = vmatprep.subr.mxu0 0.0
        %3428 = vmatpush1.msra.mxu0 0.0
        %3429 = vmatprep.subr.mxu0 0.0
        %3430 = vmatpush1.msra.mxu0 0.0
        %3431 = vmatprep.subr.mxu0 0.0
        %3432 = vmatpush1.msra.mxu0 0.0
        %3433 = vmatprep.subr.mxu0 0.0
        %3434 = vmatpush1.msra.mxu0 0.0
        %3435 = vmatprep.subr.mxu0 0.0
        %3436 = vmatpush1.msra.mxu0 0.0
        %3437 = vmatprep.subr.mxu0 0.0
        %3438 = vmatpush1.msra.mxu0 0.0
        %3439 = vmatprep.subr.mxu0 0.0
        %3440 = vmatpush1.msra.mxu0 0.0
        %3441 = vmatprep.mubr.f32.mxu0 0.0
        %3442 = vmatmul.mubr.f32.gmra.mrb[0].mxu0 %v3300
        %v3443 = vpop.f32.mrb[0].mxu0
        %v3444 = vadd.f32 %v3374, %v3443
        %v3445 = vpop.f32.mrb[0].mxu0
        %3446 = vdwg.mxu0
        %v3447 = vld [vmem:[%s12] sm:$0xff]
        %v3448 = vld [vmem:[%s12 + $0x8] sm:$0xff]
        %v3449 = vld [vmem:[%s12 + $0x10] sm:$0xff]
        %v3450 = vld [vmem:[%s12 + $0x18] sm:$0xff]
        %v3452 = vsel %vm2804, %v3444, 0
        %3454 = vmatprep.subr.mxu0 0.0
        %3455 = vmatpush1.msra.mxu0 %v3447
        %3456 = vmatprep.subr.mxu0 0.0
        %3457 = vmatpush1.msra.mxu0 %v3448
        %3458 = vmatprep.subr.mxu0 0.0
        %3459 = vmatpush1.msra.mxu0 %v3449
        %3460 = vmatprep.subr.mxu0 0.0
        %3461 = vmatpush1.msra.mxu0 %v3450
        %3462 = vmatprep.subr.mxu0 0.0
        %3463 = vmatpush1.msra.mxu0 0.0
        %3464 = vmatprep.subr.mxu0 0.0
        %3465 = vmatpush1.msra.mxu0 0.0
        %3466 = vmatprep.subr.mxu0 0.0
        %3467 = vmatpush1.msra.mxu0 0.0
        %3468 = vmatprep.subr.mxu0 0.0
        %3469 = vmatpush1.msra.mxu0 0.0
        %3470 = vmatprep.subr.mxu0 0.0
        %3471 = vmatpush1.msra.mxu0 0.0
        %3472 = vmatprep.subr.mxu0 0.0
        %3473 = vmatpush1.msra.mxu0 0.0
        %3474 = vmatprep.subr.mxu0 0.0
        %3475 = vmatpush1.msra.mxu0 0.0
        %3476 = vmatprep.subr.mxu0 0.0
        %3477 = vmatpush1.msra.mxu0 0.0
        %3478 = vmatprep.subr.mxu0 0.0
        %3479 = vmatpush1.msra.mxu0 0.0
        %3480 = vmatprep.subr.mxu0 0.0
        %3481 = vmatpush1.msra.mxu0 0.0
        %3482 = vmatprep.subr.mxu0 0.0
        %3483 = vmatpush1.msra.mxu0 0.0
        %3484 = vmatprep.subr.mxu0 0.0
        %3485 = vmatpush1.msra.mxu0 0.0
        %3486 = vmatprep.subr.mxu0 0.0
        %3487 = vmatpush1.msra.mxu0 0.0
        %3488 = vmatprep.subr.mxu0 0.0
        %3489 = vmatpush1.msra.mxu0 0.0
        %3490 = vmatprep.subr.mxu0 0.0
        %3491 = vmatpush1.msra.mxu0 0.0
        %3492 = vmatprep.subr.mxu0 0.0
        %3493 = vmatpush1.msra.mxu0 0.0
        %3494 = vmatprep.subr.mxu0 0.0
        %3495 = vmatpush1.msra.mxu0 0.0
        %3496 = vmatprep.subr.mxu0 0.0
        %3497 = vmatpush1.msra.mxu0 0.0
        %3498 = vmatprep.subr.mxu0 0.0
        %3499 = vmatpush1.msra.mxu0 0.0
        %3500 = vmatprep.subr.mxu0 0.0
        %3501 = vmatpush1.msra.mxu0 0.0
        %3502 = vmatprep.subr.mxu0 0.0
        %3503 = vmatpush1.msra.mxu0 0.0
        %3504 = vmatprep.subr.mxu0 0.0
        %3505 = vmatpush1.msra.mxu0 0.0
        %3506 = vmatprep.subr.mxu0 0.0
        %3507 = vmatpush1.msra.mxu0 0.0
        %3508 = vmatprep.subr.mxu0 0.0
        %3509 = vmatpush1.msra.mxu0 0.0
        %3510 = vmatprep.subr.mxu0 0.0
        %3511 = vmatpush1.msra.mxu0 0.0
        %3512 = vmatprep.subr.mxu0 0.0
        %3513 = vmatpush1.msra.mxu0 0.0
        %3514 = vmatprep.subr.mxu0 0.0
        %3515 = vmatpush1.msra.mxu0 0.0
        %3516 = vmatprep.subr.mxu0 0.0
        %3517 = vmatpush1.msra.mxu0 0.0
        %3518 = vmatprep.mubr.f32.mxu0 0.0
        %3519 = vmatmul.mubr.f32.gmra.mrb[0].mxu0 %v3452
        %v3520 = vpop.f32.mrb[0].mxu0
        %v3521 = vadd.f32 0.0, %v3520
        %v3522 = vpop.f32.mrb[0].mxu0
        %3523 = vdwg.mxu0
        %s3524 = scalar_lea.vmem %s12, 32
        %v3525 = vld [vmem:[%s3524] sm:$0xff]
        %v3526 = vld [vmem:[%s3524 + $0x8] sm:$0xff]
        %v3527 = vld [vmem:[%s3524 + $0x10] sm:$0xff]
        %v3528 = vld [vmem:[%s3524 + $0x18] sm:$0xff]
        %3529 = vmatprep.subr.mxu0 0.0
        %3530 = vmatpush1.msra.mxu0 %v3525
        %3531 = vmatprep.subr.mxu0 0.0
        %3532 = vmatpush1.msra.mxu0 %v3526
        %3533 = vmatprep.subr.mxu0 0.0
        %3534 = vmatpush1.msra.mxu0 %v3527
        %3535 = vmatprep.subr.mxu0 0.0
        %3536 = vmatpush1.msra.mxu0 %v3528
        %3537 = vmatprep.subr.mxu0 0.0
        %3538 = vmatpush1.msra.mxu0 0.0
        %3539 = vmatprep.subr.mxu0 0.0
        %3540 = vmatpush1.msra.mxu0 0.0
        %3541 = vmatprep.subr.mxu0 0.0
        %3542 = vmatpush1.msra.mxu0 0.0
        %3543 = vmatprep.subr.mxu0 0.0
        %3544 = vmatpush1.msra.mxu0 0.0
        %3545 = vmatprep.subr.mxu0 0.0
        %3546 = vmatpush1.msra.mxu0 0.0
        %3547 = vmatprep.subr.mxu0 0.0
        %3548 = vmatpush1.msra.mxu0 0.0
        %3549 = vmatprep.subr.mxu0 0.0
        %3550 = vmatpush1.msra.mxu0 0.0
        %3551 = vmatprep.subr.mxu0 0.0
        %3552 = vmatpush1.msra.mxu0 0.0
        %3553 = vmatprep.subr.mxu0 0.0
        %3554 = vmatpush1.msra.mxu0 0.0
        %3555 = vmatprep.subr.mxu0 0.0
        %3556 = vmatpush1.msra.mxu0 0.0
        %3557 = vmatprep.subr.mxu0 0.0
        %3558 = vmatpush1.msra.mxu0 0.0
        %3559 = vmatprep.subr.mxu0 0.0
        %3560 = vmatpush1.msra.mxu0 0.0
        %3561 = vmatprep.subr.mxu0 0.0
        %3562 = vmatpush1.msra.mxu0 0.0
        %3563 = vmatprep.subr.mxu0 0.0
        %3564 = vmatpush1.msra.mxu0 0.0
        %3565 = vmatprep.subr.mxu0 0.0
        %3566 = vmatpush1.msra.mxu0 0.0
        %3567 = vmatprep.subr.mxu0 0.0
        %3568 = vmatpush1.msra.mxu0 0.0
        %3569 = vmatprep.subr.mxu0 0.0
        %3570 = vmatpush1.msra.mxu0 0.0
        %3571 = vmatprep.subr.mxu0 0.0
        %3572 = vmatpush1.msra.mxu0 0.0
        %3573 = vmatprep.subr.mxu0 0.0
        %3574 = vmatpush1.msra.mxu0 0.0
        %3575 = vmatprep.subr.mxu0 0.0
        %3576 = vmatpush1.msra.mxu0 0.0
        %3577 = vmatprep.subr.mxu0 0.0
        %3578 = vmatpush1.msra.mxu0 0.0
        %3579 = vmatprep.subr.mxu0 0.0
        %3580 = vmatpush1.msra.mxu0 0.0
        %3581 = vmatprep.subr.mxu0 0.0
        %3582 = vmatpush1.msra.mxu0 0.0
        %3583 = vmatprep.subr.mxu0 0.0
        %3584 = vmatpush1.msra.mxu0 0.0
        %3585 = vmatprep.subr.mxu0 0.0
        %3586 = vmatpush1.msra.mxu0 0.0
        %3587 = vmatprep.subr.mxu0 0.0
        %3588 = vmatpush1.msra.mxu0 0.0
        %3589 = vmatprep.subr.mxu0 0.0
        %3590 = vmatpush1.msra.mxu0 0.0
        %3591 = vmatprep.subr.mxu0 0.0
        %3592 = vmatpush1.msra.mxu0 0.0
        %3593 = vmatprep.mubr.f32.mxu0 0.0
        %3594 = vmatmul.mubr.f32.gmra.mrb[0].mxu0 %v3452
        %v3595 = vpop.f32.mrb[0].mxu0
        %v3596 = vadd.f32 0.0, %v3595
        %v3597 = vpop.f32.mrb[0].mxu0
        %3598 = vdwg.mxu0
        %s3599 = scalar_lea.vmem %s12, 64
        %v3600 = vld [vmem:[%s3599] sm:$0xff]
        %v3601 = vld [vmem:[%s3599 + $0x8] sm:$0xff]
        %v3602 = vld [vmem:[%s3599 + $0x10] sm:$0xff]
        %v3603 = vld [vmem:[%s3599 + $0x18] sm:$0xff]
        %3604 = vmatprep.subr.mxu0 0.0
        %3605 = vmatpush1.msra.mxu0 %v3600
        %3606 = vmatprep.subr.mxu0 0.0
        %3607 = vmatpush1.msra.mxu0 %v3601
        %3608 = vmatprep.subr.mxu0 0.0
        %3609 = vmatpush1.msra.mxu0 %v3602
        %3610 = vmatprep.subr.mxu0 0.0
        %3611 = vmatpush1.msra.mxu0 %v3603
        %3612 = vmatprep.subr.mxu0 0.0
        %3613 = vmatpush1.msra.mxu0 0.0
        %3614 = vmatprep.subr.mxu0 0.0
        %3615 = vmatpush1.msra.mxu0 0.0
        %3616 = vmatprep.subr.mxu0 0.0
        %3617 = vmatpush1.msra.mxu0 0.0
        %3618 = vmatprep.subr.mxu0 0.0
        %3619 = vmatpush1.msra.mxu0 0.0
        %3620 = vmatprep.subr.mxu0 0.0
        %3621 = vmatpush1.msra.mxu0 0.0
        %3622 = vmatprep.subr.mxu0 0.0
        %3623 = vmatpush1.msra.mxu0 0.0
        %3624 = vmatprep.subr.mxu0 0.0
        %3625 = vmatpush1.msra.mxu0 0.0
        %3626 = vmatprep.subr.mxu0 0.0
        %3627 = vmatpush1.msra.mxu0 0.0
        %3628 = vmatprep.subr.mxu0 0.0
        %3629 = vmatpush1.msra.mxu0 0.0
        %3630 = vmatprep.subr.mxu0 0.0
        %3631 = vmatpush1.msra.mxu0 0.0
        %3632 = vmatprep.subr.mxu0 0.0
        %3633 = vmatpush1.msra.mxu0 0.0
        %3634 = vmatprep.subr.mxu0 0.0
        %3635 = vmatpush1.msra.mxu0 0.0
        %3636 = vmatprep.subr.mxu0 0.0
        %3637 = vmatpush1.msra.mxu0 0.0
        %3638 = vmatprep.subr.mxu0 0.0
        %3639 = vmatpush1.msra.mxu0 0.0
        %3640 = vmatprep.subr.mxu0 0.0
        %3641 = vmatpush1.msra.mxu0 0.0
        %3642 = vmatprep.subr.mxu0 0.0
        %3643 = vmatpush1.msra.mxu0 0.0
        %3644 = vmatprep.subr.mxu0 0.0
        %3645 = vmatpush1.msra.mxu0 0.0
        %3646 = vmatprep.subr.mxu0 0.0
        %3647 = vmatpush1.msra.mxu0 0.0
        %3648 = vmatprep.subr.mxu0 0.0
        %3649 = vmatpush1.msra.mxu0 0.0
        %3650 = vmatprep.subr.mxu0 0.0
        %3651 = vmatpush1.msra.mxu0 0.0
        %3652 = vmatprep.subr.mxu0 0.0
        %3653 = vmatpush1.msra.mxu0 0.0
        %3654 = vmatprep.subr.mxu0 0.0
        %3655 = vmatpush1.msra.mxu0 0.0
        %3656 = vmatprep.subr.mxu0 0.0
        %3657 = vmatpush1.msra.mxu0 0.0
        %3658 = vmatprep.subr.mxu0 0.0
        %3659 = vmatpush1.msra.mxu0 0.0
        %3660 = vmatprep.subr.mxu0 0.0
        %3661 = vmatpush1.msra.mxu0 0.0
        %3662 = vmatprep.subr.mxu0 0.0
        %3663 = vmatpush1.msra.mxu0 0.0
        %3664 = vmatprep.subr.mxu0 0.0
        %3665 = vmatpush1.msra.mxu0 0.0
        %3666 = vmatprep.subr.mxu0 0.0
        %3667 = vmatpush1.msra.mxu0 0.0
        %3668 = vmatprep.mubr.f32.mxu0 0.0
        %3669 = vmatmul.mubr.f32.gmra.mrb[0].mxu0 %v3452
        %v3670 = vpop.f32.mrb[0].mxu0
        %v3671 = vadd.f32 0.0, %v3670
        %v3672 = vpop.f32.mrb[0].mxu0
        %3673 = vdwg.mxu0
        %s3674 = scalar_lea.vmem %s12, 96
        %v3675 = vld [vmem:[%s3674] sm:$0xff]
        %v3676 = vld [vmem:[%s3674 + $0x8] sm:$0xff]
        %v3677 = vld [vmem:[%s3674 + $0x10] sm:$0xff]
        %v3678 = vld [vmem:[%s3674 + $0x18] sm:$0xff]
        %3679 = vmatprep.subr.mxu0 0.0
        %3680 = vmatpush1.msra.mxu0 %v3675
        %3681 = vmatprep.subr.mxu0 0.0
        %3682 = vmatpush1.msra.mxu0 %v3676
        %3683 = vmatprep.subr.mxu0 0.0
        %3684 = vmatpush1.msra.mxu0 %v3677
        %3685 = vmatprep.subr.mxu0 0.0
        %3686 = vmatpush1.msra.mxu0 %v3678
        %3687 = vmatprep.subr.mxu0 0.0
        %3688 = vmatpush1.msra.mxu0 0.0
        %3689 = vmatprep.subr.mxu0 0.0
        %3690 = vmatpush1.msra.mxu0 0.0
        %3691 = vmatprep.subr.mxu0 0.0
        %3692 = vmatpush1.msra.mxu0 0.0
        %3693 = vmatprep.subr.mxu0 0.0
        %3694 = vmatpush1.msra.mxu0 0.0
        %3695 = vmatprep.subr.mxu0 0.0
        %3696 = vmatpush1.msra.mxu0 0.0
        %3697 = vmatprep.subr.mxu0 0.0
        %3698 = vmatpush1.msra.mxu0 0.0
        %3699 = vmatprep.subr.mxu0 0.0
        %3700 = vmatpush1.msra.mxu0 0.0
        %3701 = vmatprep.subr.mxu0 0.0
        %3702 = vmatpush1.msra.mxu0 0.0
        %3703 = vmatprep.subr.mxu0 0.0
        %3704 = vmatpush1.msra.mxu0 0.0
        %3705 = vmatprep.subr.mxu0 0.0
        %3706 = vmatpush1.msra.mxu0 0.0
        %3707 = vmatprep.subr.mxu0 0.0
        %3708 = vmatpush1.msra.mxu0 0.0
        %3709 = vmatprep.subr.mxu0 0.0
        %3710 = vmatpush1.msra.mxu0 0.0
        %3711 = vmatprep.subr.mxu0 0.0
        %3712 = vmatpush1.msra.mxu0 0.0
        %3713 = vmatprep.subr.mxu0 0.0
        %3714 = vmatpush1.msra.mxu0 0.0
        %3715 = vmatprep.subr.mxu0 0.0
        %3716 = vmatpush1.msra.mxu0 0.0
        %3717 = vmatprep.subr.mxu0 0.0
        %3718 = vmatpush1.msra.mxu0 0.0
        %3719 = vmatprep.subr.mxu0 0.0
        %3720 = vmatpush1.msra.mxu0 0.0
        %3721 = vmatprep.subr.mxu0 0.0
        %3722 = vmatpush1.msra.mxu0 0.0
        %3723 = vmatprep.subr.mxu0 0.0
        %3724 = vmatpush1.msra.mxu0 0.0
        %3725 = vmatprep.subr.mxu0 0.0
        %3726 = vmatpush1.msra.mxu0 0.0
        %3727 = vmatprep.subr.mxu0 0.0
        %3728 = vmatpush1.msra.mxu0 0.0
        %3729 = vmatprep.subr.mxu0 0.0
        %3730 = vmatpush1.msra.mxu0 0.0
        %3731 = vmatprep.subr.mxu0 0.0
        %3732 = vmatpush1.msra.mxu0 0.0
        %3733 = vmatprep.subr.mxu0 0.0
        %3734 = vmatpush1.msra.mxu0 0.0
        %3735 = vmatprep.subr.mxu0 0.0
        %3736 = vmatpush1.msra.mxu0 0.0
        %3737 = vmatprep.subr.mxu0 0.0
        %3738 = vmatpush1.msra.mxu0 0.0
        %3739 = vmatprep.subr.mxu0 0.0
        %3740 = vmatpush1.msra.mxu0 0.0
        %3741 = vmatprep.subr.mxu0 0.0
        %3742 = vmatpush1.msra.mxu0 0.0
        %3743 = vmatprep.mubr.f32.mxu0 0.0
        %3744 = vmatmul.mubr.f32.gmra.mrb[0].mxu0 %v3452
        %v3745 = vpop.f32.mrb[0].mxu0
        %v3746 = vadd.f32 0.0, %v3745
        %v3747 = vpop.f32.mrb[0].mxu0
        %3748 = vdwg.mxu0
        %s3749 = scalar_lea.vmem %s12, 128
        %v3750 = vld [vmem:[%s3749] sm:$0xff]
        %v3751 = vld [vmem:[%s3749 + $0x8] sm:$0xff]
        %v3752 = vld [vmem:[%s3749 + $0x10] sm:$0xff]
        %v3753 = vld [vmem:[%s3749 + $0x18] sm:$0xff]
        %3754 = vmatprep.subr.mxu0 0.0
        %3755 = vmatpush1.msra.mxu0 %v3750
        %3756 = vmatprep.subr.mxu0 0.0
        %3757 = vmatpush1.msra.mxu0 %v3751
        %3758 = vmatprep.subr.mxu0 0.0
        %3759 = vmatpush1.msra.mxu0 %v3752
        %3760 = vmatprep.subr.mxu0 0.0
        %3761 = vmatpush1.msra.mxu0 %v3753
        %3762 = vmatprep.subr.mxu0 0.0
        %3763 = vmatpush1.msra.mxu0 0.0
        %3764 = vmatprep.subr.mxu0 0.0
        %3765 = vmatpush1.msra.mxu0 0.0
        %3766 = vmatprep.subr.mxu0 0.0
        %3767 = vmatpush1.msra.mxu0 0.0
        %3768 = vmatprep.subr.mxu0 0.0
        %3769 = vmatpush1.msra.mxu0 0.0
        %3770 = vmatprep.subr.mxu0 0.0
        %3771 = vmatpush1.msra.mxu0 0.0
        %3772 = vmatprep.subr.mxu0 0.0
        %3773 = vmatpush1.msra.mxu0 0.0
        %3774 = vmatprep.subr.mxu0 0.0
        %3775 = vmatpush1.msra.mxu0 0.0
        %3776 = vmatprep.subr.mxu0 0.0
        %3777 = vmatpush1.msra.mxu0 0.0
        %3778 = vmatprep.subr.mxu0 0.0
        %3779 = vmatpush1.msra.mxu0 0.0
        %3780 = vmatprep.subr.mxu0 0.0
        %3781 = vmatpush1.msra.mxu0 0.0
        %3782 = vmatprep.subr.mxu0 0.0
        %3783 = vmatpush1.msra.mxu0 0.0
        %3784 = vmatprep.subr.mxu0 0.0
        %3785 = vmatpush1.msra.mxu0 0.0
        %3786 = vmatprep.subr.mxu0 0.0
        %3787 = vmatpush1.msra.mxu0 0.0
        %3788 = vmatprep.subr.mxu0 0.0
        %3789 = vmatpush1.msra.mxu0 0.0
        %3790 = vmatprep.subr.mxu0 0.0
        %3791 = vmatpush1.msra.mxu0 0.0
        %3792 = vmatprep.subr.mxu0 0.0
        %3793 = vmatpush1.msra.mxu0 0.0
        %3794 = vmatprep.subr.mxu0 0.0
        %3795 = vmatpush1.msra.mxu0 0.0
        %3796 = vmatprep.subr.mxu0 0.0
        %3797 = vmatpush1.msra.mxu0 0.0
        %3798 = vmatprep.subr.mxu0 0.0
        %3799 = vmatpush1.msra.mxu0 0.0
        %3800 = vmatprep.subr.mxu0 0.0
        %3801 = vmatpush1.msra.mxu0 0.0
        %3802 = vmatprep.subr.mxu0 0.0
        %3803 = vmatpush1.msra.mxu0 0.0
        %3804 = vmatprep.subr.mxu0 0.0
        %3805 = vmatpush1.msra.mxu0 0.0
        %3806 = vmatprep.subr.mxu0 0.0
        %3807 = vmatpush1.msra.mxu0 0.0
        %3808 = vmatprep.subr.mxu0 0.0
        %3809 = vmatpush1.msra.mxu0 0.0
        %3810 = vmatprep.subr.mxu0 0.0
        %3811 = vmatpush1.msra.mxu0 0.0
        %3812 = vmatprep.subr.mxu0 0.0
        %3813 = vmatpush1.msra.mxu0 0.0
        %3814 = vmatprep.subr.mxu0 0.0
        %3815 = vmatpush1.msra.mxu0 0.0
        %3816 = vmatprep.subr.mxu0 0.0
        %3817 = vmatpush1.msra.mxu0 0.0
        %3818 = vmatprep.mubr.f32.mxu0 0.0
        %3819 = vmatmul.mubr.f32.gmra.mrb[0].mxu0 %v3452
        %v3820 = vpop.f32.mrb[0].mxu0
        %v3821 = vadd.f32 0.0, %v3820
        %v3822 = vpop.f32.mrb[0].mxu0
        %3823 = vdwg.mxu0
        %v3824 = vld [vmem:[%s10] sm:$0xff]
        %v3825 = vld [vmem:[%s10 + $0x8] sm:$0xff]
        %v3826 = vld [vmem:[%s10 + $0x10] sm:$0xff]
        %v3827 = vld [vmem:[%s10 + $0x18] sm:$0xff]
        %v3828 = vld [vmem:[%s10 + $0x20] sm:$0xff]
        %v3829 = vld [vmem:[%s10 + $0x28] sm:$0xff]
        %v3830 = vld [vmem:[%s10 + $0x30] sm:$0xff]
        %v3831 = vld [vmem:[%s10 + $0x38] sm:$0xff]
        %v3832 = vld [vmem:[%s10 + $0x40] sm:$0xff]
        %v3833 = vld [vmem:[%s10 + $0x48] sm:$0xff]
        %v3834 = vld [vmem:[%s10 + $0x50] sm:$0xff]
        %v3835 = vld [vmem:[%s10 + $0x58] sm:$0xff]
        %v3836 = vld [vmem:[%s10 + $0x60] sm:$0xff]
        %v3837 = vld [vmem:[%s10 + $0x68] sm:$0xff]
        %v3838 = vld [vmem:[%s10 + $0x70] sm:$0xff]
        %v3839 = vld [vmem:[%s10 + $0x78] sm:$0xff]
        %v3840 = vld [vmem:[%s11] sm:$0xff]
        %v3841 = vld [vmem:[%s11 + $0x8] sm:$0xff]
        %v3842 = vld [vmem:[%s11 + $0x10] sm:$0xff]
        %v3843 = vld [vmem:[%s11 + $0x18] sm:$0xff]
        %v3844 = vld [vmem:[%s11 + $0x20] sm:$0xff]
        %v3845 = vld [vmem:[%s11 + $0x28] sm:$0xff]
        %v3846 = vld [vmem:[%s11 + $0x30] sm:$0xff]
        %v3847 = vld [vmem:[%s11 + $0x38] sm:$0xff]
        %v3848 = vld [vmem:[%s11 + $0x40] sm:$0xff]
        %v3849 = vld [vmem:[%s11 + $0x48] sm:$0xff]
        %v3850 = vld [vmem:[%s11 + $0x50] sm:$0xff]
        %v3851 = vld [vmem:[%s11 + $0x58] sm:$0xff]
        %v3852 = vld [vmem:[%s11 + $0x60] sm:$0xff]
        %v3853 = vld [vmem:[%s11 + $0x68] sm:$0xff]
        %v3854 = vld [vmem:[%s11 + $0x70] sm:$0xff]
        %v3855 = vld [vmem:[%s11 + $0x78] sm:$0xff]
        %3857 = vset.pattern.permute.xlu0 0
        %3858 = vperm.xlu0 %3857, %v3840
        %v3859 = vpop.permute.xlu0 %3858
        %3862 = vset.pattern.permute.xlu0 0
        %3863 = vperm.xlu0 %3862, %v3841
        %v3864 = vpop.permute.xlu0 %3863
        %3867 = vset.pattern.permute.xlu0 0
        %3868 = vperm.xlu0 %3867, %v3842
        %v3869 = vpop.permute.xlu0 %3868
        %3872 = vset.pattern.permute.xlu0 0
        %3873 = vperm.xlu0 %3872, %v3843
        %v3874 = vpop.permute.xlu0 %3873
        %3877 = vset.pattern.permute.xlu0 0
        %3878 = vperm.xlu0 %3877, %v3844
        %v3879 = vpop.permute.xlu0 %3878
        %3882 = vset.pattern.permute.xlu0 0
        %3883 = vperm.xlu0 %3882, %v3845
        %v3884 = vpop.permute.xlu0 %3883
        %3887 = vset.pattern.permute.xlu0 0
        %3888 = vperm.xlu0 %3887, %v3846
        %v3889 = vpop.permute.xlu0 %3888
        %3892 = vset.pattern.permute.xlu0 0
        %3893 = vperm.xlu0 %3892, %v3847
        %v3894 = vpop.permute.xlu0 %3893
        %3897 = vset.pattern.permute.xlu0 0
        %3898 = vperm.xlu0 %3897, %v3848
        %v3899 = vpop.permute.xlu0 %3898
        %3902 = vset.pattern.permute.xlu0 0
        %3903 = vperm.xlu0 %3902, %v3849
        %v3904 = vpop.permute.xlu0 %3903
        %3907 = vset.pattern.permute.xlu0 0
        %3908 = vperm.xlu0 %3907, %v3850
        %v3909 = vpop.permute.xlu0 %3908
        %3912 = vset.pattern.permute.xlu0 0
        %3913 = vperm.xlu0 %3912, %v3851
        %v3914 = vpop.permute.xlu0 %3913
        %3917 = vset.pattern.permute.xlu0 0
        %3918 = vperm.xlu0 %3917, %v3852
        %v3919 = vpop.permute.xlu0 %3918
        %3922 = vset.pattern.permute.xlu0 0
        %3923 = vperm.xlu0 %3922, %v3853
        %v3924 = vpop.permute.xlu0 %3923
        %3927 = vset.pattern.permute.xlu0 0
        %3928 = vperm.xlu0 %3927, %v3854
        %v3929 = vpop.permute.xlu0 %3928
        %3932 = vset.pattern.permute.xlu0 0
        %3933 = vperm.xlu0 %3932, %v3855
        %v3934 = vpop.permute.xlu0 %3933
        %v3937 = vsel %vm1145, %v3824, 0
        %v3940 = vsel %vm1145, %v3825, 0
        %v3943 = vsel %vm1145, %v3826, 0
        %v3946 = vsel %vm1145, %v3827, 0
        %v3949 = vsel %vm1145, %v3828, 0
        %v3952 = vsel %vm1145, %v3829, 0
        %v3955 = vsel %vm1145, %v3830, 0
        %v3958 = vsel %vm1145, %v3831, 0
        %v3961 = vsel %vm1145, %v3832, 0
        %v3964 = vsel %vm1145, %v3833, 0
        %v3967 = vsel %vm1145, %v3834, 0
        %v3970 = vsel %vm1145, %v3835, 0
        %v3973 = vsel %vm1145, %v3836, 0
        %v3976 = vsel %vm1145, %v3837, 0
        %v3979 = vsel %vm1145, %v3838, 0
        %v3982 = vsel %vm1145, %v3839, 0
        %3984 = vmatprep.subr.mxu0 0.0
        %3985 = vmatpush1.msra.mxu0 %v3521
        %3986 = vmatprep.subr.mxu0 0.0
        %3987 = vmatpush1.msra.mxu0 %v3596
        %3988 = vmatprep.subr.mxu0 0.0
        %3989 = vmatpush1.msra.mxu0 %v3671
        %3990 = vmatprep.subr.mxu0 0.0
        %3991 = vmatpush1.msra.mxu0 %v3746
        %3992 = vmatprep.subr.mxu0 0.0
        %3993 = vmatpush1.msra.mxu0 %v3821
        %3994 = vmatprep.subr.mxu0 0.0
        %3995 = vmatpush1.msra.mxu0 0.0
        %3996 = vmatprep.subr.mxu0 0.0
        %3997 = vmatpush1.msra.mxu0 0.0
        %3998 = vmatprep.subr.mxu0 0.0
        %3999 = vmatpush1.msra.mxu0 0.0
        %4000 = vmatprep.subr.mxu0 0.0
        %4001 = vmatpush1.msra.mxu0 0.0
        %4002 = vmatprep.subr.mxu0 0.0
        %4003 = vmatpush1.msra.mxu0 0.0
        %4004 = vmatprep.subr.mxu0 0.0
        %4005 = vmatpush1.msra.mxu0 0.0
        %4006 = vmatprep.subr.mxu0 0.0
        %4007 = vmatpush1.msra.mxu0 0.0
        %4008 = vmatprep.subr.mxu0 0.0
        %4009 = vmatpush1.msra.mxu0 0.0
        %4010 = vmatprep.subr.mxu0 0.0
        %4011 = vmatpush1.msra.mxu0 0.0
        %4012 = vmatprep.subr.mxu0 0.0
        %4013 = vmatpush1.msra.mxu0 0.0
        %4014 = vmatprep.subr.mxu0 0.0
        %4015 = vmatpush1.msra.mxu0 0.0
        %4016 = vmatprep.subr.mxu0 0.0
        %4017 = vmatpush1.msra.mxu0 0.0
        %4018 = vmatprep.subr.mxu0 0.0
        %4019 = vmatpush1.msra.mxu0 0.0
        %4020 = vmatprep.subr.mxu0 0.0
        %4021 = vmatpush1.msra.mxu0 0.0
        %4022 = vmatprep.subr.mxu0 0.0
        %4023 = vmatpush1.msra.mxu0 0.0
        %4024 = vmatprep.subr.mxu0 0.0
        %4025 = vmatpush1.msra.mxu0 0.0
        %4026 = vmatprep.subr.mxu0 0.0
        %4027 = vmatpush1.msra.mxu0 0.0
        %4028 = vmatprep.subr.mxu0 0.0
        %4029 = vmatpush1.msra.mxu0 0.0
        %4030 = vmatprep.subr.mxu0 0.0
        %4031 = vmatpush1.msra.mxu0 0.0
        %4032 = vmatprep.subr.mxu0 0.0
        %4033 = vmatpush1.msra.mxu0 0.0
        %4034 = vmatprep.subr.mxu0 0.0
        %4035 = vmatpush1.msra.mxu0 0.0
        %4036 = vmatprep.subr.mxu0 0.0
        %4037 = vmatpush1.msra.mxu0 0.0
        %4038 = vmatprep.subr.mxu0 0.0
        %4039 = vmatpush1.msra.mxu0 0.0
        %4040 = vmatprep.subr.mxu0 0.0
        %4041 = vmatpush1.msra.mxu0 0.0
        %4042 = vmatprep.subr.mxu0 0.0
        %4043 = vmatpush1.msra.mxu0 0.0
        %4044 = vmatprep.subr.mxu0 0.0
        %4045 = vmatpush1.msra.mxu0 0.0
        %4046 = vmatprep.subr.mxu0 0.0
        %4047 = vmatpush1.msra.mxu0 0.0
        %4048 = vmatprep.mubr.f32.mxu0 0.0
        %4049 = vmatmul.mubr.f32.gmra.mrb[0].mxu0 %v3937
        %v4050 = vpop.f32.mrb[0].mxu0
        %v4051 = vadd.f32 %v3859, %v4050
        %v4052 = vpop.f32.mrb[0].mxu0
        %4053 = vmatprep.mubr.f32.mxu0 0.0
        %4054 = vmatmul.mubr.f32.gmra.mrb[0].mxu0 %v3940
        %v4055 = vpop.f32.mrb[0].mxu0
        %v4056 = vadd.f32 %v3864, %v4055
        %v4057 = vpop.f32.mrb[0].mxu0
        %4058 = vmatprep.mubr.f32.mxu0 0.0
        %4059 = vmatmul.mubr.f32.gmra.mrb[0].mxu0 %v3943
        %v4060 = vpop.f32.mrb[0].mxu0
        %v4061 = vadd.f32 %v3869, %v4060
        %v4062 = vpop.f32.mrb[0].mxu0
        %4063 = vmatprep.mubr.f32.mxu0 0.0
        %4064 = vmatmul.mubr.f32.gmra.mrb[0].mxu0 %v3946
        %v4065 = vpop.f32.mrb[0].mxu0
        %v4066 = vadd.f32 %v3874, %v4065
        %v4067 = vpop.f32.mrb[0].mxu0
        %4068 = vmatprep.mubr.f32.mxu0 0.0
        %4069 = vmatmul.mubr.f32.gmra.mrb[0].mxu0 %v3949
        %v4070 = vpop.f32.mrb[0].mxu0
        %v4071 = vadd.f32 %v3879, %v4070
        %v4072 = vpop.f32.mrb[0].mxu0
        %4073 = vmatprep.mubr.f32.mxu0 0.0
        %4074 = vmatmul.mubr.f32.gmra.mrb[0].mxu0 %v3952
        %v4075 = vpop.f32.mrb[0].mxu0
        %v4076 = vadd.f32 %v3884, %v4075
        %v4077 = vpop.f32.mrb[0].mxu0
        %4078 = vmatprep.mubr.f32.mxu0 0.0
        %4079 = vmatmul.mubr.f32.gmra.mrb[0].mxu0 %v3955
        %v4080 = vpop.f32.mrb[0].mxu0
        %v4081 = vadd.f32 %v3889, %v4080
        %v4082 = vpop.f32.mrb[0].mxu0
        %4083 = vmatprep.mubr.f32.mxu0 0.0
        %4084 = vmatmul.mubr.f32.gmra.mrb[0].mxu0 %v3958
        %v4085 = vpop.f32.mrb[0].mxu0
        %v4086 = vadd.f32 %v3894, %v4085
        %v4087 = vpop.f32.mrb[0].mxu0
        %4088 = vmatprep.mubr.f32.mxu0 0.0
        %4089 = vmatmul.mubr.f32.gmra.mrb[0].mxu0 %v3961
        %v4090 = vpop.f32.mrb[0].mxu0
        %v4091 = vadd.f32 %v3899, %v4090
        %v4092 = vpop.f32.mrb[0].mxu0
        %4093 = vmatprep.mubr.f32.mxu0 0.0
        %4094 = vmatmul.mubr.f32.gmra.mrb[0].mxu0 %v3964
        %v4095 = vpop.f32.mrb[0].mxu0
        %v4096 = vadd.f32 %v3904, %v4095
        %v4097 = vpop.f32.mrb[0].mxu0
        %4098 = vmatprep.mubr.f32.mxu0 0.0
        %4099 = vmatmul.mubr.f32.gmra.mrb[0].mxu0 %v3967
        %v4100 = vpop.f32.mrb[0].mxu0
        %v4101 = vadd.f32 %v3909, %v4100
        %v4102 = vpop.f32.mrb[0].mxu0
        %4103 = vmatprep.mubr.f32.mxu0 0.0
        %4104 = vmatmul.mubr.f32.gmra.mrb[0].mxu0 %v3970
        %v4105 = vpop.f32.mrb[0].mxu0
        %v4106 = vadd.f32 %v3914, %v4105
        %v4107 = vpop.f32.mrb[0].mxu0
        %4108 = vmatprep.mubr.f32.mxu0 0.0
        %4109 = vmatmul.mubr.f32.gmra.mrb[0].mxu0 %v3973
        %v4110 = vpop.f32.mrb[0].mxu0
        %v4111 = vadd.f32 %v3919, %v4110
        %v4112 = vpop.f32.mrb[0].mxu0
        %4113 = vmatprep.mubr.f32.mxu0 0.0
        %4114 = vmatmul.mubr.f32.gmra.mrb[0].mxu0 %v3976
        %v4115 = vpop.f32.mrb[0].mxu0
        %v4116 = vadd.f32 %v3924, %v4115
        %v4117 = vpop.f32.mrb[0].mxu0
        %4118 = vmatprep.mubr.f32.mxu0 0.0
        %4119 = vmatmul.mubr.f32.gmra.mrb[0].mxu0 %v3979
        %v4120 = vpop.f32.mrb[0].mxu0
        %v4121 = vadd.f32 %v3929, %v4120
        %v4122 = vpop.f32.mrb[0].mxu0
        %4123 = vmatprep.mubr.f32.mxu0 0.0
        %4124 = vmatmul.mubr.f32.gmra.mrb[0].mxu0 %v3982
        %v4125 = vpop.f32.mrb[0].mxu0
        %v4126 = vadd.f32 %v3934, %v4125
        %v4127 = vpop.f32.mrb[0].mxu0
        %4128 = vdwg.mxu0
        %v4129 = vmax.f32 %v4051, 0.0
        %v4130 = vmax.f32 %v4056, 0.0
        %v4131 = vmax.f32 %v4061, 0.0
        %v4132 = vmax.f32 %v4066, 0.0
        %v4133 = vmax.f32 %v4071, 0.0
        %v4134 = vmax.f32 %v4076, 0.0
        %v4135 = vmax.f32 %v4081, 0.0
        %v4136 = vmax.f32 %v4086, 0.0
        %v4137 = vmax.f32 %v4091, 0.0
        %v4138 = vmax.f32 %v4096, 0.0
        %v4139 = vmax.f32 %v4101, 0.0
        %v4140 = vmax.f32 %v4106, 0.0
        %v4141 = vmax.f32 %v4111, 0.0
        %v4142 = vmax.f32 %v4116, 0.0
        %v4143 = vmax.f32 %v4121, 0.0
        %v4144 = vmax.f32 %v4126, 0.0
        %v4145 = vld [vmem:[%s15] sm:$0xff]
        %v4146 = vld [vmem:[%s15 + $0x8] sm:$0xff]
        %v4147 = vld [vmem:[%s15 + $0x10] sm:$0xff]
        %v4148 = vld [vmem:[%s15 + $0x18] sm:$0xff]
        %v4149 = vld [vmem:[%s15 + $0x20] sm:$0xff]
        %v4150 = vld [vmem:[%s15 + $0x28] sm:$0xff]
        %v4151 = vld [vmem:[%s15 + $0x30] sm:$0xff]
        %v4152 = vld [vmem:[%s15 + $0x38] sm:$0xff]
        %v4154 = vsel %vm1363, %v4129, 0
        %v4157 = vsel %vm1363, %v4130, 0
        %v4160 = vsel %vm1363, %v4131, 0
        %v4163 = vsel %vm1363, %v4132, 0
        %v4166 = vsel %vm1363, %v4133, 0
        %v4169 = vsel %vm1363, %v4134, 0
        %v4172 = vsel %vm1363, %v4135, 0
        %v4175 = vsel %vm1363, %v4136, 0
        %v4178 = vsel %vm1363, %v4137, 0
        %v4181 = vsel %vm1363, %v4138, 0
        %v4184 = vsel %vm1363, %v4139, 0
        %v4187 = vsel %vm1363, %v4140, 0
        %v4190 = vsel %vm1363, %v4141, 0
        %v4193 = vsel %vm1363, %v4142, 0
        %v4196 = vsel %vm1363, %v4143, 0
        %v4199 = vsel %vm1363, %v4144, 0
        %4201 = vmatprep.subr.mxu0 0.0
        %4202 = vmatpush1.msra.mxu0 %v4145
        %4203 = vmatprep.subr.mxu0 0.0
        %4204 = vmatpush1.msra.mxu0 %v4146
        %4205 = vmatprep.subr.mxu0 0.0
        %4206 = vmatpush1.msra.mxu0 %v4147
        %4207 = vmatprep.subr.mxu0 0.0
        %4208 = vmatpush1.msra.mxu0 %v4148
        %4209 = vmatprep.subr.mxu0 0.0
        %4210 = vmatpush1.msra.mxu0 %v4149
        %4211 = vmatprep.subr.mxu0 0.0
        %4212 = vmatpush1.msra.mxu0 %v4150
        %4213 = vmatprep.subr.mxu0 0.0
        %4214 = vmatpush1.msra.mxu0 %v4151
        %4215 = vmatprep.subr.mxu0 0.0
        %4216 = vmatpush1.msra.mxu0 %v4152
        %4217 = vmatprep.subr.mxu0 0.0
        %4218 = vmatpush1.msra.mxu0 0.0
        %4219 = vmatprep.subr.mxu0 0.0
        %4220 = vmatpush1.msra.mxu0 0.0
        %4221 = vmatprep.subr.mxu0 0.0
        %4222 = vmatpush1.msra.mxu0 0.0
        %4223 = vmatprep.subr.mxu0 0.0
        %4224 = vmatpush1.msra.mxu0 0.0
        %4225 = vmatprep.subr.mxu0 0.0
        %4226 = vmatpush1.msra.mxu0 0.0
        %4227 = vmatprep.subr.mxu0 0.0
        %4228 = vmatpush1.msra.mxu0 0.0
        %4229 = vmatprep.subr.mxu0 0.0
        %4230 = vmatpush1.msra.mxu0 0.0
        %4231 = vmatprep.subr.mxu0 0.0
        %4232 = vmatpush1.msra.mxu0 0.0
        %4233 = vmatprep.subr.mxu0 0.0
        %4234 = vmatpush1.msra.mxu0 0.0
        %4235 = vmatprep.subr.mxu0 0.0
        %4236 = vmatpush1.msra.mxu0 0.0
        %4237 = vmatprep.subr.mxu0 0.0
        %4238 = vmatpush1.msra.mxu0 0.0
        %4239 = vmatprep.subr.mxu0 0.0
        %4240 = vmatpush1.msra.mxu0 0.0
        %4241 = vmatprep.subr.mxu0 0.0
        %4242 = vmatpush1.msra.mxu0 0.0
        %4243 = vmatprep.subr.mxu0 0.0
        %4244 = vmatpush1.msra.mxu0 0.0
        %4245 = vmatprep.subr.mxu0 0.0
        %4246 = vmatpush1.msra.mxu0 0.0
        %4247 = vmatprep.subr.mxu0 0.0
        %4248 = vmatpush1.msra.mxu0 0.0
        %4249 = vmatprep.subr.mxu0 0.0
        %4250 = vmatpush1.msra.mxu0 0.0
        %4251 = vmatprep.subr.mxu0 0.0
        %4252 = vmatpush1.msra.mxu0 0.0
        %4253 = vmatprep.subr.mxu0 0.0
        %4254 = vmatpush1.msra.mxu0 0.0
        %4255 = vmatprep.subr.mxu0 0.0
        %4256 = vmatpush1.msra.mxu0 0.0
        %4257 = vmatprep.subr.mxu0 0.0
        %4258 = vmatpush1.msra.mxu0 0.0
        %4259 = vmatprep.subr.mxu0 0.0
        %4260 = vmatpush1.msra.mxu0 0.0
        %4261 = vmatprep.subr.mxu0 0.0
        %4262 = vmatpush1.msra.mxu0 0.0
        %4263 = vmatprep.subr.mxu0 0.0
        %4264 = vmatpush1.msra.mxu0 0.0
        %4265 = vmatprep.mubr.f32.mxu0 0.0
        %4266 = vmatmul.mubr.f32.gmra.mrb[0].mxu0 %v4154
        %v4267 = vpop.f32.mrb[0].mxu0
        %v4268 = vadd.f32 0.0, %v4267
        %v4269 = vpop.f32.mrb[0].mxu0
        %4270 = vmatprep.mubr.f32.mxu0 0.0
        %4271 = vmatmul.mubr.f32.gmra.mrb[0].mxu0 %v4157
        %v4272 = vpop.f32.mrb[0].mxu0
        %v4273 = vadd.f32 0.0, %v4272
        %v4274 = vpop.f32.mrb[0].mxu0
        %4275 = vmatprep.mubr.f32.mxu0 0.0
        %4276 = vmatmul.mubr.f32.gmra.mrb[0].mxu0 %v4160
        %v4277 = vpop.f32.mrb[0].mxu0
        %v4278 = vadd.f32 0.0, %v4277
        %v4279 = vpop.f32.mrb[0].mxu0
        %4280 = vmatprep.mubr.f32.mxu0 0.0
        %4281 = vmatmul.mubr.f32.gmra.mrb[0].mxu0 %v4163
        %v4282 = vpop.f32.mrb[0].mxu0
        %v4283 = vadd.f32 0.0, %v4282
        %v4284 = vpop.f32.mrb[0].mxu0
        %4285 = vmatprep.mubr.f32.mxu0 0.0
        %4286 = vmatmul.mubr.f32.gmra.mrb[0].mxu0 %v4166
        %v4287 = vpop.f32.mrb[0].mxu0
        %v4288 = vadd.f32 0.0, %v4287
        %v4289 = vpop.f32.mrb[0].mxu0
        %4290 = vmatprep.mubr.f32.mxu0 0.0
        %4291 = vmatmul.mubr.f32.gmra.mrb[0].mxu0 %v4169
        %v4292 = vpop.f32.mrb[0].mxu0
        %v4293 = vadd.f32 0.0, %v4292
        %v4294 = vpop.f32.mrb[0].mxu0
        %4295 = vmatprep.mubr.f32.mxu0 0.0
        %4296 = vmatmul.mubr.f32.gmra.mrb[0].mxu0 %v4172
        %v4297 = vpop.f32.mrb[0].mxu0
        %v4298 = vadd.f32 0.0, %v4297
        %v4299 = vpop.f32.mrb[0].mxu0
        %4300 = vmatprep.mubr.f32.mxu0 0.0
        %4301 = vmatmul.mubr.f32.gmra.mrb[0].mxu0 %v4175
        %v4302 = vpop.f32.mrb[0].mxu0
        %v4303 = vadd.f32 0.0, %v4302
        %v4304 = vpop.f32.mrb[0].mxu0
        %4305 = vmatprep.mubr.f32.mxu0 0.0
        %4306 = vmatmul.mubr.f32.gmra.mrb[0].mxu0 %v4178
        %v4307 = vpop.f32.mrb[0].mxu0
        %v4308 = vadd.f32 0.0, %v4307
        %v4309 = vpop.f32.mrb[0].mxu0
        %4310 = vmatprep.mubr.f32.mxu0 0.0
        %4311 = vmatmul.mubr.f32.gmra.mrb[0].mxu0 %v4181
        %v4312 = vpop.f32.mrb[0].mxu0
        %v4313 = vadd.f32 0.0, %v4312
        %v4314 = vpop.f32.mrb[0].mxu0
        %4315 = vmatprep.mubr.f32.mxu0 0.0
        %4316 = vmatmul.mubr.f32.gmra.mrb[0].mxu0 %v4184
        %v4317 = vpop.f32.mrb[0].mxu0
        %v4318 = vadd.f32 0.0, %v4317
        %v4319 = vpop.f32.mrb[0].mxu0
        %4320 = vmatprep.mubr.f32.mxu0 0.0
        %4321 = vmatmul.mubr.f32.gmra.mrb[0].mxu0 %v4187
        %v4322 = vpop.f32.mrb[0].mxu0
        %v4323 = vadd.f32 0.0, %v4322
        %v4324 = vpop.f32.mrb[0].mxu0
        %4325 = vmatprep.mubr.f32.mxu0 0.0
        %4326 = vmatmul.mubr.f32.gmra.mrb[0].mxu0 %v4190
        %v4327 = vpop.f32.mrb[0].mxu0
        %v4328 = vadd.f32 0.0, %v4327
        %v4329 = vpop.f32.mrb[0].mxu0
        %4330 = vmatprep.mubr.f32.mxu0 0.0
        %4331 = vmatmul.mubr.f32.gmra.mrb[0].mxu0 %v4193
        %v4332 = vpop.f32.mrb[0].mxu0
        %v4333 = vadd.f32 0.0, %v4332
        %v4334 = vpop.f32.mrb[0].mxu0
        %4335 = vmatprep.mubr.f32.mxu0 0.0
        %4336 = vmatmul.mubr.f32.gmra.mrb[0].mxu0 %v4196
        %v4337 = vpop.f32.mrb[0].mxu0
        %v4338 = vadd.f32 0.0, %v4337
        %v4339 = vpop.f32.mrb[0].mxu0
        %4340 = vmatprep.mubr.f32.mxu0 0.0
        %4341 = vmatmul.mubr.f32.gmra.mrb[0].mxu0 %v4199
        %v4342 = vpop.f32.mrb[0].mxu0
        %v4343 = vadd.f32 0.0, %v4342
        %v4344 = vpop.f32.mrb[0].mxu0
        %4345 = vdwg.mxu0
        %s4346 = scalar_lea.vmem %s15, 64
        %v4347 = vld [vmem:[%s4346] sm:$0xff]
        %v4348 = vld [vmem:[%s4346 + $0x8] sm:$0xff]
        %v4349 = vld [vmem:[%s4346 + $0x10] sm:$0xff]
        %v4350 = vld [vmem:[%s4346 + $0x18] sm:$0xff]
        %v4351 = vld [vmem:[%s4346 + $0x20] sm:$0xff]
        %v4352 = vld [vmem:[%s4346 + $0x28] sm:$0xff]
        %v4353 = vld [vmem:[%s4346 + $0x30] sm:$0xff]
        %v4354 = vld [vmem:[%s4346 + $0x38] sm:$0xff]
        %4355 = vmatprep.subr.mxu0 0.0
        %4356 = vmatpush1.msra.mxu0 %v4347
        %4357 = vmatprep.subr.mxu0 0.0
        %4358 = vmatpush1.msra.mxu0 %v4348
        %4359 = vmatprep.subr.mxu0 0.0
        %4360 = vmatpush1.msra.mxu0 %v4349
        %4361 = vmatprep.subr.mxu0 0.0
        %4362 = vmatpush1.msra.mxu0 %v4350
        %4363 = vmatprep.subr.mxu0 0.0
        %4364 = vmatpush1.msra.mxu0 %v4351
        %4365 = vmatprep.subr.mxu0 0.0
        %4366 = vmatpush1.msra.mxu0 %v4352
        %4367 = vmatprep.subr.mxu0 0.0
        %4368 = vmatpush1.msra.mxu0 %v4353
        %4369 = vmatprep.subr.mxu0 0.0
        %4370 = vmatpush1.msra.mxu0 %v4354
        %4371 = vmatprep.subr.mxu0 0.0
        %4372 = vmatpush1.msra.mxu0 0.0
        %4373 = vmatprep.subr.mxu0 0.0
        %4374 = vmatpush1.msra.mxu0 0.0
        %4375 = vmatprep.subr.mxu0 0.0
        %4376 = vmatpush1.msra.mxu0 0.0
        %4377 = vmatprep.subr.mxu0 0.0
        %4378 = vmatpush1.msra.mxu0 0.0
        %4379 = vmatprep.subr.mxu0 0.0
        %4380 = vmatpush1.msra.mxu0 0.0
        %4381 = vmatprep.subr.mxu0 0.0
        %4382 = vmatpush1.msra.mxu0 0.0
        %4383 = vmatprep.subr.mxu0 0.0
        %4384 = vmatpush1.msra.mxu0 0.0
        %4385 = vmatprep.subr.mxu0 0.0
        %4386 = vmatpush1.msra.mxu0 0.0
        %4387 = vmatprep.subr.mxu0 0.0
        %4388 = vmatpush1.msra.mxu0 0.0
        %4389 = vmatprep.subr.mxu0 0.0
        %4390 = vmatpush1.msra.mxu0 0.0
        %4391 = vmatprep.subr.mxu0 0.0
        %4392 = vmatpush1.msra.mxu0 0.0
        %4393 = vmatprep.subr.mxu0 0.0
        %4394 = vmatpush1.msra.mxu0 0.0
        %4395 = vmatprep.subr.mxu0 0.0
        %4396 = vmatpush1.msra.mxu0 0.0
        %4397 = vmatprep.subr.mxu0 0.0
        %4398 = vmatpush1.msra.mxu0 0.0
        %4399 = vmatprep.subr.mxu0 0.0
        %4400 = vmatpush1.msra.mxu0 0.0
        %4401 = vmatprep.subr.mxu0 0.0
        %4402 = vmatpush1.msra.mxu0 0.0
        %4403 = vmatprep.subr.mxu0 0.0
        %4404 = vmatpush1.msra.mxu0 0.0
        %4405 = vmatprep.subr.mxu0 0.0
        %4406 = vmatpush1.msra.mxu0 0.0
        %4407 = vmatprep.subr.mxu0 0.0
        %4408 = vmatpush1.msra.mxu0 0.0
        %4409 = vmatprep.subr.mxu0 0.0
        %4410 = vmatpush1.msra.mxu0 0.0
        %4411 = vmatprep.subr.mxu0 0.0
        %4412 = vmatpush1.msra.mxu0 0.0
        %4413 = vmatprep.subr.mxu0 0.0
        %4414 = vmatpush1.msra.mxu0 0.0
        %4415 = vmatprep.subr.mxu0 0.0
        %4416 = vmatpush1.msra.mxu0 0.0
        %4417 = vmatprep.subr.mxu0 0.0
        %4418 = vmatpush1.msra.mxu0 0.0
        %4419 = vmatprep.mubr.f32.mxu0 0.0
        %4420 = vmatmul.mubr.f32.gmra.mrb[0].mxu0 %v4154
        %v4421 = vpop.f32.mrb[0].mxu0
        %v4422 = vadd.f32 0.0, %v4421
        %v4423 = vpop.f32.mrb[0].mxu0
        %4424 = vmatprep.mubr.f32.mxu0 0.0
        %4425 = vmatmul.mubr.f32.gmra.mrb[0].mxu0 %v4157
        %v4426 = vpop.f32.mrb[0].mxu0
        %v4427 = vadd.f32 0.0, %v4426
        %v4428 = vpop.f32.mrb[0].mxu0
        %4429 = vmatprep.mubr.f32.mxu0 0.0
        %4430 = vmatmul.mubr.f32.gmra.mrb[0].mxu0 %v4160
        %v4431 = vpop.f32.mrb[0].mxu0
        %v4432 = vadd.f32 0.0, %v4431
        %v4433 = vpop.f32.mrb[0].mxu0
        %4434 = vmatprep.mubr.f32.mxu0 0.0
        %4435 = vmatmul.mubr.f32.gmra.mrb[0].mxu0 %v4163
        %v4436 = vpop.f32.mrb[0].mxu0
        %v4437 = vadd.f32 0.0, %v4436
        %v4438 = vpop.f32.mrb[0].mxu0
        %4439 = vmatprep.mubr.f32.mxu0 0.0
        %4440 = vmatmul.mubr.f32.gmra.mrb[0].mxu0 %v4166
        %v4441 = vpop.f32.mrb[0].mxu0
        %v4442 = vadd.f32 0.0, %v4441
        %v4443 = vpop.f32.mrb[0].mxu0
        %4444 = vmatprep.mubr.f32.mxu0 0.0
        %4445 = vmatmul.mubr.f32.gmra.mrb[0].mxu0 %v4169
        %v4446 = vpop.f32.mrb[0].mxu0
        %v4447 = vadd.f32 0.0, %v4446
        %v4448 = vpop.f32.mrb[0].mxu0
        %4449 = vmatprep.mubr.f32.mxu0 0.0
        %4450 = vmatmul.mubr.f32.gmra.mrb[0].mxu0 %v4172
        %v4451 = vpop.f32.mrb[0].mxu0
        %v4452 = vadd.f32 0.0, %v4451
        %v4453 = vpop.f32.mrb[0].mxu0
        %4454 = vmatprep.mubr.f32.mxu0 0.0
        %4455 = vmatmul.mubr.f32.gmra.mrb[0].mxu0 %v4175
        %v4456 = vpop.f32.mrb[0].mxu0
        %v4457 = vadd.f32 0.0, %v4456
        %v4458 = vpop.f32.mrb[0].mxu0
        %4459 = vmatprep.mubr.f32.mxu0 0.0
        %4460 = vmatmul.mubr.f32.gmra.mrb[0].mxu0 %v4178
        %v4461 = vpop.f32.mrb[0].mxu0
        %v4462 = vadd.f32 0.0, %v4461
        %v4463 = vpop.f32.mrb[0].mxu0
        %4464 = vmatprep.mubr.f32.mxu0 0.0
        %4465 = vmatmul.mubr.f32.gmra.mrb[0].mxu0 %v4181
        %v4466 = vpop.f32.mrb[0].mxu0
        %v4467 = vadd.f32 0.0, %v4466
        %v4468 = vpop.f32.mrb[0].mxu0
        %4469 = vmatprep.mubr.f32.mxu0 0.0
        %4470 = vmatmul.mubr.f32.gmra.mrb[0].mxu0 %v4184
        %v4471 = vpop.f32.mrb[0].mxu0
        %v4472 = vadd.f32 0.0, %v4471
        %v4473 = vpop.f32.mrb[0].mxu0
        %4474 = vmatprep.mubr.f32.mxu0 0.0
        %4475 = vmatmul.mubr.f32.gmra.mrb[0].mxu0 %v4187
        %v4476 = vpop.f32.mrb[0].mxu0
        %v4477 = vadd.f32 0.0, %v4476
        %v4478 = vpop.f32.mrb[0].mxu0
        %4479 = vmatprep.mubr.f32.mxu0 0.0
        %4480 = vmatmul.mubr.f32.gmra.mrb[0].mxu0 %v4190
        %v4481 = vpop.f32.mrb[0].mxu0
        %v4482 = vadd.f32 0.0, %v4481
        %v4483 = vpop.f32.mrb[0].mxu0
        %4484 = vmatprep.mubr.f32.mxu0 0.0
        %4485 = vmatmul.mubr.f32.gmra.mrb[0].mxu0 %v4193
        %v4486 = vpop.f32.mrb[0].mxu0
        %v4487 = vadd.f32 0.0, %v4486
        %v4488 = vpop.f32.mrb[0].mxu0
        %4489 = vmatprep.mubr.f32.mxu0 0.0
        %4490 = vmatmul.mubr.f32.gmra.mrb[0].mxu0 %v4196
        %v4491 = vpop.f32.mrb[0].mxu0
        %v4492 = vadd.f32 0.0, %v4491
        %v4493 = vpop.f32.mrb[0].mxu0
        %4494 = vmatprep.mubr.f32.mxu0 0.0
        %4495 = vmatmul.mubr.f32.gmra.mrb[0].mxu0 %v4199
        %v4496 = vpop.f32.mrb[0].mxu0
        %v4497 = vadd.f32 0.0, %v4496
        %v4498 = vpop.f32.mrb[0].mxu0
        %4499 = vdwg.mxu0
        %s4500 = scalar_lea.vmem %s15, 128
        %v4501 = vld [vmem:[%s4500] sm:$0xff]
        %v4502 = vld [vmem:[%s4500 + $0x8] sm:$0xff]
        %v4503 = vld [vmem:[%s4500 + $0x10] sm:$0xff]
        %v4504 = vld [vmem:[%s4500 + $0x18] sm:$0xff]
        %v4505 = vld [vmem:[%s4500 + $0x20] sm:$0xff]
        %v4506 = vld [vmem:[%s4500 + $0x28] sm:$0xff]
        %v4507 = vld [vmem:[%s4500 + $0x30] sm:$0xff]
        %v4508 = vld [vmem:[%s4500 + $0x38] sm:$0xff]
        %4509 = vmatprep.subr.mxu0 0.0
        %4510 = vmatpush1.msra.mxu0 %v4501
        %4511 = vmatprep.subr.mxu0 0.0
        %4512 = vmatpush1.msra.mxu0 %v4502
        %4513 = vmatprep.subr.mxu0 0.0
        %4514 = vmatpush1.msra.mxu0 %v4503
        %4515 = vmatprep.subr.mxu0 0.0
        %4516 = vmatpush1.msra.mxu0 %v4504
        %4517 = vmatprep.subr.mxu0 0.0
        %4518 = vmatpush1.msra.mxu0 %v4505
        %4519 = vmatprep.subr.mxu0 0.0
        %4520 = vmatpush1.msra.mxu0 %v4506
        %4521 = vmatprep.subr.mxu0 0.0
        %4522 = vmatpush1.msra.mxu0 %v4507
        %4523 = vmatprep.subr.mxu0 0.0
        %4524 = vmatpush1.msra.mxu0 %v4508
        %4525 = vmatprep.subr.mxu0 0.0
        %4526 = vmatpush1.msra.mxu0 0.0
        %4527 = vmatprep.subr.mxu0 0.0
        %4528 = vmatpush1.msra.mxu0 0.0
        %4529 = vmatprep.subr.mxu0 0.0
        %4530 = vmatpush1.msra.mxu0 0.0
        %4531 = vmatprep.subr.mxu0 0.0
        %4532 = vmatpush1.msra.mxu0 0.0
        %4533 = vmatprep.subr.mxu0 0.0
        %4534 = vmatpush1.msra.mxu0 0.0
        %4535 = vmatprep.subr.mxu0 0.0
        %4536 = vmatpush1.msra.mxu0 0.0
        %4537 = vmatprep.subr.mxu0 0.0
        %4538 = vmatpush1.msra.mxu0 0.0
        %4539 = vmatprep.subr.mxu0 0.0
        %4540 = vmatpush1.msra.mxu0 0.0
        %4541 = vmatprep.subr.mxu0 0.0
        %4542 = vmatpush1.msra.mxu0 0.0
        %4543 = vmatprep.subr.mxu0 0.0
        %4544 = vmatpush1.msra.mxu0 0.0
        %4545 = vmatprep.subr.mxu0 0.0
        %4546 = vmatpush1.msra.mxu0 0.0
        %4547 = vmatprep.subr.mxu0 0.0
        %4548 = vmatpush1.msra.mxu0 0.0
        %4549 = vmatprep.subr.mxu0 0.0
        %4550 = vmatpush1.msra.mxu0 0.0
        %4551 = vmatprep.subr.mxu0 0.0
        %4552 = vmatpush1.msra.mxu0 0.0
        %4553 = vmatprep.subr.mxu0 0.0
        %4554 = vmatpush1.msra.mxu0 0.0
        %4555 = vmatprep.subr.mxu0 0.0
        %4556 = vmatpush1.msra.mxu0 0.0
        %4557 = vmatprep.subr.mxu0 0.0
        %4558 = vmatpush1.msra.mxu0 0.0
        %4559 = vmatprep.subr.mxu0 0.0
        %4560 = vmatpush1.msra.mxu0 0.0
        %4561 = vmatprep.subr.mxu0 0.0
        %4562 = vmatpush1.msra.mxu0 0.0
        %4563 = vmatprep.subr.mxu0 0.0
        %4564 = vmatpush1.msra.mxu0 0.0
        %4565 = vmatprep.subr.mxu0 0.0
        %4566 = vmatpush1.msra.mxu0 0.0
        %4567 = vmatprep.subr.mxu0 0.0
        %4568 = vmatpush1.msra.mxu0 0.0
        %4569 = vmatprep.subr.mxu0 0.0
        %4570 = vmatpush1.msra.mxu0 0.0
        %4571 = vmatprep.subr.mxu0 0.0
        %4572 = vmatpush1.msra.mxu0 0.0
        %4573 = vmatprep.mubr.f32.mxu0 0.0
        %4574 = vmatmul.mubr.f32.gmra.mrb[0].mxu0 %v4154
        %v4575 = vpop.f32.mrb[0].mxu0
        %v4576 = vadd.f32 0.0, %v4575
        %v4577 = vpop.f32.mrb[0].mxu0
        %4578 = vmatprep.mubr.f32.mxu0 0.0
        %4579 = vmatmul.mubr.f32.gmra.mrb[0].mxu0 %v4157
        %v4580 = vpop.f32.mrb[0].mxu0
        %v4581 = vadd.f32 0.0, %v4580
        %v4582 = vpop.f32.mrb[0].mxu0
        %4583 = vmatprep.mubr.f32.mxu0 0.0
        %4584 = vmatmul.mubr.f32.gmra.mrb[0].mxu0 %v4160
        %v4585 = vpop.f32.mrb[0].mxu0
        %v4586 = vadd.f32 0.0, %v4585
        %v4587 = vpop.f32.mrb[0].mxu0
        %4588 = vmatprep.mubr.f32.mxu0 0.0
        %4589 = vmatmul.mubr.f32.gmra.mrb[0].mxu0 %v4163
        %v4590 = vpop.f32.mrb[0].mxu0
        %v4591 = vadd.f32 0.0, %v4590
        %v4592 = vpop.f32.mrb[0].mxu0
        %4593 = vmatprep.mubr.f32.mxu0 0.0
        %4594 = vmatmul.mubr.f32.gmra.mrb[0].mxu0 %v4166
        %v4595 = vpop.f32.mrb[0].mxu0
        %v4596 = vadd.f32 0.0, %v4595
        %v4597 = vpop.f32.mrb[0].mxu0
        %4598 = vmatprep.mubr.f32.mxu0 0.0
        %4599 = vmatmul.mubr.f32.gmra.mrb[0].mxu0 %v4169
        %v4600 = vpop.f32.mrb[0].mxu0
        %v4601 = vadd.f32 0.0, %v4600
        %v4602 = vpop.f32.mrb[0].mxu0
        %4603 = vmatprep.mubr.f32.mxu0 0.0
        %4604 = vmatmul.mubr.f32.gmra.mrb[0].mxu0 %v4172
        %v4605 = vpop.f32.mrb[0].mxu0
        %v4606 = vadd.f32 0.0, %v4605
        %v4607 = vpop.f32.mrb[0].mxu0
        %4608 = vmatprep.mubr.f32.mxu0 0.0
        %4609 = vmatmul.mubr.f32.gmra.mrb[0].mxu0 %v4175
        %v4610 = vpop.f32.mrb[0].mxu0
        %v4611 = vadd.f32 0.0, %v4610
        %v4612 = vpop.f32.mrb[0].mxu0
        %4613 = vmatprep.mubr.f32.mxu0 0.0
        %4614 = vmatmul.mubr.f32.gmra.mrb[0].mxu0 %v4178
        %v4615 = vpop.f32.mrb[0].mxu0
        %v4616 = vadd.f32 0.0, %v4615
        %v4617 = vpop.f32.mrb[0].mxu0
        %4618 = vmatprep.mubr.f32.mxu0 0.0
        %4619 = vmatmul.mubr.f32.gmra.mrb[0].mxu0 %v4181
        %v4620 = vpop.f32.mrb[0].mxu0
        %v4621 = vadd.f32 0.0, %v4620
        %v4622 = vpop.f32.mrb[0].mxu0
        %4623 = vmatprep.mubr.f32.mxu0 0.0
        %4624 = vmatmul.mubr.f32.gmra.mrb[0].mxu0 %v4184
        %v4625 = vpop.f32.mrb[0].mxu0
        %v4626 = vadd.f32 0.0, %v4625
        %v4627 = vpop.f32.mrb[0].mxu0
        %4628 = vmatprep.mubr.f32.mxu0 0.0
        %4629 = vmatmul.mubr.f32.gmra.mrb[0].mxu0 %v4187
        %v4630 = vpop.f32.mrb[0].mxu0
        %v4631 = vadd.f32 0.0, %v4630
        %v4632 = vpop.f32.mrb[0].mxu0
        %4633 = vmatprep.mubr.f32.mxu0 0.0
        %4634 = vmatmul.mubr.f32.gmra.mrb[0].mxu0 %v4190
        %v4635 = vpop.f32.mrb[0].mxu0
        %v4636 = vadd.f32 0.0, %v4635
        %v4637 = vpop.f32.mrb[0].mxu0
        %4638 = vmatprep.mubr.f32.mxu0 0.0
        %4639 = vmatmul.mubr.f32.gmra.mrb[0].mxu0 %v4193
        %v4640 = vpop.f32.mrb[0].mxu0
        %v4641 = vadd.f32 0.0, %v4640
        %v4642 = vpop.f32.mrb[0].mxu0
        %4643 = vmatprep.mubr.f32.mxu0 0.0
        %4644 = vmatmul.mubr.f32.gmra.mrb[0].mxu0 %v4196
        %v4645 = vpop.f32.mrb[0].mxu0
        %v4646 = vadd.f32 0.0, %v4645
        %v4647 = vpop.f32.mrb[0].mxu0
        %4648 = vmatprep.mubr.f32.mxu0 0.0
        %4649 = vmatmul.mubr.f32.gmra.mrb[0].mxu0 %v4199
        %v4650 = vpop.f32.mrb[0].mxu0
        %v4651 = vadd.f32 0.0, %v4650
        %v4652 = vpop.f32.mrb[0].mxu0
        %4653 = vdwg.mxu0
        %s4654 = scalar_lea.vmem %s15, 192
        %v4655 = vld [vmem:[%s4654] sm:$0xff]
        %v4656 = vld [vmem:[%s4654 + $0x8] sm:$0xff]
        %v4657 = vld [vmem:[%s4654 + $0x10] sm:$0xff]
        %v4658 = vld [vmem:[%s4654 + $0x18] sm:$0xff]
        %v4659 = vld [vmem:[%s4654 + $0x20] sm:$0xff]
        %v4660 = vld [vmem:[%s4654 + $0x28] sm:$0xff]
        %v4661 = vld [vmem:[%s4654 + $0x30] sm:$0xff]
        %v4662 = vld [vmem:[%s4654 + $0x38] sm:$0xff]
        %4663 = vmatprep.subr.mxu0 0.0
        %4664 = vmatpush1.msra.mxu0 %v4655
        %4665 = vmatprep.subr.mxu0 0.0
        %4666 = vmatpush1.msra.mxu0 %v4656
        %4667 = vmatprep.subr.mxu0 0.0
        %4668 = vmatpush1.msra.mxu0 %v4657
        %4669 = vmatprep.subr.mxu0 0.0
        %4670 = vmatpush1.msra.mxu0 %v4658
        %4671 = vmatprep.subr.mxu0 0.0
        %4672 = vmatpush1.msra.mxu0 %v4659
        %4673 = vmatprep.subr.mxu0 0.0
        %4674 = vmatpush1.msra.mxu0 %v4660
        %4675 = vmatprep.subr.mxu0 0.0
        %4676 = vmatpush1.msra.mxu0 %v4661
        %4677 = vmatprep.subr.mxu0 0.0
        %4678 = vmatpush1.msra.mxu0 %v4662
        %4679 = vmatprep.subr.mxu0 0.0
        %4680 = vmatpush1.msra.mxu0 0.0
        %4681 = vmatprep.subr.mxu0 0.0
        %4682 = vmatpush1.msra.mxu0 0.0
        %4683 = vmatprep.subr.mxu0 0.0
        %4684 = vmatpush1.msra.mxu0 0.0
        %4685 = vmatprep.subr.mxu0 0.0
        %4686 = vmatpush1.msra.mxu0 0.0
        %4687 = vmatprep.subr.mxu0 0.0
        %4688 = vmatpush1.msra.mxu0 0.0
        %4689 = vmatprep.subr.mxu0 0.0
        %4690 = vmatpush1.msra.mxu0 0.0
        %4691 = vmatprep.subr.mxu0 0.0
        %4692 = vmatpush1.msra.mxu0 0.0
        %4693 = vmatprep.subr.mxu0 0.0
        %4694 = vmatpush1.msra.mxu0 0.0
        %4695 = vmatprep.subr.mxu0 0.0
        %4696 = vmatpush1.msra.mxu0 0.0
        %4697 = vmatprep.subr.mxu0 0.0
        %4698 = vmatpush1.msra.mxu0 0.0
        %4699 = vmatprep.subr.mxu0 0.0
        %4700 = vmatpush1.msra.mxu0 0.0
        %4701 = vmatprep.subr.mxu0 0.0
        %4702 = vmatpush1.msra.mxu0 0.0
        %4703 = vmatprep.subr.mxu0 0.0
        %4704 = vmatpush1.msra.mxu0 0.0
        %4705 = vmatprep.subr.mxu0 0.0
        %4706 = vmatpush1.msra.mxu0 0.0
        %4707 = vmatprep.subr.mxu0 0.0
        %4708 = vmatpush1.msra.mxu0 0.0
        %4709 = vmatprep.subr.mxu0 0.0
        %4710 = vmatpush1.msra.mxu0 0.0
        %4711 = vmatprep.subr.mxu0 0.0
        %4712 = vmatpush1.msra.mxu0 0.0
        %4713 = vmatprep.subr.mxu0 0.0
        %4714 = vmatpush1.msra.mxu0 0.0
        %4715 = vmatprep.subr.mxu0 0.0
        %4716 = vmatpush1.msra.mxu0 0.0
        %4717 = vmatprep.subr.mxu0 0.0
        %4718 = vmatpush1.msra.mxu0 0.0
        %4719 = vmatprep.subr.mxu0 0.0
        %4720 = vmatpush1.msra.mxu0 0.0
        %4721 = vmatprep.subr.mxu0 0.0
        %4722 = vmatpush1.msra.mxu0 0.0
        %4723 = vmatprep.subr.mxu0 0.0
        %4724 = vmatpush1.msra.mxu0 0.0
        %4725 = vmatprep.subr.mxu0 0.0
        %4726 = vmatpush1.msra.mxu0 0.0
        %4727 = vmatprep.mubr.f32.mxu0 0.0
        %4728 = vmatmul.mubr.f32.gmra.mrb[0].mxu0 %v4154
        %v4729 = vpop.f32.mrb[0].mxu0
        %v4730 = vadd.f32 0.0, %v4729
        %v4731 = vpop.f32.mrb[0].mxu0
        %4732 = vmatprep.mubr.f32.mxu0 0.0
        %4733 = vmatmul.mubr.f32.gmra.mrb[0].mxu0 %v4157
        %v4734 = vpop.f32.mrb[0].mxu0
        %v4735 = vadd.f32 0.0, %v4734
        %v4736 = vpop.f32.mrb[0].mxu0
        %4737 = vmatprep.mubr.f32.mxu0 0.0
        %4738 = vmatmul.mubr.f32.gmra.mrb[0].mxu0 %v4160
        %v4739 = vpop.f32.mrb[0].mxu0
        %v4740 = vadd.f32 0.0, %v4739
        %v4741 = vpop.f32.mrb[0].mxu0
        %4742 = vmatprep.mubr.f32.mxu0 0.0
        %4743 = vmatmul.mubr.f32.gmra.mrb[0].mxu0 %v4163
        %v4744 = vpop.f32.mrb[0].mxu0
        %v4745 = vadd.f32 0.0, %v4744
        %v4746 = vpop.f32.mrb[0].mxu0
        %4747 = vmatprep.mubr.f32.mxu0 0.0
        %4748 = vmatmul.mubr.f32.gmra.mrb[0].mxu0 %v4166
        %v4749 = vpop.f32.mrb[0].mxu0
        %v4750 = vadd.f32 0.0, %v4749
        %v4751 = vpop.f32.mrb[0].mxu0
        %4752 = vmatprep.mubr.f32.mxu0 0.0
        %4753 = vmatmul.mubr.f32.gmra.mrb[0].mxu0 %v4169
        %v4754 = vpop.f32.mrb[0].mxu0
        %v4755 = vadd.f32 0.0, %v4754
        %v4756 = vpop.f32.mrb[0].mxu0
        %4757 = vmatprep.mubr.f32.mxu0 0.0
        %4758 = vmatmul.mubr.f32.gmra.mrb[0].mxu0 %v4172
        %v4759 = vpop.f32.mrb[0].mxu0
        %v4760 = vadd.f32 0.0, %v4759
        %v4761 = vpop.f32.mrb[0].mxu0
        %4762 = vmatprep.mubr.f32.mxu0 0.0
        %4763 = vmatmul.mubr.f32.gmra.mrb[0].mxu0 %v4175
        %v4764 = vpop.f32.mrb[0].mxu0
        %v4765 = vadd.f32 0.0, %v4764
        %v4766 = vpop.f32.mrb[0].mxu0
        %4767 = vmatprep.mubr.f32.mxu0 0.0
        %4768 = vmatmul.mubr.f32.gmra.mrb[0].mxu0 %v4178
        %v4769 = vpop.f32.mrb[0].mxu0
        %v4770 = vadd.f32 0.0, %v4769
        %v4771 = vpop.f32.mrb[0].mxu0
        %4772 = vmatprep.mubr.f32.mxu0 0.0
        %4773 = vmatmul.mubr.f32.gmra.mrb[0].mxu0 %v4181
        %v4774 = vpop.f32.mrb[0].mxu0
        %v4775 = vadd.f32 0.0, %v4774
        %v4776 = vpop.f32.mrb[0].mxu0
        %4777 = vmatprep.mubr.f32.mxu0 0.0
        %4778 = vmatmul.mubr.f32.gmra.mrb[0].mxu0 %v4184
        %v4779 = vpop.f32.mrb[0].mxu0
        %v4780 = vadd.f32 0.0, %v4779
        %v4781 = vpop.f32.mrb[0].mxu0
        %4782 = vmatprep.mubr.f32.mxu0 0.0
        %4783 = vmatmul.mubr.f32.gmra.mrb[0].mxu0 %v4187
        %v4784 = vpop.f32.mrb[0].mxu0
        %v4785 = vadd.f32 0.0, %v4784
        %v4786 = vpop.f32.mrb[0].mxu0
        %4787 = vmatprep.mubr.f32.mxu0 0.0
        %4788 = vmatmul.mubr.f32.gmra.mrb[0].mxu0 %v4190
        %v4789 = vpop.f32.mrb[0].mxu0
        %v4790 = vadd.f32 0.0, %v4789
        %v4791 = vpop.f32.mrb[0].mxu0
        %4792 = vmatprep.mubr.f32.mxu0 0.0
        %4793 = vmatmul.mubr.f32.gmra.mrb[0].mxu0 %v4193
        %v4794 = vpop.f32.mrb[0].mxu0
        %v4795 = vadd.f32 0.0, %v4794
        %v4796 = vpop.f32.mrb[0].mxu0
        %4797 = vmatprep.mubr.f32.mxu0 0.0
        %4798 = vmatmul.mubr.f32.gmra.mrb[0].mxu0 %v4196
        %v4799 = vpop.f32.mrb[0].mxu0
        %v4800 = vadd.f32 0.0, %v4799
        %v4801 = vpop.f32.mrb[0].mxu0
        %4802 = vmatprep.mubr.f32.mxu0 0.0
        %4803 = vmatmul.mubr.f32.gmra.mrb[0].mxu0 %v4199
        %v4804 = vpop.f32.mrb[0].mxu0
        %v4805 = vadd.f32 0.0, %v4804
        %v4806 = vpop.f32.mrb[0].mxu0
        %4807 = vdwg.mxu0
        %s4808 = scalar_lea.vmem %s15, 256
        %v4809 = vld [vmem:[%s4808] sm:$0xff]
        %v4810 = vld [vmem:[%s4808 + $0x8] sm:$0xff]
        %v4811 = vld [vmem:[%s4808 + $0x10] sm:$0xff]
        %v4812 = vld [vmem:[%s4808 + $0x18] sm:$0xff]
        %v4813 = vld [vmem:[%s4808 + $0x20] sm:$0xff]
        %v4814 = vld [vmem:[%s4808 + $0x28] sm:$0xff]
        %v4815 = vld [vmem:[%s4808 + $0x30] sm:$0xff]
        %v4816 = vld [vmem:[%s4808 + $0x38] sm:$0xff]
        %4817 = vmatprep.subr.mxu0 0.0
        %4818 = vmatpush1.msra.mxu0 %v4809
        %4819 = vmatprep.subr.mxu0 0.0
        %4820 = vmatpush1.msra.mxu0 %v4810
        %4821 = vmatprep.subr.mxu0 0.0
        %4822 = vmatpush1.msra.mxu0 %v4811
        %4823 = vmatprep.subr.mxu0 0.0
        %4824 = vmatpush1.msra.mxu0 %v4812
        %4825 = vmatprep.subr.mxu0 0.0
        %4826 = vmatpush1.msra.mxu0 %v4813
        %4827 = vmatprep.subr.mxu0 0.0
        %4828 = vmatpush1.msra.mxu0 %v4814
        %4829 = vmatprep.subr.mxu0 0.0
        %4830 = vmatpush1.msra.mxu0 %v4815
        %4831 = vmatprep.subr.mxu0 0.0
        %4832 = vmatpush1.msra.mxu0 %v4816
        %4833 = vmatprep.subr.mxu0 0.0
        %4834 = vmatpush1.msra.mxu0 0.0
        %4835 = vmatprep.subr.mxu0 0.0
        %4836 = vmatpush1.msra.mxu0 0.0
        %4837 = vmatprep.subr.mxu0 0.0
        %4838 = vmatpush1.msra.mxu0 0.0
        %4839 = vmatprep.subr.mxu0 0.0
        %4840 = vmatpush1.msra.mxu0 0.0
        %4841 = vmatprep.subr.mxu0 0.0
        %4842 = vmatpush1.msra.mxu0 0.0
        %4843 = vmatprep.subr.mxu0 0.0
        %4844 = vmatpush1.msra.mxu0 0.0
        %4845 = vmatprep.subr.mxu0 0.0
        %4846 = vmatpush1.msra.mxu0 0.0
        %4847 = vmatprep.subr.mxu0 0.0
        %4848 = vmatpush1.msra.mxu0 0.0
        %4849 = vmatprep.subr.mxu0 0.0
        %4850 = vmatpush1.msra.mxu0 0.0
        %4851 = vmatprep.subr.mxu0 0.0
        %4852 = vmatpush1.msra.mxu0 0.0
        %4853 = vmatprep.subr.mxu0 0.0
        %4854 = vmatpush1.msra.mxu0 0.0
        %4855 = vmatprep.subr.mxu0 0.0
        %4856 = vmatpush1.msra.mxu0 0.0
        %4857 = vmatprep.subr.mxu0 0.0
        %4858 = vmatpush1.msra.mxu0 0.0
        %4859 = vmatprep.subr.mxu0 0.0
        %4860 = vmatpush1.msra.mxu0 0.0
        %4861 = vmatprep.subr.mxu0 0.0
        %4862 = vmatpush1.msra.mxu0 0.0
        %4863 = vmatprep.subr.mxu0 0.0
        %4864 = vmatpush1.msra.mxu0 0.0
        %4865 = vmatprep.subr.mxu0 0.0
        %4866 = vmatpush1.msra.mxu0 0.0
        %4867 = vmatprep.subr.mxu0 0.0
        %4868 = vmatpush1.msra.mxu0 0.0
        %4869 = vmatprep.subr.mxu0 0.0
        %4870 = vmatpush1.msra.mxu0 0.0
        %4871 = vmatprep.subr.mxu0 0.0
        %4872 = vmatpush1.msra.mxu0 0.0
        %4873 = vmatprep.subr.mxu0 0.0
        %4874 = vmatpush1.msra.mxu0 0.0
        %4875 = vmatprep.subr.mxu0 0.0
        %4876 = vmatpush1.msra.mxu0 0.0
        %4877 = vmatprep.subr.mxu0 0.0
        %4878 = vmatpush1.msra.mxu0 0.0
        %4879 = vmatprep.subr.mxu0 0.0
        %4880 = vmatpush1.msra.mxu0 0.0
        %4881 = vmatprep.mubr.f32.mxu0 0.0
        %4882 = vmatmul.mubr.f32.gmra.mrb[0].mxu0 %v4154
        %v4883 = vpop.f32.mrb[0].mxu0
        %v4884 = vadd.f32 0.0, %v4883
        %v4885 = vpop.f32.mrb[0].mxu0
        %4886 = vmatprep.mubr.f32.mxu0 0.0
        %4887 = vmatmul.mubr.f32.gmra.mrb[0].mxu0 %v4157
        %v4888 = vpop.f32.mrb[0].mxu0
        %v4889 = vadd.f32 0.0, %v4888
        %v4890 = vpop.f32.mrb[0].mxu0
        %4891 = vmatprep.mubr.f32.mxu0 0.0
        %4892 = vmatmul.mubr.f32.gmra.mrb[0].mxu0 %v4160
        %v4893 = vpop.f32.mrb[0].mxu0
        %v4894 = vadd.f32 0.0, %v4893
        %v4895 = vpop.f32.mrb[0].mxu0
        %4896 = vmatprep.mubr.f32.mxu0 0.0
        %4897 = vmatmul.mubr.f32.gmra.mrb[0].mxu0 %v4163
        %v4898 = vpop.f32.mrb[0].mxu0
        %v4899 = vadd.f32 0.0, %v4898
        %v4900 = vpop.f32.mrb[0].mxu0
        %4901 = vmatprep.mubr.f32.mxu0 0.0
        %4902 = vmatmul.mubr.f32.gmra.mrb[0].mxu0 %v4166
        %v4903 = vpop.f32.mrb[0].mxu0
        %v4904 = vadd.f32 0.0, %v4903
        %v4905 = vpop.f32.mrb[0].mxu0
        %4906 = vmatprep.mubr.f32.mxu0 0.0
        %4907 = vmatmul.mubr.f32.gmra.mrb[0].mxu0 %v4169
        %v4908 = vpop.f32.mrb[0].mxu0
        %v4909 = vadd.f32 0.0, %v4908
        %v4910 = vpop.f32.mrb[0].mxu0
        %4911 = vmatprep.mubr.f32.mxu0 0.0
        %4912 = vmatmul.mubr.f32.gmra.mrb[0].mxu0 %v4172
        %v4913 = vpop.f32.mrb[0].mxu0
        %v4914 = vadd.f32 0.0, %v4913
        %v4915 = vpop.f32.mrb[0].mxu0
        %4916 = vmatprep.mubr.f32.mxu0 0.0
        %4917 = vmatmul.mubr.f32.gmra.mrb[0].mxu0 %v4175
        %v4918 = vpop.f32.mrb[0].mxu0
        %v4919 = vadd.f32 0.0, %v4918
        %v4920 = vpop.f32.mrb[0].mxu0
        %4921 = vmatprep.mubr.f32.mxu0 0.0
        %4922 = vmatmul.mubr.f32.gmra.mrb[0].mxu0 %v4178
        %v4923 = vpop.f32.mrb[0].mxu0
        %v4924 = vadd.f32 0.0, %v4923
        %v4925 = vpop.f32.mrb[0].mxu0
        %4926 = vmatprep.mubr.f32.mxu0 0.0
        %4927 = vmatmul.mubr.f32.gmra.mrb[0].mxu0 %v4181
        %v4928 = vpop.f32.mrb[0].mxu0
        %v4929 = vadd.f32 0.0, %v4928
        %v4930 = vpop.f32.mrb[0].mxu0
        %4931 = vmatprep.mubr.f32.mxu0 0.0
        %4932 = vmatmul.mubr.f32.gmra.mrb[0].mxu0 %v4184
        %v4933 = vpop.f32.mrb[0].mxu0
        %v4934 = vadd.f32 0.0, %v4933
        %v4935 = vpop.f32.mrb[0].mxu0
        %4936 = vmatprep.mubr.f32.mxu0 0.0
        %4937 = vmatmul.mubr.f32.gmra.mrb[0].mxu0 %v4187
        %v4938 = vpop.f32.mrb[0].mxu0
        %v4939 = vadd.f32 0.0, %v4938
        %v4940 = vpop.f32.mrb[0].mxu0
        %4941 = vmatprep.mubr.f32.mxu0 0.0
        %4942 = vmatmul.mubr.f32.gmra.mrb[0].mxu0 %v4190
        %v4943 = vpop.f32.mrb[0].mxu0
        %v4944 = vadd.f32 0.0, %v4943
        %v4945 = vpop.f32.mrb[0].mxu0
        %4946 = vmatprep.mubr.f32.mxu0 0.0
        %4947 = vmatmul.mubr.f32.gmra.mrb[0].mxu0 %v4193
        %v4948 = vpop.f32.mrb[0].mxu0
        %v4949 = vadd.f32 0.0, %v4948
        %v4950 = vpop.f32.mrb[0].mxu0
        %4951 = vmatprep.mubr.f32.mxu0 0.0
        %4952 = vmatmul.mubr.f32.gmra.mrb[0].mxu0 %v4196
        %v4953 = vpop.f32.mrb[0].mxu0
        %v4954 = vadd.f32 0.0, %v4953
        %v4955 = vpop.f32.mrb[0].mxu0
        %4956 = vmatprep.mubr.f32.mxu0 0.0
        %4957 = vmatmul.mubr.f32.gmra.mrb[0].mxu0 %v4199
        %v4958 = vpop.f32.mrb[0].mxu0
        %v4959 = vadd.f32 0.0, %v4958
        %v4960 = vpop.f32.mrb[0].mxu0
        %4961 = vdwg.mxu0
        %v4962 = vld [vmem:[%s13] sm:$0xff]
        %v4963 = vld [vmem:[%s13 + $0x8] sm:$0xff]
        %v4964 = vld [vmem:[%s13 + $0x10] sm:$0xff]
        %v4965 = vld [vmem:[%s13 + $0x18] sm:$0xff]
        %v4966 = vld [vmem:[%s13 + $0x20] sm:$0xff]
        %v4967 = vld [vmem:[%s13 + $0x28] sm:$0xff]
        %v4968 = vld [vmem:[%s13 + $0x30] sm:$0xff]
        %v4969 = vld [vmem:[%s13 + $0x38] sm:$0xff]
        %v4970 = vld [vmem:[%s13 + $0x40] sm:$0xff]
        %v4971 = vld [vmem:[%s13 + $0x48] sm:$0xff]
        %v4972 = vld [vmem:[%s13 + $0x50] sm:$0xff]
        %v4973 = vld [vmem:[%s13 + $0x58] sm:$0xff]
        %v4974 = vld [vmem:[%s13 + $0x60] sm:$0xff]
        %v4975 = vld [vmem:[%s13 + $0x68] sm:$0xff]
        %v4976 = vld [vmem:[%s13 + $0x70] sm:$0xff]
        %v4977 = vld [vmem:[%s13 + $0x78] sm:$0xff]
        %v4978 = vld [vmem:[%s13 + $0x80] sm:$0xff]
        %v4979 = vld [vmem:[%s13 + $0x88] sm:$0xff]
        %v4980 = vld [vmem:[%s13 + $0x90] sm:$0xff]
        %v4981 = vld [vmem:[%s13 + $0x98] sm:$0xff]
        %v4982 = vld [vmem:[%s13 + $0xa0] sm:$0xff]
        %v4983 = vld [vmem:[%s13 + $0xa8] sm:$0xff]
        %v4984 = vld [vmem:[%s13 + $0xb0] sm:$0xff]
        %v4985 = vld [vmem:[%s13 + $0xb8] sm:$0xff]
        %v4986 = vld [vmem:[%s13 + $0xc0] sm:$0xff]
        %v4987 = vld [vmem:[%s13 + $0xc8] sm:$0xff]
        %v4988 = vld [vmem:[%s13 + $0xd0] sm:$0xff]
        %v4989 = vld [vmem:[%s13 + $0xd8] sm:$0xff]
        %v4990 = vld [vmem:[%s13 + $0xe0] sm:$0xff]
        %v4991 = vld [vmem:[%s13 + $0xe8] sm:$0xff]
        %v4992 = vld [vmem:[%s13 + $0xf0] sm:$0xff]
        %v4993 = vld [vmem:[%s13 + $0xf8] sm:$0xff]
        %v4994 = vld [vmem:[%s13 + $0x100] sm:$0xff]
        %v4995 = vld [vmem:[%s13 + $0x108] sm:$0xff]
        %v4996 = vld [vmem:[%s13 + $0x110] sm:$0xff]
        %v4997 = vld [vmem:[%s13 + $0x118] sm:$0xff]
        %v4998 = vld [vmem:[%s13 + $0x120] sm:$0xff]
        %v4999 = vld [vmem:[%s13 + $0x128] sm:$0xff]
        %v5000 = vld [vmem:[%s13 + $0x130] sm:$0xff]
        %v5001 = vld [vmem:[%s13 + $0x138] sm:$0xff]
        %v5002 = vld [vmem:[%s13 + $0x140] sm:$0xff]
        %v5003 = vld [vmem:[%s13 + $0x148] sm:$0xff]
        %v5004 = vld [vmem:[%s13 + $0x150] sm:$0xff]
        %v5005 = vld [vmem:[%s13 + $0x158] sm:$0xff]
        %v5006 = vld [vmem:[%s13 + $0x160] sm:$0xff]
        %v5007 = vld [vmem:[%s13 + $0x168] sm:$0xff]
        %v5008 = vld [vmem:[%s13 + $0x170] sm:$0xff]
        %v5009 = vld [vmem:[%s13 + $0x178] sm:$0xff]
        %v5010 = vld [vmem:[%s13 + $0x180] sm:$0xff]
        %v5011 = vld [vmem:[%s13 + $0x188] sm:$0xff]
        %v5012 = vld [vmem:[%s13 + $0x190] sm:$0xff]
        %v5013 = vld [vmem:[%s13 + $0x198] sm:$0xff]
        %v5014 = vld [vmem:[%s13 + $0x1a0] sm:$0xff]
        %v5015 = vld [vmem:[%s13 + $0x1a8] sm:$0xff]
        %v5016 = vld [vmem:[%s13 + $0x1b0] sm:$0xff]
        %v5017 = vld [vmem:[%s13 + $0x1b8] sm:$0xff]
        %v5018 = vld [vmem:[%s13 + $0x1c0] sm:$0xff]
        %v5019 = vld [vmem:[%s13 + $0x1c8] sm:$0xff]
        %v5020 = vld [vmem:[%s13 + $0x1d0] sm:$0xff]
        %v5021 = vld [vmem:[%s13 + $0x1d8] sm:$0xff]
        %v5022 = vld [vmem:[%s13 + $0x1e0] sm:$0xff]
        %v5023 = vld [vmem:[%s13 + $0x1e8] sm:$0xff]
        %v5024 = vld [vmem:[%s13 + $0x1f0] sm:$0xff]
        %v5025 = vld [vmem:[%s13 + $0x1f8] sm:$0xff]
        %v5026 = vld [vmem:[%s13 + $0x200] sm:$0xff]
        %v5027 = vld [vmem:[%s13 + $0x208] sm:$0xff]
        %v5028 = vld [vmem:[%s13 + $0x210] sm:$0xff]
        %v5029 = vld [vmem:[%s13 + $0x218] sm:$0xff]
        %v5030 = vld [vmem:[%s13 + $0x220] sm:$0xff]
        %v5031 = vld [vmem:[%s13 + $0x228] sm:$0xff]
        %v5032 = vld [vmem:[%s13 + $0x230] sm:$0xff]
        %v5033 = vld [vmem:[%s13 + $0x238] sm:$0xff]
        %v5034 = vld [vmem:[%s13 + $0x240] sm:$0xff]
        %v5035 = vld [vmem:[%s13 + $0x248] sm:$0xff]
        %v5036 = vld [vmem:[%s13 + $0x250] sm:$0xff]
        %v5037 = vld [vmem:[%s13 + $0x258] sm:$0xff]
        %v5038 = vld [vmem:[%s13 + $0x260] sm:$0xff]
        %v5039 = vld [vmem:[%s13 + $0x268] sm:$0xff]
        %v5040 = vld [vmem:[%s13 + $0x270] sm:$0xff]
        %v5041 = vld [vmem:[%s13 + $0x278] sm:$0xff]
        %v5042 = vld [vmem:[%s14] sm:$0xff]
        %v5043 = vld [vmem:[%s14 + $0x8] sm:$0xff]
        %v5044 = vld [vmem:[%s14 + $0x10] sm:$0xff]
        %v5045 = vld [vmem:[%s14 + $0x18] sm:$0xff]
        %v5046 = vld [vmem:[%s14 + $0x20] sm:$0xff]
        %v5047 = vld [vmem:[%s14 + $0x28] sm:$0xff]
        %v5048 = vld [vmem:[%s14 + $0x30] sm:$0xff]
        %v5049 = vld [vmem:[%s14 + $0x38] sm:$0xff]
        %v5050 = vld [vmem:[%s14 + $0x40] sm:$0xff]
        %v5051 = vld [vmem:[%s14 + $0x48] sm:$0xff]
        %v5052 = vld [vmem:[%s14 + $0x50] sm:$0xff]
        %v5053 = vld [vmem:[%s14 + $0x58] sm:$0xff]
        %v5054 = vld [vmem:[%s14 + $0x60] sm:$0xff]
        %v5055 = vld [vmem:[%s14 + $0x68] sm:$0xff]
        %v5056 = vld [vmem:[%s14 + $0x70] sm:$0xff]
        %v5057 = vld [vmem:[%s14 + $0x78] sm:$0xff]
        %5059 = vset.pattern.permute.xlu0 0
        %5060 = vperm.xlu0 %5059, %v5042
        %v5061 = vpop.permute.xlu0 %5060
        %5064 = vset.pattern.permute.xlu0 0
        %5065 = vperm.xlu0 %5064, %v5043
        %v5066 = vpop.permute.xlu0 %5065
        %5069 = vset.pattern.permute.xlu0 0
        %5070 = vperm.xlu0 %5069, %v5044
        %v5071 = vpop.permute.xlu0 %5070
        %5074 = vset.pattern.permute.xlu0 0
        %5075 = vperm.xlu0 %5074, %v5045
        %v5076 = vpop.permute.xlu0 %5075
        %5079 = vset.pattern.permute.xlu0 0
        %5080 = vperm.xlu0 %5079, %v5046
        %v5081 = vpop.permute.xlu0 %5080
        %5084 = vset.pattern.permute.xlu0 0
        %5085 = vperm.xlu0 %5084, %v5047
        %v5086 = vpop.permute.xlu0 %5085
        %5089 = vset.pattern.permute.xlu0 0
        %5090 = vperm.xlu0 %5089, %v5048
        %v5091 = vpop.permute.xlu0 %5090
        %5094 = vset.pattern.permute.xlu0 0
        %5095 = vperm.xlu0 %5094, %v5049
        %v5096 = vpop.permute.xlu0 %5095
        %5099 = vset.pattern.permute.xlu0 0
        %5100 = vperm.xlu0 %5099, %v5050
        %v5101 = vpop.permute.xlu0 %5100
        %5104 = vset.pattern.permute.xlu0 0
        %5105 = vperm.xlu0 %5104, %v5051
        %v5106 = vpop.permute.xlu0 %5105
        %5109 = vset.pattern.permute.xlu0 0
        %5110 = vperm.xlu0 %5109, %v5052
        %v5111 = vpop.permute.xlu0 %5110
        %5114 = vset.pattern.permute.xlu0 0
        %5115 = vperm.xlu0 %5114, %v5053
        %v5116 = vpop.permute.xlu0 %5115
        %5119 = vset.pattern.permute.xlu0 0
        %5120 = vperm.xlu0 %5119, %v5054
        %v5121 = vpop.permute.xlu0 %5120
        %5124 = vset.pattern.permute.xlu0 0
        %5125 = vperm.xlu0 %5124, %v5055
        %v5126 = vpop.permute.xlu0 %5125
        %5129 = vset.pattern.permute.xlu0 0
        %5130 = vperm.xlu0 %5129, %v5056
        %v5131 = vpop.permute.xlu0 %5130
        %5134 = vset.pattern.permute.xlu0 0
        %5135 = vperm.xlu0 %5134, %v5057
        %v5136 = vpop.permute.xlu0 %5135
        %5138 = vmatprep.subr.mxu0 0.0
        %5139 = vmatpush1.msra.mxu0 %v4268
        %5140 = vmatprep.subr.mxu0 0.0
        %5141 = vmatpush1.msra.mxu0 %v4273
        %5142 = vmatprep.subr.mxu0 0.0
        %5143 = vmatpush1.msra.mxu0 %v4278
        %5144 = vmatprep.subr.mxu0 0.0
        %5145 = vmatpush1.msra.mxu0 %v4283
        %5146 = vmatprep.subr.mxu0 0.0
        %5147 = vmatpush1.msra.mxu0 %v4288
        %5148 = vmatprep.subr.mxu0 0.0
        %5149 = vmatpush1.msra.mxu0 %v4293
        %5150 = vmatprep.subr.mxu0 0.0
        %5151 = vmatpush1.msra.mxu0 %v4298
        %5152 = vmatprep.subr.mxu0 0.0
        %5153 = vmatpush1.msra.mxu0 %v4303
        %5154 = vmatprep.subr.mxu0 0.0
        %5155 = vmatpush1.msra.mxu0 %v4308
        %5156 = vmatprep.subr.mxu0 0.0
        %5157 = vmatpush1.msra.mxu0 %v4313
        %5158 = vmatprep.subr.mxu0 0.0
        %5159 = vmatpush1.msra.mxu0 %v4318
        %5160 = vmatprep.subr.mxu0 0.0
        %5161 = vmatpush1.msra.mxu0 %v4323
        %5162 = vmatprep.subr.mxu0 0.0
        %5163 = vmatpush1.msra.mxu0 %v4328
        %5164 = vmatprep.subr.mxu0 0.0
        %5165 = vmatpush1.msra.mxu0 %v4333
        %5166 = vmatprep.subr.mxu0 0.0
        %5167 = vmatpush1.msra.mxu0 %v4338
        %5168 = vmatprep.subr.mxu0 0.0
        %5169 = vmatpush1.msra.mxu0 %v4343
        %5170 = vmatprep.subr.mxu0 0.0
        %5171 = vmatpush1.msra.mxu0 %v4422
        %5172 = vmatprep.subr.mxu0 0.0
        %5173 = vmatpush1.msra.mxu0 %v4427
        %5174 = vmatprep.subr.mxu0 0.0
        %5175 = vmatpush1.msra.mxu0 %v4432
        %5176 = vmatprep.subr.mxu0 0.0
        %5177 = vmatpush1.msra.mxu0 %v4437
        %5178 = vmatprep.subr.mxu0 0.0
        %5179 = vmatpush1.msra.mxu0 %v4442
        %5180 = vmatprep.subr.mxu0 0.0
        %5181 = vmatpush1.msra.mxu0 %v4447
        %5182 = vmatprep.subr.mxu0 0.0
        %5183 = vmatpush1.msra.mxu0 %v4452
        %5184 = vmatprep.subr.mxu0 0.0
        %5185 = vmatpush1.msra.mxu0 %v4457
        %5186 = vmatprep.subr.mxu0 0.0
        %5187 = vmatpush1.msra.mxu0 %v4462
        %5188 = vmatprep.subr.mxu0 0.0
        %5189 = vmatpush1.msra.mxu0 %v4467
        %5190 = vmatprep.subr.mxu0 0.0
        %5191 = vmatpush1.msra.mxu0 %v4472
        %5192 = vmatprep.subr.mxu0 0.0
        %5193 = vmatpush1.msra.mxu0 %v4477
        %5194 = vmatprep.subr.mxu0 0.0
        %5195 = vmatpush1.msra.mxu0 %v4482
        %5196 = vmatprep.subr.mxu0 0.0
        %5197 = vmatpush1.msra.mxu0 %v4487
        %5198 = vmatprep.subr.mxu0 0.0
        %5199 = vmatpush1.msra.mxu0 %v4492
        %5200 = vmatprep.subr.mxu0 0.0
        %5201 = vmatpush1.msra.mxu0 %v4497
        %5202 = vmatprep.mubr.f32.mxu0 %v4963
        %5203 = vmatmul.mubr.f32.gmra.mrb[0].mxu0 %v4962
        %v5204 = vpop.f32.mrb[0].mxu0
        %v5205 = vadd.f32 %v5061, %v5204
        %v5206 = vpop.f32.mrb[0].mxu0
        %5207 = vmatprep.mubr.f32.mxu0 %v4968
        %5208 = vmatmul.mubr.f32.gmra.mrb[0].mxu0 %v4967
        %v5209 = vpop.f32.mrb[0].mxu0
        %v5210 = vadd.f32 %v5066, %v5209
        %v5211 = vpop.f32.mrb[0].mxu0
        %5212 = vmatprep.mubr.f32.mxu0 %v4973
        %5213 = vmatmul.mubr.f32.gmra.mrb[0].mxu0 %v4972
        %v5214 = vpop.f32.mrb[0].mxu0
        %v5215 = vadd.f32 %v5071, %v5214
        %v5216 = vpop.f32.mrb[0].mxu0
        %5217 = vmatprep.mubr.f32.mxu0 %v4978
        %5218 = vmatmul.mubr.f32.gmra.mrb[0].mxu0 %v4977
        %v5219 = vpop.f32.mrb[0].mxu0
        %v5220 = vadd.f32 %v5076, %v5219
        %v5221 = vpop.f32.mrb[0].mxu0
        %5222 = vmatprep.mubr.f32.mxu0 %v4983
        %5223 = vmatmul.mubr.f32.gmra.mrb[0].mxu0 %v4982
        %v5224 = vpop.f32.mrb[0].mxu0
        %v5225 = vadd.f32 %v5081, %v5224
        %v5226 = vpop.f32.mrb[0].mxu0
        %5227 = vmatprep.mubr.f32.mxu0 %v4988
        %5228 = vmatmul.mubr.f32.gmra.mrb[0].mxu0 %v4987
        %v5229 = vpop.f32.mrb[0].mxu0
        %v5230 = vadd.f32 %v5086, %v5229
        %v5231 = vpop.f32.mrb[0].mxu0
        %5232 = vmatprep.mubr.f32.mxu0 %v4993
        %5233 = vmatmul.mubr.f32.gmra.mrb[0].mxu0 %v4992
        %v5234 = vpop.f32.mrb[0].mxu0
        %v5235 = vadd.f32 %v5091, %v5234
        %v5236 = vpop.f32.mrb[0].mxu0
        %5237 = vmatprep.mubr.f32.mxu0 %v4998
        %5238 = vmatmul.mubr.f32.gmra.mrb[0].mxu0 %v4997
        %v5239 = vpop.f32.mrb[0].mxu0
        %v5240 = vadd.f32 %v5096, %v5239
        %v5241 = vpop.f32.mrb[0].mxu0
        %5242 = vmatprep.mubr.f32.mxu0 %v5003
        %5243 = vmatmul.mubr.f32.gmra.mrb[0].mxu0 %v5002
        %v5244 = vpop.f32.mrb[0].mxu0
        %v5245 = vadd.f32 %v5101, %v5244
        %v5246 = vpop.f32.mrb[0].mxu0
        %5247 = vmatprep.mubr.f32.mxu0 %v5008
        %5248 = vmatmul.mubr.f32.gmra.mrb[0].mxu0 %v5007
        %v5249 = vpop.f32.mrb[0].mxu0
        %v5250 = vadd.f32 %v5106, %v5249
        %v5251 = vpop.f32.mrb[0].mxu0
        %5252 = vmatprep.mubr.f32.mxu0 %v5013
        %5253 = vmatmul.mubr.f32.gmra.mrb[0].mxu0 %v5012
        %v5254 = vpop.f32.mrb[0].mxu0
        %v5255 = vadd.f32 %v5111, %v5254
        %v5256 = vpop.f32.mrb[0].mxu0
        %5257 = vmatprep.mubr.f32.mxu0 %v5018
        %5258 = vmatmul.mubr.f32.gmra.mrb[0].mxu0 %v5017
        %v5259 = vpop.f32.mrb[0].mxu0
        %v5260 = vadd.f32 %v5116, %v5259
        %v5261 = vpop.f32.mrb[0].mxu0
        %5262 = vmatprep.mubr.f32.mxu0 %v5023
        %5263 = vmatmul.mubr.f32.gmra.mrb[0].mxu0 %v5022
        %v5264 = vpop.f32.mrb[0].mxu0
        %v5265 = vadd.f32 %v5121, %v5264
        %v5266 = vpop.f32.mrb[0].mxu0
        %5267 = vmatprep.mubr.f32.mxu0 %v5028
        %5268 = vmatmul.mubr.f32.gmra.mrb[0].mxu0 %v5027
        %v5269 = vpop.f32.mrb[0].mxu0
        %v5270 = vadd.f32 %v5126, %v5269
        %v5271 = vpop.f32.mrb[0].mxu0
        %5272 = vmatprep.mubr.f32.mxu0 %v5033
        %5273 = vmatmul.mubr.f32.gmra.mrb[0].mxu0 %v5032
        %v5274 = vpop.f32.mrb[0].mxu0
        %v5275 = vadd.f32 %v5131, %v5274
        %v5276 = vpop.f32.mrb[0].mxu0
        %5277 = vmatprep.mubr.f32.mxu0 %v5038
        %5278 = vmatmul.mubr.f32.gmra.mrb[0].mxu0 %v5037
        %v5279 = vpop.f32.mrb[0].mxu0
        %v5280 = vadd.f32 %v5136, %v5279
        %v5281 = vpop.f32.mrb[0].mxu0
        %5282 = vdwg.mxu0
        %5283 = vmatprep.subr.mxu0 0.0
        %5284 = vmatpush1.msra.mxu0 %v4576
        %5285 = vmatprep.subr.mxu0 0.0
        %5286 = vmatpush1.msra.mxu0 %v4581
        %5287 = vmatprep.subr.mxu0 0.0
        %5288 = vmatpush1.msra.mxu0 %v4586
        %5289 = vmatprep.subr.mxu0 0.0
        %5290 = vmatpush1.msra.mxu0 %v4591
        %5291 = vmatprep.subr.mxu0 0.0
        %5292 = vmatpush1.msra.mxu0 %v4596
        %5293 = vmatprep.subr.mxu0 0.0
        %5294 = vmatpush1.msra.mxu0 %v4601
        %5295 = vmatprep.subr.mxu0 0.0
        %5296 = vmatpush1.msra.mxu0 %v4606
        %5297 = vmatprep.subr.mxu0 0.0
        %5298 = vmatpush1.msra.mxu0 %v4611
        %5299 = vmatprep.subr.mxu0 0.0
        %5300 = vmatpush1.msra.mxu0 %v4616
        %5301 = vmatprep.subr.mxu0 0.0
        %5302 = vmatpush1.msra.mxu0 %v4621
        %5303 = vmatprep.subr.mxu0 0.0
        %5304 = vmatpush1.msra.mxu0 %v4626
        %5305 = vmatprep.subr.mxu0 0.0
        %5306 = vmatpush1.msra.mxu0 %v4631
        %5307 = vmatprep.subr.mxu0 0.0
        %5308 = vmatpush1.msra.mxu0 %v4636
        %5309 = vmatprep.subr.mxu0 0.0
        %5310 = vmatpush1.msra.mxu0 %v4641
        %5311 = vmatprep.subr.mxu0 0.0
        %5312 = vmatpush1.msra.mxu0 %v4646
        %5313 = vmatprep.subr.mxu0 0.0
        %5314 = vmatpush1.msra.mxu0 %v4651
        %5315 = vmatprep.subr.mxu0 0.0
        %5316 = vmatpush1.msra.mxu0 %v4730
        %5317 = vmatprep.subr.mxu0 0.0
        %5318 = vmatpush1.msra.mxu0 %v4735
        %5319 = vmatprep.subr.mxu0 0.0
        %5320 = vmatpush1.msra.mxu0 %v4740
        %5321 = vmatprep.subr.mxu0 0.0
        %5322 = vmatpush1.msra.mxu0 %v4745
        %5323 = vmatprep.subr.mxu0 0.0
        %5324 = vmatpush1.msra.mxu0 %v4750
        %5325 = vmatprep.subr.mxu0 0.0
        %5326 = vmatpush1.msra.mxu0 %v4755
        %5327 = vmatprep.subr.mxu0 0.0
        %5328 = vmatpush1.msra.mxu0 %v4760
        %5329 = vmatprep.subr.mxu0 0.0
        %5330 = vmatpush1.msra.mxu0 %v4765
        %5331 = vmatprep.subr.mxu0 0.0
        %5332 = vmatpush1.msra.mxu0 %v4770
        %5333 = vmatprep.subr.mxu0 0.0
        %5334 = vmatpush1.msra.mxu0 %v4775
        %5335 = vmatprep.subr.mxu0 0.0
        %5336 = vmatpush1.msra.mxu0 %v4780
        %5337 = vmatprep.subr.mxu0 0.0
        %5338 = vmatpush1.msra.mxu0 %v4785
        %5339 = vmatprep.subr.mxu0 0.0
        %5340 = vmatpush1.msra.mxu0 %v4790
        %5341 = vmatprep.subr.mxu0 0.0
        %5342 = vmatpush1.msra.mxu0 %v4795
        %5343 = vmatprep.subr.mxu0 0.0
        %5344 = vmatpush1.msra.mxu0 %v4800
        %5345 = vmatprep.subr.mxu0 0.0
        %5346 = vmatpush1.msra.mxu0 %v4805
        %5347 = vmatprep.mubr.f32.mxu0 %v4965
        %5348 = vmatmul.mubr.f32.gmra.mrb[0].mxu0 %v4964
        %v5349 = vpop.f32.mrb[0].mxu0
        %v5350 = vadd.f32 %v5205, %v5349
        %v5351 = vpop.f32.mrb[0].mxu0
        %5352 = vmatprep.mubr.f32.mxu0 %v4970
        %5353 = vmatmul.mubr.f32.gmra.mrb[0].mxu0 %v4969
        %v5354 = vpop.f32.mrb[0].mxu0
        %v5355 = vadd.f32 %v5210, %v5354
        %v5356 = vpop.f32.mrb[0].mxu0
        %5357 = vmatprep.mubr.f32.mxu0 %v4975
        %5358 = vmatmul.mubr.f32.gmra.mrb[0].mxu0 %v4974
        %v5359 = vpop.f32.mrb[0].mxu0
        %v5360 = vadd.f32 %v5215, %v5359
        %v5361 = vpop.f32.mrb[0].mxu0
        %5362 = vmatprep.mubr.f32.mxu0 %v4980
        %5363 = vmatmul.mubr.f32.gmra.mrb[0].mxu0 %v4979
        %v5364 = vpop.f32.mrb[0].mxu0
        %v5365 = vadd.f32 %v5220, %v5364
        %v5366 = vpop.f32.mrb[0].mxu0
        %5367 = vmatprep.mubr.f32.mxu0 %v4985
        %5368 = vmatmul.mubr.f32.gmra.mrb[0].mxu0 %v4984
        %v5369 = vpop.f32.mrb[0].mxu0
        %v5370 = vadd.f32 %v5225, %v5369
        %v5371 = vpop.f32.mrb[0].mxu0
        %5372 = vmatprep.mubr.f32.mxu0 %v4990
        %5373 = vmatmul.mubr.f32.gmra.mrb[0].mxu0 %v4989
        %v5374 = vpop.f32.mrb[0].mxu0
        %v5375 = vadd.f32 %v5230, %v5374
        %v5376 = vpop.f32.mrb[0].mxu0
        %5377 = vmatprep.mubr.f32.mxu0 %v4995
        %5378 = vmatmul.mubr.f32.gmra.mrb[0].mxu0 %v4994
        %v5379 = vpop.f32.mrb[0].mxu0
        %v5380 = vadd.f32 %v5235, %v5379
        %v5381 = vpop.f32.mrb[0].mxu0
        %5382 = vmatprep.mubr.f32.mxu0 %v5000
        %5383 = vmatmul.mubr.f32.gmra.mrb[0].mxu0 %v4999
        %v5384 = vpop.f32.mrb[0].mxu0
        %v5385 = vadd.f32 %v5240, %v5384
        %v5386 = vpop.f32.mrb[0].mxu0
        %5387 = vmatprep.mubr.f32.mxu0 %v5005
        %5388 = vmatmul.mubr.f32.gmra.mrb[0].mxu0 %v5004
        %v5389 = vpop.f32.mrb[0].mxu0
        %v5390 = vadd.f32 %v5245, %v5389
        %v5391 = vpop.f32.mrb[0].mxu0
        %5392 = vmatprep.mubr.f32.mxu0 %v5010
        %5393 = vmatmul.mubr.f32.gmra.mrb[0].mxu0 %v5009
        %v5394 = vpop.f32.mrb[0].mxu0
        %v5395 = vadd.f32 %v5250, %v5394
        %v5396 = vpop.f32.mrb[0].mxu0
        %5397 = vmatprep.mubr.f32.mxu0 %v5015
        %5398 = vmatmul.mubr.f32.gmra.mrb[0].mxu0 %v5014
        %v5399 = vpop.f32.mrb[0].mxu0
        %v5400 = vadd.f32 %v5255, %v5399
        %v5401 = vpop.f32.mrb[0].mxu0
        %5402 = vmatprep.mubr.f32.mxu0 %v5020
        %5403 = vmatmul.mubr.f32.gmra.mrb[0].mxu0 %v5019
        %v5404 = vpop.f32.mrb[0].mxu0
        %v5405 = vadd.f32 %v5260, %v5404
        %v5406 = vpop.f32.mrb[0].mxu0
        %5407 = vmatprep.mubr.f32.mxu0 %v5025
        %5408 = vmatmul.mubr.f32.gmra.mrb[0].mxu0 %v5024
        %v5409 = vpop.f32.mrb[0].mxu0
        %v5410 = vadd.f32 %v5265, %v5409
        %v5411 = vpop.f32.mrb[0].mxu0
        %5412 = vmatprep.mubr.f32.mxu0 %v5030
        %5413 = vmatmul.mubr.f32.gmra.mrb[0].mxu0 %v5029
        %v5414 = vpop.f32.mrb[0].mxu0
        %v5415 = vadd.f32 %v5270, %v5414
        %v5416 = vpop.f32.mrb[0].mxu0
        %5417 = vmatprep.mubr.f32.mxu0 %v5035
        %5418 = vmatmul.mubr.f32.gmra.mrb[0].mxu0 %v5034
        %v5419 = vpop.f32.mrb[0].mxu0
        %v5420 = vadd.f32 %v5275, %v5419
        %v5421 = vpop.f32.mrb[0].mxu0
        %5422 = vmatprep.mubr.f32.mxu0 %v5040
        %5423 = vmatmul.mubr.f32.gmra.mrb[0].mxu0 %v5039
        %v5424 = vpop.f32.mrb[0].mxu0
        %v5425 = vadd.f32 %v5280, %v5424
        %v5426 = vpop.f32.mrb[0].mxu0
        %5427 = vdwg.mxu0
        %5428 = vmatprep.subr.mxu0 0.0
        %5429 = vmatpush1.msra.mxu0 %v4884
        %5430 = vmatprep.subr.mxu0 0.0
        %5431 = vmatpush1.msra.mxu0 %v4889
        %5432 = vmatprep.subr.mxu0 0.0
        %5433 = vmatpush1.msra.mxu0 %v4894
        %5434 = vmatprep.subr.mxu0 0.0
        %5435 = vmatpush1.msra.mxu0 %v4899
        %5436 = vmatprep.subr.mxu0 0.0
        %5437 = vmatpush1.msra.mxu0 %v4904
        %5438 = vmatprep.subr.mxu0 0.0
        %5439 = vmatpush1.msra.mxu0 %v4909
        %5440 = vmatprep.subr.mxu0 0.0
        %5441 = vmatpush1.msra.mxu0 %v4914
        %5442 = vmatprep.subr.mxu0 0.0
        %5443 = vmatpush1.msra.mxu0 %v4919
        %5444 = vmatprep.subr.mxu0 0.0
        %5445 = vmatpush1.msra.mxu0 %v4924
        %5446 = vmatprep.subr.mxu0 0.0
        %5447 = vmatpush1.msra.mxu0 %v4929
        %5448 = vmatprep.subr.mxu0 0.0
        %5449 = vmatpush1.msra.mxu0 %v4934
        %5450 = vmatprep.subr.mxu0 0.0
        %5451 = vmatpush1.msra.mxu0 %v4939
        %5452 = vmatprep.subr.mxu0 0.0
        %5453 = vmatpush1.msra.mxu0 %v4944
        %5454 = vmatprep.subr.mxu0 0.0
        %5455 = vmatpush1.msra.mxu0 %v4949
        %5456 = vmatprep.subr.mxu0 0.0
        %5457 = vmatpush1.msra.mxu0 %v4954
        %5458 = vmatprep.subr.mxu0 0.0
        %5459 = vmatpush1.msra.mxu0 %v4959
        %5460 = vmatprep.subr.mxu0 0.0
        %5461 = vmatpush1.msra.mxu0 0.0
        %5462 = vmatprep.subr.mxu0 0.0
        %5463 = vmatpush1.msra.mxu0 0.0
        %5464 = vmatprep.subr.mxu0 0.0
        %5465 = vmatpush1.msra.mxu0 0.0
        %5466 = vmatprep.subr.mxu0 0.0
        %5467 = vmatpush1.msra.mxu0 0.0
        %5468 = vmatprep.subr.mxu0 0.0
        %5469 = vmatpush1.msra.mxu0 0.0
        %5470 = vmatprep.subr.mxu0 0.0
        %5471 = vmatpush1.msra.mxu0 0.0
        %5472 = vmatprep.subr.mxu0 0.0
        %5473 = vmatpush1.msra.mxu0 0.0
        %5474 = vmatprep.subr.mxu0 0.0
        %5475 = vmatpush1.msra.mxu0 0.0
        %5476 = vmatprep.subr.mxu0 0.0
        %5477 = vmatpush1.msra.mxu0 0.0
        %5478 = vmatprep.subr.mxu0 0.0
        %5479 = vmatpush1.msra.mxu0 0.0
        %5480 = vmatprep.subr.mxu0 0.0
        %5481 = vmatpush1.msra.mxu0 0.0
        %5482 = vmatprep.subr.mxu0 0.0
        %5483 = vmatpush1.msra.mxu0 0.0
        %5484 = vmatprep.subr.mxu0 0.0
        %5485 = vmatpush1.msra.mxu0 0.0
        %5486 = vmatprep.subr.mxu0 0.0
        %5487 = vmatpush1.msra.mxu0 0.0
        %5488 = vmatprep.subr.mxu0 0.0
        %5489 = vmatpush1.msra.mxu0 0.0
        %5490 = vmatprep.subr.mxu0 0.0
        %5491 = vmatpush1.msra.mxu0 0.0
        %5492 = vmatprep.mubr.f32.mxu0 0.0
        %5493 = vmatmul.mubr.f32.gmra.mrb[0].mxu0 %v4966
        %v5494 = vpop.f32.mrb[0].mxu0
        %v5495 = vadd.f32 %v5350, %v5494
        %v5496 = vpop.f32.mrb[0].mxu0
        %5497 = vmatprep.mubr.f32.mxu0 0.0
        %5498 = vmatmul.mubr.f32.gmra.mrb[0].mxu0 %v4971
        %v5499 = vpop.f32.mrb[0].mxu0
        %v5500 = vadd.f32 %v5355, %v5499
        %v5501 = vpop.f32.mrb[0].mxu0
        %5502 = vmatprep.mubr.f32.mxu0 0.0
        %5503 = vmatmul.mubr.f32.gmra.mrb[0].mxu0 %v4976
        %v5504 = vpop.f32.mrb[0].mxu0
        %v5505 = vadd.f32 %v5360, %v5504
        %v5506 = vpop.f32.mrb[0].mxu0
        %5507 = vmatprep.mubr.f32.mxu0 0.0
        %5508 = vmatmul.mubr.f32.gmra.mrb[0].mxu0 %v4981
        %v5509 = vpop.f32.mrb[0].mxu0
        %v5510 = vadd.f32 %v5365, %v5509
        %v5511 = vpop.f32.mrb[0].mxu0
        %5512 = vmatprep.mubr.f32.mxu0 0.0
        %5513 = vmatmul.mubr.f32.gmra.mrb[0].mxu0 %v4986
        %v5514 = vpop.f32.mrb[0].mxu0
        %v5515 = vadd.f32 %v5370, %v5514
        %v5516 = vpop.f32.mrb[0].mxu0
        %5517 = vmatprep.mubr.f32.mxu0 0.0
        %5518 = vmatmul.mubr.f32.gmra.mrb[0].mxu0 %v4991
        %v5519 = vpop.f32.mrb[0].mxu0
        %v5520 = vadd.f32 %v5375, %v5519
        %v5521 = vpop.f32.mrb[0].mxu0
        %5522 = vmatprep.mubr.f32.mxu0 0.0
        %5523 = vmatmul.mubr.f32.gmra.mrb[0].mxu0 %v4996
        %v5524 = vpop.f32.mrb[0].mxu0
        %v5525 = vadd.f32 %v5380, %v5524
        %v5526 = vpop.f32.mrb[0].mxu0
        %5527 = vmatprep.mubr.f32.mxu0 0.0
        %5528 = vmatmul.mubr.f32.gmra.mrb[0].mxu0 %v5001
        %v5529 = vpop.f32.mrb[0].mxu0
        %v5530 = vadd.f32 %v5385, %v5529
        %v5531 = vpop.f32.mrb[0].mxu0
        %5532 = vmatprep.mubr.f32.mxu0 0.0
        %5533 = vmatmul.mubr.f32.gmra.mrb[0].mxu0 %v5006
        %v5534 = vpop.f32.mrb[0].mxu0
        %v5535 = vadd.f32 %v5390, %v5534
        %v5536 = vpop.f32.mrb[0].mxu0
        %5537 = vmatprep.mubr.f32.mxu0 0.0
        %5538 = vmatmul.mubr.f32.gmra.mrb[0].mxu0 %v5011
        %v5539 = vpop.f32.mrb[0].mxu0
        %v5540 = vadd.f32 %v5395, %v5539
        %v5541 = vpop.f32.mrb[0].mxu0
        %5542 = vmatprep.mubr.f32.mxu0 0.0
        %5543 = vmatmul.mubr.f32.gmra.mrb[0].mxu0 %v5016
        %v5544 = vpop.f32.mrb[0].mxu0
        %v5545 = vadd.f32 %v5400, %v5544
        %v5546 = vpop.f32.mrb[0].mxu0
        %5547 = vmatprep.mubr.f32.mxu0 0.0
        %5548 = vmatmul.mubr.f32.gmra.mrb[0].mxu0 %v5021
        %v5549 = vpop.f32.mrb[0].mxu0
        %v5550 = vadd.f32 %v5405, %v5549
        %v5551 = vpop.f32.mrb[0].mxu0
        %5552 = vmatprep.mubr.f32.mxu0 0.0
        %5553 = vmatmul.mubr.f32.gmra.mrb[0].mxu0 %v5026
        %v5554 = vpop.f32.mrb[0].mxu0
        %v5555 = vadd.f32 %v5410, %v5554
        %v5556 = vpop.f32.mrb[0].mxu0
        %5557 = vmatprep.mubr.f32.mxu0 0.0
        %5558 = vmatmul.mubr.f32.gmra.mrb[0].mxu0 %v5031
        %v5559 = vpop.f32.mrb[0].mxu0
        %v5560 = vadd.f32 %v5415, %v5559
        %v5561 = vpop.f32.mrb[0].mxu0
        %5562 = vmatprep.mubr.f32.mxu0 0.0
        %5563 = vmatmul.mubr.f32.gmra.mrb[0].mxu0 %v5036
        %v5564 = vpop.f32.mrb[0].mxu0
        %v5565 = vadd.f32 %v5420, %v5564
        %v5566 = vpop.f32.mrb[0].mxu0
        %5567 = vmatprep.mubr.f32.mxu0 0.0
        %5568 = vmatmul.mubr.f32.gmra.mrb[0].mxu0 %v5041
        %v5569 = vpop.f32.mrb[0].mxu0
        %v5570 = vadd.f32 %v5425, %v5569
        %v5571 = vpop.f32.mrb[0].mxu0
        %5572 = vdwg.mxu0
        %v5573 = vmax.f32 %v5495, 0.0
        %v5574 = vmax.f32 %v5500, 0.0
        %v5575 = vmax.f32 %v5505, 0.0
        %v5576 = vmax.f32 %v5510, 0.0
        %v5577 = vmax.f32 %v5515, 0.0
        %v5578 = vmax.f32 %v5520, 0.0
        %v5579 = vmax.f32 %v5525, 0.0
        %v5580 = vmax.f32 %v5530, 0.0
        %v5581 = vmax.f32 %v5535, 0.0
        %v5582 = vmax.f32 %v5540, 0.0
        %v5583 = vmax.f32 %v5545, 0.0
        %v5584 = vmax.f32 %v5550, 0.0
        %v5585 = vmax.f32 %v5555, 0.0
        %v5586 = vmax.f32 %v5560, 0.0
        %v5587 = vmax.f32 %v5565, 0.0
        %v5588 = vmax.f32 %v5570, 0.0
        %v5589 = vld [vmem:[%s18] sm:$0xff]
        %v5590 = vld [vmem:[%s18 + $0x8] sm:$0xff]
        %v5591 = vld [vmem:[%s18 + $0x10] sm:$0xff]
        %v5592 = vld [vmem:[%s18 + $0x18] sm:$0xff]
        %v5593 = vld [vmem:[%s18 + $0x20] sm:$0xff]
        %v5594 = vld [vmem:[%s18 + $0x28] sm:$0xff]
        %v5595 = vld [vmem:[%s18 + $0x30] sm:$0xff]
        %v5596 = vld [vmem:[%s18 + $0x38] sm:$0xff]
        %v5597 = vld [vmem:[%s18 + $0x40] sm:$0xff]
        %v5598 = vld [vmem:[%s18 + $0x48] sm:$0xff]
        %v5599 = vld [vmem:[%s18 + $0x50] sm:$0xff]
        %v5600 = vld [vmem:[%s18 + $0x58] sm:$0xff]
        %v5601 = vld [vmem:[%s18 + $0x60] sm:$0xff]
        %v5602 = vld [vmem:[%s18 + $0x68] sm:$0xff]
        %v5603 = vld [vmem:[%s18 + $0x70] sm:$0xff]
        %v5604 = vld [vmem:[%s18 + $0x78] sm:$0xff]
        %5605 = vmatprep.subr.mxu0 0.0
        %5606 = vmatpush1.msra.mxu0 %v5589
        %5607 = vmatprep.subr.mxu0 0.0
        %5608 = vmatpush1.msra.mxu0 %v5590
        %5609 = vmatprep.subr.mxu0 0.0
        %5610 = vmatpush1.msra.mxu0 %v5591
        %5611 = vmatprep.subr.mxu0 0.0
        %5612 = vmatpush1.msra.mxu0 %v5592
        %5613 = vmatprep.subr.mxu0 0.0
        %5614 = vmatpush1.msra.mxu0 %v5593
        %5615 = vmatprep.subr.mxu0 0.0
        %5616 = vmatpush1.msra.mxu0 %v5594
        %5617 = vmatprep.subr.mxu0 0.0
        %5618 = vmatpush1.msra.mxu0 %v5595
        %5619 = vmatprep.subr.mxu0 0.0
        %5620 = vmatpush1.msra.mxu0 %v5596
        %5621 = vmatprep.subr.mxu0 0.0
        %5622 = vmatpush1.msra.mxu0 %v5597
        %5623 = vmatprep.subr.mxu0 0.0
        %5624 = vmatpush1.msra.mxu0 %v5598
        %5625 = vmatprep.subr.mxu0 0.0
        %5626 = vmatpush1.msra.mxu0 %v5599
        %5627 = vmatprep.subr.mxu0 0.0
        %5628 = vmatpush1.msra.mxu0 %v5600
        %5629 = vmatprep.subr.mxu0 0.0
        %5630 = vmatpush1.msra.mxu0 %v5601
        %5631 = vmatprep.subr.mxu0 0.0
        %5632 = vmatpush1.msra.mxu0 %v5602
        %5633 = vmatprep.subr.mxu0 0.0
        %5634 = vmatpush1.msra.mxu0 %v5603
        %5635 = vmatprep.subr.mxu0 0.0
        %5636 = vmatpush1.msra.mxu0 %v5604
        %5637 = vmatprep.subr.mxu0 0.0
        %5638 = vmatpush1.msra.mxu0 0.0
        %5639 = vmatprep.subr.mxu0 0.0
        %5640 = vmatpush1.msra.mxu0 0.0
        %5641 = vmatprep.subr.mxu0 0.0
        %5642 = vmatpush1.msra.mxu0 0.0
        %5643 = vmatprep.subr.mxu0 0.0
        %5644 = vmatpush1.msra.mxu0 0.0
        %5645 = vmatprep.subr.mxu0 0.0
        %5646 = vmatpush1.msra.mxu0 0.0
        %5647 = vmatprep.subr.mxu0 0.0
        %5648 = vmatpush1.msra.mxu0 0.0
        %5649 = vmatprep.subr.mxu0 0.0
        %5650 = vmatpush1.msra.mxu0 0.0
        %5651 = vmatprep.subr.mxu0 0.0
        %5652 = vmatpush1.msra.mxu0 0.0
        %5653 = vmatprep.subr.mxu0 0.0
        %5654 = vmatpush1.msra.mxu0 0.0
        %5655 = vmatprep.subr.mxu0 0.0
        %5656 = vmatpush1.msra.mxu0 0.0
        %5657 = vmatprep.subr.mxu0 0.0
        %5658 = vmatpush1.msra.mxu0 0.0
        %5659 = vmatprep.subr.mxu0 0.0
        %5660 = vmatpush1.msra.mxu0 0.0
        %5661 = vmatprep.subr.mxu0 0.0
        %5662 = vmatpush1.msra.mxu0 0.0
        %5663 = vmatprep.subr.mxu0 0.0
        %5664 = vmatpush1.msra.mxu0 0.0
        %5665 = vmatprep.subr.mxu0 0.0
        %5666 = vmatpush1.msra.mxu0 0.0
        %5667 = vmatprep.subr.mxu0 0.0
        %5668 = vmatpush1.msra.mxu0 0.0
        %5669 = vmatprep.mubr.f32.mxu0 0.0
        %5670 = vmatmul.mubr.f32.gmra.mrb[0].mxu0 %v5573
        %v5671 = vpop.f32.mrb[0].mxu0
        %v5672 = vadd.f32 0.0, %v5671
        %v5673 = vpop.f32.mrb[0].mxu0
        %5674 = vmatprep.mubr.f32.mxu0 0.0
        %5675 = vmatmul.mubr.f32.gmra.mrb[0].mxu0 %v5574
        %v5676 = vpop.f32.mrb[0].mxu0
        %v5677 = vadd.f32 0.0, %v5676
        %v5678 = vpop.f32.mrb[0].mxu0
        %5679 = vmatprep.mubr.f32.mxu0 0.0
        %5680 = vmatmul.mubr.f32.gmra.mrb[0].mxu0 %v5575
        %v5681 = vpop.f32.mrb[0].mxu0
        %v5682 = vadd.f32 0.0, %v5681
        %v5683 = vpop.f32.mrb[0].mxu0
        %5684 = vmatprep.mubr.f32.mxu0 0.0
        %5685 = vmatmul.mubr.f32.gmra.mrb[0].mxu0 %v5576
        %v5686 = vpop.f32.mrb[0].mxu0
        %v5687 = vadd.f32 0.0, %v5686
        %v5688 = vpop.f32.mrb[0].mxu0
        %5689 = vmatprep.mubr.f32.mxu0 0.0
        %5690 = vmatmul.mubr.f32.gmra.mrb[0].mxu0 %v5577
        %v5691 = vpop.f32.mrb[0].mxu0
        %v5692 = vadd.f32 0.0, %v5691
        %v5693 = vpop.f32.mrb[0].mxu0
        %5694 = vmatprep.mubr.f32.mxu0 0.0
        %5695 = vmatmul.mubr.f32.gmra.mrb[0].mxu0 %v5578
        %v5696 = vpop.f32.mrb[0].mxu0
        %v5697 = vadd.f32 0.0, %v5696
        %v5698 = vpop.f32.mrb[0].mxu0
        %5699 = vmatprep.mubr.f32.mxu0 0.0
        %5700 = vmatmul.mubr.f32.gmra.mrb[0].mxu0 %v5579
        %v5701 = vpop.f32.mrb[0].mxu0
        %v5702 = vadd.f32 0.0, %v5701
        %v5703 = vpop.f32.mrb[0].mxu0
        %5704 = vmatprep.mubr.f32.mxu0 0.0
        %5705 = vmatmul.mubr.f32.gmra.mrb[0].mxu0 %v5580
        %v5706 = vpop.f32.mrb[0].mxu0
        %v5707 = vadd.f32 0.0, %v5706
        %v5708 = vpop.f32.mrb[0].mxu0
        %5709 = vmatprep.mubr.f32.mxu0 0.0
        %5710 = vmatmul.mubr.f32.gmra.mrb[0].mxu0 %v5581
        %v5711 = vpop.f32.mrb[0].mxu0
        %v5712 = vadd.f32 0.0, %v5711
        %v5713 = vpop.f32.mrb[0].mxu0
        %5714 = vmatprep.mubr.f32.mxu0 0.0
        %5715 = vmatmul.mubr.f32.gmra.mrb[0].mxu0 %v5582
        %v5716 = vpop.f32.mrb[0].mxu0
        %v5717 = vadd.f32 0.0, %v5716
        %v5718 = vpop.f32.mrb[0].mxu0
        %5719 = vmatprep.mubr.f32.mxu0 0.0
        %5720 = vmatmul.mubr.f32.gmra.mrb[0].mxu0 %v5583
        %v5721 = vpop.f32.mrb[0].mxu0
        %v5722 = vadd.f32 0.0, %v5721
        %v5723 = vpop.f32.mrb[0].mxu0
        %5724 = vmatprep.mubr.f32.mxu0 0.0
        %5725 = vmatmul.mubr.f32.gmra.mrb[0].mxu0 %v5584
        %v5726 = vpop.f32.mrb[0].mxu0
        %v5727 = vadd.f32 0.0, %v5726
        %v5728 = vpop.f32.mrb[0].mxu0
        %5729 = vmatprep.mubr.f32.mxu0 0.0
        %5730 = vmatmul.mubr.f32.gmra.mrb[0].mxu0 %v5585
        %v5731 = vpop.f32.mrb[0].mxu0
        %v5732 = vadd.f32 0.0, %v5731
        %v5733 = vpop.f32.mrb[0].mxu0
        %5734 = vmatprep.mubr.f32.mxu0 0.0
        %5735 = vmatmul.mubr.f32.gmra.mrb[0].mxu0 %v5586
        %v5736 = vpop.f32.mrb[0].mxu0
        %v5737 = vadd.f32 0.0, %v5736
        %v5738 = vpop.f32.mrb[0].mxu0
        %5739 = vmatprep.mubr.f32.mxu0 0.0
        %5740 = vmatmul.mubr.f32.gmra.mrb[0].mxu0 %v5587
        %v5741 = vpop.f32.mrb[0].mxu0
        %v5742 = vadd.f32 0.0, %v5741
        %v5743 = vpop.f32.mrb[0].mxu0
        %5744 = vmatprep.mubr.f32.mxu0 0.0
        %5745 = vmatmul.mubr.f32.gmra.mrb[0].mxu0 %v5588
        %v5746 = vpop.f32.mrb[0].mxu0
        %v5747 = vadd.f32 0.0, %v5746
        %v5748 = vpop.f32.mrb[0].mxu0
        %5749 = vdwg.mxu0
        %s5750 = scalar_lea.vmem %s18, 128
        %v5751 = vld [vmem:[%s5750] sm:$0xff]
        %v5752 = vld [vmem:[%s5750 + $0x8] sm:$0xff]
        %v5753 = vld [vmem:[%s5750 + $0x10] sm:$0xff]
        %v5754 = vld [vmem:[%s5750 + $0x18] sm:$0xff]
        %v5755 = vld [vmem:[%s5750 + $0x20] sm:$0xff]
        %v5756 = vld [vmem:[%s5750 + $0x28] sm:$0xff]
        %v5757 = vld [vmem:[%s5750 + $0x30] sm:$0xff]
        %v5758 = vld [vmem:[%s5750 + $0x38] sm:$0xff]
        %v5759 = vld [vmem:[%s5750 + $0x40] sm:$0xff]
        %v5760 = vld [vmem:[%s5750 + $0x48] sm:$0xff]
        %v5761 = vld [vmem:[%s5750 + $0x50] sm:$0xff]
        %v5762 = vld [vmem:[%s5750 + $0x58] sm:$0xff]
        %v5763 = vld [vmem:[%s5750 + $0x60] sm:$0xff]
        %v5764 = vld [vmem:[%s5750 + $0x68] sm:$0xff]
        %v5765 = vld [vmem:[%s5750 + $0x70] sm:$0xff]
        %v5766 = vld [vmem:[%s5750 + $0x78] sm:$0xff]
        %5767 = vmatprep.subr.mxu0 0.0
        %5768 = vmatpush1.msra.mxu0 %v5751
        %5769 = vmatprep.subr.mxu0 0.0
        %5770 = vmatpush1.msra.mxu0 %v5752
        %5771 = vmatprep.subr.mxu0 0.0
        %5772 = vmatpush1.msra.mxu0 %v5753
        %5773 = vmatprep.subr.mxu0 0.0
        %5774 = vmatpush1.msra.mxu0 %v5754
        %5775 = vmatprep.subr.mxu0 0.0
        %5776 = vmatpush1.msra.mxu0 %v5755
        %5777 = vmatprep.subr.mxu0 0.0
        %5778 = vmatpush1.msra.mxu0 %v5756
        %5779 = vmatprep.subr.mxu0 0.0
        %5780 = vmatpush1.msra.mxu0 %v5757
        %5781 = vmatprep.subr.mxu0 0.0
        %5782 = vmatpush1.msra.mxu0 %v5758
        %5783 = vmatprep.subr.mxu0 0.0
        %5784 = vmatpush1.msra.mxu0 %v5759
        %5785 = vmatprep.subr.mxu0 0.0
        %5786 = vmatpush1.msra.mxu0 %v5760
        %5787 = vmatprep.subr.mxu0 0.0
        %5788 = vmatpush1.msra.mxu0 %v5761
        %5789 = vmatprep.subr.mxu0 0.0
        %5790 = vmatpush1.msra.mxu0 %v5762
        %5791 = vmatprep.subr.mxu0 0.0
        %5792 = vmatpush1.msra.mxu0 %v5763
        %5793 = vmatprep.subr.mxu0 0.0
        %5794 = vmatpush1.msra.mxu0 %v5764
        %5795 = vmatprep.subr.mxu0 0.0
        %5796 = vmatpush1.msra.mxu0 %v5765
        %5797 = vmatprep.subr.mxu0 0.0
        %5798 = vmatpush1.msra.mxu0 %v5766
        %5799 = vmatprep.subr.mxu0 0.0
        %5800 = vmatpush1.msra.mxu0 0.0
        %5801 = vmatprep.subr.mxu0 0.0
        %5802 = vmatpush1.msra.mxu0 0.0
        %5803 = vmatprep.subr.mxu0 0.0
        %5804 = vmatpush1.msra.mxu0 0.0
        %5805 = vmatprep.subr.mxu0 0.0
        %5806 = vmatpush1.msra.mxu0 0.0
        %5807 = vmatprep.subr.mxu0 0.0
        %5808 = vmatpush1.msra.mxu0 0.0
        %5809 = vmatprep.subr.mxu0 0.0
        %5810 = vmatpush1.msra.mxu0 0.0
        %5811 = vmatprep.subr.mxu0 0.0
        %5812 = vmatpush1.msra.mxu0 0.0
        %5813 = vmatprep.subr.mxu0 0.0
        %5814 = vmatpush1.msra.mxu0 0.0
        %5815 = vmatprep.subr.mxu0 0.0
        %5816 = vmatpush1.msra.mxu0 0.0
        %5817 = vmatprep.subr.mxu0 0.0
        %5818 = vmatpush1.msra.mxu0 0.0
        %5819 = vmatprep.subr.mxu0 0.0
        %5820 = vmatpush1.msra.mxu0 0.0
        %5821 = vmatprep.subr.mxu0 0.0
        %5822 = vmatpush1.msra.mxu0 0.0
        %5823 = vmatprep.subr.mxu0 0.0
        %5824 = vmatpush1.msra.mxu0 0.0
        %5825 = vmatprep.subr.mxu0 0.0
        %5826 = vmatpush1.msra.mxu0 0.0
        %5827 = vmatprep.subr.mxu0 0.0
        %5828 = vmatpush1.msra.mxu0 0.0
        %5829 = vmatprep.subr.mxu0 0.0
        %5830 = vmatpush1.msra.mxu0 0.0
        %5831 = vmatprep.mubr.f32.mxu0 0.0
        %5832 = vmatmul.mubr.f32.gmra.mrb[0].mxu0 %v5573
        %v5833 = vpop.f32.mrb[0].mxu0
        %v5834 = vadd.f32 0.0, %v5833
        %v5835 = vpop.f32.mrb[0].mxu0
        %5836 = vmatprep.mubr.f32.mxu0 0.0
        %5837 = vmatmul.mubr.f32.gmra.mrb[0].mxu0 %v5574
        %v5838 = vpop.f32.mrb[0].mxu0
        %v5839 = vadd.f32 0.0, %v5838
        %v5840 = vpop.f32.mrb[0].mxu0
        %5841 = vmatprep.mubr.f32.mxu0 0.0
        %5842 = vmatmul.mubr.f32.gmra.mrb[0].mxu0 %v5575
        %v5843 = vpop.f32.mrb[0].mxu0
        %v5844 = vadd.f32 0.0, %v5843
        %v5845 = vpop.f32.mrb[0].mxu0
        %5846 = vmatprep.mubr.f32.mxu0 0.0
        %5847 = vmatmul.mubr.f32.gmra.mrb[0].mxu0 %v5576
        %v5848 = vpop.f32.mrb[0].mxu0
        %v5849 = vadd.f32 0.0, %v5848
        %v5850 = vpop.f32.mrb[0].mxu0
        %5851 = vmatprep.mubr.f32.mxu0 0.0
        %5852 = vmatmul.mubr.f32.gmra.mrb[0].mxu0 %v5577
        %v5853 = vpop.f32.mrb[0].mxu0
        %v5854 = vadd.f32 0.0, %v5853
        %v5855 = vpop.f32.mrb[0].mxu0
        %5856 = vmatprep.mubr.f32.mxu0 0.0
        %5857 = vmatmul.mubr.f32.gmra.mrb[0].mxu0 %v5578
        %v5858 = vpop.f32.mrb[0].mxu0
        %v5859 = vadd.f32 0.0, %v5858
        %v5860 = vpop.f32.mrb[0].mxu0
        %5861 = vmatprep.mubr.f32.mxu0 0.0
        %5862 = vmatmul.mubr.f32.gmra.mrb[0].mxu0 %v5579
        %v5863 = vpop.f32.mrb[0].mxu0
        %v5864 = vadd.f32 0.0, %v5863
        %v5865 = vpop.f32.mrb[0].mxu0
        %5866 = vmatprep.mubr.f32.mxu0 0.0
        %5867 = vmatmul.mubr.f32.gmra.mrb[0].mxu0 %v5580
        %v5868 = vpop.f32.mrb[0].mxu0
        %v5869 = vadd.f32 0.0, %v5868
        %v5870 = vpop.f32.mrb[0].mxu0
        %5871 = vmatprep.mubr.f32.mxu0 0.0
        %5872 = vmatmul.mubr.f32.gmra.mrb[0].mxu0 %v5581
        %v5873 = vpop.f32.mrb[0].mxu0
        %v5874 = vadd.f32 0.0, %v5873
        %v5875 = vpop.f32.mrb[0].mxu0
        %5876 = vmatprep.mubr.f32.mxu0 0.0
        %5877 = vmatmul.mubr.f32.gmra.mrb[0].mxu0 %v5582
        %v5878 = vpop.f32.mrb[0].mxu0
        %v5879 = vadd.f32 0.0, %v5878
        %v5880 = vpop.f32.mrb[0].mxu0
        %5881 = vmatprep.mubr.f32.mxu0 0.0
        %5882 = vmatmul.mubr.f32.gmra.mrb[0].mxu0 %v5583
        %v5883 = vpop.f32.mrb[0].mxu0
        %v5884 = vadd.f32 0.0, %v5883
        %v5885 = vpop.f32.mrb[0].mxu0
        %5886 = vmatprep.mubr.f32.mxu0 0.0
        %5887 = vmatmul.mubr.f32.gmra.mrb[0].mxu0 %v5584
        %v5888 = vpop.f32.mrb[0].mxu0
        %v5889 = vadd.f32 0.0, %v5888
        %v5890 = vpop.f32.mrb[0].mxu0
        %5891 = vmatprep.mubr.f32.mxu0 0.0
        %5892 = vmatmul.mubr.f32.gmra.mrb[0].mxu0 %v5585
        %v5893 = vpop.f32.mrb[0].mxu0
        %v5894 = vadd.f32 0.0, %v5893
        %v5895 = vpop.f32.mrb[0].mxu0
        %5896 = vmatprep.mubr.f32.mxu0 0.0
        %5897 = vmatmul.mubr.f32.gmra.mrb[0].mxu0 %v5586
        %v5898 = vpop.f32.mrb[0].mxu0
        %v5899 = vadd.f32 0.0, %v5898
        %v5900 = vpop.f32.mrb[0].mxu0
        %5901 = vmatprep.mubr.f32.mxu0 0.0
        %5902 = vmatmul.mubr.f32.gmra.mrb[0].mxu0 %v5587
        %v5903 = vpop.f32.mrb[0].mxu0
        %v5904 = vadd.f32 0.0, %v5903
        %v5905 = vpop.f32.mrb[0].mxu0
        %5906 = vmatprep.mubr.f32.mxu0 0.0
        %5907 = vmatmul.mubr.f32.gmra.mrb[0].mxu0 %v5588
        %v5908 = vpop.f32.mrb[0].mxu0
        %v5909 = vadd.f32 0.0, %v5908
        %v5910 = vpop.f32.mrb[0].mxu0
        %5911 = vdwg.mxu0
        %s5912 = scalar_lea.vmem %s18, 256
        %v5913 = vld [vmem:[%s5912] sm:$0xff]
        %v5914 = vld [vmem:[%s5912 + $0x8] sm:$0xff]
        %v5915 = vld [vmem:[%s5912 + $0x10] sm:$0xff]
        %v5916 = vld [vmem:[%s5912 + $0x18] sm:$0xff]
        %v5917 = vld [vmem:[%s5912 + $0x20] sm:$0xff]
        %v5918 = vld [vmem:[%s5912 + $0x28] sm:$0xff]
        %v5919 = vld [vmem:[%s5912 + $0x30] sm:$0xff]
        %v5920 = vld [vmem:[%s5912 + $0x38] sm:$0xff]
        %v5921 = vld [vmem:[%s5912 + $0x40] sm:$0xff]
        %v5922 = vld [vmem:[%s5912 + $0x48] sm:$0xff]
        %v5923 = vld [vmem:[%s5912 + $0x50] sm:$0xff]
        %v5924 = vld [vmem:[%s5912 + $0x58] sm:$0xff]
        %v5925 = vld [vmem:[%s5912 + $0x60] sm:$0xff]
        %v5926 = vld [vmem:[%s5912 + $0x68] sm:$0xff]
        %v5927 = vld [vmem:[%s5912 + $0x70] sm:$0xff]
        %v5928 = vld [vmem:[%s5912 + $0x78] sm:$0xff]
        %5929 = vmatprep.subr.mxu0 0.0
        %5930 = vmatpush1.msra.mxu0 %v5913
        %5931 = vmatprep.subr.mxu0 0.0
        %5932 = vmatpush1.msra.mxu0 %v5914
        %5933 = vmatprep.subr.mxu0 0.0
        %5934 = vmatpush1.msra.mxu0 %v5915
        %5935 = vmatprep.subr.mxu0 0.0
        %5936 = vmatpush1.msra.mxu0 %v5916
        %5937 = vmatprep.subr.mxu0 0.0
        %5938 = vmatpush1.msra.mxu0 %v5917
        %5939 = vmatprep.subr.mxu0 0.0
        %5940 = vmatpush1.msra.mxu0 %v5918
        %5941 = vmatprep.subr.mxu0 0.0
        %5942 = vmatpush1.msra.mxu0 %v5919
        %5943 = vmatprep.subr.mxu0 0.0
        %5944 = vmatpush1.msra.mxu0 %v5920
        %5945 = vmatprep.subr.mxu0 0.0
        %5946 = vmatpush1.msra.mxu0 %v5921
        %5947 = vmatprep.subr.mxu0 0.0
        %5948 = vmatpush1.msra.mxu0 %v5922
        %5949 = vmatprep.subr.mxu0 0.0
        %5950 = vmatpush1.msra.mxu0 %v5923
        %5951 = vmatprep.subr.mxu0 0.0
        %5952 = vmatpush1.msra.mxu0 %v5924
        %5953 = vmatprep.subr.mxu0 0.0
        %5954 = vmatpush1.msra.mxu0 %v5925
        %5955 = vmatprep.subr.mxu0 0.0
        %5956 = vmatpush1.msra.mxu0 %v5926
        %5957 = vmatprep.subr.mxu0 0.0
        %5958 = vmatpush1.msra.mxu0 %v5927
        %5959 = vmatprep.subr.mxu0 0.0
        %5960 = vmatpush1.msra.mxu0 %v5928
        %5961 = vmatprep.subr.mxu0 0.0
        %5962 = vmatpush1.msra.mxu0 0.0
        %5963 = vmatprep.subr.mxu0 0.0
        %5964 = vmatpush1.msra.mxu0 0.0
        %5965 = vmatprep.subr.mxu0 0.0
        %5966 = vmatpush1.msra.mxu0 0.0
        %5967 = vmatprep.subr.mxu0 0.0
        %5968 = vmatpush1.msra.mxu0 0.0
        %5969 = vmatprep.subr.mxu0 0.0
        %5970 = vmatpush1.msra.mxu0 0.0
        %5971 = vmatprep.subr.mxu0 0.0
        %5972 = vmatpush1.msra.mxu0 0.0
        %5973 = vmatprep.subr.mxu0 0.0
        %5974 = vmatpush1.msra.mxu0 0.0
        %5975 = vmatprep.subr.mxu0 0.0
        %5976 = vmatpush1.msra.mxu0 0.0
        %5977 = vmatprep.subr.mxu0 0.0
        %5978 = vmatpush1.msra.mxu0 0.0
        %5979 = vmatprep.subr.mxu0 0.0
        %5980 = vmatpush1.msra.mxu0 0.0
        %5981 = vmatprep.subr.mxu0 0.0
        %5982 = vmatpush1.msra.mxu0 0.0
        %5983 = vmatprep.subr.mxu0 0.0
        %5984 = vmatpush1.msra.mxu0 0.0
        %5985 = vmatprep.subr.mxu0 0.0
        %5986 = vmatpush1.msra.mxu0 0.0
        %5987 = vmatprep.subr.mxu0 0.0
        %5988 = vmatpush1.msra.mxu0 0.0
        %5989 = vmatprep.subr.mxu0 0.0
        %5990 = vmatpush1.msra.mxu0 0.0
        %5991 = vmatprep.subr.mxu0 0.0
        %5992 = vmatpush1.msra.mxu0 0.0
        %5993 = vmatprep.mubr.f32.mxu0 0.0
        %5994 = vmatmul.mubr.f32.gmra.mrb[0].mxu0 %v5573
        %v5995 = vpop.f32.mrb[0].mxu0
        %v5996 = vadd.f32 0.0, %v5995
        %v5997 = vpop.f32.mrb[0].mxu0
        %5998 = vmatprep.mubr.f32.mxu0 0.0
        %5999 = vmatmul.mubr.f32.gmra.mrb[0].mxu0 %v5574
        %v6000 = vpop.f32.mrb[0].mxu0
        %v6001 = vadd.f32 0.0, %v6000
        %v6002 = vpop.f32.mrb[0].mxu0
        %6003 = vmatprep.mubr.f32.mxu0 0.0
        %6004 = vmatmul.mubr.f32.gmra.mrb[0].mxu0 %v5575
        %v6005 = vpop.f32.mrb[0].mxu0
        %v6006 = vadd.f32 0.0, %v6005
        %v6007 = vpop.f32.mrb[0].mxu0
        %6008 = vmatprep.mubr.f32.mxu0 0.0
        %6009 = vmatmul.mubr.f32.gmra.mrb[0].mxu0 %v5576
        %v6010 = vpop.f32.mrb[0].mxu0
        %v6011 = vadd.f32 0.0, %v6010
        %v6012 = vpop.f32.mrb[0].mxu0
        %6013 = vmatprep.mubr.f32.mxu0 0.0
        %6014 = vmatmul.mubr.f32.gmra.mrb[0].mxu0 %v5577
        %v6015 = vpop.f32.mrb[0].mxu0
        %v6016 = vadd.f32 0.0, %v6015
        %v6017 = vpop.f32.mrb[0].mxu0
        %6018 = vmatprep.mubr.f32.mxu0 0.0
        %6019 = vmatmul.mubr.f32.gmra.mrb[0].mxu0 %v5578
        %v6020 = vpop.f32.mrb[0].mxu0
        %v6021 = vadd.f32 0.0, %v6020
        %v6022 = vpop.f32.mrb[0].mxu0
        %6023 = vmatprep.mubr.f32.mxu0 0.0
        %6024 = vmatmul.mubr.f32.gmra.mrb[0].mxu0 %v5579
        %v6025 = vpop.f32.mrb[0].mxu0
        %v6026 = vadd.f32 0.0, %v6025
        %v6027 = vpop.f32.mrb[0].mxu0
        %6028 = vmatprep.mubr.f32.mxu0 0.0
        %6029 = vmatmul.mubr.f32.gmra.mrb[0].mxu0 %v5580
        %v6030 = vpop.f32.mrb[0].mxu0
        %v6031 = vadd.f32 0.0, %v6030
        %v6032 = vpop.f32.mrb[0].mxu0
        %6033 = vmatprep.mubr.f32.mxu0 0.0
        %6034 = vmatmul.mubr.f32.gmra.mrb[0].mxu0 %v5581
        %v6035 = vpop.f32.mrb[0].mxu0
        %v6036 = vadd.f32 0.0, %v6035
        %v6037 = vpop.f32.mrb[0].mxu0
        %6038 = vmatprep.mubr.f32.mxu0 0.0
        %6039 = vmatmul.mubr.f32.gmra.mrb[0].mxu0 %v5582
        %v6040 = vpop.f32.mrb[0].mxu0
        %v6041 = vadd.f32 0.0, %v6040
        %v6042 = vpop.f32.mrb[0].mxu0
        %6043 = vmatprep.mubr.f32.mxu0 0.0
        %6044 = vmatmul.mubr.f32.gmra.mrb[0].mxu0 %v5583
        %v6045 = vpop.f32.mrb[0].mxu0
        %v6046 = vadd.f32 0.0, %v6045
        %v6047 = vpop.f32.mrb[0].mxu0
        %6048 = vmatprep.mubr.f32.mxu0 0.0
        %6049 = vmatmul.mubr.f32.gmra.mrb[0].mxu0 %v5584
        %v6050 = vpop.f32.mrb[0].mxu0
        %v6051 = vadd.f32 0.0, %v6050
        %v6052 = vpop.f32.mrb[0].mxu0
        %6053 = vmatprep.mubr.f32.mxu0 0.0
        %6054 = vmatmul.mubr.f32.gmra.mrb[0].mxu0 %v5585
        %v6055 = vpop.f32.mrb[0].mxu0
        %v6056 = vadd.f32 0.0, %v6055
        %v6057 = vpop.f32.mrb[0].mxu0
        %6058 = vmatprep.mubr.f32.mxu0 0.0
        %6059 = vmatmul.mubr.f32.gmra.mrb[0].mxu0 %v5586
        %v6060 = vpop.f32.mrb[0].mxu0
        %v6061 = vadd.f32 0.0, %v6060
        %v6062 = vpop.f32.mrb[0].mxu0
        %6063 = vmatprep.mubr.f32.mxu0 0.0
        %6064 = vmatmul.mubr.f32.gmra.mrb[0].mxu0 %v5587
        %v6065 = vpop.f32.mrb[0].mxu0
        %v6066 = vadd.f32 0.0, %v6065
        %v6067 = vpop.f32.mrb[0].mxu0
        %6068 = vmatprep.mubr.f32.mxu0 0.0
        %6069 = vmatmul.mubr.f32.gmra.mrb[0].mxu0 %v5588
        %v6070 = vpop.f32.mrb[0].mxu0
        %v6071 = vadd.f32 0.0, %v6070
        %v6072 = vpop.f32.mrb[0].mxu0
        %6073 = vdwg.mxu0
        %v6074 = vld [vmem:[%s16] sm:$0xff]
        %v6075 = vld [vmem:[%s16 + $0x8] sm:$0xff]
        %v6076 = vld [vmem:[%s16 + $0x10] sm:$0xff]
        %v6077 = vld [vmem:[%s17] sm:$0xff]
        %6079 = vset.pattern.permute.xlu0 0
        %6080 = vperm.xlu0 %6079, %v6077
        %v6081 = vpop.permute.xlu0 %6080
        %6083 = vmatprep.subr.mxu0 0.0
        %6084 = vmatpush1.msra.mxu0 %v5672
        %6085 = vmatprep.subr.mxu0 0.0
        %6086 = vmatpush1.msra.mxu0 %v5677
        %6087 = vmatprep.subr.mxu0 0.0
        %6088 = vmatpush1.msra.mxu0 %v5682
        %6089 = vmatprep.subr.mxu0 0.0
        %6090 = vmatpush1.msra.mxu0 %v5687
        %6091 = vmatprep.subr.mxu0 0.0
        %6092 = vmatpush1.msra.mxu0 %v5692
        %6093 = vmatprep.subr.mxu0 0.0
        %6094 = vmatpush1.msra.mxu0 %v5697
        %6095 = vmatprep.subr.mxu0 0.0
        %6096 = vmatpush1.msra.mxu0 %v5702
        %6097 = vmatprep.subr.mxu0 0.0
        %6098 = vmatpush1.msra.mxu0 %v5707
        %6099 = vmatprep.subr.mxu0 0.0
        %6100 = vmatpush1.msra.mxu0 %v5712
        %6101 = vmatprep.subr.mxu0 0.0
        %6102 = vmatpush1.msra.mxu0 %v5717
        %6103 = vmatprep.subr.mxu0 0.0
        %6104 = vmatpush1.msra.mxu0 %v5722
        %6105 = vmatprep.subr.mxu0 0.0
        %6106 = vmatpush1.msra.mxu0 %v5727
        %6107 = vmatprep.subr.mxu0 0.0
        %6108 = vmatpush1.msra.mxu0 %v5732
        %6109 = vmatprep.subr.mxu0 0.0
        %6110 = vmatpush1.msra.mxu0 %v5737
        %6111 = vmatprep.subr.mxu0 0.0
        %6112 = vmatpush1.msra.mxu0 %v5742
        %6113 = vmatprep.subr.mxu0 0.0
        %6114 = vmatpush1.msra.mxu0 %v5747
        %6115 = vmatprep.subr.mxu0 0.0
        %6116 = vmatpush1.msra.mxu0 %v5834
        %6117 = vmatprep.subr.mxu0 0.0
        %6118 = vmatpush1.msra.mxu0 %v5839
        %6119 = vmatprep.subr.mxu0 0.0
        %6120 = vmatpush1.msra.mxu0 %v5844
        %6121 = vmatprep.subr.mxu0 0.0
        %6122 = vmatpush1.msra.mxu0 %v5849
        %6123 = vmatprep.subr.mxu0 0.0
        %6124 = vmatpush1.msra.mxu0 %v5854
        %6125 = vmatprep.subr.mxu0 0.0
        %6126 = vmatpush1.msra.mxu0 %v5859
        %6127 = vmatprep.subr.mxu0 0.0
        %6128 = vmatpush1.msra.mxu0 %v5864
        %6129 = vmatprep.subr.mxu0 0.0
        %6130 = vmatpush1.msra.mxu0 %v5869
        %6131 = vmatprep.subr.mxu0 0.0
        %6132 = vmatpush1.msra.mxu0 %v5874
        %6133 = vmatprep.subr.mxu0 0.0
        %6134 = vmatpush1.msra.mxu0 %v5879
        %6135 = vmatprep.subr.mxu0 0.0
        %6136 = vmatpush1.msra.mxu0 %v5884
        %6137 = vmatprep.subr.mxu0 0.0
        %6138 = vmatpush1.msra.mxu0 %v5889
        %6139 = vmatprep.subr.mxu0 0.0
        %6140 = vmatpush1.msra.mxu0 %v5894
        %6141 = vmatprep.subr.mxu0 0.0
        %6142 = vmatpush1.msra.mxu0 %v5899
        %6143 = vmatprep.subr.mxu0 0.0
        %6144 = vmatpush1.msra.mxu0 %v5904
        %6145 = vmatprep.subr.mxu0 0.0
        %6146 = vmatpush1.msra.mxu0 %v5909
        %6147 = vmatprep.mubr.f32.mxu0 %v6075
        %6148 = vmatmul.mubr.f32.gmra.mrb[0].mxu0 %v6074
        %v6149 = vpop.f32.mrb[0].mxu0
        %v6150 = vadd.f32 %v6081, %v6149
        %v6151 = vpop.f32.mrb[0].mxu0
        %6152 = vdwg.mxu0
        %6153 = vmatprep.subr.mxu0 0.0
        %6154 = vmatpush1.msra.mxu0 %v5996
        %6155 = vmatprep.subr.mxu0 0.0
        %6156 = vmatpush1.msra.mxu0 %v6001
        %6157 = vmatprep.subr.mxu0 0.0
        %6158 = vmatpush1.msra.mxu0 %v6006
        %6159 = vmatprep.subr.mxu0 0.0
        %6160 = vmatpush1.msra.mxu0 %v6011
        %6161 = vmatprep.subr.mxu0 0.0
        %6162 = vmatpush1.msra.mxu0 %v6016
        %6163 = vmatprep.subr.mxu0 0.0
        %6164 = vmatpush1.msra.mxu0 %v6021
        %6165 = vmatprep.subr.mxu0 0.0
        %6166 = vmatpush1.msra.mxu0 %v6026
        %6167 = vmatprep.subr.mxu0 0.0
        %6168 = vmatpush1.msra.mxu0 %v6031
        %6169 = vmatprep.subr.mxu0 0.0
        %6170 = vmatpush1.msra.mxu0 %v6036
        %6171 = vmatprep.subr.mxu0 0.0
        %6172 = vmatpush1.msra.mxu0 %v6041
        %6173 = vmatprep.subr.mxu0 0.0
        %6174 = vmatpush1.msra.mxu0 %v6046
        %6175 = vmatprep.subr.mxu0 0.0
        %6176 = vmatpush1.msra.mxu0 %v6051
        %6177 = vmatprep.subr.mxu0 0.0
        %6178 = vmatpush1.msra.mxu0 %v6056
        %6179 = vmatprep.subr.mxu0 0.0
        %6180 = vmatpush1.msra.mxu0 %v6061
        %6181 = vmatprep.subr.mxu0 0.0
        %6182 = vmatpush1.msra.mxu0 %v6066
        %6183 = vmatprep.subr.mxu0 0.0
        %6184 = vmatpush1.msra.mxu0 %v6071
        %6185 = vmatprep.subr.mxu0 0.0
        %6186 = vmatpush1.msra.mxu0 0.0
        %6187 = vmatprep.subr.mxu0 0.0
        %6188 = vmatpush1.msra.mxu0 0.0
        %6189 = vmatprep.subr.mxu0 0.0
        %6190 = vmatpush1.msra.mxu0 0.0
        %6191 = vmatprep.subr.mxu0 0.0
        %6192 = vmatpush1.msra.mxu0 0.0
        %6193 = vmatprep.subr.mxu0 0.0
        %6194 = vmatpush1.msra.mxu0 0.0
        %6195 = vmatprep.subr.mxu0 0.0
        %6196 = vmatpush1.msra.mxu0 0.0
        %6197 = vmatprep.subr.mxu0 0.0
        %6198 = vmatpush1.msra.mxu0 0.0
        %6199 = vmatprep.subr.mxu0 0.0
        %6200 = vmatpush1.msra.mxu0 0.0
        %6201 = vmatprep.subr.mxu0 0.0
        %6202 = vmatpush1.msra.mxu0 0.0
        %6203 = vmatprep.subr.mxu0 0.0
        %6204 = vmatpush1.msra.mxu0 0.0
        %6205 = vmatprep.subr.mxu0 0.0
        %6206 = vmatpush1.msra.mxu0 0.0
        %6207 = vmatprep.subr.mxu0 0.0
        %6208 = vmatpush1.msra.mxu0 0.0
        %6209 = vmatprep.subr.mxu0 0.0
        %6210 = vmatpush1.msra.mxu0 0.0
        %6211 = vmatprep.subr.mxu0 0.0
        %6212 = vmatpush1.msra.mxu0 0.0
        %6213 = vmatprep.subr.mxu0 0.0
        %6214 = vmatpush1.msra.mxu0 0.0
        %6215 = vmatprep.subr.mxu0 0.0
        %6216 = vmatpush1.msra.mxu0 0.0
        %6217 = vmatprep.mubr.f32.mxu0 0.0
        %6218 = vmatmul.mubr.f32.gmra.mrb[0].mxu0 %v6076
        %v6219 = vpop.f32.mrb[0].mxu0
        %v6220 = vadd.f32 %v6150, %v6219
        %v6221 = vpop.f32.mrb[0].mxu0
        %6222 = vdwg.mxu0
        %6223 = vst [vmem:[%s593] sm:$0xff] %v6220
        %s6224 = sand.u32 %s445, 1
        %s6225 = scalar_lea.sflag [#allocation3], %s6224
        %s6226 = sand.u32 %s445, 1
        %s6227 = smul.addr %s6226, 8
        %s6228 = scalar_lea.vmem [#allocation2], %s6227
        // Predicated region
        $region97: #{autoencoder_forward.1} parent=95 // pred_check
          %p6229 = pneg %p455
        $region98: #{autoencoder_forward.1} parent=95 // pred_check_branch
          %6231 = sbr.rel (%p6229) target = $region100
        $region99: #{autoencoder_forward.1} parent=95 // pred_region
          %s6233 = ssub.s32 128, 128
          %6234 = vsyncadd %s6225, %s6233
          %s6235 = smul.addr %s33, 128
          %s6236 = scalar_lea.hbm %s19, %s6235
          %s6238 = sshll.u32 %s6228, 4
          %s6239 = int_to_ptr.vmem [resolvable:$true] %s6238
          %6241 = dma.vmem_to_hbm [thread:$0]  %s6239, 128, %s6236, %s6225
        $region100: #{autoencoder_forward.1} parent=95 // pred_fallthru
          _
      $region96: #{autoencoder_forward.1} parent=5 // pred_fallthru
        _
      %p6242 = scmp.le.s32.totalorder 2, %s28
      // Predicated region
      $region101: #{autoencoder_forward.1} parent=5 // pred_check
        %p6243 = pneg %p6242
      $region102: #{autoencoder_forward.1} parent=5 // pred_check_branch
        %6245 = sbr.rel (%p6243) target = $region104
      $region103: #{autoencoder_forward.1} parent=5 // pred_region
        %s6246 = ssub.s32 %s28, 2
        // Predicated region
        $region105: #{autoencoder_forward.1} parent=103 // pred_check
          %p6247 = pneg %p461
        $region106: #{autoencoder_forward.1} parent=103 // pred_check_branch
          %6249 = sbr.rel (%p6247) target = $region108
        $region107: #{autoencoder_forward.1} parent=103 // pred_region
          %s6250 = sand.u32 %s446, 1
          %s6251 = scalar_lea.sflag [#allocation3], %s6250
          %s6252 = sand.u32 %s446, 1
          %s6253 = smul.addr %s6252, 8
          %s6254 = scalar_lea.vmem [#allocation2], %s6253
          %6255 = dma.done %s6251, 128
        $region108: #{autoencoder_forward.1} parent=103 // pred_fallthru
          _
      $region104: #{autoencoder_forward.1} parent=5 // pred_fallthru
        _
    $region6: #{autoencoder_forward.1} parent=1 // loop_footer
      %s32 = sadd.s32 1, %s28
    $region7: #{autoencoder_forward.1} parent=1 // loop_footer_branch
      %27 = sbr.rel target = $region3
    $region8: #{autoencoder_forward.1} parent=1 // loop_exit
      _
    %6256 = vsyncpa [#allocation3], 1
    %s6257 = scalar_lea.sflag [#allocation3], 1
    %6258 = vsyncpa %s6257, 1

</llo_original>
